<compile_context>
chip_gen: v7x
topology: tpu7x:2x2x1
jax: 0.10.0
libtpu: 0.0.40
codegen_flags: <defaults>
</compile_context>

<pallas_src>
import functools

import jax
import jax.numpy as jnp
from jax.experimental import pallas as pl
from jax.experimental.pallas import tpu as pltpu

H = 32          # hidden / fingerprint dim
FA = 16         # atom feature dim
FB = 8          # bond feature dim
T_MOL = 2       # Mol_AttentiveFP readout timesteps


# ----------------------------- small math helpers -----------------------------
def _leaky_relu(x, slope=0.01):
    return jnp.where(x >= 0, x, slope * x)


def _elu(x):
    return jnp.where(x > 0, x, jnp.exp(x) - 1.0)


def _masked_softmax(align, adj):
    # softmax over the last axis (neighbors), masked by adjacency
    logits = jnp.where(adj > 0, align, jnp.float32(-1e9))
    mx = jnp.max(logits, axis=-1, keepdims=True)
    ex = jnp.exp(logits - mx) * adj
    return ex / (jnp.sum(ex, axis=-1, keepdims=True) + 1e-9)


def _gru_fused(x, h, w, b):
    # torch.nn.GRUCell, weights pre-fused host-side into a (2H, 4H) matrix whose
    # output columns are [r_sum | z_sum | gi_n | gh_n].
    g = jnp.dot(jnp.concatenate([x, h], axis=1), w,
                preferred_element_type=jnp.float32) + b
    r = jax.nn.sigmoid(g[:, 0:H])
    z = jax.nn.sigmoid(g[:, H:2 * H])
    n = jnp.tanh(g[:, 2 * H:3 * H] + r * g[:, 3 * H:4 * H])
    return (1.0 - z) * n + z * h


# ----------------------------------- kernel -----------------------------------
def frag_layer_kernel(x_ref, e_ref, adj_ref, w_ref, out_ref, *, layout, bb, n):
    def W(name):
        off, r, c = layout[name]
        chunk = w_ref[pl.ds(off, r), :]          # full 128-lane rows (aligned load)
        return chunk if c == 128 else chunk[:, :c]

    m1 = bb * n
    m2 = bb * n * n

    x = x_ref[...]                               # [m1, FA]
    e = e_ref[...]                               # [m2, FB]
    adj3 = adj_ref[...].reshape(bb, n, n)        # [bb, n, n]

    # ---------------- Atom_AttentiveFP: initial embeddings ----------------
    h = _leaky_relu(jnp.dot(x, W('node_w'), preferred_element_type=jnp.float32)
                    + W('node_b'))                                        # [m1, H]
    e_emb = _leaky_relu(jnp.dot(e, W('edge_w'), preferred_element_type=jnp.float32)
                        + W('edge_b'))                                    # [m2, H]

    # ---------------- attentive layer 1 (edge-aware) ----------------
    en = jnp.dot(e_emb, W('nei_e'), preferred_element_type=jnp.float32)   # [m2, H]
    # fused [w_nei_h | w_al1_s] matmul; bias col H carries b_al1
    hp = jnp.dot(h, W('nh1_w'), preferred_element_type=jnp.float32) + W('nh1_b')
    hn = hp[:, :H]                                                        # [m1, H]
    self1 = hp[:, H:H + 1].reshape(bb, n, 1)                              # incl. b_al1
    fc4 = _leaky_relu(en.reshape(bb, n, n, H) + hn.reshape(bb, 1, n, H) + W('nei_b'))
    nei1 = jnp.sum(fc4 * W('al1_n_row'), axis=-1)                         # [bb, n, n]
    align1 = _leaky_relu(self1 + nei1)
    attw1 = _masked_softmax(align1, adj3)                                 # [bb, n, n]
    att1 = (jnp.dot(fc4.reshape(m2, H), W('att1_w'),
                    preferred_element_type=jnp.float32)
            + W('att1_b')).reshape(bb, n, n, H)
    ctx1 = _elu(jnp.sum(attw1[..., None] * att1, axis=2)).reshape(m1, H)
    h = _gru_fused(ctx1, h, W('gru1_w'), W('gru1_b'))

    # ---------------- attentive layer 2 (node-only) ----------------
    # fused [w_att2 | w_al2_s] matmul; bias = [b_att2 | b_al2]
    l2 = jnp.dot(h, W('l2_w'), preferred_element_type=jnp.float32) + W('l2_b')
    att2 = l2[:, :H].reshape(bb, n, H)                                    # h@w_att2+b_att2
    self2 = l2[:, H:H + 1].reshape(bb, n, 1)                              # h@w_al2_s+b_al2
    h3 = h.reshape(bb, n, H)
    nei2 = jnp.sum(h3 * W('al2_n_row'), axis=-1)[:, None, :]              # [bb, 1, n]
    align2 = _leaky_relu(self2 + nei2)
    attw2 = _masked_softmax(align2, adj3)                                 # [bb, n, n]
    ctx2 = _elu(jnp.sum(attw2[..., None] * att2[:, None, :, :], axis=2)).reshape(m1, H)
    h = _gru_fused(ctx2, h, W('gru2_w'), W('gru2_b'))

    # ---------------- Mol_AttentiveFP readout ----------------
    h3 = h.reshape(bb, n, H)
    h_mol = jnp.sum(h3, axis=1)                                           # [bb, H]
    act_nodes = jax.nn.relu(h)                                            # [m1, H]
    act_nodes3 = act_nodes.reshape(bb, n, H)
    m_attend = (jnp.dot(act_nodes, W('matt_w'), preferred_element_type=jnp.float32)
                + W('matt_b')).reshape(bb, n, H)
    nei_m = jnp.sum(act_nodes3 * W('mal_n_row'), axis=-1)                 # [bb, n]
    act_mol = jax.nn.relu(h_mol)
    for _ in range(T_MOL):
        self_m = jnp.sum(act_mol * W('mal_s_row'), axis=-1, keepdims=True)  # [bb, 1]
        al = _leaky_relu(self_m + nei_m + W('mal_b'))                     # [bb, n]
        mx = jnp.max(al, axis=-1, keepdims=True)
        ex = jnp.exp(al - mx)
        aw = ex / (jnp.sum(ex, axis=-1, keepdims=True) + 1e-9)            # [bb, n]
        mctx = _elu(jnp.sum(aw[:, :, None] * m_attend, axis=1))           # [bb, H]
        h_mol = _gru_fused(mctx, h_mol, W('grum_w'), W('grum_b'))
        act_mol = jax.nn.relu(h_mol)

    out_ref[...] = h_mol                                                  # [bb, H]


# ------------------------- parameters (torch-equivalent) -------------------------
_PARAM_SHAPES = [
    ('w_node', (FA, H)), ('b_node', (1, H)),
    ('w_edge', (FB, H)), ('b_edge', (1, H)),
    ('w_nei_h', (H, H)), ('w_nei_e', (H, H)), ('b_nei', (1, H)),
    ('w_al1_s', (H, 1)), ('w_al1_n', (H, 1)), ('b_al1', (1, 1)),
    ('w_att1', (H, H)), ('b_att1', (1, H)),
    ('w_ih1', (H, 3 * H)), ('w_hh1', (H, 3 * H)), ('b_ih1', (1, 3 * H)), ('b_hh1', (1, 3 * H)),
    ('w_al2_s', (H, 1)), ('w_al2_n', (H, 1)), ('b_al2', (1, 1)),
    ('w_att2', (H, H)), ('b_att2', (1, H)),
    ('w_ih2', (H, 3 * H)), ('w_hh2', (H, 3 * H)), ('b_ih2', (1, 3 * H)), ('b_hh2', (1, 3 * H)),
    ('w_mal_s', (H, 1)), ('w_mal_n', (H, 1)), ('b_mal', (1, 1)),
    ('w_matt', (H, H)), ('b_matt', (1, H)),
    ('w_ihm', (H, 3 * H)), ('w_hhm', (H, 3 * H)), ('b_ihm', (1, 3 * H)), ('b_hhm', (1, 3 * H)),
]


def make_params(key):
    keys = jax.random.split(key, len(_PARAM_SHAPES))
    return [0.1 * jax.random.normal(k, shape, jnp.float32)
            for k, (_, shape) in zip(keys, _PARAM_SHAPES)]


def _round_up(x, m):
    return ((x + m - 1) // m) * m


def _fuse_gru(w_ih, w_hh, b_ih, b_hh):
    # Build a (2H, 4H) matrix so that concat([x, h]) @ W = [r_sum | z_sum | gi_n | gh_n]
    w = jnp.zeros((2 * H, 4 * H), jnp.float32)
    w = w.at[:H, 0:2 * H].set(w_ih[:, 0:2 * H])
    w = w.at[H:, 0:2 * H].set(w_hh[:, 0:2 * H])
    w = w.at[:H, 2 * H:3 * H].set(w_ih[:, 2 * H:3 * H])
    w = w.at[H:, 3 * H:4 * H].set(w_hh[:, 2 * H:3 * H])
    b = jnp.concatenate([b_ih[:, :2 * H] + b_hh[:, :2 * H],
                         b_ih[:, 2 * H:3 * H], b_hh[:, 2 * H:3 * H]], axis=1)
    return w, b


def pack_params(params):
    """Fuse and pack all 34 weights/biases into one (rows, 128) f32 slab + static layout."""
    p = dict(zip([n for n, _ in _PARAM_SHAPES], params))
    g1w, g1b = _fuse_gru(p['w_ih1'], p['w_hh1'], p['b_ih1'], p['b_hh1'])
    g2w, g2b = _fuse_gru(p['w_ih2'], p['w_hh2'], p['b_ih2'], p['b_hh2'])
    gmw, gmb = _fuse_gru(p['w_ihm'], p['w_hhm'], p['b_ihm'], p['b_hhm'])
    zero_h = jnp.zeros((1, H), jnp.float32)

    fused = [
        ('node_w', p['w_node']), ('node_b', p['b_node']),
        ('edge_w', p['w_edge']), ('edge_b', p['b_edge']),
        ('nei_e', p['w_nei_e']), ('nei_b', p['b_nei']),
        ('nh1_w', jnp.concatenate([p['w_nei_h'], p['w_al1_s']], axis=1)),
        ('nh1_b', jnp.concatenate([zero_h, p['b_al1']], axis=1)),
        ('al1_n_row', p['w_al1_n'].T),
        ('att1_w', p['w_att1']), ('att1_b', p['b_att1']),
        ('gru1_w', g1w), ('gru1_b', g1b),
        ('l2_w', jnp.concatenate([p['w_att2'], p['w_al2_s']], axis=1)),
        ('l2_b', jnp.concatenate([p['b_att2'], p['b_al2']], axis=1)),
        ('al2_n_row', p['w_al2_n'].T),
        ('gru2_w', g2w), ('gru2_b', g2b),
        ('mal_s_row', p['w_mal_s'].T), ('mal_b', p['b_mal']),
        ('mal_n_row', p['w_mal_n'].T),
        ('matt_w', p['w_matt']), ('matt_b', p['b_matt']),
        ('grum_w', gmw), ('grum_b', gmb),
    ]

    layout, blocks, off = {}, [], 0
    for name, arr in fused:
        arr = jnp.asarray(arr, jnp.float32)
        r, c = arr.shape
        rp = _round_up(r, 8)
        blocks.append(jnp.zeros((rp, 128), jnp.float32).at[:r, :c].set(arr))
        layout[name] = (off, r, c)
        off += rp
    slab = jnp.concatenate(blocks, axis=0)
    return slab, layout


# ----------------------------------- wrapper -----------------------------------
def single_head_fragment_layer(frag_node, frag_edge, adj, slab, layout, *, block_graphs=8):
    # block_graphs must be a multiple of 8 (output block sublane alignment).
    B, N_, FA_ = frag_node.shape
    FB_ = frag_edge.shape[-1]
    BB = block_graphs
    Bp = _round_up(B, BB)
    if Bp != B:
        pad = Bp - B
        frag_node = jnp.concatenate(
            [frag_node, jnp.zeros((pad, N_, FA_), frag_node.dtype)], axis=0)
        frag_edge = jnp.concatenate(
            [frag_edge, jnp.zeros((pad, N_, N_, FB_), frag_edge.dtype)], axis=0)
        adj = jnp.concatenate([adj, jnp.zeros((pad, N_, N_), adj.dtype)], axis=0)

    # Pre-flatten in the wrapper so the kernel sees lane-dense 2-D tiles (no ref reshapes).
    x2 = frag_node.reshape(Bp * N_, FA_).astype(jnp.float32)
    e2 = frag_edge.reshape(Bp * N_ * N_, FB_).astype(jnp.float32)
    a2 = adj.reshape(Bp * N_, N_).astype(jnp.float32)
    R = slab.shape[0]
    m1 = BB * N_
    m2 = BB * N_ * N_

    kernel = functools.partial(frag_layer_kernel, layout=layout, bb=BB, n=N_)

    # advisory cost estimate (approximate matmul flops + transcendentals + HBM bytes)
    mm = (N_ * FA_ * H + N_ * N_ * FB_ * H + 2 * N_ * N_ * H * H
          + 2 * N_ * H * (H + 1) + 2 * N_ * (2 * H) * (4 * H)
          + N_ * H * H + T_MOL * (2 * H) * (4 * H))
    cost = pl.CostEstimate(
        flops=2 * Bp * mm,
        transcendentals=Bp * (2 * N_ * N_ + T_MOL * N_ + (2 * N_ + T_MOL) * 4 * H),
        bytes_accessed=4 * (x2.size + e2.size + a2.size + Bp * H) + 4 * R * 128,
    )

    out = pl.pallas_call(
        kernel,
        out_shape=jax.ShapeDtypeStruct((Bp, H), jnp.float32),
        grid=(Bp // BB,),
        in_specs=[
            pl.BlockSpec((m1, FA_), lambda g: (g, 0)),
            pl.BlockSpec((m2, FB_), lambda g: (g, 0)),
            pl.BlockSpec((m1, N_), lambda g: (g, 0)),
            pl.BlockSpec((R, 128), lambda g: (0, 0)),   # weight slab, resident across steps
        ],
        out_specs=pl.BlockSpec((BB, H), lambda g: (g, 0)),
        compiler_params=pltpu.CompilerParams(
            dimension_semantics=("parallel",),
            vmem_limit_bytes=32 * 1024 * 1024,
        ),
        cost_estimate=cost,
    )(x2, e2, a2, slab)
    return out[:B]


if __name__ == "__main__":
    B, N = 16, 8     # 16 graphs of 8 atoms -> 2 grid steps of 8 graphs (even for v7x 2 TCs)
    key = jax.random.PRNGKey(0)
    k_node, k_edge = jax.random.split(key)

    frag_node = jax.random.normal(k_node, (B, N, FA), jnp.float32)
    frag_edge = jax.random.normal(k_edge, (B, N, N, FB), jnp.float32)

    # deterministic ring graph (symmetric, no self loops), shared across the batch
    idx = jnp.arange(N)
    ring = jnp.zeros((N, N), jnp.float32).at[idx, (idx + 1) % N].set(1.0)
    adj = jnp.broadcast_to(ring + ring.T, (B, N, N)).astype(jnp.float32)

    params = make_params(jax.random.PRNGKey(42))
    slab, layout = pack_params(params)

    fwd = jax.jit(functools.partial(single_head_fragment_layer,
                                    layout=layout, block_graphs=8))
    out = fwd(frag_node, frag_edge, adj, slab)
    out = jax.block_until_ready(out)
    assert out.shape == (B, H) and out.dtype == jnp.float32
    print("KERNEL_OK")
</pallas_src>

<mosaic_0001>
module attributes {stable_mosaic.version = 11 : i64} {
  func.func @frag_layer_kernel(%arg0: i32, %arg1: memref<64x16xf32, #tpu.memory_space<vmem>>, %arg2: memref<512x8xf32, #tpu.memory_space<vmem>>, %arg3: memref<64x8xf32, #tpu.memory_space<vmem>>, %arg4: memref<496x128xf32, #tpu.memory_space<vmem>>, %arg5: memref<8x32xf32, #tpu.memory_space<vmem>>) attributes {dimension_semantics = [#tpu.dimension_semantics<parallel>], iteration_bounds = array<i64: 2>, scalar_prefetch = 0 : i64, scratch_operands = 0 : i64, tpu.core_type = #tpu.core_type<tc>, window_params = [{transform_indices = @transform_0, window_bounds = array<i64: 64, 16>}, {transform_indices = @transform_1, window_bounds = array<i64: 512, 8>}, {transform_indices = @transform_2, window_bounds = array<i64: 64, 8>}, {pipeline_mode = #tpu.pipeline_mode<synchronous>, transform_indices = @transform_3, window_bounds = array<i64: 496, 128>}, {transform_indices = @transform_4, window_bounds = array<i64: 8, 32>}]} {
    %c0 = arith.constant 0 : index
    %c0_0 = arith.constant 0 : index
    %0 = vector.load %arg1[%c0, %c0_0] : memref<64x16xf32, #tpu.memory_space<vmem>>, vector<64x16xf32>
    %c0_1 = arith.constant 0 : index
    %c0_2 = arith.constant 0 : index
    %1 = vector.load %arg2[%c0_1, %c0_2] : memref<512x8xf32, #tpu.memory_space<vmem>>, vector<512x8xf32>
    %c0_3 = arith.constant 0 : index
    %c0_4 = arith.constant 0 : index
    %2 = vector.load %arg3[%c0_3, %c0_4] : memref<64x8xf32, #tpu.memory_space<vmem>>, vector<64x8xf32>
    %3 = vector.shape_cast %2 : vector<64x8xf32> to vector<8x8x8xf32>
    %c0_5 = arith.constant 0 : index
    %c0_6 = arith.constant 0 : index
    %4 = vector.load %arg4[%c0_5, %c0_6] : memref<496x128xf32, #tpu.memory_space<vmem>>, vector<16x128xf32>
    %5 = vector.extract_strided_slice %4 {offsets = [0, 0], sizes = [16, 32], strides = [1, 1]} : vector<16x128xf32> to vector<16x32xf32>
    %cst = arith.constant dense<0.000000e+00> : vector<64x32xf32>
    %6 = tpu.matmul %0, %5, %cst {dimension_numbers = #tpu.dot_dimension_numbers<[1], [0], [0], [1], [0, 0, 1, 1], [], []>} : vector<64x16xf32>, vector<16x32xf32>, vector<64x32xf32> -> vector<64x32xf32>
    %c16 = arith.constant 16 : index
    %c0_7 = arith.constant 0 : index
    %7 = vector.load %arg4[%c16, %c0_7] : memref<496x128xf32, #tpu.memory_space<vmem>>, vector<1x128xf32>
    %8 = vector.extract_strided_slice %7 {offsets = [0, 0], sizes = [1, 32], strides = [1, 1]} : vector<1x128xf32> to vector<1x32xf32>
    %9 = vector.broadcast %8 : vector<1x32xf32> to vector<64x32xf32>
    %10 = arith.addf %6, %9 : vector<64x32xf32>
    %cst_8 = arith.constant 0.000000e+00 : f32
    %11 = vector.broadcast %cst_8 : f32 to vector<64x32xf32>
    %12 = arith.cmpf oge, %10, %11 : vector<64x32xf32>
    %cst_9 = arith.constant 0.00999999977 : f32
    %13 = vector.broadcast %cst_9 : f32 to vector<64x32xf32>
    %14 = arith.mulf %13, %10 : vector<64x32xf32>
    %15 = arith.select %12, %10, %14 : vector<64x32xi1>, vector<64x32xf32>
    %c24 = arith.constant 24 : index
    %c0_10 = arith.constant 0 : index
    %16 = vector.load %arg4[%c24, %c0_10] : memref<496x128xf32, #tpu.memory_space<vmem>>, vector<8x128xf32>
    %17 = vector.extract_strided_slice %16 {offsets = [0, 0], sizes = [8, 32], strides = [1, 1]} : vector<8x128xf32> to vector<8x32xf32>
    %cst_11 = arith.constant dense<0.000000e+00> : vector<512x32xf32>
    %18 = tpu.matmul %1, %17, %cst_11 {dimension_numbers = #tpu.dot_dimension_numbers<[1], [0], [0], [1], [0, 0, 1, 1], [], []>} : vector<512x8xf32>, vector<8x32xf32>, vector<512x32xf32> -> vector<512x32xf32>
    %c32 = arith.constant 32 : index
    %c0_12 = arith.constant 0 : index
    %19 = vector.load %arg4[%c32, %c0_12] : memref<496x128xf32, #tpu.memory_space<vmem>>, vector<1x128xf32>
    %20 = vector.extract_strided_slice %19 {offsets = [0, 0], sizes = [1, 32], strides = [1, 1]} : vector<1x128xf32> to vector<1x32xf32>
    %21 = vector.broadcast %20 : vector<1x32xf32> to vector<512x32xf32>
    %22 = arith.addf %18, %21 : vector<512x32xf32>
    %cst_13 = arith.constant 0.000000e+00 : f32
    %23 = vector.broadcast %cst_13 : f32 to vector<512x32xf32>
    %24 = arith.cmpf oge, %22, %23 : vector<512x32xf32>
    %cst_14 = arith.constant 0.00999999977 : f32
    %25 = vector.broadcast %cst_14 : f32 to vector<512x32xf32>
    %26 = arith.mulf %25, %22 : vector<512x32xf32>
    %27 = arith.select %24, %22, %26 : vector<512x32xi1>, vector<512x32xf32>
    %c40 = arith.constant 40 : index
    %c0_15 = arith.constant 0 : index
    %28 = vector.load %arg4[%c40, %c0_15] : memref<496x128xf32, #tpu.memory_space<vmem>>, vector<32x128xf32>
    %29 = vector.extract_strided_slice %28 {offsets = [0, 0], sizes = [32, 32], strides = [1, 1]} : vector<32x128xf32> to vector<32x32xf32>
    %cst_16 = arith.constant dense<0.000000e+00> : vector<512x32xf32>
    %30 = tpu.matmul %27, %29, %cst_16 {dimension_numbers = #tpu.dot_dimension_numbers<[1], [0], [0], [1], [0, 0, 1, 1], [], []>} : vector<512x32xf32>, vector<32x32xf32>, vector<512x32xf32> -> vector<512x32xf32>
    %c80 = arith.constant 80 : index
    %c0_17 = arith.constant 0 : index
    %31 = vector.load %arg4[%c80, %c0_17] : memref<496x128xf32, #tpu.memory_space<vmem>>, vector<32x128xf32>
    %32 = vector.extract_strided_slice %31 {offsets = [0, 0], sizes = [32, 33], strides = [1, 1]} : vector<32x128xf32> to vector<32x33xf32>
    %cst_18 = arith.constant dense<0.000000e+00> : vector<64x33xf32>
    %33 = tpu.matmul %15, %32, %cst_18 {dimension_numbers = #tpu.dot_dimension_numbers<[1], [0], [0], [1], [0, 0, 1, 1], [], []>} : vector<64x32xf32>, vector<32x33xf32>, vector<64x33xf32> -> vector<64x33xf32>
    %c112 = arith.constant 112 : index
    %c0_19 = arith.constant 0 : index
    %34 = vector.load %arg4[%c112, %c0_19] : memref<496x128xf32, #tpu.memory_space<vmem>>, vector<1x128xf32>
    %35 = vector.extract_strided_slice %34 {offsets = [0, 0], sizes = [1, 33], strides = [1, 1]} : vector<1x128xf32> to vector<1x33xf32>
    %36 = vector.broadcast %35 : vector<1x33xf32> to vector<64x33xf32>
    %37 = arith.addf %33, %36 : vector<64x33xf32>
    %38 = vector.extract_strided_slice %37 {offsets = [0, 0], sizes = [64, 32], strides = [1, 1]} : vector<64x33xf32> to vector<64x32xf32>
    %39 = vector.extract_strided_slice %37 {offsets = [0, 32], sizes = [64, 1], strides = [1, 1]} : vector<64x33xf32> to vector<64x1xf32>
    %40 = vector.shape_cast %39 : vector<64x1xf32> to vector<8x8x1xf32>
    %41 = vector.shape_cast %30 : vector<512x32xf32> to vector<8x8x8x32xf32>
    %42 = vector.shape_cast %38 : vector<64x32xf32> to vector<8x1x8x32xf32>
    %43 = vector.broadcast %42 : vector<8x1x8x32xf32> to vector<8x8x8x32xf32>
    %44 = arith.addf %41, %43 : vector<8x8x8x32xf32>
    %c72 = arith.constant 72 : index
    %c0_20 = arith.constant 0 : index
    %45 = vector.load %arg4[%c72, %c0_20] : memref<496x128xf32, #tpu.memory_space<vmem>>, vector<1x128xf32>
    %46 = vector.extract_strided_slice %45 {offsets = [0, 0], sizes = [1, 32], strides = [1, 1]} : vector<1x128xf32> to vector<1x32xf32>
    %47 = vector.shape_cast %46 : vector<1x32xf32> to vector<1x1x1x32xf32>
    %48 = vector.broadcast %47 : vector<1x1x1x32xf32> to vector<8x8x8x32xf32>
    %49 = arith.addf %44, %48 : vector<8x8x8x32xf32>
    %cst_21 = arith.constant 0.000000e+00 : f32
    %50 = vector.broadcast %cst_21 : f32 to vector<8x8x8x32xf32>
    %51 = arith.cmpf oge, %49, %50 : vector<8x8x8x32xf32>
    %cst_22 = arith.constant 0.00999999977 : f32
    %52 = vector.broadcast %cst_22 : f32 to vector<8x8x8x32xf32>
    %53 = arith.mulf %52, %49 : vector<8x8x8x32xf32>
    %54 = arith.select %51, %49, %53 : vector<8x8x8x32xi1>, vector<8x8x8x32xf32>
    %c120 = arith.constant 120 : index
    %c0_23 = arith.constant 0 : index
    %55 = vector.load %arg4[%c120, %c0_23] : memref<496x128xf32, #tpu.memory_space<vmem>>, vector<1x128xf32>
    %56 = vector.extract_strided_slice %55 {offsets = [0, 0], sizes = [1, 32], strides = [1, 1]} : vector<1x128xf32> to vector<1x32xf32>
    %57 = vector.shape_cast %56 : vector<1x32xf32> to vector<1x1x1x32xf32>
    %58 = vector.broadcast %57 : vector<1x1x1x32xf32> to vector<8x8x8x32xf32>
    %59 = arith.mulf %54, %58 : vector<8x8x8x32xf32>
    %cst_24 = arith.constant dense<0.000000e+00> : vector<8x8x8xf32>
    %60 = vector.multi_reduction <add>, %59, %cst_24 [3] : vector<8x8x8x32xf32> to vector<8x8x8xf32>
    %61 = vector.broadcast %40 : vector<8x8x1xf32> to vector<8x8x8xf32>
    %62 = arith.addf %61, %60 : vector<8x8x8xf32>
    %cst_25 = arith.constant 0.000000e+00 : f32
    %63 = vector.broadcast %cst_25 : f32 to vector<8x8x8xf32>
    %64 = arith.cmpf oge, %62, %63 : vector<8x8x8xf32>
    %cst_26 = arith.constant 0.00999999977 : f32
    %65 = vector.broadcast %cst_26 : f32 to vector<8x8x8xf32>
    %66 = arith.mulf %65, %62 : vector<8x8x8xf32>
    %67 = arith.select %64, %62, %66 : vector<8x8x8xi1>, vector<8x8x8xf32>
    %cst_27 = arith.constant 0.000000e+00 : f32
    %68 = vector.broadcast %cst_27 : f32 to vector<8x8x8xf32>
    %69 = arith.cmpf ogt, %3, %68 : vector<8x8x8xf32>
    %cst_28 = arith.constant -1.000000e+09 : f32
    %70 = vector.broadcast %cst_28 : f32 to vector<8x8x8xf32>
    %71 = arith.select %69, %67, %70 : vector<8x8x8xi1>, vector<8x8x8xf32>
    %cst_29 = arith.constant dense<0xFF800000> : vector<8x8xf32>
    %72 = vector.multi_reduction <maximumf>, %71, %cst_29 [2] : vector<8x8x8xf32> to vector<8x8xf32>
    %73 = vector.shape_cast %72 : vector<8x8xf32> to vector<8x8x1xf32>
    %74 = vector.broadcast %73 : vector<8x8x1xf32> to vector<8x8x8xf32>
    %75 = arith.subf %71, %74 : vector<8x8x8xf32>
    %76 = math.exp %75 : vector<8x8x8xf32>
    %77 = arith.mulf %76, %3 : vector<8x8x8xf32>
    %cst_30 = arith.constant dense<0.000000e+00> : vector<8x8xf32>
    %78 = vector.multi_reduction <add>, %77, %cst_30 [2] : vector<8x8x8xf32> to vector<8x8xf32>
    %79 = vector.shape_cast %78 : vector<8x8xf32> to vector<8x8x1xf32>
    %cst_31 = arith.constant 9.99999971E-10 : f32
    %80 = vector.broadcast %cst_31 : f32 to vector<8x8x1xf32>
    %81 = arith.addf %79, %80 : vector<8x8x1xf32>
    %82 = vector.broadcast %81 : vector<8x8x1xf32> to vector<8x8x8xf32>
    %83 = arith.divf %77, %82 : vector<8x8x8xf32>
    %84 = vector.shape_cast %54 : vector<8x8x8x32xf32> to vector<512x32xf32>
    %c128 = arith.constant 128 : index
    %c0_32 = arith.constant 0 : index
    %85 = vector.load %arg4[%c128, %c0_32] : memref<496x128xf32, #tpu.memory_space<vmem>>, vector<32x128xf32>
    %86 = vector.extract_strided_slice %85 {offsets = [0, 0], sizes = [32, 32], strides = [1, 1]} : vector<32x128xf32> to vector<32x32xf32>
    %cst_33 = arith.constant dense<0.000000e+00> : vector<512x32xf32>
    %87 = tpu.matmul %84, %86, %cst_33 {dimension_numbers = #tpu.dot_dimension_numbers<[1], [0], [0], [1], [0, 0, 1, 1], [], []>} : vector<512x32xf32>, vector<32x32xf32>, vector<512x32xf32> -> vector<512x32xf32>
    %c160 = arith.constant 160 : index
    %c0_34 = arith.constant 0 : index
    %88 = vector.load %arg4[%c160, %c0_34] : memref<496x128xf32, #tpu.memory_space<vmem>>, vector<1x128xf32>
    %89 = vector.extract_strided_slice %88 {offsets = [0, 0], sizes = [1, 32], strides = [1, 1]} : vector<1x128xf32> to vector<1x32xf32>
    %90 = vector.broadcast %89 : vector<1x32xf32> to vector<512x32xf32>
    %91 = arith.addf %87, %90 : vector<512x32xf32>
    %92 = vector.shape_cast %91 : vector<512x32xf32> to vector<8x8x8x32xf32>
    %93 = vector.shape_cast %83 : vector<8x8x8xf32> to vector<8x8x8x1xf32>
    %94 = vector.broadcast %93 : vector<8x8x8x1xf32> to vector<8x8x8x32xf32>
    %95 = arith.mulf %94, %92 : vector<8x8x8x32xf32>
    %cst_35 = arith.constant dense<0.000000e+00> : vector<8x8x32xf32>
    %96 = vector.multi_reduction <add>, %95, %cst_35 [2] : vector<8x8x8x32xf32> to vector<8x8x32xf32>
    %cst_36 = arith.constant 0.000000e+00 : f32
    %97 = vector.broadcast %cst_36 : f32 to vector<8x8x32xf32>
    %98 = arith.cmpf ogt, %96, %97 : vector<8x8x32xf32>
    %99 = math.exp %96 : vector<8x8x32xf32>
    %cst_37 = arith.constant 1.000000e+00 : f32
    %100 = vector.broadcast %cst_37 : f32 to vector<8x8x32xf32>
    %101 = arith.subf %99, %100 : vector<8x8x32xf32>
    %102 = arith.select %98, %96, %101 : vector<8x8x32xi1>, vector<8x8x32xf32>
    %103 = vector.shape_cast %102 : vector<8x8x32xf32> to vector<64x32xf32>
    %c168 = arith.constant 168 : index
    %c0_38 = arith.constant 0 : index
    %104 = vector.load %arg4[%c168, %c0_38] : memref<496x128xf32, #tpu.memory_space<vmem>>, vector<64x128xf32>
    %c232 = arith.constant 232 : index
    %c0_39 = arith.constant 0 : index
    %105 = vector.load %arg4[%c232, %c0_39] : memref<496x128xf32, #tpu.memory_space<vmem>>, vector<1x128xf32>
    %106 = tpu.concatenate %103, %15 in 1 : vector<64x32xf32>, vector<64x32xf32> -> vector<64x64xf32>
    %cst_40 = arith.constant dense<0.000000e+00> : vector<64x128xf32>
    %107 = tpu.matmul %106, %104, %cst_40 {dimension_numbers = #tpu.dot_dimension_numbers<[1], [0], [0], [1], [0, 0, 1, 1], [], []>} : vector<64x64xf32>, vector<64x128xf32>, vector<64x128xf32> -> vector<64x128xf32>
    %108 = vector.broadcast %105 : vector<1x128xf32> to vector<64x128xf32>
    %109 = arith.addf %107, %108 : vector<64x128xf32>
    %110 = vector.extract_strided_slice %109 {offsets = [0, 0], sizes = [64, 32], strides = [1, 1]} : vector<64x128xf32> to vector<64x32xf32>
    %111 = arith.negf %110 : vector<64x32xf32>
    %112 = math.exp %111 : vector<64x32xf32>
    %cst_41 = arith.constant 1.000000e+00 : f32
    %113 = vector.broadcast %cst_41 : f32 to vector<64x32xf32>
    %114 = arith.addf %113, %112 : vector<64x32xf32>
    %115 = arith.divf %113, %114 : vector<64x32xf32>
    %116 = vector.extract_strided_slice %109 {offsets = [0, 32], sizes = [64, 32], strides = [1, 1]} : vector<64x128xf32> to vector<64x32xf32>
    %117 = arith.negf %116 : vector<64x32xf32>
    %118 = math.exp %117 : vector<64x32xf32>
    %cst_42 = arith.constant 1.000000e+00 : f32
    %119 = vector.broadcast %cst_42 : f32 to vector<64x32xf32>
    %120 = arith.addf %119, %118 : vector<64x32xf32>
    %121 = arith.divf %119, %120 : vector<64x32xf32>
    %122 = vector.extract_strided_slice %109 {offsets = [0, 64], sizes = [64, 32], strides = [1, 1]} : vector<64x128xf32> to vector<64x32xf32>
    %123 = vector.extract_strided_slice %109 {offsets = [0, 96], sizes = [64, 32], strides = [1, 1]} : vector<64x128xf32> to vector<64x32xf32>
    %124 = arith.mulf %115, %123 : vector<64x32xf32>
    %125 = arith.addf %122, %124 : vector<64x32xf32>
    %126 = math.tanh %125 : vector<64x32xf32>
    %cst_43 = arith.constant 1.000000e+00 : f32
    %127 = vector.broadcast %cst_43 : f32 to vector<64x32xf32>
    %128 = arith.subf %127, %121 : vector<64x32xf32>
    %129 = arith.mulf %128, %126 : vector<64x32xf32>
    %130 = arith.mulf %121, %15 : vector<64x32xf32>
    %131 = arith.addf %129, %130 : vector<64x32xf32>
    %c240 = arith.constant 240 : index
    %c0_44 = arith.constant 0 : index
    %132 = vector.load %arg4[%c240, %c0_44] : memref<496x128xf32, #tpu.memory_space<vmem>>, vector<32x128xf32>
    %133 = vector.extract_strided_slice %132 {offsets = [0, 0], sizes = [32, 33], strides = [1, 1]} : vector<32x128xf32> to vector<32x33xf32>
    %cst_45 = arith.constant dense<0.000000e+00> : vector<64x33xf32>
    %134 = tpu.matmul %131, %133, %cst_45 {dimension_numbers = #tpu.dot_dimension_numbers<[1], [0], [0], [1], [0, 0, 1, 1], [], []>} : vector<64x32xf32>, vector<32x33xf32>, vector<64x33xf32> -> vector<64x33xf32>
    %c272 = arith.constant 272 : index
    %c0_46 = arith.constant 0 : index
    %135 = vector.load %arg4[%c272, %c0_46] : memref<496x128xf32, #tpu.memory_space<vmem>>, vector<1x128xf32>
    %136 = vector.extract_strided_slice %135 {offsets = [0, 0], sizes = [1, 33], strides = [1, 1]} : vector<1x128xf32> to vector<1x33xf32>
    %137 = vector.broadcast %136 : vector<1x33xf32> to vector<64x33xf32>
    %138 = arith.addf %134, %137 : vector<64x33xf32>
    %139 = vector.extract_strided_slice %138 {offsets = [0, 0], sizes = [64, 32], strides = [1, 1]} : vector<64x33xf32> to vector<64x32xf32>
    %140 = vector.shape_cast %139 : vector<64x32xf32> to vector<8x8x32xf32>
    %141 = vector.extract_strided_slice %138 {offsets = [0, 32], sizes = [64, 1], strides = [1, 1]} : vector<64x33xf32> to vector<64x1xf32>
    %142 = vector.shape_cast %141 : vector<64x1xf32> to vector<8x8x1xf32>
    %143 = vector.shape_cast %131 : vector<64x32xf32> to vector<8x8x32xf32>
    %c280 = arith.constant 280 : index
    %c0_47 = arith.constant 0 : index
    %144 = vector.load %arg4[%c280, %c0_47] : memref<496x128xf32, #tpu.memory_space<vmem>>, vector<1x128xf32>
    %145 = vector.extract_strided_slice %144 {offsets = [0, 0], sizes = [1, 32], strides = [1, 1]} : vector<1x128xf32> to vector<1x32xf32>
    %146 = vector.shape_cast %145 : vector<1x32xf32> to vector<1x1x32xf32>
    %147 = vector.broadcast %146 : vector<1x1x32xf32> to vector<8x8x32xf32>
    %148 = arith.mulf %143, %147 : vector<8x8x32xf32>
    %cst_48 = arith.constant dense<0.000000e+00> : vector<8x8xf32>
    %149 = vector.multi_reduction <add>, %148, %cst_48 [2] : vector<8x8x32xf32> to vector<8x8xf32>
    %150 = vector.shape_cast %149 : vector<8x8xf32> to vector<8x1x8xf32>
    %151 = vector.broadcast %142 : vector<8x8x1xf32> to vector<8x8x8xf32>
    %152 = vector.broadcast %150 : vector<8x1x8xf32> to vector<8x8x8xf32>
    %153 = arith.addf %151, %152 : vector<8x8x8xf32>
    %cst_49 = arith.constant 0.000000e+00 : f32
    %154 = vector.broadcast %cst_49 : f32 to vector<8x8x8xf32>
    %155 = arith.cmpf oge, %153, %154 : vector<8x8x8xf32>
    %cst_50 = arith.constant 0.00999999977 : f32
    %156 = vector.broadcast %cst_50 : f32 to vector<8x8x8xf32>
    %157 = arith.mulf %156, %153 : vector<8x8x8xf32>
    %158 = arith.select %155, %153, %157 : vector<8x8x8xi1>, vector<8x8x8xf32>
    %cst_51 = arith.constant 0.000000e+00 : f32
    %159 = vector.broadcast %cst_51 : f32 to vector<8x8x8xf32>
    %160 = arith.cmpf ogt, %3, %159 : vector<8x8x8xf32>
    %cst_52 = arith.constant -1.000000e+09 : f32
    %161 = vector.broadcast %cst_52 : f32 to vector<8x8x8xf32>
    %162 = arith.select %160, %158, %161 : vector<8x8x8xi1>, vector<8x8x8xf32>
    %cst_53 = arith.constant dense<0xFF800000> : vector<8x8xf32>
    %163 = vector.multi_reduction <maximumf>, %162, %cst_53 [2] : vector<8x8x8xf32> to vector<8x8xf32>
    %164 = vector.shape_cast %163 : vector<8x8xf32> to vector<8x8x1xf32>
    %165 = vector.broadcast %164 : vector<8x8x1xf32> to vector<8x8x8xf32>
    %166 = arith.subf %162, %165 : vector<8x8x8xf32>
    %167 = math.exp %166 : vector<8x8x8xf32>
    %168 = arith.mulf %167, %3 : vector<8x8x8xf32>
    %cst_54 = arith.constant dense<0.000000e+00> : vector<8x8xf32>
    %169 = vector.multi_reduction <add>, %168, %cst_54 [2] : vector<8x8x8xf32> to vector<8x8xf32>
    %170 = vector.shape_cast %169 : vector<8x8xf32> to vector<8x8x1xf32>
    %cst_55 = arith.constant 9.99999971E-10 : f32
    %171 = vector.broadcast %cst_55 : f32 to vector<8x8x1xf32>
    %172 = arith.addf %170, %171 : vector<8x8x1xf32>
    %173 = vector.broadcast %172 : vector<8x8x1xf32> to vector<8x8x8xf32>
    %174 = arith.divf %168, %173 : vector<8x8x8xf32>
    %175 = vector.shape_cast %174 : vector<8x8x8xf32> to vector<8x8x8x1xf32>
    %176 = vector.shape_cast %140 : vector<8x8x32xf32> to vector<8x1x8x32xf32>
    %177 = vector.broadcast %175 : vector<8x8x8x1xf32> to vector<8x8x8x32xf32>
    %178 = vector.broadcast %176 : vector<8x1x8x32xf32> to vector<8x8x8x32xf32>
    %179 = arith.mulf %177, %178 : vector<8x8x8x32xf32>
    %cst_56 = arith.constant dense<0.000000e+00> : vector<8x8x32xf32>
    %180 = vector.multi_reduction <add>, %179, %cst_56 [2] : vector<8x8x8x32xf32> to vector<8x8x32xf32>
    %cst_57 = arith.constant 0.000000e+00 : f32
    %181 = vector.broadcast %cst_57 : f32 to vector<8x8x32xf32>
    %182 = arith.cmpf ogt, %180, %181 : vector<8x8x32xf32>
    %183 = math.exp %180 : vector<8x8x32xf32>
    %cst_58 = arith.constant 1.000000e+00 : f32
    %184 = vector.broadcast %cst_58 : f32 to vector<8x8x32xf32>
    %185 = arith.subf %183, %184 : vector<8x8x32xf32>
    %186 = arith.select %182, %180, %185 : vector<8x8x32xi1>, vector<8x8x32xf32>
    %187 = vector.shape_cast %186 : vector<8x8x32xf32> to vector<64x32xf32>
    %c288 = arith.constant 288 : index
    %c0_59 = arith.constant 0 : index
    %188 = vector.load %arg4[%c288, %c0_59] : memref<496x128xf32, #tpu.memory_space<vmem>>, vector<64x128xf32>
    %c352 = arith.constant 352 : index
    %c0_60 = arith.constant 0 : index
    %189 = vector.load %arg4[%c352, %c0_60] : memref<496x128xf32, #tpu.memory_space<vmem>>, vector<1x128xf32>
    %190 = tpu.concatenate %187, %131 in 1 : vector<64x32xf32>, vector<64x32xf32> -> vector<64x64xf32>
    %cst_61 = arith.constant dense<0.000000e+00> : vector<64x128xf32>
    %191 = tpu.matmul %190, %188, %cst_61 {dimension_numbers = #tpu.dot_dimension_numbers<[1], [0], [0], [1], [0, 0, 1, 1], [], []>} : vector<64x64xf32>, vector<64x128xf32>, vector<64x128xf32> -> vector<64x128xf32>
    %192 = vector.broadcast %189 : vector<1x128xf32> to vector<64x128xf32>
    %193 = arith.addf %191, %192 : vector<64x128xf32>
    %194 = vector.extract_strided_slice %193 {offsets = [0, 0], sizes = [64, 32], strides = [1, 1]} : vector<64x128xf32> to vector<64x32xf32>
    %195 = arith.negf %194 : vector<64x32xf32>
    %196 = math.exp %195 : vector<64x32xf32>
    %cst_62 = arith.constant 1.000000e+00 : f32
    %197 = vector.broadcast %cst_62 : f32 to vector<64x32xf32>
    %198 = arith.addf %197, %196 : vector<64x32xf32>
    %199 = arith.divf %197, %198 : vector<64x32xf32>
    %200 = vector.extract_strided_slice %193 {offsets = [0, 32], sizes = [64, 32], strides = [1, 1]} : vector<64x128xf32> to vector<64x32xf32>
    %201 = arith.negf %200 : vector<64x32xf32>
    %202 = math.exp %201 : vector<64x32xf32>
    %cst_63 = arith.constant 1.000000e+00 : f32
    %203 = vector.broadcast %cst_63 : f32 to vector<64x32xf32>
    %204 = arith.addf %203, %202 : vector<64x32xf32>
    %205 = arith.divf %203, %204 : vector<64x32xf32>
    %206 = vector.extract_strided_slice %193 {offsets = [0, 64], sizes = [64, 32], strides = [1, 1]} : vector<64x128xf32> to vector<64x32xf32>
    %207 = vector.extract_strided_slice %193 {offsets = [0, 96], sizes = [64, 32], strides = [1, 1]} : vector<64x128xf32> to vector<64x32xf32>
    %208 = arith.mulf %199, %207 : vector<64x32xf32>
    %209 = arith.addf %206, %208 : vector<64x32xf32>
    %210 = math.tanh %209 : vector<64x32xf32>
    %cst_64 = arith.constant 1.000000e+00 : f32
    %211 = vector.broadcast %cst_64 : f32 to vector<64x32xf32>
    %212 = arith.subf %211, %205 : vector<64x32xf32>
    %213 = arith.mulf %212, %210 : vector<64x32xf32>
    %214 = arith.mulf %205, %131 : vector<64x32xf32>
    %215 = arith.addf %213, %214 : vector<64x32xf32>
    %216 = vector.shape_cast %215 : vector<64x32xf32> to vector<8x8x32xf32>
    %cst_65 = arith.constant dense<0.000000e+00> : vector<8x32xf32>
    %217 = vector.multi_reduction <add>, %216, %cst_65 [1] : vector<8x8x32xf32> to vector<8x32xf32>
    %cst_66 = arith.constant 0.000000e+00 : f32
    %218 = vector.broadcast %cst_66 : f32 to vector<64x32xf32>
    %219 = arith.maximumf %215, %218 : vector<64x32xf32>
    %220 = vector.shape_cast %219 : vector<64x32xf32> to vector<8x8x32xf32>
    %c384 = arith.constant 384 : index
    %c0_67 = arith.constant 0 : index
    %221 = vector.load %arg4[%c384, %c0_67] : memref<496x128xf32, #tpu.memory_space<vmem>>, vector<32x128xf32>
    %222 = vector.extract_strided_slice %221 {offsets = [0, 0], sizes = [32, 32], strides = [1, 1]} : vector<32x128xf32> to vector<32x32xf32>
    %cst_68 = arith.constant dense<0.000000e+00> : vector<64x32xf32>
    %223 = tpu.matmul %219, %222, %cst_68 {dimension_numbers = #tpu.dot_dimension_numbers<[1], [0], [0], [1], [0, 0, 1, 1], [], []>} : vector<64x32xf32>, vector<32x32xf32>, vector<64x32xf32> -> vector<64x32xf32>
    %c416 = arith.constant 416 : index
    %c0_69 = arith.constant 0 : index
    %224 = vector.load %arg4[%c416, %c0_69] : memref<496x128xf32, #tpu.memory_space<vmem>>, vector<1x128xf32>
    %225 = vector.extract_strided_slice %224 {offsets = [0, 0], sizes = [1, 32], strides = [1, 1]} : vector<1x128xf32> to vector<1x32xf32>
    %226 = vector.broadcast %225 : vector<1x32xf32> to vector<64x32xf32>
    %227 = arith.addf %223, %226 : vector<64x32xf32>
    %228 = vector.shape_cast %227 : vector<64x32xf32> to vector<8x8x32xf32>
    %c376 = arith.constant 376 : index
    %c0_70 = arith.constant 0 : index
    %229 = vector.load %arg4[%c376, %c0_70] : memref<496x128xf32, #tpu.memory_space<vmem>>, vector<1x128xf32>
    %230 = vector.extract_strided_slice %229 {offsets = [0, 0], sizes = [1, 32], strides = [1, 1]} : vector<1x128xf32> to vector<1x32xf32>
    %231 = vector.shape_cast %230 : vector<1x32xf32> to vector<1x1x32xf32>
    %232 = vector.broadcast %231 : vector<1x1x32xf32> to vector<8x8x32xf32>
    %233 = arith.mulf %220, %232 : vector<8x8x32xf32>
    %cst_71 = arith.constant dense<0.000000e+00> : vector<8x8xf32>
    %234 = vector.multi_reduction <add>, %233, %cst_71 [2] : vector<8x8x32xf32> to vector<8x8xf32>
    %cst_72 = arith.constant 0.000000e+00 : f32
    %235 = vector.broadcast %cst_72 : f32 to vector<8x32xf32>
    %236 = arith.maximumf %217, %235 : vector<8x32xf32>
    %c360 = arith.constant 360 : index
    %c0_73 = arith.constant 0 : index
    %237 = vector.load %arg4[%c360, %c0_73] : memref<496x128xf32, #tpu.memory_space<vmem>>, vector<1x128xf32>
    %238 = vector.extract_strided_slice %237 {offsets = [0, 0], sizes = [1, 32], strides = [1, 1]} : vector<1x128xf32> to vector<1x32xf32>
    %239 = vector.broadcast %238 : vector<1x32xf32> to vector<8x32xf32>
    %240 = arith.mulf %236, %239 : vector<8x32xf32>
    %cst_74 = arith.constant dense<0.000000e+00> : vector<8xf32>
    %241 = vector.multi_reduction <add>, %240, %cst_74 [1] : vector<8x32xf32> to vector<8xf32>
    %242 = vector.shape_cast %241 : vector<8xf32> to vector<8x1xf32>
    %243 = vector.broadcast %242 : vector<8x1xf32> to vector<8x8xf32>
    %244 = arith.addf %243, %234 : vector<8x8xf32>
    %c368 = arith.constant 368 : index
    %c0_75 = arith.constant 0 : index
    %245 = vector.load %arg4[%c368, %c0_75] : memref<496x128xf32, #tpu.memory_space<vmem>>, vector<1x128xf32>
    %246 = vector.extract_strided_slice %245 {offsets = [0, 0], sizes = [1, 1], strides = [1, 1]} : vector<1x128xf32> to vector<1x1xf32>
    %247 = vector.broadcast %246 : vector<1x1xf32> to vector<8x8xf32>
    %248 = arith.addf %244, %247 : vector<8x8xf32>
    %cst_76 = arith.constant 0.000000e+00 : f32
    %249 = vector.broadcast %cst_76 : f32 to vector<8x8xf32>
    %250 = arith.cmpf oge, %248, %249 : vector<8x8xf32>
    %cst_77 = arith.constant 0.00999999977 : f32
    %251 = vector.broadcast %cst_77 : f32 to vector<8x8xf32>
    %252 = arith.mulf %251, %248 : vector<8x8xf32>
    %253 = arith.select %250, %248, %252 : vector<8x8xi1>, vector<8x8xf32>
    %cst_78 = arith.constant dense<0xFF800000> : vector<8xf32>
    %254 = vector.multi_reduction <maximumf>, %253, %cst_78 [1] : vector<8x8xf32> to vector<8xf32>
    %255 = vector.shape_cast %254 : vector<8xf32> to vector<8x1xf32>
    %256 = vector.broadcast %255 : vector<8x1xf32> to vector<8x8xf32>
    %257 = arith.subf %253, %256 : vector<8x8xf32>
    %258 = math.exp %257 : vector<8x8xf32>
    %cst_79 = arith.constant dense<0.000000e+00> : vector<8xf32>
    %259 = vector.multi_reduction <add>, %258, %cst_79 [1] : vector<8x8xf32> to vector<8xf32>
    %260 = vector.shape_cast %259 : vector<8xf32> to vector<8x1xf32>
    %cst_80 = arith.constant 9.99999971E-10 : f32
    %261 = vector.broadcast %cst_80 : f32 to vector<8x1xf32>
    %262 = arith.addf %260, %261 : vector<8x1xf32>
    %263 = vector.broadcast %262 : vector<8x1xf32> to vector<8x8xf32>
    %264 = arith.divf %258, %263 : vector<8x8xf32>
    %265 = vector.shape_cast %264 : vector<8x8xf32> to vector<8x8x1xf32>
    %266 = vector.broadcast %265 : vector<8x8x1xf32> to vector<8x8x32xf32>
    %267 = arith.mulf %266, %228 : vector<8x8x32xf32>
    %cst_81 = arith.constant dense<0.000000e+00> : vector<8x32xf32>
    %268 = vector.multi_reduction <add>, %267, %cst_81 [1] : vector<8x8x32xf32> to vector<8x32xf32>
    %cst_82 = arith.constant 0.000000e+00 : f32
    %269 = vector.broadcast %cst_82 : f32 to vector<8x32xf32>
    %270 = arith.cmpf ogt, %268, %269 : vector<8x32xf32>
    %271 = math.exp %268 : vector<8x32xf32>
    %cst_83 = arith.constant 1.000000e+00 : f32
    %272 = vector.broadcast %cst_83 : f32 to vector<8x32xf32>
    %273 = arith.subf %271, %272 : vector<8x32xf32>
    %274 = arith.select %270, %268, %273 : vector<8x32xi1>, vector<8x32xf32>
    %c424 = arith.constant 424 : index
    %c0_84 = arith.constant 0 : index
    %275 = vector.load %arg4[%c424, %c0_84] : memref<496x128xf32, #tpu.memory_space<vmem>>, vector<64x128xf32>
    %c488 = arith.constant 488 : index
    %c0_85 = arith.constant 0 : index
    %276 = vector.load %arg4[%c488, %c0_85] : memref<496x128xf32, #tpu.memory_space<vmem>>, vector<1x128xf32>
    %277 = tpu.concatenate %274, %217 in 1 : vector<8x32xf32>, vector<8x32xf32> -> vector<8x64xf32>
    %cst_86 = arith.constant dense<0.000000e+00> : vector<8x128xf32>
    %278 = tpu.matmul %277, %275, %cst_86 {dimension_numbers = #tpu.dot_dimension_numbers<[1], [0], [0], [1], [0, 0, 1, 1], [], []>} : vector<8x64xf32>, vector<64x128xf32>, vector<8x128xf32> -> vector<8x128xf32>
    %279 = vector.broadcast %276 : vector<1x128xf32> to vector<8x128xf32>
    %280 = arith.addf %278, %279 : vector<8x128xf32>
    %281 = vector.extract_strided_slice %280 {offsets = [0, 0], sizes = [8, 32], strides = [1, 1]} : vector<8x128xf32> to vector<8x32xf32>
    %282 = arith.negf %281 : vector<8x32xf32>
    %283 = math.exp %282 : vector<8x32xf32>
    %cst_87 = arith.constant 1.000000e+00 : f32
    %284 = vector.broadcast %cst_87 : f32 to vector<8x32xf32>
    %285 = arith.addf %284, %283 : vector<8x32xf32>
    %286 = arith.divf %284, %285 : vector<8x32xf32>
    %287 = vector.extract_strided_slice %280 {offsets = [0, 32], sizes = [8, 32], strides = [1, 1]} : vector<8x128xf32> to vector<8x32xf32>
    %288 = arith.negf %287 : vector<8x32xf32>
    %289 = math.exp %288 : vector<8x32xf32>
    %cst_88 = arith.constant 1.000000e+00 : f32
    %290 = vector.broadcast %cst_88 : f32 to vector<8x32xf32>
    %291 = arith.addf %290, %289 : vector<8x32xf32>
    %292 = arith.divf %290, %291 : vector<8x32xf32>
    %293 = vector.extract_strided_slice %280 {offsets = [0, 64], sizes = [8, 32], strides = [1, 1]} : vector<8x128xf32> to vector<8x32xf32>
    %294 = vector.extract_strided_slice %280 {offsets = [0, 96], sizes = [8, 32], strides = [1, 1]} : vector<8x128xf32> to vector<8x32xf32>
    %295 = arith.mulf %286, %294 : vector<8x32xf32>
    %296 = arith.addf %293, %295 : vector<8x32xf32>
    %297 = math.tanh %296 : vector<8x32xf32>
    %cst_89 = arith.constant 1.000000e+00 : f32
    %298 = vector.broadcast %cst_89 : f32 to vector<8x32xf32>
    %299 = arith.subf %298, %292 : vector<8x32xf32>
    %300 = arith.mulf %299, %297 : vector<8x32xf32>
    %301 = arith.mulf %292, %217 : vector<8x32xf32>
    %302 = arith.addf %300, %301 : vector<8x32xf32>
    %cst_90 = arith.constant 0.000000e+00 : f32
    %303 = vector.broadcast %cst_90 : f32 to vector<8x32xf32>
    %304 = arith.maximumf %302, %303 : vector<8x32xf32>
    %c360_91 = arith.constant 360 : index
    %c0_92 = arith.constant 0 : index
    %305 = vector.load %arg4[%c360_91, %c0_92] : memref<496x128xf32, #tpu.memory_space<vmem>>, vector<1x128xf32>
    %306 = vector.extract_strided_slice %305 {offsets = [0, 0], sizes = [1, 32], strides = [1, 1]} : vector<1x128xf32> to vector<1x32xf32>
    %307 = vector.broadcast %306 : vector<1x32xf32> to vector<8x32xf32>
    %308 = arith.mulf %304, %307 : vector<8x32xf32>
    %cst_93 = arith.constant dense<0.000000e+00> : vector<8xf32>
    %309 = vector.multi_reduction <add>, %308, %cst_93 [1] : vector<8x32xf32> to vector<8xf32>
    %310 = vector.shape_cast %309 : vector<8xf32> to vector<8x1xf32>
    %311 = vector.broadcast %310 : vector<8x1xf32> to vector<8x8xf32>
    %312 = arith.addf %311, %234 : vector<8x8xf32>
    %c368_94 = arith.constant 368 : index
    %c0_95 = arith.constant 0 : index
    %313 = vector.load %arg4[%c368_94, %c0_95] : memref<496x128xf32, #tpu.memory_space<vmem>>, vector<1x128xf32>
    %314 = vector.extract_strided_slice %313 {offsets = [0, 0], sizes = [1, 1], strides = [1, 1]} : vector<1x128xf32> to vector<1x1xf32>
    %315 = vector.broadcast %314 : vector<1x1xf32> to vector<8x8xf32>
    %316 = arith.addf %312, %315 : vector<8x8xf32>
    %cst_96 = arith.constant 0.000000e+00 : f32
    %317 = vector.broadcast %cst_96 : f32 to vector<8x8xf32>
    %318 = arith.cmpf oge, %316, %317 : vector<8x8xf32>
    %cst_97 = arith.constant 0.00999999977 : f32
    %319 = vector.broadcast %cst_97 : f32 to vector<8x8xf32>
    %320 = arith.mulf %319, %316 : vector<8x8xf32>
    %321 = arith.select %318, %316, %320 : vector<8x8xi1>, vector<8x8xf32>
    %cst_98 = arith.constant dense<0xFF800000> : vector<8xf32>
    %322 = vector.multi_reduction <maximumf>, %321, %cst_98 [1] : vector<8x8xf32> to vector<8xf32>
    %323 = vector.shape_cast %322 : vector<8xf32> to vector<8x1xf32>
    %324 = vector.broadcast %323 : vector<8x1xf32> to vector<8x8xf32>
    %325 = arith.subf %321, %324 : vector<8x8xf32>
    %326 = math.exp %325 : vector<8x8xf32>
    %cst_99 = arith.constant dense<0.000000e+00> : vector<8xf32>
    %327 = vector.multi_reduction <add>, %326, %cst_99 [1] : vector<8x8xf32> to vector<8xf32>
    %328 = vector.shape_cast %327 : vector<8xf32> to vector<8x1xf32>
    %cst_100 = arith.constant 9.99999971E-10 : f32
    %329 = vector.broadcast %cst_100 : f32 to vector<8x1xf32>
    %330 = arith.addf %328, %329 : vector<8x1xf32>
    %331 = vector.broadcast %330 : vector<8x1xf32> to vector<8x8xf32>
    %332 = arith.divf %326, %331 : vector<8x8xf32>
    %333 = vector.shape_cast %332 : vector<8x8xf32> to vector<8x8x1xf32>
    %334 = vector.broadcast %333 : vector<8x8x1xf32> to vector<8x8x32xf32>
    %335 = arith.mulf %334, %228 : vector<8x8x32xf32>
    %cst_101 = arith.constant dense<0.000000e+00> : vector<8x32xf32>
    %336 = vector.multi_reduction <add>, %335, %cst_101 [1] : vector<8x8x32xf32> to vector<8x32xf32>
    %cst_102 = arith.constant 0.000000e+00 : f32
    %337 = vector.broadcast %cst_102 : f32 to vector<8x32xf32>
    %338 = arith.cmpf ogt, %336, %337 : vector<8x32xf32>
    %339 = math.exp %336 : vector<8x32xf32>
    %cst_103 = arith.constant 1.000000e+00 : f32
    %340 = vector.broadcast %cst_103 : f32 to vector<8x32xf32>
    %341 = arith.subf %339, %340 : vector<8x32xf32>
    %342 = arith.select %338, %336, %341 : vector<8x32xi1>, vector<8x32xf32>
    %c424_104 = arith.constant 424 : index
    %c0_105 = arith.constant 0 : index
    %343 = vector.load %arg4[%c424_104, %c0_105] : memref<496x128xf32, #tpu.memory_space<vmem>>, vector<64x128xf32>
    %c488_106 = arith.constant 488 : index
    %c0_107 = arith.constant 0 : index
    %344 = vector.load %arg4[%c488_106, %c0_107] : memref<496x128xf32, #tpu.memory_space<vmem>>, vector<1x128xf32>
    %345 = tpu.concatenate %342, %302 in 1 : vector<8x32xf32>, vector<8x32xf32> -> vector<8x64xf32>
    %cst_108 = arith.constant dense<0.000000e+00> : vector<8x128xf32>
    %346 = tpu.matmul %345, %343, %cst_108 {dimension_numbers = #tpu.dot_dimension_numbers<[1], [0], [0], [1], [0, 0, 1, 1], [], []>} : vector<8x64xf32>, vector<64x128xf32>, vector<8x128xf32> -> vector<8x128xf32>
    %347 = vector.broadcast %344 : vector<1x128xf32> to vector<8x128xf32>
    %348 = arith.addf %346, %347 : vector<8x128xf32>
    %349 = vector.extract_strided_slice %348 {offsets = [0, 0], sizes = [8, 32], strides = [1, 1]} : vector<8x128xf32> to vector<8x32xf32>
    %350 = arith.negf %349 : vector<8x32xf32>
    %351 = math.exp %350 : vector<8x32xf32>
    %cst_109 = arith.constant 1.000000e+00 : f32
    %352 = vector.broadcast %cst_109 : f32 to vector<8x32xf32>
    %353 = arith.addf %352, %351 : vector<8x32xf32>
    %354 = arith.divf %352, %353 : vector<8x32xf32>
    %355 = vector.extract_strided_slice %348 {offsets = [0, 32], sizes = [8, 32], strides = [1, 1]} : vector<8x128xf32> to vector<8x32xf32>
    %356 = arith.negf %355 : vector<8x32xf32>
    %357 = math.exp %356 : vector<8x32xf32>
    %cst_110 = arith.constant 1.000000e+00 : f32
    %358 = vector.broadcast %cst_110 : f32 to vector<8x32xf32>
    %359 = arith.addf %358, %357 : vector<8x32xf32>
    %360 = arith.divf %358, %359 : vector<8x32xf32>
    %361 = vector.extract_strided_slice %348 {offsets = [0, 64], sizes = [8, 32], strides = [1, 1]} : vector<8x128xf32> to vector<8x32xf32>
    %362 = vector.extract_strided_slice %348 {offsets = [0, 96], sizes = [8, 32], strides = [1, 1]} : vector<8x128xf32> to vector<8x32xf32>
    %363 = arith.mulf %354, %362 : vector<8x32xf32>
    %364 = arith.addf %361, %363 : vector<8x32xf32>
    %365 = math.tanh %364 : vector<8x32xf32>
    %cst_111 = arith.constant 1.000000e+00 : f32
    %366 = vector.broadcast %cst_111 : f32 to vector<8x32xf32>
    %367 = arith.subf %366, %360 : vector<8x32xf32>
    %368 = arith.mulf %367, %365 : vector<8x32xf32>
    %369 = arith.mulf %360, %302 : vector<8x32xf32>
    %370 = arith.addf %368, %369 : vector<8x32xf32>
    %c0_112 = arith.constant 0 : index
    %c0_113 = arith.constant 0 : index
    %371 = vector.load %arg5[%c0_112, %c0_113] : memref<8x32xf32, #tpu.memory_space<vmem>>, vector<8x32xf32>
    tpu.vector_store %arg5[%c0_112, %c0_113], %370 {strides = array<i32>} : memref<8x32xf32, #tpu.memory_space<vmem>>, vector<8x32xf32>,
    return
  }
  func.func @transform_0(%arg0: i32) -> (i32, i32) {
    %c0_i32 = arith.constant 0 : i32
    %c0_i32_0 = arith.constant 0 : i32
    return %arg0, %c0_i32 : i32, i32
  }
  func.func @transform_1(%arg0: i32) -> (i32, i32) {
    %c0_i32 = arith.constant 0 : i32
    %c0_i32_0 = arith.constant 0 : i32
    return %arg0, %c0_i32 : i32, i32
  }
  func.func @transform_2(%arg0: i32) -> (i32, i32) {
    %c0_i32 = arith.constant 0 : i32
    %c0_i32_0 = arith.constant 0 : i32
    return %arg0, %c0_i32 : i32, i32
  }
  func.func @transform_3(%arg0: i32) -> (i32, i32) {
    %c0_i32 = arith.constant 0 : i32
    %c0_i32_0 = arith.constant 0 : i32
    %c0_i32_1 = arith.constant 0 : i32
    return %c0_i32, %c0_i32_0 : i32, i32
  }
  func.func @transform_4(%arg0: i32) -> (i32, i32) {
    %c0_i32 = arith.constant 0 : i32
    %c0_i32_0 = arith.constant 0 : i32
    return %arg0, %c0_i32 : i32, i32
  }
}

</mosaic_0001>

<llo_original>
// kernel: single_head_fragment_layer.1
$region0: #{single_head_fragment_layer.1}
  #allocation0 [shape = 'u32[]', space=smem, size = 0x4, offset = 0x4, fixed_abs, tag = 'smem constant byte address 0x4 - core index']
  #allocation1 [shape = 'u32[144,128]{1,0:T(1,128)}', space=vmem, size = 0x12000, scoped, tag = 'internal scratch']
  %s0 = inlined_call_operand.vmem [shape: f32[128,16], index: 0, kind: input, shape index: {}]
  %s1 = inlined_call_operand.vmem [shape: f32[1024,8], index: 1, kind: input, shape index: {}]
  %s2 = inlined_call_operand.vmem [shape: f32[128,8], index: 2, kind: input, shape index: {}]
  %s3 = inlined_call_operand.vmem [shape: f32[496,128], index: 3, kind: input, shape index: {}]
  %s4 = inlined_call_operand.hbm [shape: f32[16,32], index: 4, kind: output, shape index: {}]
  %s5 = sld [smem:[#allocation0]]
  $region49: #{single_head_fragment_layer.1} parent=0
    _
  %s7 = ssub.s32 1, %s5
  %s8 = scalar_select 0, %s7, %s5
  $region1: #{single_head_fragment_layer.1} parent=0
    #allocation2 [shape = 'u8[8192]{0}', space=vmem, size = 0x2000, scoped, tag = 'output window, operand 0']
    #allocation3 [shape = 's32[2]{0}', space=sflag, size = 0x8, scoped, tag = 'scoped memory for single_head_fragment_layer.1']
    %9 = vsyncpa [#allocation3], 0
    %s10 = scalar_lea.sflag [#allocation3], 1
    %11 = vsyncpa %s10, 0
    loop: start=0, step=1, limit=4
    $region2: #{single_head_fragment_layer.1} parent=1 // loop_pre_header
      _
    $region3: #{single_head_fragment_layer.1} parent=1 // loop_header
      %s13 = sphi 0, %s17
      %p14 = scmp.ge.s32.totalorder %s13, 4
      %s23 = sphi 0, %s25
      %s26 = sphi 0, %s23
      %s27 = sphi 0, %s26
      %s43 = sphi 0, %s27
      %s49 = sphi 0, %s51
      %s52 = sphi 0, %s49
      %s53 = sphi 0, %s52
      %s69 = sphi 0, %s53
      %s75 = sphi 0, %s77
      %s78 = sphi 0, %s75
      %s79 = sphi 0, %s78
      %s95 = sphi 0, %s79
      %s99 = sphi 0, %s99
      %s101 = sphi 0, %s99
      %s102 = sphi 0, %s101
      %s116 = sphi 0, %s102
      %s122 = sphi 0, %s124
      %s125 = sphi 0, %s122
      %s126 = sphi 0, %s125
      %s142 = sphi 0, %s126
    $region4: #{single_head_fragment_layer.1} parent=1 // loop_header_branch
      %16 = sbr.rel (%p14) target = $region8
    $region5: #{single_head_fragment_layer.1} parent=1 // loop_body
      %s18 = ssub.s32 %s13, 1
      %s19 = ssub.s32 %s13, 2
      %s20 = sadd.s32 %s13, 1
      %s21 = ssub.s32 %s13, %s20
      %p22 = scmp.eq.s32.totalorder %s21, 0
      %s24 = sadd.s32 %s23, 1
      %s25 = scalar_select %p22, %s23, %s24
      %p28 = pneg %p22
      %p29 = scmp.eq.s32.totalorder %s13, 1
      %p30 = por %p28, %p29
      %p31 = scmp.ne.s32.totalorder %s23, %s26
      %p32 = scmp.eq.s32.totalorder %s13, 0
      %p33 = por %p31, %p32
      %p34 = scmp.ne.s32.totalorder %s23, %s26
      %p35 = scmp.eq.s32.totalorder %s18, 1
      %p36 = por %p34, %p35
      %p37 = scmp.ne.s32.totalorder %s26, %s27
      %p38 = scmp.eq.s32.totalorder %s18, 0
      %p39 = por %p37, %p38
      %p40 = scmp.ne.s32.totalorder %s26, %s27
      %p41 = scmp.eq.s32.totalorder %s19, 1
      %p42 = por %p40, %p41
      %p44 = scmp.ne.s32.totalorder %s27, %s43
      %p45 = scmp.eq.s32.totalorder %s19, 0
      %p46 = por %p44, %p45
      %s47 = ssub.s32 %s13, %s20
      %p48 = scmp.eq.s32.totalorder %s47, 0
      %s50 = sadd.s32 %s49, 1
      %s51 = scalar_select %p48, %s49, %s50
      %p54 = pneg %p48
      %p55 = scmp.eq.s32.totalorder %s13, 1
      %p56 = por %p54, %p55
      %p57 = scmp.ne.s32.totalorder %s49, %s52
      %p58 = scmp.eq.s32.totalorder %s13, 0
      %p59 = por %p57, %p58
      %p60 = scmp.ne.s32.totalorder %s49, %s52
      %p61 = scmp.eq.s32.totalorder %s18, 1
      %p62 = por %p60, %p61
      %p63 = scmp.ne.s32.totalorder %s52, %s53
      %p64 = scmp.eq.s32.totalorder %s18, 0
      %p65 = por %p63, %p64
      %p66 = scmp.ne.s32.totalorder %s52, %s53
      %p67 = scmp.eq.s32.totalorder %s19, 1
      %p68 = por %p66, %p67
      %p70 = scmp.ne.s32.totalorder %s53, %s69
      %p71 = scmp.eq.s32.totalorder %s19, 0
      %p72 = por %p70, %p71
      %s73 = ssub.s32 %s13, %s20
      %p74 = scmp.eq.s32.totalorder %s73, 0
      %s76 = sadd.s32 %s75, 1
      %s77 = scalar_select %p74, %s75, %s76
      %p80 = pneg %p74
      %p81 = scmp.eq.s32.totalorder %s13, 1
      %p82 = por %p80, %p81
      %p83 = scmp.ne.s32.totalorder %s75, %s78
      %p84 = scmp.eq.s32.totalorder %s13, 0
      %p85 = por %p83, %p84
      %p86 = scmp.ne.s32.totalorder %s75, %s78
      %p87 = scmp.eq.s32.totalorder %s18, 1
      %p88 = por %p86, %p87
      %p89 = scmp.ne.s32.totalorder %s78, %s79
      %p90 = scmp.eq.s32.totalorder %s18, 0
      %p91 = por %p89, %p90
      %p92 = scmp.ne.s32.totalorder %s78, %s79
      %p93 = scmp.eq.s32.totalorder %s19, 1
      %p94 = por %p92, %p93
      %p96 = scmp.ne.s32.totalorder %s79, %s95
      %p97 = scmp.eq.s32.totalorder %s19, 0
      %p98 = por %p96, %p97
      %s100 = sadd.s32 %s99, 1
      %p103 = scmp.eq.s32.totalorder %s13, 1
      %p104 = scmp.ne.s32.totalorder %s99, %s101
      %p105 = scmp.eq.s32.totalorder %s13, 0
      %p106 = por %p104, %p105
      %p107 = scmp.ne.s32.totalorder %s99, %s101
      %p108 = scmp.eq.s32.totalorder %s18, 1
      %p109 = por %p107, %p108
      %p110 = scmp.ne.s32.totalorder %s101, %s102
      %p111 = scmp.eq.s32.totalorder %s18, 0
      %p112 = por %p110, %p111
      %p113 = scmp.ne.s32.totalorder %s101, %s102
      %p114 = scmp.eq.s32.totalorder %s19, 1
      %p115 = por %p113, %p114
      %p117 = scmp.ne.s32.totalorder %s102, %s116
      %p118 = scmp.eq.s32.totalorder %s19, 0
      %p119 = por %p117, %p118
      %s120 = ssub.s32 %s13, %s20
      %p121 = scmp.eq.s32.totalorder %s120, 0
      %s123 = sadd.s32 %s122, 1
      %s124 = scalar_select %p121, %s122, %s123
      %p127 = pneg %p121
      %p128 = scmp.eq.s32.totalorder %s13, 1
      %p129 = por %p127, %p128
      %p130 = scmp.ne.s32.totalorder %s122, %s125
      %p131 = scmp.eq.s32.totalorder %s13, 0
      %p132 = por %p130, %p131
      %p133 = scmp.ne.s32.totalorder %s122, %s125
      %p134 = scmp.eq.s32.totalorder %s18, 1
      %p135 = por %p133, %p134
      %p136 = scmp.ne.s32.totalorder %s125, %s126
      %p137 = scmp.eq.s32.totalorder %s18, 0
      %p138 = por %p136, %p137
      %p139 = scmp.ne.s32.totalorder %s125, %s126
      %p140 = scmp.eq.s32.totalorder %s19, 1
      %p141 = por %p139, %p140
      %p143 = scmp.ne.s32.totalorder %s126, %s142
      %p144 = scmp.eq.s32.totalorder %s19, 0
      %p145 = por %p143, %p144
      %p146 = scmp.le.s32.totalorder 1, %s13
      %p147 = scmp.lt.s32.totalorder %s13, 3
      %p148 = pnand %p146, %p147
      %p149 = pneg %p148
      // Predicated region
      $region9: #{single_head_fragment_layer.1} parent=5 // pred_check
        _
      $region10: #{single_head_fragment_layer.1} parent=5 // pred_check_branch
        %151 = sbr.rel (%p148) target = $region12
      $region11: #{single_head_fragment_layer.1} parent=5 // pred_region
        %s152 = ssub.s32 %s13, 1
        // Predicated region
        $region13: #{single_head_fragment_layer.1} parent=11 // pred_check
          %p153 = pneg %p112
        $region14: #{single_head_fragment_layer.1} parent=11 // pred_check_branch
          %155 = sbr.rel (%p153) target = $region16
        $region15: #{single_head_fragment_layer.1} parent=11 // pred_region
          _
        $region16: #{single_head_fragment_layer.1} parent=11 // pred_fallthru
          _
      $region12: #{single_head_fragment_layer.1} parent=5 // pred_fallthru
        _
      %p156 = scmp.lt.s32.totalorder %s13, 2
      // Predicated region
      $region17: #{single_head_fragment_layer.1} parent=5 // pred_check
        %p157 = pneg %p156
      $region18: #{single_head_fragment_layer.1} parent=5 // pred_check_branch
        %159 = sbr.rel (%p157) target = $region20
      $region19: #{single_head_fragment_layer.1} parent=5 // pred_region
        // Predicated region
        $region21: #{single_head_fragment_layer.1} parent=19 // pred_check
          %p160 = pneg %p33
        $region22: #{single_head_fragment_layer.1} parent=19 // pred_check_branch
          %162 = sbr.rel (%p160) target = $region24
        $region23: #{single_head_fragment_layer.1} parent=19 // pred_region
          %s163 = smul.u32 8, %s13
          %p164 = scmp.lt.s32.totalorder %s163, 15
          %s165 = scalar_select %p164, %s163, 15
          %s166 = smul.addr %s165, 8
          %s167 = scalar_lea.vmem %s0, %s166
          %s168 = smul.u32 8, %s13
        $region24: #{single_head_fragment_layer.1} parent=19 // pred_fallthru
          _
        // Predicated region
        $region25: #{single_head_fragment_layer.1} parent=19 // pred_check
          %p169 = pneg %p59
        $region26: #{single_head_fragment_layer.1} parent=19 // pred_check_branch
          %171 = sbr.rel (%p169) target = $region28
        $region27: #{single_head_fragment_layer.1} parent=19 // pred_region
          %s172 = smul.u32 64, %s13
          %p173 = scmp.lt.s32.totalorder %s172, 127
          %s174 = scalar_select %p173, %s172, 127
          %s175 = smul.addr %s174, 8
          %s176 = scalar_lea.vmem %s1, %s175
          %s177 = smul.u32 64, %s13
        $region28: #{single_head_fragment_layer.1} parent=19 // pred_fallthru
          _
        // Predicated region
        $region29: #{single_head_fragment_layer.1} parent=19 // pred_check
          %p178 = pneg %p85
        $region30: #{single_head_fragment_layer.1} parent=19 // pred_check_branch
          %180 = sbr.rel (%p178) target = $region32
        $region31: #{single_head_fragment_layer.1} parent=19 // pred_region
          %s181 = smul.u32 8, %s13
          %p182 = scmp.lt.s32.totalorder %s181, 15
          %s183 = scalar_select %p182, %s181, 15
          %s184 = smul.addr %s183, 8
          %s185 = scalar_lea.vmem %s2, %s184
          %s186 = smul.u32 8, %s13
        $region32: #{single_head_fragment_layer.1} parent=19 // pred_fallthru
          _
      $region20: #{single_head_fragment_layer.1} parent=5 // pred_fallthru
        _
      %p187 = scmp.le.s32.totalorder 1, %s13
      %p188 = scmp.lt.s32.totalorder %s13, 3
      %p189 = pnand %p187, %p188
      %p190 = pneg %p189
      // Predicated region
      $region33: #{single_head_fragment_layer.1} parent=5 // pred_check
        _
      $region34: #{single_head_fragment_layer.1} parent=5 // pred_check_branch
        %192 = sbr.rel (%p189) target = $region36
      $region35: #{single_head_fragment_layer.1} parent=5 // pred_region
        %s193 = ssub.s32 %s13, 1
        %s194 = smul.u32 8, %s18
        %p195 = scmp.lt.s32.totalorder %s194, 15
        %s196 = scalar_select %p195, %s194, 15
        %s197 = smul.addr %s196, 8
        %s198 = scalar_lea.vmem %s0, %s197
        %p199 = pneg %p39
        %p200 = pneg %p36
        %s201 = smul.u32 64, %s18
        %p202 = scmp.lt.s32.totalorder %s201, 127
        %s203 = scalar_select %p202, %s201, 127
        %s204 = smul.addr %s203, 8
        %s205 = scalar_lea.vmem %s1, %s204
        %p206 = pneg %p65
        %p207 = pneg %p62
        %s208 = smul.u32 8, %s18
        %p209 = scmp.lt.s32.totalorder %s208, 15
        %s210 = scalar_select %p209, %s208, 15
        %s211 = smul.addr %s210, 8
        %s212 = scalar_lea.vmem %s2, %s211
        %p213 = pneg %p91
        %p214 = pneg %p88
        %p215 = pneg %p112
        %p216 = pneg %p109
        %p217 = pneg %p138
        %p218 = pneg %p135
        %s219 = sand.u32 %s125, 1
        %s220 = scalar_lea.sflag [#allocation3], %s219
        %s221 = sand.u32 %s125, 1
        %s222 = smul.addr %s221, 8
        %s223 = scalar_lea.vmem [#allocation2], %s222
        %s224 = smul.u32 8, %s18
        %p225 = scmp.lt.s32.totalorder %s224, 15
        %s226 = scalar_select %p225, %s224, 15
        %s227 = smul.addr %s226, 8
        %s228 = scalar_lea.vmem %s0, %s227
        %s229 = smul.u32 8, %s18
        %s230 = smul.u32 64, %s18
        %p231 = scmp.lt.s32.totalorder %s230, 127
        %s232 = scalar_select %p231, %s230, 127
        %s233 = smul.addr %s232, 8
        %s234 = scalar_lea.vmem %s1, %s233
        %s235 = smul.u32 64, %s18
        %s236 = smul.u32 8, %s18
        %p237 = scmp.lt.s32.totalorder %s236, 15
        %s238 = scalar_select %p237, %s236, 15
        %s239 = smul.addr %s238, 8
        %s240 = scalar_lea.vmem %s2, %s239
        %s241 = smul.u32 8, %s18
        %v242 = vld [vmem:[%s228] sm:$0xff]
        %v243 = vld [vmem:[%s228 + $0x8] sm:$0xff]
        %v244 = vld [vmem:[%s228 + $0x10] sm:$0xff]
        %v245 = vld [vmem:[%s228 + $0x18] sm:$0xff]
        %v246 = vld [vmem:[%s228 + $0x20] sm:$0xff]
        %v247 = vld [vmem:[%s228 + $0x28] sm:$0xff]
        %v248 = vld [vmem:[%s228 + $0x30] sm:$0xff]
        %v249 = vld [vmem:[%s228 + $0x38] sm:$0xff]
        %v250 = vld [vmem:[%s234] sm:$0xff]
        %v251 = vld [vmem:[%s234 + $0x8] sm:$0xff]
        %v252 = vld [vmem:[%s234 + $0x10] sm:$0xff]
        %v253 = vld [vmem:[%s234 + $0x18] sm:$0xff]
        %v254 = vld [vmem:[%s234 + $0x20] sm:$0xff]
        %v255 = vld [vmem:[%s234 + $0x28] sm:$0xff]
        %v256 = vld [vmem:[%s234 + $0x30] sm:$0xff]
        %v257 = vld [vmem:[%s234 + $0x38] sm:$0xff]
        %v258 = vld [vmem:[%s234 + $0x40] sm:$0xff]
        %v259 = vld [vmem:[%s234 + $0x48] sm:$0xff]
        %v260 = vld [vmem:[%s234 + $0x50] sm:$0xff]
        %v261 = vld [vmem:[%s234 + $0x58] sm:$0xff]
        %v262 = vld [vmem:[%s234 + $0x60] sm:$0xff]
        %v263 = vld [vmem:[%s234 + $0x68] sm:$0xff]
        %v264 = vld [vmem:[%s234 + $0x70] sm:$0xff]
        %v265 = vld [vmem:[%s234 + $0x78] sm:$0xff]
        %v266 = vld [vmem:[%s234 + $0x80] sm:$0xff]
        %v267 = vld [vmem:[%s234 + $0x88] sm:$0xff]
        %v268 = vld [vmem:[%s234 + $0x90] sm:$0xff]
        %v269 = vld [vmem:[%s234 + $0x98] sm:$0xff]
        %v270 = vld [vmem:[%s234 + $0xa0] sm:$0xff]
        %v271 = vld [vmem:[%s234 + $0xa8] sm:$0xff]
        %v272 = vld [vmem:[%s234 + $0xb0] sm:$0xff]
        %v273 = vld [vmem:[%s234 + $0xb8] sm:$0xff]
        %v274 = vld [vmem:[%s234 + $0xc0] sm:$0xff]
        %v275 = vld [vmem:[%s234 + $0xc8] sm:$0xff]
        %v276 = vld [vmem:[%s234 + $0xd0] sm:$0xff]
        %v277 = vld [vmem:[%s234 + $0xd8] sm:$0xff]
        %v278 = vld [vmem:[%s234 + $0xe0] sm:$0xff]
        %v279 = vld [vmem:[%s234 + $0xe8] sm:$0xff]
        %v280 = vld [vmem:[%s234 + $0xf0] sm:$0xff]
        %v281 = vld [vmem:[%s234 + $0xf8] sm:$0xff]
        %v282 = vld [vmem:[%s234 + $0x100] sm:$0xff]
        %v283 = vld [vmem:[%s234 + $0x108] sm:$0xff]
        %v284 = vld [vmem:[%s234 + $0x110] sm:$0xff]
        %v285 = vld [vmem:[%s234 + $0x118] sm:$0xff]
        %v286 = vld [vmem:[%s234 + $0x120] sm:$0xff]
        %v287 = vld [vmem:[%s234 + $0x128] sm:$0xff]
        %v288 = vld [vmem:[%s234 + $0x130] sm:$0xff]
        %v289 = vld [vmem:[%s234 + $0x138] sm:$0xff]
        %v290 = vld [vmem:[%s234 + $0x140] sm:$0xff]
        %v291 = vld [vmem:[%s234 + $0x148] sm:$0xff]
        %v292 = vld [vmem:[%s234 + $0x150] sm:$0xff]
        %v293 = vld [vmem:[%s234 + $0x158] sm:$0xff]
        %v294 = vld [vmem:[%s234 + $0x160] sm:$0xff]
        %v295 = vld [vmem:[%s234 + $0x168] sm:$0xff]
        %v296 = vld [vmem:[%s234 + $0x170] sm:$0xff]
        %v297 = vld [vmem:[%s234 + $0x178] sm:$0xff]
        %v298 = vld [vmem:[%s234 + $0x180] sm:$0xff]
        %v299 = vld [vmem:[%s234 + $0x188] sm:$0xff]
        %v300 = vld [vmem:[%s234 + $0x190] sm:$0xff]
        %v301 = vld [vmem:[%s234 + $0x198] sm:$0xff]
        %v302 = vld [vmem:[%s234 + $0x1a0] sm:$0xff]
        %v303 = vld [vmem:[%s234 + $0x1a8] sm:$0xff]
        %v304 = vld [vmem:[%s234 + $0x1b0] sm:$0xff]
        %v305 = vld [vmem:[%s234 + $0x1b8] sm:$0xff]
        %v306 = vld [vmem:[%s234 + $0x1c0] sm:$0xff]
        %v307 = vld [vmem:[%s234 + $0x1c8] sm:$0xff]
        %v308 = vld [vmem:[%s234 + $0x1d0] sm:$0xff]
        %v309 = vld [vmem:[%s234 + $0x1d8] sm:$0xff]
        %v310 = vld [vmem:[%s234 + $0x1e0] sm:$0xff]
        %v311 = vld [vmem:[%s234 + $0x1e8] sm:$0xff]
        %v312 = vld [vmem:[%s234 + $0x1f0] sm:$0xff]
        %v313 = vld [vmem:[%s234 + $0x1f8] sm:$0xff]
        %v314 = vld [vmem:[%s240] sm:$0xff]
        %v315 = vld [vmem:[%s240 + $0x8] sm:$0xff]
        %v316 = vld [vmem:[%s240 + $0x10] sm:$0xff]
        %v317 = vld [vmem:[%s240 + $0x18] sm:$0xff]
        %v318 = vld [vmem:[%s240 + $0x20] sm:$0xff]
        %v319 = vld [vmem:[%s240 + $0x28] sm:$0xff]
        %v320 = vld [vmem:[%s240 + $0x30] sm:$0xff]
        %v321 = vld [vmem:[%s240 + $0x38] sm:$0xff]
        %v322 = vld [vmem:[%s3] sm:$0xff]
        %v323 = vld [vmem:[%s3 + $0x8] sm:$0xff]
        %v324 = vld [vmem:[%s3 + $0x10] sm:$0x1]
        %v325 = vlaneseq
        %v326 = vshrl.u32 %v325, 7
        %v327 = vsub.s32 0, %v326
        %v328 = vrot.slane %v324, %v327
        %vm329 = vcmask 130048
        %v331 = vsel %vm329, %v242, 0
        %v334 = vsel %vm329, %v243, 0
        %v337 = vsel %vm329, %v244, 0
        %v340 = vsel %vm329, %v245, 0
        %v343 = vsel %vm329, %v246, 0
        %v346 = vsel %vm329, %v247, 0
        %v349 = vsel %vm329, %v248, 0
        %v352 = vsel %vm329, %v249, 0
        %354 = vmatprep.subr.mxu0 0.0
        %355 = vmatpush1.msra.mxu0 %v322
        %356 = vmatprep.subr.mxu0 0.0
        %357 = vmatpush1.msra.mxu0 %v323
        %358 = vmatprep.subr.mxu0 0.0
        %359 = vmatpush1.msra.mxu0 0.0
        %360 = vmatprep.subr.mxu0 0.0
        %361 = vmatpush1.msra.mxu0 0.0
        %362 = vmatprep.subr.mxu0 0.0
        %363 = vmatpush1.msra.mxu0 0.0
        %364 = vmatprep.subr.mxu0 0.0
        %365 = vmatpush1.msra.mxu0 0.0
        %366 = vmatprep.subr.mxu0 0.0
        %367 = vmatpush1.msra.mxu0 0.0
        %368 = vmatprep.subr.mxu0 0.0
        %369 = vmatpush1.msra.mxu0 0.0
        %370 = vmatprep.subr.mxu0 0.0
        %371 = vmatpush1.msra.mxu0 0.0
        %372 = vmatprep.subr.mxu0 0.0
        %373 = vmatpush1.msra.mxu0 0.0
        %374 = vmatprep.subr.mxu0 0.0
        %375 = vmatpush1.msra.mxu0 0.0
        %376 = vmatprep.subr.mxu0 0.0
        %377 = vmatpush1.msra.mxu0 0.0
        %378 = vmatprep.subr.mxu0 0.0
        %379 = vmatpush1.msra.mxu0 0.0
        %380 = vmatprep.subr.mxu0 0.0
        %381 = vmatpush1.msra.mxu0 0.0
        %382 = vmatprep.subr.mxu0 0.0
        %383 = vmatpush1.msra.mxu0 0.0
        %384 = vmatprep.subr.mxu0 0.0
        %385 = vmatpush1.msra.mxu0 0.0
        %386 = vmatprep.subr.mxu0 0.0
        %387 = vmatpush1.msra.mxu0 0.0
        %388 = vmatprep.subr.mxu0 0.0
        %389 = vmatpush1.msra.mxu0 0.0
        %390 = vmatprep.subr.mxu0 0.0
        %391 = vmatpush1.msra.mxu0 0.0
        %392 = vmatprep.subr.mxu0 0.0
        %393 = vmatpush1.msra.mxu0 0.0
        %394 = vmatprep.subr.mxu0 0.0
        %395 = vmatpush1.msra.mxu0 0.0
        %396 = vmatprep.subr.mxu0 0.0
        %397 = vmatpush1.msra.mxu0 0.0
        %398 = vmatprep.subr.mxu0 0.0
        %399 = vmatpush1.msra.mxu0 0.0
        %400 = vmatprep.subr.mxu0 0.0
        %401 = vmatpush1.msra.mxu0 0.0
        %402 = vmatprep.subr.mxu0 0.0
        %403 = vmatpush1.msra.mxu0 0.0
        %404 = vmatprep.subr.mxu0 0.0
        %405 = vmatpush1.msra.mxu0 0.0
        %406 = vmatprep.subr.mxu0 0.0
        %407 = vmatpush1.msra.mxu0 0.0
        %408 = vmatprep.subr.mxu0 0.0
        %409 = vmatpush1.msra.mxu0 0.0
        %410 = vmatprep.subr.mxu0 0.0
        %411 = vmatpush1.msra.mxu0 0.0
        %412 = vmatprep.subr.mxu0 0.0
        %413 = vmatpush1.msra.mxu0 0.0
        %414 = vmatprep.subr.mxu0 0.0
        %415 = vmatpush1.msra.mxu0 0.0
        %416 = vmatprep.subr.mxu0 0.0
        %417 = vmatpush1.msra.mxu0 0.0
        %418 = vmatprep.mubr.f32.mxu0 0.0
        %419 = vmatmul.mubr.f32.gmra.mrb[0].mxu0 %v331
        %v420 = vpop.f32.mrb[0].mxu0
        %v421 = vadd.f32 %v328, %v420
        %v422 = vpop.f32.mrb[0].mxu0
        %423 = vmatprep.mubr.f32.mxu0 0.0
        %424 = vmatmul.mubr.f32.gmra.mrb[0].mxu0 %v334
        %v425 = vpop.f32.mrb[0].mxu0
        %v426 = vadd.f32 %v328, %v425
        %v427 = vpop.f32.mrb[0].mxu0
        %428 = vmatprep.mubr.f32.mxu0 0.0
        %429 = vmatmul.mubr.f32.gmra.mrb[0].mxu0 %v337
        %v430 = vpop.f32.mrb[0].mxu0
        %v431 = vadd.f32 %v328, %v430
        %v432 = vpop.f32.mrb[0].mxu0
        %433 = vmatprep.mubr.f32.mxu0 0.0
        %434 = vmatmul.mubr.f32.gmra.mrb[0].mxu0 %v340
        %v435 = vpop.f32.mrb[0].mxu0
        %v436 = vadd.f32 %v328, %v435
        %v437 = vpop.f32.mrb[0].mxu0
        %438 = vmatprep.mubr.f32.mxu0 0.0
        %439 = vmatmul.mubr.f32.gmra.mrb[0].mxu0 %v343
        %v440 = vpop.f32.mrb[0].mxu0
        %v441 = vadd.f32 %v328, %v440
        %v442 = vpop.f32.mrb[0].mxu0
        %443 = vmatprep.mubr.f32.mxu0 0.0
        %444 = vmatmul.mubr.f32.gmra.mrb[0].mxu0 %v346
        %v445 = vpop.f32.mrb[0].mxu0
        %v446 = vadd.f32 %v328, %v445
        %v447 = vpop.f32.mrb[0].mxu0
        %448 = vmatprep.mubr.f32.mxu0 0.0
        %449 = vmatmul.mubr.f32.gmra.mrb[0].mxu0 %v349
        %v450 = vpop.f32.mrb[0].mxu0
        %v451 = vadd.f32 %v328, %v450
        %v452 = vpop.f32.mrb[0].mxu0
        %453 = vmatprep.mubr.f32.mxu0 0.0
        %454 = vmatmul.mubr.f32.gmra.mrb[0].mxu0 %v352
        %v455 = vpop.f32.mrb[0].mxu0
        %v456 = vadd.f32 %v328, %v455
        %v457 = vpop.f32.mrb[0].mxu0
        %458 = vdwg.mxu0
        %vm459 = vcmp.ge.f32.partialorder %v421, 0.0
        %vm460 = vcmp.ge.f32.partialorder %v426, 0.0
        %vm461 = vcmp.ge.f32.partialorder %v431, 0.0
        %vm462 = vcmp.ge.f32.partialorder %v436, 0.0
        %vm463 = vcmp.ge.f32.partialorder %v441, 0.0
        %vm464 = vcmp.ge.f32.partialorder %v446, 0.0
        %vm465 = vcmp.ge.f32.partialorder %v451, 0.0
        %vm466 = vcmp.ge.f32.partialorder %v456, 0.0
        %v467 = vmul.f32 %v421, 0.01
        %v468 = vmul.f32 %v426, 0.01
        %v469 = vmul.f32 %v431, 0.01
        %v470 = vmul.f32 %v436, 0.01
        %v471 = vmul.f32 %v441, 0.01
        %v472 = vmul.f32 %v446, 0.01
        %v473 = vmul.f32 %v451, 0.01
        %v474 = vmul.f32 %v456, 0.01
        %v475 = vsel %vm459, %v421, %v467
        %v476 = vsel %vm460, %v426, %v468
        %v477 = vsel %vm461, %v431, %v469
        %v478 = vsel %vm462, %v436, %v470
        %v479 = vsel %vm463, %v441, %v471
        %v480 = vsel %vm464, %v446, %v472
        %v481 = vsel %vm465, %v451, %v473
        %v482 = vsel %vm466, %v456, %v474
        %v483 = vld [vmem:[%s3 + $0x18] sm:$0xff]
        %v484 = vld [vmem:[%s3 + $0x20] sm:$0x1]
        %v485 = vlaneseq
        %v486 = vshrl.u32 %v485, 7
        %v487 = vsub.s32 0, %v486
        %v488 = vrot.slane %v484, %v487
        %vm489 = vcmask 64512
        %v491 = vsel %vm489, %v250, 0
        %v494 = vsel %vm489, %v251, 0
        %v497 = vsel %vm489, %v252, 0
        %v500 = vsel %vm489, %v253, 0
        %v503 = vsel %vm489, %v254, 0
        %v506 = vsel %vm489, %v255, 0
        %v509 = vsel %vm489, %v256, 0
        %v512 = vsel %vm489, %v257, 0
        %v515 = vsel %vm489, %v258, 0
        %v518 = vsel %vm489, %v259, 0
        %v521 = vsel %vm489, %v260, 0
        %v524 = vsel %vm489, %v261, 0
        %v527 = vsel %vm489, %v262, 0
        %v530 = vsel %vm489, %v263, 0
        %v533 = vsel %vm489, %v264, 0
        %v536 = vsel %vm489, %v265, 0
        %v539 = vsel %vm489, %v266, 0
        %v542 = vsel %vm489, %v267, 0
        %v545 = vsel %vm489, %v268, 0
        %v548 = vsel %vm489, %v269, 0
        %v551 = vsel %vm489, %v270, 0
        %v554 = vsel %vm489, %v271, 0
        %v557 = vsel %vm489, %v272, 0
        %v560 = vsel %vm489, %v273, 0
        %v563 = vsel %vm489, %v274, 0
        %v566 = vsel %vm489, %v275, 0
        %v569 = vsel %vm489, %v276, 0
        %v572 = vsel %vm489, %v277, 0
        %v575 = vsel %vm489, %v278, 0
        %v578 = vsel %vm489, %v279, 0
        %v581 = vsel %vm489, %v280, 0
        %v584 = vsel %vm489, %v281, 0
        %v587 = vsel %vm489, %v282, 0
        %v590 = vsel %vm489, %v283, 0
        %v593 = vsel %vm489, %v284, 0
        %v596 = vsel %vm489, %v285, 0
        %v599 = vsel %vm489, %v286, 0
        %v602 = vsel %vm489, %v287, 0
        %v605 = vsel %vm489, %v288, 0
        %v608 = vsel %vm489, %v289, 0
        %v611 = vsel %vm489, %v290, 0
        %v614 = vsel %vm489, %v291, 0
        %v617 = vsel %vm489, %v292, 0
        %v620 = vsel %vm489, %v293, 0
        %v623 = vsel %vm489, %v294, 0
        %v626 = vsel %vm489, %v295, 0
        %v629 = vsel %vm489, %v296, 0
        %v632 = vsel %vm489, %v297, 0
        %v635 = vsel %vm489, %v298, 0
        %v638 = vsel %vm489, %v299, 0
        %v641 = vsel %vm489, %v300, 0
        %v644 = vsel %vm489, %v301, 0
        %v647 = vsel %vm489, %v302, 0
        %v650 = vsel %vm489, %v303, 0
        %v653 = vsel %vm489, %v304, 0
        %v656 = vsel %vm489, %v305, 0
        %v659 = vsel %vm489, %v306, 0
        %v662 = vsel %vm489, %v307, 0
        %v665 = vsel %vm489, %v308, 0
        %v668 = vsel %vm489, %v309, 0
        %v671 = vsel %vm489, %v310, 0
        %v674 = vsel %vm489, %v311, 0
        %v677 = vsel %vm489, %v312, 0
        %v680 = vsel %vm489, %v313, 0
        %682 = vmatprep.subr.mxu0 0.0
        %683 = vmatpush1.msra.mxu0 %v483
        %684 = vmatprep.subr.mxu0 0.0
        %685 = vmatpush1.msra.mxu0 0.0
        %686 = vmatprep.subr.mxu0 0.0
        %687 = vmatpush1.msra.mxu0 0.0
        %688 = vmatprep.subr.mxu0 0.0
        %689 = vmatpush1.msra.mxu0 0.0
        %690 = vmatprep.subr.mxu0 0.0
        %691 = vmatpush1.msra.mxu0 0.0
        %692 = vmatprep.subr.mxu0 0.0
        %693 = vmatpush1.msra.mxu0 0.0
        %694 = vmatprep.subr.mxu0 0.0
        %695 = vmatpush1.msra.mxu0 0.0
        %696 = vmatprep.subr.mxu0 0.0
        %697 = vmatpush1.msra.mxu0 0.0
        %698 = vmatprep.subr.mxu0 0.0
        %699 = vmatpush1.msra.mxu0 0.0
        %700 = vmatprep.subr.mxu0 0.0
        %701 = vmatpush1.msra.mxu0 0.0
        %702 = vmatprep.subr.mxu0 0.0
        %703 = vmatpush1.msra.mxu0 0.0
        %704 = vmatprep.subr.mxu0 0.0
        %705 = vmatpush1.msra.mxu0 0.0
        %706 = vmatprep.subr.mxu0 0.0
        %707 = vmatpush1.msra.mxu0 0.0
        %708 = vmatprep.subr.mxu0 0.0
        %709 = vmatpush1.msra.mxu0 0.0
        %710 = vmatprep.subr.mxu0 0.0
        %711 = vmatpush1.msra.mxu0 0.0
        %712 = vmatprep.subr.mxu0 0.0
        %713 = vmatpush1.msra.mxu0 0.0
        %714 = vmatprep.subr.mxu0 0.0
        %715 = vmatpush1.msra.mxu0 0.0
        %716 = vmatprep.subr.mxu0 0.0
        %717 = vmatpush1.msra.mxu0 0.0
        %718 = vmatprep.subr.mxu0 0.0
        %719 = vmatpush1.msra.mxu0 0.0
        %720 = vmatprep.subr.mxu0 0.0
        %721 = vmatpush1.msra.mxu0 0.0
        %722 = vmatprep.subr.mxu0 0.0
        %723 = vmatpush1.msra.mxu0 0.0
        %724 = vmatprep.subr.mxu0 0.0
        %725 = vmatpush1.msra.mxu0 0.0
        %726 = vmatprep.subr.mxu0 0.0
        %727 = vmatpush1.msra.mxu0 0.0
        %728 = vmatprep.subr.mxu0 0.0
        %729 = vmatpush1.msra.mxu0 0.0
        %730 = vmatprep.subr.mxu0 0.0
        %731 = vmatpush1.msra.mxu0 0.0
        %732 = vmatprep.subr.mxu0 0.0
        %733 = vmatpush1.msra.mxu0 0.0
        %734 = vmatprep.subr.mxu0 0.0
        %735 = vmatpush1.msra.mxu0 0.0
        %736 = vmatprep.subr.mxu0 0.0
        %737 = vmatpush1.msra.mxu0 0.0
        %738 = vmatprep.subr.mxu0 0.0
        %739 = vmatpush1.msra.mxu0 0.0
        %740 = vmatprep.subr.mxu0 0.0
        %741 = vmatpush1.msra.mxu0 0.0
        %742 = vmatprep.subr.mxu0 0.0
        %743 = vmatpush1.msra.mxu0 0.0
        %744 = vmatprep.subr.mxu0 0.0
        %745 = vmatpush1.msra.mxu0 0.0
        %746 = vmatprep.mubr.f32.mxu0 0.0
        %747 = vmatmul.mubr.f32.gmra.mrb[0].mxu0 %v491
        %v748 = vpop.f32.mrb[0].mxu0
        %v749 = vadd.f32 %v488, %v748
        %v750 = vpop.f32.mrb[0].mxu0
        %751 = vmatprep.mubr.f32.mxu0 0.0
        %752 = vmatmul.mubr.f32.gmra.mrb[0].mxu0 %v494
        %v753 = vpop.f32.mrb[0].mxu0
        %v754 = vadd.f32 %v488, %v753
        %v755 = vpop.f32.mrb[0].mxu0
        %756 = vmatprep.mubr.f32.mxu0 0.0
        %757 = vmatmul.mubr.f32.gmra.mrb[0].mxu0 %v497
        %v758 = vpop.f32.mrb[0].mxu0
        %v759 = vadd.f32 %v488, %v758
        %v760 = vpop.f32.mrb[0].mxu0
        %761 = vmatprep.mubr.f32.mxu0 0.0
        %762 = vmatmul.mubr.f32.gmra.mrb[0].mxu0 %v500
        %v763 = vpop.f32.mrb[0].mxu0
        %v764 = vadd.f32 %v488, %v763
        %v765 = vpop.f32.mrb[0].mxu0
        %766 = vmatprep.mubr.f32.mxu0 0.0
        %767 = vmatmul.mubr.f32.gmra.mrb[0].mxu0 %v503
        %v768 = vpop.f32.mrb[0].mxu0
        %v769 = vadd.f32 %v488, %v768
        %v770 = vpop.f32.mrb[0].mxu0
        %771 = vmatprep.mubr.f32.mxu0 0.0
        %772 = vmatmul.mubr.f32.gmra.mrb[0].mxu0 %v506
        %v773 = vpop.f32.mrb[0].mxu0
        %v774 = vadd.f32 %v488, %v773
        %v775 = vpop.f32.mrb[0].mxu0
        %776 = vmatprep.mubr.f32.mxu0 0.0
        %777 = vmatmul.mubr.f32.gmra.mrb[0].mxu0 %v509
        %v778 = vpop.f32.mrb[0].mxu0
        %v779 = vadd.f32 %v488, %v778
        %v780 = vpop.f32.mrb[0].mxu0
        %781 = vmatprep.mubr.f32.mxu0 0.0
        %782 = vmatmul.mubr.f32.gmra.mrb[0].mxu0 %v512
        %v783 = vpop.f32.mrb[0].mxu0
        %v784 = vadd.f32 %v488, %v783
        %v785 = vpop.f32.mrb[0].mxu0
        %786 = vmatprep.mubr.f32.mxu0 0.0
        %787 = vmatmul.mubr.f32.gmra.mrb[0].mxu0 %v515
        %v788 = vpop.f32.mrb[0].mxu0
        %v789 = vadd.f32 %v488, %v788
        %v790 = vpop.f32.mrb[0].mxu0
        %791 = vmatprep.mubr.f32.mxu0 0.0
        %792 = vmatmul.mubr.f32.gmra.mrb[0].mxu0 %v518
        %v793 = vpop.f32.mrb[0].mxu0
        %v794 = vadd.f32 %v488, %v793
        %v795 = vpop.f32.mrb[0].mxu0
        %796 = vmatprep.mubr.f32.mxu0 0.0
        %797 = vmatmul.mubr.f32.gmra.mrb[0].mxu0 %v521
        %v798 = vpop.f32.mrb[0].mxu0
        %v799 = vadd.f32 %v488, %v798
        %v800 = vpop.f32.mrb[0].mxu0
        %801 = vmatprep.mubr.f32.mxu0 0.0
        %802 = vmatmul.mubr.f32.gmra.mrb[0].mxu0 %v524
        %v803 = vpop.f32.mrb[0].mxu0
        %v804 = vadd.f32 %v488, %v803
        %v805 = vpop.f32.mrb[0].mxu0
        %806 = vmatprep.mubr.f32.mxu0 0.0
        %807 = vmatmul.mubr.f32.gmra.mrb[0].mxu0 %v527
        %v808 = vpop.f32.mrb[0].mxu0
        %v809 = vadd.f32 %v488, %v808
        %v810 = vpop.f32.mrb[0].mxu0
        %811 = vmatprep.mubr.f32.mxu0 0.0
        %812 = vmatmul.mubr.f32.gmra.mrb[0].mxu0 %v530
        %v813 = vpop.f32.mrb[0].mxu0
        %v814 = vadd.f32 %v488, %v813
        %v815 = vpop.f32.mrb[0].mxu0
        %816 = vmatprep.mubr.f32.mxu0 0.0
        %817 = vmatmul.mubr.f32.gmra.mrb[0].mxu0 %v533
        %v818 = vpop.f32.mrb[0].mxu0
        %v819 = vadd.f32 %v488, %v818
        %v820 = vpop.f32.mrb[0].mxu0
        %821 = vmatprep.mubr.f32.mxu0 0.0
        %822 = vmatmul.mubr.f32.gmra.mrb[0].mxu0 %v536
        %v823 = vpop.f32.mrb[0].mxu0
        %v824 = vadd.f32 %v488, %v823
        %v825 = vpop.f32.mrb[0].mxu0
        %826 = vmatprep.mubr.f32.mxu0 0.0
        %827 = vmatmul.mubr.f32.gmra.mrb[0].mxu0 %v539
        %v828 = vpop.f32.mrb[0].mxu0
        %v829 = vadd.f32 %v488, %v828
        %v830 = vpop.f32.mrb[0].mxu0
        %831 = vmatprep.mubr.f32.mxu0 0.0
        %832 = vmatmul.mubr.f32.gmra.mrb[0].mxu0 %v542
        %v833 = vpop.f32.mrb[0].mxu0
        %v834 = vadd.f32 %v488, %v833
        %v835 = vpop.f32.mrb[0].mxu0
        %836 = vmatprep.mubr.f32.mxu0 0.0
        %837 = vmatmul.mubr.f32.gmra.mrb[0].mxu0 %v545
        %v838 = vpop.f32.mrb[0].mxu0
        %v839 = vadd.f32 %v488, %v838
        %v840 = vpop.f32.mrb[0].mxu0
        %841 = vmatprep.mubr.f32.mxu0 0.0
        %842 = vmatmul.mubr.f32.gmra.mrb[0].mxu0 %v548
        %v843 = vpop.f32.mrb[0].mxu0
        %v844 = vadd.f32 %v488, %v843
        %v845 = vpop.f32.mrb[0].mxu0
        %846 = vmatprep.mubr.f32.mxu0 0.0
        %847 = vmatmul.mubr.f32.gmra.mrb[0].mxu0 %v551
        %v848 = vpop.f32.mrb[0].mxu0
        %v849 = vadd.f32 %v488, %v848
        %v850 = vpop.f32.mrb[0].mxu0
        %851 = vmatprep.mubr.f32.mxu0 0.0
        %852 = vmatmul.mubr.f32.gmra.mrb[0].mxu0 %v554
        %v853 = vpop.f32.mrb[0].mxu0
        %v854 = vadd.f32 %v488, %v853
        %v855 = vpop.f32.mrb[0].mxu0
        %856 = vmatprep.mubr.f32.mxu0 0.0
        %857 = vmatmul.mubr.f32.gmra.mrb[0].mxu0 %v557
        %v858 = vpop.f32.mrb[0].mxu0
        %v859 = vadd.f32 %v488, %v858
        %v860 = vpop.f32.mrb[0].mxu0
        %861 = vmatprep.mubr.f32.mxu0 0.0
        %862 = vmatmul.mubr.f32.gmra.mrb[0].mxu0 %v560
        %v863 = vpop.f32.mrb[0].mxu0
        %v864 = vadd.f32 %v488, %v863
        %v865 = vpop.f32.mrb[0].mxu0
        %866 = vmatprep.mubr.f32.mxu0 0.0
        %867 = vmatmul.mubr.f32.gmra.mrb[0].mxu0 %v563
        %v868 = vpop.f32.mrb[0].mxu0
        %v869 = vadd.f32 %v488, %v868
        %v870 = vpop.f32.mrb[0].mxu0
        %871 = vmatprep.mubr.f32.mxu0 0.0
        %872 = vmatmul.mubr.f32.gmra.mrb[0].mxu0 %v566
        %v873 = vpop.f32.mrb[0].mxu0
        %v874 = vadd.f32 %v488, %v873
        %v875 = vpop.f32.mrb[0].mxu0
        %876 = vmatprep.mubr.f32.mxu0 0.0
        %877 = vmatmul.mubr.f32.gmra.mrb[0].mxu0 %v569
        %v878 = vpop.f32.mrb[0].mxu0
        %v879 = vadd.f32 %v488, %v878
        %v880 = vpop.f32.mrb[0].mxu0
        %881 = vmatprep.mubr.f32.mxu0 0.0
        %882 = vmatmul.mubr.f32.gmra.mrb[0].mxu0 %v572
        %v883 = vpop.f32.mrb[0].mxu0
        %v884 = vadd.f32 %v488, %v883
        %v885 = vpop.f32.mrb[0].mxu0
        %886 = vmatprep.mubr.f32.mxu0 0.0
        %887 = vmatmul.mubr.f32.gmra.mrb[0].mxu0 %v575
        %v888 = vpop.f32.mrb[0].mxu0
        %v889 = vadd.f32 %v488, %v888
        %v890 = vpop.f32.mrb[0].mxu0
        %891 = vmatprep.mubr.f32.mxu0 0.0
        %892 = vmatmul.mubr.f32.gmra.mrb[0].mxu0 %v578
        %v893 = vpop.f32.mrb[0].mxu0
        %v894 = vadd.f32 %v488, %v893
        %v895 = vpop.f32.mrb[0].mxu0
        %896 = vmatprep.mubr.f32.mxu0 0.0
        %897 = vmatmul.mubr.f32.gmra.mrb[0].mxu0 %v581
        %v898 = vpop.f32.mrb[0].mxu0
        %v899 = vadd.f32 %v488, %v898
        %v900 = vpop.f32.mrb[0].mxu0
        %901 = vmatprep.mubr.f32.mxu0 0.0
        %902 = vmatmul.mubr.f32.gmra.mrb[0].mxu0 %v584
        %v903 = vpop.f32.mrb[0].mxu0
        %v904 = vadd.f32 %v488, %v903
        %v905 = vpop.f32.mrb[0].mxu0
        %906 = vmatprep.mubr.f32.mxu0 0.0
        %907 = vmatmul.mubr.f32.gmra.mrb[0].mxu0 %v587
        %v908 = vpop.f32.mrb[0].mxu0
        %v909 = vadd.f32 %v488, %v908
        %v910 = vpop.f32.mrb[0].mxu0
        %911 = vmatprep.mubr.f32.mxu0 0.0
        %912 = vmatmul.mubr.f32.gmra.mrb[0].mxu0 %v590
        %v913 = vpop.f32.mrb[0].mxu0
        %v914 = vadd.f32 %v488, %v913
        %v915 = vpop.f32.mrb[0].mxu0
        %916 = vmatprep.mubr.f32.mxu0 0.0
        %917 = vmatmul.mubr.f32.gmra.mrb[0].mxu0 %v593
        %v918 = vpop.f32.mrb[0].mxu0
        %v919 = vadd.f32 %v488, %v918
        %v920 = vpop.f32.mrb[0].mxu0
        %921 = vmatprep.mubr.f32.mxu0 0.0
        %922 = vmatmul.mubr.f32.gmra.mrb[0].mxu0 %v596
        %v923 = vpop.f32.mrb[0].mxu0
        %v924 = vadd.f32 %v488, %v923
        %v925 = vpop.f32.mrb[0].mxu0
        %926 = vmatprep.mubr.f32.mxu0 0.0
        %927 = vmatmul.mubr.f32.gmra.mrb[0].mxu0 %v599
        %v928 = vpop.f32.mrb[0].mxu0
        %v929 = vadd.f32 %v488, %v928
        %v930 = vpop.f32.mrb[0].mxu0
        %931 = vmatprep.mubr.f32.mxu0 0.0
        %932 = vmatmul.mubr.f32.gmra.mrb[0].mxu0 %v602
        %v933 = vpop.f32.mrb[0].mxu0
        %v934 = vadd.f32 %v488, %v933
        %v935 = vpop.f32.mrb[0].mxu0
        %936 = vmatprep.mubr.f32.mxu0 0.0
        %937 = vmatmul.mubr.f32.gmra.mrb[0].mxu0 %v605
        %v938 = vpop.f32.mrb[0].mxu0
        %v939 = vadd.f32 %v488, %v938
        %v940 = vpop.f32.mrb[0].mxu0
        %941 = vmatprep.mubr.f32.mxu0 0.0
        %942 = vmatmul.mubr.f32.gmra.mrb[0].mxu0 %v608
        %v943 = vpop.f32.mrb[0].mxu0
        %v944 = vadd.f32 %v488, %v943
        %v945 = vpop.f32.mrb[0].mxu0
        %946 = vmatprep.mubr.f32.mxu0 0.0
        %947 = vmatmul.mubr.f32.gmra.mrb[0].mxu0 %v611
        %v948 = vpop.f32.mrb[0].mxu0
        %v949 = vadd.f32 %v488, %v948
        %v950 = vpop.f32.mrb[0].mxu0
        %951 = vmatprep.mubr.f32.mxu0 0.0
        %952 = vmatmul.mubr.f32.gmra.mrb[0].mxu0 %v614
        %v953 = vpop.f32.mrb[0].mxu0
        %v954 = vadd.f32 %v488, %v953
        %v955 = vpop.f32.mrb[0].mxu0
        %956 = vmatprep.mubr.f32.mxu0 0.0
        %957 = vmatmul.mubr.f32.gmra.mrb[0].mxu0 %v617
        %v958 = vpop.f32.mrb[0].mxu0
        %v959 = vadd.f32 %v488, %v958
        %v960 = vpop.f32.mrb[0].mxu0
        %961 = vmatprep.mubr.f32.mxu0 0.0
        %962 = vmatmul.mubr.f32.gmra.mrb[0].mxu0 %v620
        %v963 = vpop.f32.mrb[0].mxu0
        %v964 = vadd.f32 %v488, %v963
        %v965 = vpop.f32.mrb[0].mxu0
        %966 = vmatprep.mubr.f32.mxu0 0.0
        %967 = vmatmul.mubr.f32.gmra.mrb[0].mxu0 %v623
        %v968 = vpop.f32.mrb[0].mxu0
        %v969 = vadd.f32 %v488, %v968
        %v970 = vpop.f32.mrb[0].mxu0
        %971 = vmatprep.mubr.f32.mxu0 0.0
        %972 = vmatmul.mubr.f32.gmra.mrb[0].mxu0 %v626
        %v973 = vpop.f32.mrb[0].mxu0
        %v974 = vadd.f32 %v488, %v973
        %v975 = vpop.f32.mrb[0].mxu0
        %976 = vmatprep.mubr.f32.mxu0 0.0
        %977 = vmatmul.mubr.f32.gmra.mrb[0].mxu0 %v629
        %v978 = vpop.f32.mrb[0].mxu0
        %v979 = vadd.f32 %v488, %v978
        %v980 = vpop.f32.mrb[0].mxu0
        %981 = vmatprep.mubr.f32.mxu0 0.0
        %982 = vmatmul.mubr.f32.gmra.mrb[0].mxu0 %v632
        %v983 = vpop.f32.mrb[0].mxu0
        %v984 = vadd.f32 %v488, %v983
        %v985 = vpop.f32.mrb[0].mxu0
        %986 = vmatprep.mubr.f32.mxu0 0.0
        %987 = vmatmul.mubr.f32.gmra.mrb[0].mxu0 %v635
        %v988 = vpop.f32.mrb[0].mxu0
        %v989 = vadd.f32 %v488, %v988
        %v990 = vpop.f32.mrb[0].mxu0
        %991 = vmatprep.mubr.f32.mxu0 0.0
        %992 = vmatmul.mubr.f32.gmra.mrb[0].mxu0 %v638
        %v993 = vpop.f32.mrb[0].mxu0
        %v994 = vadd.f32 %v488, %v993
        %v995 = vpop.f32.mrb[0].mxu0
        %996 = vmatprep.mubr.f32.mxu0 0.0
        %997 = vmatmul.mubr.f32.gmra.mrb[0].mxu0 %v641
        %v998 = vpop.f32.mrb[0].mxu0
        %v999 = vadd.f32 %v488, %v998
        %v1000 = vpop.f32.mrb[0].mxu0
        %1001 = vmatprep.mubr.f32.mxu0 0.0
        %1002 = vmatmul.mubr.f32.gmra.mrb[0].mxu0 %v644
        %v1003 = vpop.f32.mrb[0].mxu0
        %v1004 = vadd.f32 %v488, %v1003
        %v1005 = vpop.f32.mrb[0].mxu0
        %1006 = vmatprep.mubr.f32.mxu0 0.0
        %1007 = vmatmul.mubr.f32.gmra.mrb[0].mxu0 %v647
        %v1008 = vpop.f32.mrb[0].mxu0
        %v1009 = vadd.f32 %v488, %v1008
        %v1010 = vpop.f32.mrb[0].mxu0
        %1011 = vmatprep.mubr.f32.mxu0 0.0
        %1012 = vmatmul.mubr.f32.gmra.mrb[0].mxu0 %v650
        %v1013 = vpop.f32.mrb[0].mxu0
        %v1014 = vadd.f32 %v488, %v1013
        %v1015 = vpop.f32.mrb[0].mxu0
        %1016 = vmatprep.mubr.f32.mxu0 0.0
        %1017 = vmatmul.mubr.f32.gmra.mrb[0].mxu0 %v653
        %v1018 = vpop.f32.mrb[0].mxu0
        %v1019 = vadd.f32 %v488, %v1018
        %v1020 = vpop.f32.mrb[0].mxu0
        %1021 = vmatprep.mubr.f32.mxu0 0.0
        %1022 = vmatmul.mubr.f32.gmra.mrb[0].mxu0 %v656
        %v1023 = vpop.f32.mrb[0].mxu0
        %v1024 = vadd.f32 %v488, %v1023
        %v1025 = vpop.f32.mrb[0].mxu0
        %1026 = vmatprep.mubr.f32.mxu0 0.0
        %1027 = vmatmul.mubr.f32.gmra.mrb[0].mxu0 %v659
        %v1028 = vpop.f32.mrb[0].mxu0
        %v1029 = vadd.f32 %v488, %v1028
        %v1030 = vpop.f32.mrb[0].mxu0
        %1031 = vmatprep.mubr.f32.mxu0 0.0
        %1032 = vmatmul.mubr.f32.gmra.mrb[0].mxu0 %v662
        %v1033 = vpop.f32.mrb[0].mxu0
        %v1034 = vadd.f32 %v488, %v1033
        %v1035 = vpop.f32.mrb[0].mxu0
        %1036 = vmatprep.mubr.f32.mxu0 0.0
        %1037 = vmatmul.mubr.f32.gmra.mrb[0].mxu0 %v665
        %v1038 = vpop.f32.mrb[0].mxu0
        %v1039 = vadd.f32 %v488, %v1038
        %v1040 = vpop.f32.mrb[0].mxu0
        %1041 = vmatprep.mubr.f32.mxu0 0.0
        %1042 = vmatmul.mubr.f32.gmra.mrb[0].mxu0 %v668
        %v1043 = vpop.f32.mrb[0].mxu0
        %v1044 = vadd.f32 %v488, %v1043
        %v1045 = vpop.f32.mrb[0].mxu0
        %1046 = vmatprep.mubr.f32.mxu0 0.0
        %1047 = vmatmul.mubr.f32.gmra.mrb[0].mxu0 %v671
        %v1048 = vpop.f32.mrb[0].mxu0
        %v1049 = vadd.f32 %v488, %v1048
        %v1050 = vpop.f32.mrb[0].mxu0
        %1051 = vmatprep.mubr.f32.mxu0 0.0
        %1052 = vmatmul.mubr.f32.gmra.mrb[0].mxu0 %v674
        %v1053 = vpop.f32.mrb[0].mxu0
        %v1054 = vadd.f32 %v488, %v1053
        %v1055 = vpop.f32.mrb[0].mxu0
        %1056 = vmatprep.mubr.f32.mxu0 0.0
        %1057 = vmatmul.mubr.f32.gmra.mrb[0].mxu0 %v677
        %v1058 = vpop.f32.mrb[0].mxu0
        %v1059 = vadd.f32 %v488, %v1058
        %v1060 = vpop.f32.mrb[0].mxu0
        %1061 = vmatprep.mubr.f32.mxu0 0.0
        %1062 = vmatmul.mubr.f32.gmra.mrb[0].mxu0 %v680
        %v1063 = vpop.f32.mrb[0].mxu0
        %v1064 = vadd.f32 %v488, %v1063
        %v1065 = vpop.f32.mrb[0].mxu0
        %1066 = vdwg.mxu0
        %vm1067 = vcmp.ge.f32.partialorder %v749, 0.0
        %vm1068 = vcmp.ge.f32.partialorder %v754, 0.0
        %vm1069 = vcmp.ge.f32.partialorder %v759, 0.0
        %vm1070 = vcmp.ge.f32.partialorder %v764, 0.0
        %vm1071 = vcmp.ge.f32.partialorder %v769, 0.0
        %vm1072 = vcmp.ge.f32.partialorder %v774, 0.0
        %vm1073 = vcmp.ge.f32.partialorder %v779, 0.0
        %vm1074 = vcmp.ge.f32.partialorder %v784, 0.0
        %vm1075 = vcmp.ge.f32.partialorder %v789, 0.0
        %vm1076 = vcmp.ge.f32.partialorder %v794, 0.0
        %vm1077 = vcmp.ge.f32.partialorder %v799, 0.0
        %vm1078 = vcmp.ge.f32.partialorder %v804, 0.0
        %vm1079 = vcmp.ge.f32.partialorder %v809, 0.0
        %vm1080 = vcmp.ge.f32.partialorder %v814, 0.0
        %vm1081 = vcmp.ge.f32.partialorder %v819, 0.0
        %vm1082 = vcmp.ge.f32.partialorder %v824, 0.0
        %vm1083 = vcmp.ge.f32.partialorder %v829, 0.0
        %vm1084 = vcmp.ge.f32.partialorder %v834, 0.0
        %vm1085 = vcmp.ge.f32.partialorder %v839, 0.0
        %vm1086 = vcmp.ge.f32.partialorder %v844, 0.0
        %vm1087 = vcmp.ge.f32.partialorder %v849, 0.0
        %vm1088 = vcmp.ge.f32.partialorder %v854, 0.0
        %vm1089 = vcmp.ge.f32.partialorder %v859, 0.0
        %vm1090 = vcmp.ge.f32.partialorder %v864, 0.0
        %vm1091 = vcmp.ge.f32.partialorder %v869, 0.0
        %vm1092 = vcmp.ge.f32.partialorder %v874, 0.0
        %vm1093 = vcmp.ge.f32.partialorder %v879, 0.0
        %vm1094 = vcmp.ge.f32.partialorder %v884, 0.0
        %vm1095 = vcmp.ge.f32.partialorder %v889, 0.0
        %vm1096 = vcmp.ge.f32.partialorder %v894, 0.0
        %vm1097 = vcmp.ge.f32.partialorder %v899, 0.0
        %vm1098 = vcmp.ge.f32.partialorder %v904, 0.0
        %vm1099 = vcmp.ge.f32.partialorder %v909, 0.0
        %vm1100 = vcmp.ge.f32.partialorder %v914, 0.0
        %vm1101 = vcmp.ge.f32.partialorder %v919, 0.0
        %vm1102 = vcmp.ge.f32.partialorder %v924, 0.0
        %vm1103 = vcmp.ge.f32.partialorder %v929, 0.0
        %vm1104 = vcmp.ge.f32.partialorder %v934, 0.0
        %vm1105 = vcmp.ge.f32.partialorder %v939, 0.0
        %vm1106 = vcmp.ge.f32.partialorder %v944, 0.0
        %vm1107 = vcmp.ge.f32.partialorder %v949, 0.0
        %vm1108 = vcmp.ge.f32.partialorder %v954, 0.0
        %vm1109 = vcmp.ge.f32.partialorder %v959, 0.0
        %vm1110 = vcmp.ge.f32.partialorder %v964, 0.0
        %vm1111 = vcmp.ge.f32.partialorder %v969, 0.0
        %vm1112 = vcmp.ge.f32.partialorder %v974, 0.0
        %vm1113 = vcmp.ge.f32.partialorder %v979, 0.0
        %vm1114 = vcmp.ge.f32.partialorder %v984, 0.0
        %vm1115 = vcmp.ge.f32.partialorder %v989, 0.0
        %vm1116 = vcmp.ge.f32.partialorder %v994, 0.0
        %vm1117 = vcmp.ge.f32.partialorder %v999, 0.0
        %vm1118 = vcmp.ge.f32.partialorder %v1004, 0.0
        %vm1119 = vcmp.ge.f32.partialorder %v1009, 0.0
        %vm1120 = vcmp.ge.f32.partialorder %v1014, 0.0
        %vm1121 = vcmp.ge.f32.partialorder %v1019, 0.0
        %vm1122 = vcmp.ge.f32.partialorder %v1024, 0.0
        %vm1123 = vcmp.ge.f32.partialorder %v1029, 0.0
        %vm1124 = vcmp.ge.f32.partialorder %v1034, 0.0
        %vm1125 = vcmp.ge.f32.partialorder %v1039, 0.0
        %vm1126 = vcmp.ge.f32.partialorder %v1044, 0.0
        %vm1127 = vcmp.ge.f32.partialorder %v1049, 0.0
        %vm1128 = vcmp.ge.f32.partialorder %v1054, 0.0
        %vm1129 = vcmp.ge.f32.partialorder %v1059, 0.0
        %vm1130 = vcmp.ge.f32.partialorder %v1064, 0.0
        %v1131 = vmul.f32 %v749, 0.01
        %v1132 = vmul.f32 %v754, 0.01
        %v1133 = vmul.f32 %v759, 0.01
        %v1134 = vmul.f32 %v764, 0.01
        %v1135 = vmul.f32 %v769, 0.01
        %v1136 = vmul.f32 %v774, 0.01
        %v1137 = vmul.f32 %v779, 0.01
        %v1138 = vmul.f32 %v784, 0.01
        %v1139 = vmul.f32 %v789, 0.01
        %v1140 = vmul.f32 %v794, 0.01
        %v1141 = vmul.f32 %v799, 0.01
        %v1142 = vmul.f32 %v804, 0.01
        %v1143 = vmul.f32 %v809, 0.01
        %v1144 = vmul.f32 %v814, 0.01
        %v1145 = vmul.f32 %v819, 0.01
        %v1146 = vmul.f32 %v824, 0.01
        %v1147 = vmul.f32 %v829, 0.01
        %v1148 = vmul.f32 %v834, 0.01
        %v1149 = vmul.f32 %v839, 0.01
        %v1150 = vmul.f32 %v844, 0.01
        %v1151 = vmul.f32 %v849, 0.01
        %v1152 = vmul.f32 %v854, 0.01
        %v1153 = vmul.f32 %v859, 0.01
        %v1154 = vmul.f32 %v864, 0.01
        %v1155 = vmul.f32 %v869, 0.01
        %v1156 = vmul.f32 %v874, 0.01
        %v1157 = vmul.f32 %v879, 0.01
        %v1158 = vmul.f32 %v884, 0.01
        %v1159 = vmul.f32 %v889, 0.01
        %v1160 = vmul.f32 %v894, 0.01
        %v1161 = vmul.f32 %v899, 0.01
        %v1162 = vmul.f32 %v904, 0.01
        %v1163 = vmul.f32 %v909, 0.01
        %v1164 = vmul.f32 %v914, 0.01
        %v1165 = vmul.f32 %v919, 0.01
        %v1166 = vmul.f32 %v924, 0.01
        %v1167 = vmul.f32 %v929, 0.01
        %v1168 = vmul.f32 %v934, 0.01
        %v1169 = vmul.f32 %v939, 0.01
        %v1170 = vmul.f32 %v944, 0.01
        %v1171 = vmul.f32 %v949, 0.01
        %v1172 = vmul.f32 %v954, 0.01
        %v1173 = vmul.f32 %v959, 0.01
        %v1174 = vmul.f32 %v964, 0.01
        %v1175 = vmul.f32 %v969, 0.01
        %v1176 = vmul.f32 %v974, 0.01
        %v1177 = vmul.f32 %v979, 0.01
        %v1178 = vmul.f32 %v984, 0.01
        %v1179 = vmul.f32 %v989, 0.01
        %v1180 = vmul.f32 %v994, 0.01
        %v1181 = vmul.f32 %v999, 0.01
        %v1182 = vmul.f32 %v1004, 0.01
        %v1183 = vmul.f32 %v1009, 0.01
        %v1184 = vmul.f32 %v1014, 0.01
        %v1185 = vmul.f32 %v1019, 0.01
        %v1186 = vmul.f32 %v1024, 0.01
        %v1187 = vmul.f32 %v1029, 0.01
        %v1188 = vmul.f32 %v1034, 0.01
        %v1189 = vmul.f32 %v1039, 0.01
        %v1190 = vmul.f32 %v1044, 0.01
        %v1191 = vmul.f32 %v1049, 0.01
        %v1192 = vmul.f32 %v1054, 0.01
        %v1193 = vmul.f32 %v1059, 0.01
        %v1194 = vmul.f32 %v1064, 0.01
        %v1195 = vsel %vm1067, %v749, %v1131
        %v1196 = vsel %vm1068, %v754, %v1132
        %v1197 = vsel %vm1069, %v759, %v1133
        %v1198 = vsel %vm1070, %v764, %v1134
        %v1199 = vsel %vm1071, %v769, %v1135
        %v1200 = vsel %vm1072, %v774, %v1136
        %v1201 = vsel %vm1073, %v779, %v1137
        %v1202 = vsel %vm1074, %v784, %v1138
        %v1203 = vsel %vm1075, %v789, %v1139
        %v1204 = vsel %vm1076, %v794, %v1140
        %v1205 = vsel %vm1077, %v799, %v1141
        %v1206 = vsel %vm1078, %v804, %v1142
        %v1207 = vsel %vm1079, %v809, %v1143
        %v1208 = vsel %vm1080, %v814, %v1144
        %v1209 = vsel %vm1081, %v819, %v1145
        %v1210 = vsel %vm1082, %v824, %v1146
        %v1211 = vsel %vm1083, %v829, %v1147
        %v1212 = vsel %vm1084, %v834, %v1148
        %v1213 = vsel %vm1085, %v839, %v1149
        %v1214 = vsel %vm1086, %v844, %v1150
        %v1215 = vsel %vm1087, %v849, %v1151
        %v1216 = vsel %vm1088, %v854, %v1152
        %v1217 = vsel %vm1089, %v859, %v1153
        %v1218 = vsel %vm1090, %v864, %v1154
        %v1219 = vsel %vm1091, %v869, %v1155
        %v1220 = vsel %vm1092, %v874, %v1156
        %v1221 = vsel %vm1093, %v879, %v1157
        %v1222 = vsel %vm1094, %v884, %v1158
        %v1223 = vsel %vm1095, %v889, %v1159
        %v1224 = vsel %vm1096, %v894, %v1160
        %v1225 = vsel %vm1097, %v899, %v1161
        %v1226 = vsel %vm1098, %v904, %v1162
        %v1227 = vsel %vm1099, %v909, %v1163
        %v1228 = vsel %vm1100, %v914, %v1164
        %v1229 = vsel %vm1101, %v919, %v1165
        %v1230 = vsel %vm1102, %v924, %v1166
        %v1231 = vsel %vm1103, %v929, %v1167
        %v1232 = vsel %vm1104, %v934, %v1168
        %v1233 = vsel %vm1105, %v939, %v1169
        %v1234 = vsel %vm1106, %v944, %v1170
        %v1235 = vsel %vm1107, %v949, %v1171
        %v1236 = vsel %vm1108, %v954, %v1172
        %v1237 = vsel %vm1109, %v959, %v1173
        %v1238 = vsel %vm1110, %v964, %v1174
        %v1239 = vsel %vm1111, %v969, %v1175
        %v1240 = vsel %vm1112, %v974, %v1176
        %v1241 = vsel %vm1113, %v979, %v1177
        %v1242 = vsel %vm1114, %v984, %v1178
        %v1243 = vsel %vm1115, %v989, %v1179
        %v1244 = vsel %vm1116, %v994, %v1180
        %v1245 = vsel %vm1117, %v999, %v1181
        %v1246 = vsel %vm1118, %v1004, %v1182
        %v1247 = vsel %vm1119, %v1009, %v1183
        %v1248 = vsel %vm1120, %v1014, %v1184
        %v1249 = vsel %vm1121, %v1019, %v1185
        %v1250 = vsel %vm1122, %v1024, %v1186
        %v1251 = vsel %vm1123, %v1029, %v1187
        %v1252 = vsel %vm1124, %v1034, %v1188
        %v1253 = vsel %vm1125, %v1039, %v1189
        %v1254 = vsel %vm1126, %v1044, %v1190
        %v1255 = vsel %vm1127, %v1049, %v1191
        %v1256 = vsel %vm1128, %v1054, %v1192
        %v1257 = vsel %vm1129, %v1059, %v1193
        %v1258 = vsel %vm1130, %v1064, %v1194
        %v1259 = vld [vmem:[%s3 + $0x28] sm:$0xff]
        %v1260 = vld [vmem:[%s3 + $0x30] sm:$0xff]
        %v1261 = vld [vmem:[%s3 + $0x38] sm:$0xff]
        %v1262 = vld [vmem:[%s3 + $0x40] sm:$0xff]
        %vm1263 = vcmask 261120
        %v1265 = vsel %vm1263, %v1195, 0
        %v1268 = vsel %vm1263, %v1196, 0
        %v1271 = vsel %vm1263, %v1197, 0
        %v1274 = vsel %vm1263, %v1198, 0
        %v1277 = vsel %vm1263, %v1199, 0
        %v1280 = vsel %vm1263, %v1200, 0
        %v1283 = vsel %vm1263, %v1201, 0
        %v1286 = vsel %vm1263, %v1202, 0
        %v1289 = vsel %vm1263, %v1203, 0
        %v1292 = vsel %vm1263, %v1204, 0
        %v1295 = vsel %vm1263, %v1205, 0
        %v1298 = vsel %vm1263, %v1206, 0
        %v1301 = vsel %vm1263, %v1207, 0
        %v1304 = vsel %vm1263, %v1208, 0
        %v1307 = vsel %vm1263, %v1209, 0
        %v1310 = vsel %vm1263, %v1210, 0
        %v1313 = vsel %vm1263, %v1211, 0
        %v1316 = vsel %vm1263, %v1212, 0
        %v1319 = vsel %vm1263, %v1213, 0
        %v1322 = vsel %vm1263, %v1214, 0
        %v1325 = vsel %vm1263, %v1215, 0
        %v1328 = vsel %vm1263, %v1216, 0
        %v1331 = vsel %vm1263, %v1217, 0
        %v1334 = vsel %vm1263, %v1218, 0
        %v1337 = vsel %vm1263, %v1219, 0
        %v1340 = vsel %vm1263, %v1220, 0
        %v1343 = vsel %vm1263, %v1221, 0
        %v1346 = vsel %vm1263, %v1222, 0
        %v1349 = vsel %vm1263, %v1223, 0
        %v1352 = vsel %vm1263, %v1224, 0
        %v1355 = vsel %vm1263, %v1225, 0
        %v1358 = vsel %vm1263, %v1226, 0
        %v1361 = vsel %vm1263, %v1227, 0
        %v1364 = vsel %vm1263, %v1228, 0
        %v1367 = vsel %vm1263, %v1229, 0
        %v1370 = vsel %vm1263, %v1230, 0
        %v1373 = vsel %vm1263, %v1231, 0
        %v1376 = vsel %vm1263, %v1232, 0
        %v1379 = vsel %vm1263, %v1233, 0
        %v1382 = vsel %vm1263, %v1234, 0
        %v1385 = vsel %vm1263, %v1235, 0
        %v1388 = vsel %vm1263, %v1236, 0
        %v1391 = vsel %vm1263, %v1237, 0
        %v1394 = vsel %vm1263, %v1238, 0
        %v1397 = vsel %vm1263, %v1239, 0
        %v1400 = vsel %vm1263, %v1240, 0
        %v1403 = vsel %vm1263, %v1241, 0
        %v1406 = vsel %vm1263, %v1242, 0
        %v1409 = vsel %vm1263, %v1243, 0
        %v1412 = vsel %vm1263, %v1244, 0
        %v1415 = vsel %vm1263, %v1245, 0
        %v1418 = vsel %vm1263, %v1246, 0
        %v1421 = vsel %vm1263, %v1247, 0
        %v1424 = vsel %vm1263, %v1248, 0
        %v1427 = vsel %vm1263, %v1249, 0
        %v1430 = vsel %vm1263, %v1250, 0
        %v1433 = vsel %vm1263, %v1251, 0
        %v1436 = vsel %vm1263, %v1252, 0
        %v1439 = vsel %vm1263, %v1253, 0
        %v1442 = vsel %vm1263, %v1254, 0
        %v1445 = vsel %vm1263, %v1255, 0
        %v1448 = vsel %vm1263, %v1256, 0
        %v1451 = vsel %vm1263, %v1257, 0
        %v1454 = vsel %vm1263, %v1258, 0
        %1456 = vmatprep.subr.mxu0 0.0
        %1457 = vmatpush1.msra.mxu0 %v1259
        %1458 = vmatprep.subr.mxu0 0.0
        %1459 = vmatpush1.msra.mxu0 %v1260
        %1460 = vmatprep.subr.mxu0 0.0
        %1461 = vmatpush1.msra.mxu0 %v1261
        %1462 = vmatprep.subr.mxu0 0.0
        %1463 = vmatpush1.msra.mxu0 %v1262
        %1464 = vmatprep.subr.mxu0 0.0
        %1465 = vmatpush1.msra.mxu0 0.0
        %1466 = vmatprep.subr.mxu0 0.0
        %1467 = vmatpush1.msra.mxu0 0.0
        %1468 = vmatprep.subr.mxu0 0.0
        %1469 = vmatpush1.msra.mxu0 0.0
        %1470 = vmatprep.subr.mxu0 0.0
        %1471 = vmatpush1.msra.mxu0 0.0
        %1472 = vmatprep.subr.mxu0 0.0
        %1473 = vmatpush1.msra.mxu0 0.0
        %1474 = vmatprep.subr.mxu0 0.0
        %1475 = vmatpush1.msra.mxu0 0.0
        %1476 = vmatprep.subr.mxu0 0.0
        %1477 = vmatpush1.msra.mxu0 0.0
        %1478 = vmatprep.subr.mxu0 0.0
        %1479 = vmatpush1.msra.mxu0 0.0
        %1480 = vmatprep.subr.mxu0 0.0
        %1481 = vmatpush1.msra.mxu0 0.0
        %1482 = vmatprep.subr.mxu0 0.0
        %1483 = vmatpush1.msra.mxu0 0.0
        %1484 = vmatprep.subr.mxu0 0.0
        %1485 = vmatpush1.msra.mxu0 0.0
        %1486 = vmatprep.subr.mxu0 0.0
        %1487 = vmatpush1.msra.mxu0 0.0
        %1488 = vmatprep.subr.mxu0 0.0
        %1489 = vmatpush1.msra.mxu0 0.0
        %1490 = vmatprep.subr.mxu0 0.0
        %1491 = vmatpush1.msra.mxu0 0.0
        %1492 = vmatprep.subr.mxu0 0.0
        %1493 = vmatpush1.msra.mxu0 0.0
        %1494 = vmatprep.subr.mxu0 0.0
        %1495 = vmatpush1.msra.mxu0 0.0
        %1496 = vmatprep.subr.mxu0 0.0
        %1497 = vmatpush1.msra.mxu0 0.0
        %1498 = vmatprep.subr.mxu0 0.0
        %1499 = vmatpush1.msra.mxu0 0.0
        %1500 = vmatprep.subr.mxu0 0.0
        %1501 = vmatpush1.msra.mxu0 0.0
        %1502 = vmatprep.subr.mxu0 0.0
        %1503 = vmatpush1.msra.mxu0 0.0
        %1504 = vmatprep.subr.mxu0 0.0
        %1505 = vmatpush1.msra.mxu0 0.0
        %1506 = vmatprep.subr.mxu0 0.0
        %1507 = vmatpush1.msra.mxu0 0.0
        %1508 = vmatprep.subr.mxu0 0.0
        %1509 = vmatpush1.msra.mxu0 0.0
        %1510 = vmatprep.subr.mxu0 0.0
        %1511 = vmatpush1.msra.mxu0 0.0
        %1512 = vmatprep.subr.mxu0 0.0
        %1513 = vmatpush1.msra.mxu0 0.0
        %1514 = vmatprep.subr.mxu0 0.0
        %1515 = vmatpush1.msra.mxu0 0.0
        %1516 = vmatprep.subr.mxu0 0.0
        %1517 = vmatpush1.msra.mxu0 0.0
        %1518 = vmatprep.subr.mxu0 0.0
        %1519 = vmatpush1.msra.mxu0 0.0
        %1520 = vmatprep.mubr.f32.mxu0 0.0
        %1521 = vmatmul.mubr.f32.gmra.mrb[0].mxu0 %v1265
        %v1522 = vpop.f32.mrb[0].mxu0
        %v1523 = vadd.f32 0.0, %v1522
        %v1524 = vpop.f32.mrb[0].mxu0
        %1525 = vmatprep.mubr.f32.mxu0 0.0
        %1526 = vmatmul.mubr.f32.gmra.mrb[0].mxu0 %v1268
        %v1527 = vpop.f32.mrb[0].mxu0
        %v1528 = vadd.f32 0.0, %v1527
        %v1529 = vpop.f32.mrb[0].mxu0
        %1530 = vmatprep.mubr.f32.mxu0 0.0
        %1531 = vmatmul.mubr.f32.gmra.mrb[0].mxu0 %v1271
        %v1532 = vpop.f32.mrb[0].mxu0
        %v1533 = vadd.f32 0.0, %v1532
        %v1534 = vpop.f32.mrb[0].mxu0
        %1535 = vmatprep.mubr.f32.mxu0 0.0
        %1536 = vmatmul.mubr.f32.gmra.mrb[0].mxu0 %v1274
        %v1537 = vpop.f32.mrb[0].mxu0
        %v1538 = vadd.f32 0.0, %v1537
        %v1539 = vpop.f32.mrb[0].mxu0
        %1540 = vmatprep.mubr.f32.mxu0 0.0
        %1541 = vmatmul.mubr.f32.gmra.mrb[0].mxu0 %v1277
        %v1542 = vpop.f32.mrb[0].mxu0
        %v1543 = vadd.f32 0.0, %v1542
        %v1544 = vpop.f32.mrb[0].mxu0
        %1545 = vmatprep.mubr.f32.mxu0 0.0
        %1546 = vmatmul.mubr.f32.gmra.mrb[0].mxu0 %v1280
        %v1547 = vpop.f32.mrb[0].mxu0
        %v1548 = vadd.f32 0.0, %v1547
        %v1549 = vpop.f32.mrb[0].mxu0
        %1550 = vmatprep.mubr.f32.mxu0 0.0
        %1551 = vmatmul.mubr.f32.gmra.mrb[0].mxu0 %v1283
        %v1552 = vpop.f32.mrb[0].mxu0
        %v1553 = vadd.f32 0.0, %v1552
        %v1554 = vpop.f32.mrb[0].mxu0
        %1555 = vmatprep.mubr.f32.mxu0 0.0
        %1556 = vmatmul.mubr.f32.gmra.mrb[0].mxu0 %v1286
        %v1557 = vpop.f32.mrb[0].mxu0
        %v1558 = vadd.f32 0.0, %v1557
        %v1559 = vpop.f32.mrb[0].mxu0
        %1560 = vmatprep.mubr.f32.mxu0 0.0
        %1561 = vmatmul.mubr.f32.gmra.mrb[0].mxu0 %v1289
        %v1562 = vpop.f32.mrb[0].mxu0
        %v1563 = vadd.f32 0.0, %v1562
        %v1564 = vpop.f32.mrb[0].mxu0
        %1565 = vmatprep.mubr.f32.mxu0 0.0
        %1566 = vmatmul.mubr.f32.gmra.mrb[0].mxu0 %v1292
        %v1567 = vpop.f32.mrb[0].mxu0
        %v1568 = vadd.f32 0.0, %v1567
        %v1569 = vpop.f32.mrb[0].mxu0
        %1570 = vmatprep.mubr.f32.mxu0 0.0
        %1571 = vmatmul.mubr.f32.gmra.mrb[0].mxu0 %v1295
        %v1572 = vpop.f32.mrb[0].mxu0
        %v1573 = vadd.f32 0.0, %v1572
        %v1574 = vpop.f32.mrb[0].mxu0
        %1575 = vmatprep.mubr.f32.mxu0 0.0
        %1576 = vmatmul.mubr.f32.gmra.mrb[0].mxu0 %v1298
        %v1577 = vpop.f32.mrb[0].mxu0
        %v1578 = vadd.f32 0.0, %v1577
        %v1579 = vpop.f32.mrb[0].mxu0
        %1580 = vmatprep.mubr.f32.mxu0 0.0
        %1581 = vmatmul.mubr.f32.gmra.mrb[0].mxu0 %v1301
        %v1582 = vpop.f32.mrb[0].mxu0
        %v1583 = vadd.f32 0.0, %v1582
        %v1584 = vpop.f32.mrb[0].mxu0
        %1585 = vmatprep.mubr.f32.mxu0 0.0
        %1586 = vmatmul.mubr.f32.gmra.mrb[0].mxu0 %v1304
        %v1587 = vpop.f32.mrb[0].mxu0
        %v1588 = vadd.f32 0.0, %v1587
        %v1589 = vpop.f32.mrb[0].mxu0
        %1590 = vmatprep.mubr.f32.mxu0 0.0
        %1591 = vmatmul.mubr.f32.gmra.mrb[0].mxu0 %v1307
        %v1592 = vpop.f32.mrb[0].mxu0
        %v1593 = vadd.f32 0.0, %v1592
        %v1594 = vpop.f32.mrb[0].mxu0
        %1595 = vmatprep.mubr.f32.mxu0 0.0
        %1596 = vmatmul.mubr.f32.gmra.mrb[0].mxu0 %v1310
        %v1597 = vpop.f32.mrb[0].mxu0
        %v1598 = vadd.f32 0.0, %v1597
        %v1599 = vpop.f32.mrb[0].mxu0
        %1600 = vmatprep.mubr.f32.mxu0 0.0
        %1601 = vmatmul.mubr.f32.gmra.mrb[0].mxu0 %v1313
        %v1602 = vpop.f32.mrb[0].mxu0
        %v1603 = vadd.f32 0.0, %v1602
        %v1604 = vpop.f32.mrb[0].mxu0
        %1605 = vmatprep.mubr.f32.mxu0 0.0
        %1606 = vmatmul.mubr.f32.gmra.mrb[0].mxu0 %v1316
        %v1607 = vpop.f32.mrb[0].mxu0
        %v1608 = vadd.f32 0.0, %v1607
        %v1609 = vpop.f32.mrb[0].mxu0
        %1610 = vmatprep.mubr.f32.mxu0 0.0
        %1611 = vmatmul.mubr.f32.gmra.mrb[0].mxu0 %v1319
        %v1612 = vpop.f32.mrb[0].mxu0
        %v1613 = vadd.f32 0.0, %v1612
        %v1614 = vpop.f32.mrb[0].mxu0
        %1615 = vmatprep.mubr.f32.mxu0 0.0
        %1616 = vmatmul.mubr.f32.gmra.mrb[0].mxu0 %v1322
        %v1617 = vpop.f32.mrb[0].mxu0
        %v1618 = vadd.f32 0.0, %v1617
        %v1619 = vpop.f32.mrb[0].mxu0
        %1620 = vmatprep.mubr.f32.mxu0 0.0
        %1621 = vmatmul.mubr.f32.gmra.mrb[0].mxu0 %v1325
        %v1622 = vpop.f32.mrb[0].mxu0
        %v1623 = vadd.f32 0.0, %v1622
        %v1624 = vpop.f32.mrb[0].mxu0
        %1625 = vmatprep.mubr.f32.mxu0 0.0
        %1626 = vmatmul.mubr.f32.gmra.mrb[0].mxu0 %v1328
        %v1627 = vpop.f32.mrb[0].mxu0
        %v1628 = vadd.f32 0.0, %v1627
        %v1629 = vpop.f32.mrb[0].mxu0
        %1630 = vmatprep.mubr.f32.mxu0 0.0
        %1631 = vmatmul.mubr.f32.gmra.mrb[0].mxu0 %v1331
        %v1632 = vpop.f32.mrb[0].mxu0
        %v1633 = vadd.f32 0.0, %v1632
        %v1634 = vpop.f32.mrb[0].mxu0
        %1635 = vmatprep.mubr.f32.mxu0 0.0
        %1636 = vmatmul.mubr.f32.gmra.mrb[0].mxu0 %v1334
        %v1637 = vpop.f32.mrb[0].mxu0
        %v1638 = vadd.f32 0.0, %v1637
        %v1639 = vpop.f32.mrb[0].mxu0
        %1640 = vmatprep.mubr.f32.mxu0 0.0
        %1641 = vmatmul.mubr.f32.gmra.mrb[0].mxu0 %v1337
        %v1642 = vpop.f32.mrb[0].mxu0
        %v1643 = vadd.f32 0.0, %v1642
        %v1644 = vpop.f32.mrb[0].mxu0
        %1645 = vmatprep.mubr.f32.mxu0 0.0
        %1646 = vmatmul.mubr.f32.gmra.mrb[0].mxu0 %v1340
        %v1647 = vpop.f32.mrb[0].mxu0
        %v1648 = vadd.f32 0.0, %v1647
        %v1649 = vpop.f32.mrb[0].mxu0
        %1650 = vmatprep.mubr.f32.mxu0 0.0
        %1651 = vmatmul.mubr.f32.gmra.mrb[0].mxu0 %v1343
        %v1652 = vpop.f32.mrb[0].mxu0
        %v1653 = vadd.f32 0.0, %v1652
        %v1654 = vpop.f32.mrb[0].mxu0
        %1655 = vmatprep.mubr.f32.mxu0 0.0
        %1656 = vmatmul.mubr.f32.gmra.mrb[0].mxu0 %v1346
        %v1657 = vpop.f32.mrb[0].mxu0
        %v1658 = vadd.f32 0.0, %v1657
        %v1659 = vpop.f32.mrb[0].mxu0
        %1660 = vmatprep.mubr.f32.mxu0 0.0
        %1661 = vmatmul.mubr.f32.gmra.mrb[0].mxu0 %v1349
        %v1662 = vpop.f32.mrb[0].mxu0
        %v1663 = vadd.f32 0.0, %v1662
        %v1664 = vpop.f32.mrb[0].mxu0
        %1665 = vmatprep.mubr.f32.mxu0 0.0
        %1666 = vmatmul.mubr.f32.gmra.mrb[0].mxu0 %v1352
        %v1667 = vpop.f32.mrb[0].mxu0
        %v1668 = vadd.f32 0.0, %v1667
        %v1669 = vpop.f32.mrb[0].mxu0
        %1670 = vmatprep.mubr.f32.mxu0 0.0
        %1671 = vmatmul.mubr.f32.gmra.mrb[0].mxu0 %v1355
        %v1672 = vpop.f32.mrb[0].mxu0
        %v1673 = vadd.f32 0.0, %v1672
        %v1674 = vpop.f32.mrb[0].mxu0
        %1675 = vmatprep.mubr.f32.mxu0 0.0
        %1676 = vmatmul.mubr.f32.gmra.mrb[0].mxu0 %v1358
        %v1677 = vpop.f32.mrb[0].mxu0
        %v1678 = vadd.f32 0.0, %v1677
        %v1679 = vpop.f32.mrb[0].mxu0
        %1680 = vmatprep.mubr.f32.mxu0 0.0
        %1681 = vmatmul.mubr.f32.gmra.mrb[0].mxu0 %v1361
        %v1682 = vpop.f32.mrb[0].mxu0
        %v1683 = vadd.f32 0.0, %v1682
        %v1684 = vpop.f32.mrb[0].mxu0
        %1685 = vmatprep.mubr.f32.mxu0 0.0
        %1686 = vmatmul.mubr.f32.gmra.mrb[0].mxu0 %v1364
        %v1687 = vpop.f32.mrb[0].mxu0
        %v1688 = vadd.f32 0.0, %v1687
        %v1689 = vpop.f32.mrb[0].mxu0
        %1690 = vmatprep.mubr.f32.mxu0 0.0
        %1691 = vmatmul.mubr.f32.gmra.mrb[0].mxu0 %v1367
        %v1692 = vpop.f32.mrb[0].mxu0
        %v1693 = vadd.f32 0.0, %v1692
        %v1694 = vpop.f32.mrb[0].mxu0
        %1695 = vmatprep.mubr.f32.mxu0 0.0
        %1696 = vmatmul.mubr.f32.gmra.mrb[0].mxu0 %v1370
        %v1697 = vpop.f32.mrb[0].mxu0
        %v1698 = vadd.f32 0.0, %v1697
        %v1699 = vpop.f32.mrb[0].mxu0
        %1700 = vmatprep.mubr.f32.mxu0 0.0
        %1701 = vmatmul.mubr.f32.gmra.mrb[0].mxu0 %v1373
        %v1702 = vpop.f32.mrb[0].mxu0
        %v1703 = vadd.f32 0.0, %v1702
        %v1704 = vpop.f32.mrb[0].mxu0
        %1705 = vmatprep.mubr.f32.mxu0 0.0
        %1706 = vmatmul.mubr.f32.gmra.mrb[0].mxu0 %v1376
        %v1707 = vpop.f32.mrb[0].mxu0
        %v1708 = vadd.f32 0.0, %v1707
        %v1709 = vpop.f32.mrb[0].mxu0
        %1710 = vmatprep.mubr.f32.mxu0 0.0
        %1711 = vmatmul.mubr.f32.gmra.mrb[0].mxu0 %v1379
        %v1712 = vpop.f32.mrb[0].mxu0
        %v1713 = vadd.f32 0.0, %v1712
        %v1714 = vpop.f32.mrb[0].mxu0
        %1715 = vmatprep.mubr.f32.mxu0 0.0
        %1716 = vmatmul.mubr.f32.gmra.mrb[0].mxu0 %v1382
        %v1717 = vpop.f32.mrb[0].mxu0
        %v1718 = vadd.f32 0.0, %v1717
        %v1719 = vpop.f32.mrb[0].mxu0
        %1720 = vmatprep.mubr.f32.mxu0 0.0
        %1721 = vmatmul.mubr.f32.gmra.mrb[0].mxu0 %v1385
        %v1722 = vpop.f32.mrb[0].mxu0
        %v1723 = vadd.f32 0.0, %v1722
        %v1724 = vpop.f32.mrb[0].mxu0
        %1725 = vmatprep.mubr.f32.mxu0 0.0
        %1726 = vmatmul.mubr.f32.gmra.mrb[0].mxu0 %v1388
        %v1727 = vpop.f32.mrb[0].mxu0
        %v1728 = vadd.f32 0.0, %v1727
        %v1729 = vpop.f32.mrb[0].mxu0
        %1730 = vmatprep.mubr.f32.mxu0 0.0
        %1731 = vmatmul.mubr.f32.gmra.mrb[0].mxu0 %v1391
        %v1732 = vpop.f32.mrb[0].mxu0
        %v1733 = vadd.f32 0.0, %v1732
        %v1734 = vpop.f32.mrb[0].mxu0
        %1735 = vmatprep.mubr.f32.mxu0 0.0
        %1736 = vmatmul.mubr.f32.gmra.mrb[0].mxu0 %v1394
        %v1737 = vpop.f32.mrb[0].mxu0
        %v1738 = vadd.f32 0.0, %v1737
        %v1739 = vpop.f32.mrb[0].mxu0
        %1740 = vmatprep.mubr.f32.mxu0 0.0
        %1741 = vmatmul.mubr.f32.gmra.mrb[0].mxu0 %v1397
        %v1742 = vpop.f32.mrb[0].mxu0
        %v1743 = vadd.f32 0.0, %v1742
        %v1744 = vpop.f32.mrb[0].mxu0
        %1745 = vmatprep.mubr.f32.mxu0 0.0
        %1746 = vmatmul.mubr.f32.gmra.mrb[0].mxu0 %v1400
        %v1747 = vpop.f32.mrb[0].mxu0
        %v1748 = vadd.f32 0.0, %v1747
        %v1749 = vpop.f32.mrb[0].mxu0
        %1750 = vmatprep.mubr.f32.mxu0 0.0
        %1751 = vmatmul.mubr.f32.gmra.mrb[0].mxu0 %v1403
        %v1752 = vpop.f32.mrb[0].mxu0
        %v1753 = vadd.f32 0.0, %v1752
        %v1754 = vpop.f32.mrb[0].mxu0
        %1755 = vmatprep.mubr.f32.mxu0 0.0
        %1756 = vmatmul.mubr.f32.gmra.mrb[0].mxu0 %v1406
        %v1757 = vpop.f32.mrb[0].mxu0
        %v1758 = vadd.f32 0.0, %v1757
        %v1759 = vpop.f32.mrb[0].mxu0
        %1760 = vmatprep.mubr.f32.mxu0 0.0
        %1761 = vmatmul.mubr.f32.gmra.mrb[0].mxu0 %v1409
        %v1762 = vpop.f32.mrb[0].mxu0
        %v1763 = vadd.f32 0.0, %v1762
        %v1764 = vpop.f32.mrb[0].mxu0
        %1765 = vmatprep.mubr.f32.mxu0 0.0
        %1766 = vmatmul.mubr.f32.gmra.mrb[0].mxu0 %v1412
        %v1767 = vpop.f32.mrb[0].mxu0
        %v1768 = vadd.f32 0.0, %v1767
        %v1769 = vpop.f32.mrb[0].mxu0
        %1770 = vmatprep.mubr.f32.mxu0 0.0
        %1771 = vmatmul.mubr.f32.gmra.mrb[0].mxu0 %v1415
        %v1772 = vpop.f32.mrb[0].mxu0
        %v1773 = vadd.f32 0.0, %v1772
        %v1774 = vpop.f32.mrb[0].mxu0
        %1775 = vmatprep.mubr.f32.mxu0 0.0
        %1776 = vmatmul.mubr.f32.gmra.mrb[0].mxu0 %v1418
        %v1777 = vpop.f32.mrb[0].mxu0
        %v1778 = vadd.f32 0.0, %v1777
        %v1779 = vpop.f32.mrb[0].mxu0
        %1780 = vmatprep.mubr.f32.mxu0 0.0
        %1781 = vmatmul.mubr.f32.gmra.mrb[0].mxu0 %v1421
        %v1782 = vpop.f32.mrb[0].mxu0
        %v1783 = vadd.f32 0.0, %v1782
        %v1784 = vpop.f32.mrb[0].mxu0
        %1785 = vmatprep.mubr.f32.mxu0 0.0
        %1786 = vmatmul.mubr.f32.gmra.mrb[0].mxu0 %v1424
        %v1787 = vpop.f32.mrb[0].mxu0
        %v1788 = vadd.f32 0.0, %v1787
        %v1789 = vpop.f32.mrb[0].mxu0
        %1790 = vmatprep.mubr.f32.mxu0 0.0
        %1791 = vmatmul.mubr.f32.gmra.mrb[0].mxu0 %v1427
        %v1792 = vpop.f32.mrb[0].mxu0
        %v1793 = vadd.f32 0.0, %v1792
        %v1794 = vpop.f32.mrb[0].mxu0
        %1795 = vmatprep.mubr.f32.mxu0 0.0
        %1796 = vmatmul.mubr.f32.gmra.mrb[0].mxu0 %v1430
        %v1797 = vpop.f32.mrb[0].mxu0
        %v1798 = vadd.f32 0.0, %v1797
        %v1799 = vpop.f32.mrb[0].mxu0
        %1800 = vmatprep.mubr.f32.mxu0 0.0
        %1801 = vmatmul.mubr.f32.gmra.mrb[0].mxu0 %v1433
        %v1802 = vpop.f32.mrb[0].mxu0
        %v1803 = vadd.f32 0.0, %v1802
        %v1804 = vpop.f32.mrb[0].mxu0
        %1805 = vmatprep.mubr.f32.mxu0 0.0
        %1806 = vmatmul.mubr.f32.gmra.mrb[0].mxu0 %v1436
        %v1807 = vpop.f32.mrb[0].mxu0
        %v1808 = vadd.f32 0.0, %v1807
        %v1809 = vpop.f32.mrb[0].mxu0
        %1810 = vmatprep.mubr.f32.mxu0 0.0
        %1811 = vmatmul.mubr.f32.gmra.mrb[0].mxu0 %v1439
        %v1812 = vpop.f32.mrb[0].mxu0
        %v1813 = vadd.f32 0.0, %v1812
        %v1814 = vpop.f32.mrb[0].mxu0
        %1815 = vmatprep.mubr.f32.mxu0 0.0
        %1816 = vmatmul.mubr.f32.gmra.mrb[0].mxu0 %v1442
        %v1817 = vpop.f32.mrb[0].mxu0
        %v1818 = vadd.f32 0.0, %v1817
        %v1819 = vpop.f32.mrb[0].mxu0
        %1820 = vmatprep.mubr.f32.mxu0 0.0
        %1821 = vmatmul.mubr.f32.gmra.mrb[0].mxu0 %v1445
        %v1822 = vpop.f32.mrb[0].mxu0
        %v1823 = vadd.f32 0.0, %v1822
        %v1824 = vpop.f32.mrb[0].mxu0
        %1825 = vmatprep.mubr.f32.mxu0 0.0
        %1826 = vmatmul.mubr.f32.gmra.mrb[0].mxu0 %v1448
        %v1827 = vpop.f32.mrb[0].mxu0
        %v1828 = vadd.f32 0.0, %v1827
        %v1829 = vpop.f32.mrb[0].mxu0
        %1830 = vmatprep.mubr.f32.mxu0 0.0
        %1831 = vmatmul.mubr.f32.gmra.mrb[0].mxu0 %v1451
        %v1832 = vpop.f32.mrb[0].mxu0
        %v1833 = vadd.f32 0.0, %v1832
        %v1834 = vpop.f32.mrb[0].mxu0
        %1835 = vmatprep.mubr.f32.mxu0 0.0
        %1836 = vmatmul.mubr.f32.gmra.mrb[0].mxu0 %v1454
        %v1837 = vpop.f32.mrb[0].mxu0
        %v1838 = vadd.f32 0.0, %v1837
        %v1839 = vpop.f32.mrb[0].mxu0
        %1840 = vdwg.mxu0
        %v1841 = vld [vmem:[%s3 + $0x50] sm:$0xff]
        %v1842 = vld [vmem:[%s3 + $0x58] sm:$0xff]
        %v1843 = vld [vmem:[%s3 + $0x60] sm:$0xff]
        %v1844 = vld [vmem:[%s3 + $0x68] sm:$0xff]
        %v1845 = vld [vmem:[%s3 + $0x70] sm:$0x1]
        %v1846 = vlaneseq
        %v1847 = vshrl.u32 %v1846, 7
        %v1848 = vsub.s32 0, %v1847
        %v1849 = vrot.slane %v1845, %v1848
        %v1851 = vsel %vm1263, %v475, 0
        %v1854 = vsel %vm1263, %v476, 0
        %v1857 = vsel %vm1263, %v477, 0
        %v1860 = vsel %vm1263, %v478, 0
        %v1863 = vsel %vm1263, %v479, 0
        %v1866 = vsel %vm1263, %v480, 0
        %v1869 = vsel %vm1263, %v481, 0
        %v1872 = vsel %vm1263, %v482, 0
        %1874 = vmatprep.subr.mxu0 0.0
        %1875 = vmatpush1.msra.mxu0 %v1841
        %1876 = vmatprep.subr.mxu0 0.0
        %1877 = vmatpush1.msra.mxu0 %v1842
        %1878 = vmatprep.subr.mxu0 0.0
        %1879 = vmatpush1.msra.mxu0 %v1843
        %1880 = vmatprep.subr.mxu0 0.0
        %1881 = vmatpush1.msra.mxu0 %v1844
        %1882 = vmatprep.subr.mxu0 0.0
        %1883 = vmatpush1.msra.mxu0 0.0
        %1884 = vmatprep.subr.mxu0 0.0
        %1885 = vmatpush1.msra.mxu0 0.0
        %1886 = vmatprep.subr.mxu0 0.0
        %1887 = vmatpush1.msra.mxu0 0.0
        %1888 = vmatprep.subr.mxu0 0.0
        %1889 = vmatpush1.msra.mxu0 0.0
        %1890 = vmatprep.subr.mxu0 0.0
        %1891 = vmatpush1.msra.mxu0 0.0
        %1892 = vmatprep.subr.mxu0 0.0
        %1893 = vmatpush1.msra.mxu0 0.0
        %1894 = vmatprep.subr.mxu0 0.0
        %1895 = vmatpush1.msra.mxu0 0.0
        %1896 = vmatprep.subr.mxu0 0.0
        %1897 = vmatpush1.msra.mxu0 0.0
        %1898 = vmatprep.subr.mxu0 0.0
        %1899 = vmatpush1.msra.mxu0 0.0
        %1900 = vmatprep.subr.mxu0 0.0
        %1901 = vmatpush1.msra.mxu0 0.0
        %1902 = vmatprep.subr.mxu0 0.0
        %1903 = vmatpush1.msra.mxu0 0.0
        %1904 = vmatprep.subr.mxu0 0.0
        %1905 = vmatpush1.msra.mxu0 0.0
        %1906 = vmatprep.subr.mxu0 0.0
        %1907 = vmatpush1.msra.mxu0 0.0
        %1908 = vmatprep.subr.mxu0 0.0
        %1909 = vmatpush1.msra.mxu0 0.0
        %1910 = vmatprep.subr.mxu0 0.0
        %1911 = vmatpush1.msra.mxu0 0.0
        %1912 = vmatprep.subr.mxu0 0.0
        %1913 = vmatpush1.msra.mxu0 0.0
        %1914 = vmatprep.subr.mxu0 0.0
        %1915 = vmatpush1.msra.mxu0 0.0
        %1916 = vmatprep.subr.mxu0 0.0
        %1917 = vmatpush1.msra.mxu0 0.0
        %1918 = vmatprep.subr.mxu0 0.0
        %1919 = vmatpush1.msra.mxu0 0.0
        %1920 = vmatprep.subr.mxu0 0.0
        %1921 = vmatpush1.msra.mxu0 0.0
        %1922 = vmatprep.subr.mxu0 0.0
        %1923 = vmatpush1.msra.mxu0 0.0
        %1924 = vmatprep.subr.mxu0 0.0
        %1925 = vmatpush1.msra.mxu0 0.0
        %1926 = vmatprep.subr.mxu0 0.0
        %1927 = vmatpush1.msra.mxu0 0.0
        %1928 = vmatprep.subr.mxu0 0.0
        %1929 = vmatpush1.msra.mxu0 0.0
        %1930 = vmatprep.subr.mxu0 0.0
        %1931 = vmatpush1.msra.mxu0 0.0
        %1932 = vmatprep.subr.mxu0 0.0
        %1933 = vmatpush1.msra.mxu0 0.0
        %1934 = vmatprep.subr.mxu0 0.0
        %1935 = vmatpush1.msra.mxu0 0.0
        %1936 = vmatprep.subr.mxu0 0.0
        %1937 = vmatpush1.msra.mxu0 0.0
        %1938 = vmatprep.mubr.f32.mxu0 0.0
        %1939 = vmatmul.mubr.f32.gmra.mrb[0].mxu0 %v1851
        %v1940 = vpop.f32.mrb[0].mxu0
        %v1941 = vadd.f32 %v1849, %v1940
        %v1942 = vpop.f32.mrb[0].mxu0
        %1943 = vmatprep.mubr.f32.mxu0 0.0
        %1944 = vmatmul.mubr.f32.gmra.mrb[0].mxu0 %v1854
        %v1945 = vpop.f32.mrb[0].mxu0
        %v1946 = vadd.f32 %v1849, %v1945
        %v1947 = vpop.f32.mrb[0].mxu0
        %1948 = vmatprep.mubr.f32.mxu0 0.0
        %1949 = vmatmul.mubr.f32.gmra.mrb[0].mxu0 %v1857
        %v1950 = vpop.f32.mrb[0].mxu0
        %v1951 = vadd.f32 %v1849, %v1950
        %v1952 = vpop.f32.mrb[0].mxu0
        %1953 = vmatprep.mubr.f32.mxu0 0.0
        %1954 = vmatmul.mubr.f32.gmra.mrb[0].mxu0 %v1860
        %v1955 = vpop.f32.mrb[0].mxu0
        %v1956 = vadd.f32 %v1849, %v1955
        %v1957 = vpop.f32.mrb[0].mxu0
        %1958 = vmatprep.mubr.f32.mxu0 0.0
        %1959 = vmatmul.mubr.f32.gmra.mrb[0].mxu0 %v1863
        %v1960 = vpop.f32.mrb[0].mxu0
        %v1961 = vadd.f32 %v1849, %v1960
        %v1962 = vpop.f32.mrb[0].mxu0
        %1963 = vmatprep.mubr.f32.mxu0 0.0
        %1964 = vmatmul.mubr.f32.gmra.mrb[0].mxu0 %v1866
        %v1965 = vpop.f32.mrb[0].mxu0
        %v1966 = vadd.f32 %v1849, %v1965
        %v1967 = vpop.f32.mrb[0].mxu0
        %1968 = vmatprep.mubr.f32.mxu0 0.0
        %1969 = vmatmul.mubr.f32.gmra.mrb[0].mxu0 %v1869
        %v1970 = vpop.f32.mrb[0].mxu0
        %v1971 = vadd.f32 %v1849, %v1970
        %v1972 = vpop.f32.mrb[0].mxu0
        %1973 = vmatprep.mubr.f32.mxu0 0.0
        %1974 = vmatmul.mubr.f32.gmra.mrb[0].mxu0 %v1872
        %v1975 = vpop.f32.mrb[0].mxu0
        %v1976 = vadd.f32 %v1849, %v1975
        %v1977 = vpop.f32.mrb[0].mxu0
        %1978 = vdwg.mxu0
        %v1979 = vadd.f32 %v1523, %v1941
        %v1980 = vadd.f32 %v1528, %v1941
        %v1981 = vadd.f32 %v1533, %v1941
        %v1982 = vadd.f32 %v1538, %v1941
        %v1983 = vadd.f32 %v1543, %v1941
        %v1984 = vadd.f32 %v1548, %v1941
        %v1985 = vadd.f32 %v1553, %v1941
        %v1986 = vadd.f32 %v1558, %v1941
        %v1987 = vadd.f32 %v1563, %v1946
        %v1988 = vadd.f32 %v1568, %v1946
        %v1989 = vadd.f32 %v1573, %v1946
        %v1990 = vadd.f32 %v1578, %v1946
        %v1991 = vadd.f32 %v1583, %v1946
        %v1992 = vadd.f32 %v1588, %v1946
        %v1993 = vadd.f32 %v1593, %v1946
        %v1994 = vadd.f32 %v1598, %v1946
        %v1995 = vadd.f32 %v1603, %v1951
        %v1996 = vadd.f32 %v1608, %v1951
        %v1997 = vadd.f32 %v1613, %v1951
        %v1998 = vadd.f32 %v1618, %v1951
        %v1999 = vadd.f32 %v1623, %v1951
        %v2000 = vadd.f32 %v1628, %v1951
        %v2001 = vadd.f32 %v1633, %v1951
        %v2002 = vadd.f32 %v1638, %v1951
        %v2003 = vadd.f32 %v1643, %v1956
        %v2004 = vadd.f32 %v1648, %v1956
        %v2005 = vadd.f32 %v1653, %v1956
        %v2006 = vadd.f32 %v1658, %v1956
        %v2007 = vadd.f32 %v1663, %v1956
        %v2008 = vadd.f32 %v1668, %v1956
        %v2009 = vadd.f32 %v1673, %v1956
        %v2010 = vadd.f32 %v1678, %v1956
        %v2011 = vadd.f32 %v1683, %v1961
        %v2012 = vadd.f32 %v1688, %v1961
        %v2013 = vadd.f32 %v1693, %v1961
        %v2014 = vadd.f32 %v1698, %v1961
        %v2015 = vadd.f32 %v1703, %v1961
        %v2016 = vadd.f32 %v1708, %v1961
        %v2017 = vadd.f32 %v1713, %v1961
        %v2018 = vadd.f32 %v1718, %v1961
        %v2019 = vadd.f32 %v1723, %v1966
        %v2020 = vadd.f32 %v1728, %v1966
        %v2021 = vadd.f32 %v1733, %v1966
        %v2022 = vadd.f32 %v1738, %v1966
        %v2023 = vadd.f32 %v1743, %v1966
        %v2024 = vadd.f32 %v1748, %v1966
        %v2025 = vadd.f32 %v1753, %v1966
        %v2026 = vadd.f32 %v1758, %v1966
        %v2027 = vadd.f32 %v1763, %v1971
        %v2028 = vadd.f32 %v1768, %v1971
        %v2029 = vadd.f32 %v1773, %v1971
        %v2030 = vadd.f32 %v1778, %v1971
        %v2031 = vadd.f32 %v1783, %v1971
        %v2032 = vadd.f32 %v1788, %v1971
        %v2033 = vadd.f32 %v1793, %v1971
        %v2034 = vadd.f32 %v1798, %v1971
        %v2035 = vadd.f32 %v1803, %v1976
        %v2036 = vadd.f32 %v1808, %v1976
        %v2037 = vadd.f32 %v1813, %v1976
        %v2038 = vadd.f32 %v1818, %v1976
        %v2039 = vadd.f32 %v1823, %v1976
        %v2040 = vadd.f32 %v1828, %v1976
        %v2041 = vadd.f32 %v1833, %v1976
        %v2042 = vadd.f32 %v1838, %v1976
        %v2043 = vld [vmem:[%s3 + $0x48] sm:$0x1]
        %v2044 = vlaneseq
        %v2045 = vshrl.u32 %v2044, 7
        %v2046 = vsub.s32 0, %v2045
        %v2047 = vrot.slane %v2043, %v2046
        %v2048 = vadd.f32 %v1979, %v2047
        %v2049 = vadd.f32 %v1980, %v2047
        %v2050 = vadd.f32 %v1981, %v2047
        %v2051 = vadd.f32 %v1982, %v2047
        %v2052 = vadd.f32 %v1983, %v2047
        %v2053 = vadd.f32 %v1984, %v2047
        %v2054 = vadd.f32 %v1985, %v2047
        %v2055 = vadd.f32 %v1986, %v2047
        %v2056 = vadd.f32 %v1987, %v2047
        %v2057 = vadd.f32 %v1988, %v2047
        %v2058 = vadd.f32 %v1989, %v2047
        %v2059 = vadd.f32 %v1990, %v2047
        %v2060 = vadd.f32 %v1991, %v2047
        %v2061 = vadd.f32 %v1992, %v2047
        %v2062 = vadd.f32 %v1993, %v2047
        %v2063 = vadd.f32 %v1994, %v2047
        %v2064 = vadd.f32 %v1995, %v2047
        %v2065 = vadd.f32 %v1996, %v2047
        %v2066 = vadd.f32 %v1997, %v2047
        %v2067 = vadd.f32 %v1998, %v2047
        %v2068 = vadd.f32 %v1999, %v2047
        %v2069 = vadd.f32 %v2000, %v2047
        %v2070 = vadd.f32 %v2001, %v2047
        %v2071 = vadd.f32 %v2002, %v2047
        %v2072 = vadd.f32 %v2003, %v2047
        %v2073 = vadd.f32 %v2004, %v2047
        %v2074 = vadd.f32 %v2005, %v2047
        %v2075 = vadd.f32 %v2006, %v2047
        %v2076 = vadd.f32 %v2007, %v2047
        %v2077 = vadd.f32 %v2008, %v2047
        %v2078 = vadd.f32 %v2009, %v2047
        %v2079 = vadd.f32 %v2010, %v2047
        %v2080 = vadd.f32 %v2011, %v2047
        %v2081 = vadd.f32 %v2012, %v2047
        %v2082 = vadd.f32 %v2013, %v2047
        %v2083 = vadd.f32 %v2014, %v2047
        %v2084 = vadd.f32 %v2015, %v2047
        %v2085 = vadd.f32 %v2016, %v2047
        %v2086 = vadd.f32 %v2017, %v2047
        %v2087 = vadd.f32 %v2018, %v2047
        %v2088 = vadd.f32 %v2019, %v2047
        %v2089 = vadd.f32 %v2020, %v2047
        %v2090 = vadd.f32 %v2021, %v2047
        %v2091 = vadd.f32 %v2022, %v2047
        %v2092 = vadd.f32 %v2023, %v2047
        %v2093 = vadd.f32 %v2024, %v2047
        %v2094 = vadd.f32 %v2025, %v2047
        %v2095 = vadd.f32 %v2026, %v2047
        %v2096 = vadd.f32 %v2027, %v2047
        %v2097 = vadd.f32 %v2028, %v2047
        %v2098 = vadd.f32 %v2029, %v2047
        %v2099 = vadd.f32 %v2030, %v2047
        %v2100 = vadd.f32 %v2031, %v2047
        %v2101 = vadd.f32 %v2032, %v2047
        %v2102 = vadd.f32 %v2033, %v2047
        %v2103 = vadd.f32 %v2034, %v2047
        %v2104 = vadd.f32 %v2035, %v2047
        %v2105 = vadd.f32 %v2036, %v2047
        %v2106 = vadd.f32 %v2037, %v2047
        %v2107 = vadd.f32 %v2038, %v2047
        %v2108 = vadd.f32 %v2039, %v2047
        %v2109 = vadd.f32 %v2040, %v2047
        %v2110 = vadd.f32 %v2041, %v2047
        %v2111 = vadd.f32 %v2042, %v2047
        %vm2112 = vcmp.ge.f32.partialorder %v2048, 0.0
        %vm2113 = vcmp.ge.f32.partialorder %v2049, 0.0
        %vm2114 = vcmp.ge.f32.partialorder %v2050, 0.0
        %vm2115 = vcmp.ge.f32.partialorder %v2051, 0.0
        %vm2116 = vcmp.ge.f32.partialorder %v2052, 0.0
        %vm2117 = vcmp.ge.f32.partialorder %v2053, 0.0
        %vm2118 = vcmp.ge.f32.partialorder %v2054, 0.0
        %vm2119 = vcmp.ge.f32.partialorder %v2055, 0.0
        %vm2120 = vcmp.ge.f32.partialorder %v2056, 0.0
        %vm2121 = vcmp.ge.f32.partialorder %v2057, 0.0
        %vm2122 = vcmp.ge.f32.partialorder %v2058, 0.0
        %vm2123 = vcmp.ge.f32.partialorder %v2059, 0.0
        %vm2124 = vcmp.ge.f32.partialorder %v2060, 0.0
        %vm2125 = vcmp.ge.f32.partialorder %v2061, 0.0
        %vm2126 = vcmp.ge.f32.partialorder %v2062, 0.0
        %vm2127 = vcmp.ge.f32.partialorder %v2063, 0.0
        %vm2128 = vcmp.ge.f32.partialorder %v2064, 0.0
        %vm2129 = vcmp.ge.f32.partialorder %v2065, 0.0
        %vm2130 = vcmp.ge.f32.partialorder %v2066, 0.0
        %vm2131 = vcmp.ge.f32.partialorder %v2067, 0.0
        %vm2132 = vcmp.ge.f32.partialorder %v2068, 0.0
        %vm2133 = vcmp.ge.f32.partialorder %v2069, 0.0
        %vm2134 = vcmp.ge.f32.partialorder %v2070, 0.0
        %vm2135 = vcmp.ge.f32.partialorder %v2071, 0.0
        %vm2136 = vcmp.ge.f32.partialorder %v2072, 0.0
        %vm2137 = vcmp.ge.f32.partialorder %v2073, 0.0
        %vm2138 = vcmp.ge.f32.partialorder %v2074, 0.0
        %vm2139 = vcmp.ge.f32.partialorder %v2075, 0.0
        %vm2140 = vcmp.ge.f32.partialorder %v2076, 0.0
        %vm2141 = vcmp.ge.f32.partialorder %v2077, 0.0
        %vm2142 = vcmp.ge.f32.partialorder %v2078, 0.0
        %vm2143 = vcmp.ge.f32.partialorder %v2079, 0.0
        %vm2144 = vcmp.ge.f32.partialorder %v2080, 0.0
        %vm2145 = vcmp.ge.f32.partialorder %v2081, 0.0
        %vm2146 = vcmp.ge.f32.partialorder %v2082, 0.0
        %vm2147 = vcmp.ge.f32.partialorder %v2083, 0.0
        %vm2148 = vcmp.ge.f32.partialorder %v2084, 0.0
        %vm2149 = vcmp.ge.f32.partialorder %v2085, 0.0
        %vm2150 = vcmp.ge.f32.partialorder %v2086, 0.0
        %vm2151 = vcmp.ge.f32.partialorder %v2087, 0.0
        %vm2152 = vcmp.ge.f32.partialorder %v2088, 0.0
        %vm2153 = vcmp.ge.f32.partialorder %v2089, 0.0
        %vm2154 = vcmp.ge.f32.partialorder %v2090, 0.0
        %vm2155 = vcmp.ge.f32.partialorder %v2091, 0.0
        %vm2156 = vcmp.ge.f32.partialorder %v2092, 0.0
        %vm2157 = vcmp.ge.f32.partialorder %v2093, 0.0
        %vm2158 = vcmp.ge.f32.partialorder %v2094, 0.0
        %vm2159 = vcmp.ge.f32.partialorder %v2095, 0.0
        %vm2160 = vcmp.ge.f32.partialorder %v2096, 0.0
        %vm2161 = vcmp.ge.f32.partialorder %v2097, 0.0
        %vm2162 = vcmp.ge.f32.partialorder %v2098, 0.0
        %vm2163 = vcmp.ge.f32.partialorder %v2099, 0.0
        %vm2164 = vcmp.ge.f32.partialorder %v2100, 0.0
        %vm2165 = vcmp.ge.f32.partialorder %v2101, 0.0
        %vm2166 = vcmp.ge.f32.partialorder %v2102, 0.0
        %vm2167 = vcmp.ge.f32.partialorder %v2103, 0.0
        %vm2168 = vcmp.ge.f32.partialorder %v2104, 0.0
        %vm2169 = vcmp.ge.f32.partialorder %v2105, 0.0
        %vm2170 = vcmp.ge.f32.partialorder %v2106, 0.0
        %vm2171 = vcmp.ge.f32.partialorder %v2107, 0.0
        %vm2172 = vcmp.ge.f32.partialorder %v2108, 0.0
        %vm2173 = vcmp.ge.f32.partialorder %v2109, 0.0
        %vm2174 = vcmp.ge.f32.partialorder %v2110, 0.0
        %vm2175 = vcmp.ge.f32.partialorder %v2111, 0.0
        %v2176 = vmul.f32 %v2048, 0.01
        %v2177 = vmul.f32 %v2049, 0.01
        %v2178 = vmul.f32 %v2050, 0.01
        %v2179 = vmul.f32 %v2051, 0.01
        %v2180 = vmul.f32 %v2052, 0.01
        %v2181 = vmul.f32 %v2053, 0.01
        %v2182 = vmul.f32 %v2054, 0.01
        %v2183 = vmul.f32 %v2055, 0.01
        %v2184 = vmul.f32 %v2056, 0.01
        %v2185 = vmul.f32 %v2057, 0.01
        %v2186 = vmul.f32 %v2058, 0.01
        %v2187 = vmul.f32 %v2059, 0.01
        %v2188 = vmul.f32 %v2060, 0.01
        %v2189 = vmul.f32 %v2061, 0.01
        %v2190 = vmul.f32 %v2062, 0.01
        %v2191 = vmul.f32 %v2063, 0.01
        %v2192 = vmul.f32 %v2064, 0.01
        %v2193 = vmul.f32 %v2065, 0.01
        %v2194 = vmul.f32 %v2066, 0.01
        %v2195 = vmul.f32 %v2067, 0.01
        %v2196 = vmul.f32 %v2068, 0.01
        %v2197 = vmul.f32 %v2069, 0.01
        %v2198 = vmul.f32 %v2070, 0.01
        %v2199 = vmul.f32 %v2071, 0.01
        %v2200 = vmul.f32 %v2072, 0.01
        %v2201 = vmul.f32 %v2073, 0.01
        %v2202 = vmul.f32 %v2074, 0.01
        %v2203 = vmul.f32 %v2075, 0.01
        %v2204 = vmul.f32 %v2076, 0.01
        %v2205 = vmul.f32 %v2077, 0.01
        %v2206 = vmul.f32 %v2078, 0.01
        %v2207 = vmul.f32 %v2079, 0.01
        %v2208 = vmul.f32 %v2080, 0.01
        %v2209 = vmul.f32 %v2081, 0.01
        %v2210 = vmul.f32 %v2082, 0.01
        %v2211 = vmul.f32 %v2083, 0.01
        %v2212 = vmul.f32 %v2084, 0.01
        %v2213 = vmul.f32 %v2085, 0.01
        %v2214 = vmul.f32 %v2086, 0.01
        %v2215 = vmul.f32 %v2087, 0.01
        %v2216 = vmul.f32 %v2088, 0.01
        %v2217 = vmul.f32 %v2089, 0.01
        %v2218 = vmul.f32 %v2090, 0.01
        %v2219 = vmul.f32 %v2091, 0.01
        %v2220 = vmul.f32 %v2092, 0.01
        %v2221 = vmul.f32 %v2093, 0.01
        %v2222 = vmul.f32 %v2094, 0.01
        %v2223 = vmul.f32 %v2095, 0.01
        %v2224 = vmul.f32 %v2096, 0.01
        %v2225 = vmul.f32 %v2097, 0.01
        %v2226 = vmul.f32 %v2098, 0.01
        %v2227 = vmul.f32 %v2099, 0.01
        %v2228 = vmul.f32 %v2100, 0.01
        %v2229 = vmul.f32 %v2101, 0.01
        %v2230 = vmul.f32 %v2102, 0.01
        %v2231 = vmul.f32 %v2103, 0.01
        %v2232 = vmul.f32 %v2104, 0.01
        %v2233 = vmul.f32 %v2105, 0.01
        %v2234 = vmul.f32 %v2106, 0.01
        %v2235 = vmul.f32 %v2107, 0.01
        %v2236 = vmul.f32 %v2108, 0.01
        %v2237 = vmul.f32 %v2109, 0.01
        %v2238 = vmul.f32 %v2110, 0.01
        %v2239 = vmul.f32 %v2111, 0.01
        %v2240 = vsel %vm2112, %v2048, %v2176
        %v2241 = vsel %vm2113, %v2049, %v2177
        %v2242 = vsel %vm2114, %v2050, %v2178
        %v2243 = vsel %vm2115, %v2051, %v2179
        %v2244 = vsel %vm2116, %v2052, %v2180
        %v2245 = vsel %vm2117, %v2053, %v2181
        %v2246 = vsel %vm2118, %v2054, %v2182
        %v2247 = vsel %vm2119, %v2055, %v2183
        %v2248 = vsel %vm2120, %v2056, %v2184
        %v2249 = vsel %vm2121, %v2057, %v2185
        %v2250 = vsel %vm2122, %v2058, %v2186
        %v2251 = vsel %vm2123, %v2059, %v2187
        %v2252 = vsel %vm2124, %v2060, %v2188
        %v2253 = vsel %vm2125, %v2061, %v2189
        %v2254 = vsel %vm2126, %v2062, %v2190
        %v2255 = vsel %vm2127, %v2063, %v2191
        %v2256 = vsel %vm2128, %v2064, %v2192
        %v2257 = vsel %vm2129, %v2065, %v2193
        %v2258 = vsel %vm2130, %v2066, %v2194
        %v2259 = vsel %vm2131, %v2067, %v2195
        %v2260 = vsel %vm2132, %v2068, %v2196
        %v2261 = vsel %vm2133, %v2069, %v2197
        %v2262 = vsel %vm2134, %v2070, %v2198
        %v2263 = vsel %vm2135, %v2071, %v2199
        %v2264 = vsel %vm2136, %v2072, %v2200
        %v2265 = vsel %vm2137, %v2073, %v2201
        %v2266 = vsel %vm2138, %v2074, %v2202
        %v2267 = vsel %vm2139, %v2075, %v2203
        %v2268 = vsel %vm2140, %v2076, %v2204
        %v2269 = vsel %vm2141, %v2077, %v2205
        %v2270 = vsel %vm2142, %v2078, %v2206
        %v2271 = vsel %vm2143, %v2079, %v2207
        %v2272 = vsel %vm2144, %v2080, %v2208
        %v2273 = vsel %vm2145, %v2081, %v2209
        %v2274 = vsel %vm2146, %v2082, %v2210
        %v2275 = vsel %vm2147, %v2083, %v2211
        %v2276 = vsel %vm2148, %v2084, %v2212
        %v2277 = vsel %vm2149, %v2085, %v2213
        %v2278 = vsel %vm2150, %v2086, %v2214
        %v2279 = vsel %vm2151, %v2087, %v2215
        %v2280 = vsel %vm2152, %v2088, %v2216
        %v2281 = vsel %vm2153, %v2089, %v2217
        %v2282 = vsel %vm2154, %v2090, %v2218
        %v2283 = vsel %vm2155, %v2091, %v2219
        %v2284 = vsel %vm2156, %v2092, %v2220
        %v2285 = vsel %vm2157, %v2093, %v2221
        %v2286 = vsel %vm2158, %v2094, %v2222
        %v2287 = vsel %vm2159, %v2095, %v2223
        %v2288 = vsel %vm2160, %v2096, %v2224
        %v2289 = vsel %vm2161, %v2097, %v2225
        %v2290 = vsel %vm2162, %v2098, %v2226
        %v2291 = vsel %vm2163, %v2099, %v2227
        %v2292 = vsel %vm2164, %v2100, %v2228
        %v2293 = vsel %vm2165, %v2101, %v2229
        %v2294 = vsel %vm2166, %v2102, %v2230
        %v2295 = vsel %vm2167, %v2103, %v2231
        %v2296 = vsel %vm2168, %v2104, %v2232
        %v2297 = vsel %vm2169, %v2105, %v2233
        %v2298 = vsel %vm2170, %v2106, %v2234
        %v2299 = vsel %vm2171, %v2107, %v2235
        %v2300 = vsel %vm2172, %v2108, %v2236
        %v2301 = vsel %vm2173, %v2109, %v2237
        %v2302 = vsel %vm2174, %v2110, %v2238
        %v2303 = vsel %vm2175, %v2111, %v2239
        %v2304 = vld [vmem:[%s3 + $0x78] sm:$0x1]
        %v2305 = vlaneseq
        %v2306 = vshrl.u32 %v2305, 7
        %v2307 = vsub.s32 0, %v2306
        %v2308 = vrot.slane %v2304, %v2307
        %v2309 = vmul.f32 %v2240, %v2308
        %v2310 = vmul.f32 %v2241, %v2308
        %v2311 = vmul.f32 %v2242, %v2308
        %v2312 = vmul.f32 %v2243, %v2308
        %v2313 = vmul.f32 %v2244, %v2308
        %v2314 = vmul.f32 %v2245, %v2308
        %v2315 = vmul.f32 %v2246, %v2308
        %v2316 = vmul.f32 %v2247, %v2308
        %v2317 = vmul.f32 %v2248, %v2308
        %v2318 = vmul.f32 %v2249, %v2308
        %v2319 = vmul.f32 %v2250, %v2308
        %v2320 = vmul.f32 %v2251, %v2308
        %v2321 = vmul.f32 %v2252, %v2308
        %v2322 = vmul.f32 %v2253, %v2308
        %v2323 = vmul.f32 %v2254, %v2308
        %v2324 = vmul.f32 %v2255, %v2308
        %v2325 = vmul.f32 %v2256, %v2308
        %v2326 = vmul.f32 %v2257, %v2308
        %v2327 = vmul.f32 %v2258, %v2308
        %v2328 = vmul.f32 %v2259, %v2308
        %v2329 = vmul.f32 %v2260, %v2308
        %v2330 = vmul.f32 %v2261, %v2308
        %v2331 = vmul.f32 %v2262, %v2308
        %v2332 = vmul.f32 %v2263, %v2308
        %v2333 = vmul.f32 %v2264, %v2308
        %v2334 = vmul.f32 %v2265, %v2308
        %v2335 = vmul.f32 %v2266, %v2308
        %v2336 = vmul.f32 %v2267, %v2308
        %v2337 = vmul.f32 %v2268, %v2308
        %v2338 = vmul.f32 %v2269, %v2308
        %v2339 = vmul.f32 %v2270, %v2308
        %v2340 = vmul.f32 %v2271, %v2308
        %v2341 = vmul.f32 %v2272, %v2308
        %v2342 = vmul.f32 %v2273, %v2308
        %v2343 = vmul.f32 %v2274, %v2308
        %v2344 = vmul.f32 %v2275, %v2308
        %v2345 = vmul.f32 %v2276, %v2308
        %v2346 = vmul.f32 %v2277, %v2308
        %v2347 = vmul.f32 %v2278, %v2308
        %v2348 = vmul.f32 %v2279, %v2308
        %v2349 = vmul.f32 %v2280, %v2308
        %v2350 = vmul.f32 %v2281, %v2308
        %v2351 = vmul.f32 %v2282, %v2308
        %v2352 = vmul.f32 %v2283, %v2308
        %v2353 = vmul.f32 %v2284, %v2308
        %v2354 = vmul.f32 %v2285, %v2308
        %v2355 = vmul.f32 %v2286, %v2308
        %v2356 = vmul.f32 %v2287, %v2308
        %v2357 = vmul.f32 %v2288, %v2308
        %v2358 = vmul.f32 %v2289, %v2308
        %v2359 = vmul.f32 %v2290, %v2308
        %v2360 = vmul.f32 %v2291, %v2308
        %v2361 = vmul.f32 %v2292, %v2308
        %v2362 = vmul.f32 %v2293, %v2308
        %v2363 = vmul.f32 %v2294, %v2308
        %v2364 = vmul.f32 %v2295, %v2308
        %v2365 = vmul.f32 %v2296, %v2308
        %v2366 = vmul.f32 %v2297, %v2308
        %v2367 = vmul.f32 %v2298, %v2308
        %v2368 = vmul.f32 %v2299, %v2308
        %v2369 = vmul.f32 %v2300, %v2308
        %v2370 = vmul.f32 %v2301, %v2308
        %v2371 = vmul.f32 %v2302, %v2308
        %v2372 = vmul.f32 %v2303, %v2308
        %v2373 = vsel %vm1263, %v2309, 0.0
        %2374 = vadd.xlane.f32.xlu0 %v2373
        %v2375 = vpop.xlane.xlu0 %2374
        %v2376 = vsel %vm1263, %v2310, 0.0
        %2377 = vadd.xlane.f32.xlu0 %v2376
        %v2378 = vpop.xlane.xlu0 %2377
        %v2379 = vsel %vm1263, %v2311, 0.0
        %2380 = vadd.xlane.f32.xlu0 %v2379
        %v2381 = vpop.xlane.xlu0 %2380
        %v2382 = vsel %vm1263, %v2312, 0.0
        %2383 = vadd.xlane.f32.xlu0 %v2382
        %v2384 = vpop.xlane.xlu0 %2383
        %v2385 = vsel %vm1263, %v2313, 0.0
        %2386 = vadd.xlane.f32.xlu0 %v2385
        %v2387 = vpop.xlane.xlu0 %2386
        %v2388 = vsel %vm1263, %v2314, 0.0
        %2389 = vadd.xlane.f32.xlu0 %v2388
        %v2390 = vpop.xlane.xlu0 %2389
        %v2391 = vsel %vm1263, %v2315, 0.0
        %2392 = vadd.xlane.f32.xlu0 %v2391
        %v2393 = vpop.xlane.xlu0 %2392
        %v2394 = vsel %vm1263, %v2316, 0.0
        %2395 = vadd.xlane.f32.xlu0 %v2394
        %v2396 = vpop.xlane.xlu0 %2395
        %v2397 = vsel %vm1263, %v2317, 0.0
        %2398 = vadd.xlane.f32.xlu0 %v2397
        %v2399 = vpop.xlane.xlu0 %2398
        %v2400 = vsel %vm1263, %v2318, 0.0
        %2401 = vadd.xlane.f32.xlu0 %v2400
        %v2402 = vpop.xlane.xlu0 %2401
        %v2403 = vsel %vm1263, %v2319, 0.0
        %2404 = vadd.xlane.f32.xlu0 %v2403
        %v2405 = vpop.xlane.xlu0 %2404
        %v2406 = vsel %vm1263, %v2320, 0.0
        %2407 = vadd.xlane.f32.xlu0 %v2406
        %v2408 = vpop.xlane.xlu0 %2407
        %v2409 = vsel %vm1263, %v2321, 0.0
        %2410 = vadd.xlane.f32.xlu0 %v2409
        %v2411 = vpop.xlane.xlu0 %2410
        %v2412 = vsel %vm1263, %v2322, 0.0
        %2413 = vadd.xlane.f32.xlu0 %v2412
        %v2414 = vpop.xlane.xlu0 %2413
        %v2415 = vsel %vm1263, %v2323, 0.0
        %2416 = vadd.xlane.f32.xlu0 %v2415
        %v2417 = vpop.xlane.xlu0 %2416
        %v2418 = vsel %vm1263, %v2324, 0.0
        %2419 = vadd.xlane.f32.xlu0 %v2418
        %v2420 = vpop.xlane.xlu0 %2419
        %v2421 = vsel %vm1263, %v2325, 0.0
        %2422 = vadd.xlane.f32.xlu0 %v2421
        %v2423 = vpop.xlane.xlu0 %2422
        %v2424 = vsel %vm1263, %v2326, 0.0
        %2425 = vadd.xlane.f32.xlu0 %v2424
        %v2426 = vpop.xlane.xlu0 %2425
        %v2427 = vsel %vm1263, %v2327, 0.0
        %2428 = vadd.xlane.f32.xlu0 %v2427
        %v2429 = vpop.xlane.xlu0 %2428
        %v2430 = vsel %vm1263, %v2328, 0.0
        %2431 = vadd.xlane.f32.xlu0 %v2430
        %v2432 = vpop.xlane.xlu0 %2431
        %v2433 = vsel %vm1263, %v2329, 0.0
        %2434 = vadd.xlane.f32.xlu0 %v2433
        %v2435 = vpop.xlane.xlu0 %2434
        %v2436 = vsel %vm1263, %v2330, 0.0
        %2437 = vadd.xlane.f32.xlu0 %v2436
        %v2438 = vpop.xlane.xlu0 %2437
        %v2439 = vsel %vm1263, %v2331, 0.0
        %2440 = vadd.xlane.f32.xlu0 %v2439
        %v2441 = vpop.xlane.xlu0 %2440
        %v2442 = vsel %vm1263, %v2332, 0.0
        %2443 = vadd.xlane.f32.xlu0 %v2442
        %v2444 = vpop.xlane.xlu0 %2443
        %v2445 = vsel %vm1263, %v2333, 0.0
        %2446 = vadd.xlane.f32.xlu0 %v2445
        %v2447 = vpop.xlane.xlu0 %2446
        %v2448 = vsel %vm1263, %v2334, 0.0
        %2449 = vadd.xlane.f32.xlu0 %v2448
        %v2450 = vpop.xlane.xlu0 %2449
        %v2451 = vsel %vm1263, %v2335, 0.0
        %2452 = vadd.xlane.f32.xlu0 %v2451
        %v2453 = vpop.xlane.xlu0 %2452
        %v2454 = vsel %vm1263, %v2336, 0.0
        %2455 = vadd.xlane.f32.xlu0 %v2454
        %v2456 = vpop.xlane.xlu0 %2455
        %v2457 = vsel %vm1263, %v2337, 0.0
        %2458 = vadd.xlane.f32.xlu0 %v2457
        %v2459 = vpop.xlane.xlu0 %2458
        %v2460 = vsel %vm1263, %v2338, 0.0
        %2461 = vadd.xlane.f32.xlu0 %v2460
        %v2462 = vpop.xlane.xlu0 %2461
        %v2463 = vsel %vm1263, %v2339, 0.0
        %2464 = vadd.xlane.f32.xlu0 %v2463
        %v2465 = vpop.xlane.xlu0 %2464
        %v2466 = vsel %vm1263, %v2340, 0.0
        %2467 = vadd.xlane.f32.xlu0 %v2466
        %v2468 = vpop.xlane.xlu0 %2467
        %v2469 = vsel %vm1263, %v2341, 0.0
        %2470 = vadd.xlane.f32.xlu0 %v2469
        %v2471 = vpop.xlane.xlu0 %2470
        %v2472 = vsel %vm1263, %v2342, 0.0
        %2473 = vadd.xlane.f32.xlu0 %v2472
        %v2474 = vpop.xlane.xlu0 %2473
        %v2475 = vsel %vm1263, %v2343, 0.0
        %2476 = vadd.xlane.f32.xlu0 %v2475
        %v2477 = vpop.xlane.xlu0 %2476
        %v2478 = vsel %vm1263, %v2344, 0.0
        %2479 = vadd.xlane.f32.xlu0 %v2478
        %v2480 = vpop.xlane.xlu0 %2479
        %v2481 = vsel %vm1263, %v2345, 0.0
        %2482 = vadd.xlane.f32.xlu0 %v2481
        %v2483 = vpop.xlane.xlu0 %2482
        %v2484 = vsel %vm1263, %v2346, 0.0
        %2485 = vadd.xlane.f32.xlu0 %v2484
        %v2486 = vpop.xlane.xlu0 %2485
        %v2487 = vsel %vm1263, %v2347, 0.0
        %2488 = vadd.xlane.f32.xlu0 %v2487
        %v2489 = vpop.xlane.xlu0 %2488
        %v2490 = vsel %vm1263, %v2348, 0.0
        %2491 = vadd.xlane.f32.xlu0 %v2490
        %v2492 = vpop.xlane.xlu0 %2491
        %v2493 = vsel %vm1263, %v2349, 0.0
        %2494 = vadd.xlane.f32.xlu0 %v2493
        %v2495 = vpop.xlane.xlu0 %2494
        %v2496 = vsel %vm1263, %v2350, 0.0
        %2497 = vadd.xlane.f32.xlu0 %v2496
        %v2498 = vpop.xlane.xlu0 %2497
        %v2499 = vsel %vm1263, %v2351, 0.0
        %2500 = vadd.xlane.f32.xlu0 %v2499
        %v2501 = vpop.xlane.xlu0 %2500
        %v2502 = vsel %vm1263, %v2352, 0.0
        %2503 = vadd.xlane.f32.xlu0 %v2502
        %v2504 = vpop.xlane.xlu0 %2503
        %v2505 = vsel %vm1263, %v2353, 0.0
        %2506 = vadd.xlane.f32.xlu0 %v2505
        %v2507 = vpop.xlane.xlu0 %2506
        %v2508 = vsel %vm1263, %v2354, 0.0
        %2509 = vadd.xlane.f32.xlu0 %v2508
        %v2510 = vpop.xlane.xlu0 %2509
        %v2511 = vsel %vm1263, %v2355, 0.0
        %2512 = vadd.xlane.f32.xlu0 %v2511
        %v2513 = vpop.xlane.xlu0 %2512
        %v2514 = vsel %vm1263, %v2356, 0.0
        %2515 = vadd.xlane.f32.xlu0 %v2514
        %v2516 = vpop.xlane.xlu0 %2515
        %v2517 = vsel %vm1263, %v2357, 0.0
        %2518 = vadd.xlane.f32.xlu0 %v2517
        %v2519 = vpop.xlane.xlu0 %2518
        %v2520 = vsel %vm1263, %v2358, 0.0
        %2521 = vadd.xlane.f32.xlu0 %v2520
        %v2522 = vpop.xlane.xlu0 %2521
        %v2523 = vsel %vm1263, %v2359, 0.0
        %2524 = vadd.xlane.f32.xlu0 %v2523
        %v2525 = vpop.xlane.xlu0 %2524
        %v2526 = vsel %vm1263, %v2360, 0.0
        %2527 = vadd.xlane.f32.xlu0 %v2526
        %v2528 = vpop.xlane.xlu0 %2527
        %v2529 = vsel %vm1263, %v2361, 0.0
        %2530 = vadd.xlane.f32.xlu0 %v2529
        %v2531 = vpop.xlane.xlu0 %2530
        %v2532 = vsel %vm1263, %v2362, 0.0
        %2533 = vadd.xlane.f32.xlu0 %v2532
        %v2534 = vpop.xlane.xlu0 %2533
        %v2535 = vsel %vm1263, %v2363, 0.0
        %2536 = vadd.xlane.f32.xlu0 %v2535
        %v2537 = vpop.xlane.xlu0 %2536
        %v2538 = vsel %vm1263, %v2364, 0.0
        %2539 = vadd.xlane.f32.xlu0 %v2538
        %v2540 = vpop.xlane.xlu0 %2539
        %v2541 = vsel %vm1263, %v2365, 0.0
        %2542 = vadd.xlane.f32.xlu0 %v2541
        %v2543 = vpop.xlane.xlu0 %2542
        %v2544 = vsel %vm1263, %v2366, 0.0
        %2545 = vadd.xlane.f32.xlu0 %v2544
        %v2546 = vpop.xlane.xlu0 %2545
        %v2547 = vsel %vm1263, %v2367, 0.0
        %2548 = vadd.xlane.f32.xlu0 %v2547
        %v2549 = vpop.xlane.xlu0 %2548
        %v2550 = vsel %vm1263, %v2368, 0.0
        %2551 = vadd.xlane.f32.xlu0 %v2550
        %v2552 = vpop.xlane.xlu0 %2551
        %v2553 = vsel %vm1263, %v2369, 0.0
        %2554 = vadd.xlane.f32.xlu0 %v2553
        %v2555 = vpop.xlane.xlu0 %2554
        %v2556 = vsel %vm1263, %v2370, 0.0
        %2557 = vadd.xlane.f32.xlu0 %v2556
        %v2558 = vpop.xlane.xlu0 %2557
        %v2559 = vsel %vm1263, %v2371, 0.0
        %2560 = vadd.xlane.f32.xlu0 %v2559
        %v2561 = vpop.xlane.xlu0 %2560
        %v2562 = vsel %vm1263, %v2372, 0.0
        %2563 = vadd.xlane.f32.xlu0 %v2562
        %v2564 = vpop.xlane.xlu0 %2563
        %2566 = vset.pattern.permute.xlu0 32
        %2567 = vperm.xlu0 %2566, %v1941
        %v2568 = vpop.permute.xlu0 %2567
        %2571 = vset.pattern.permute.xlu0 32
        %2572 = vperm.xlu0 %2571, %v1946
        %v2573 = vpop.permute.xlu0 %2572
        %2576 = vset.pattern.permute.xlu0 32
        %2577 = vperm.xlu0 %2576, %v1951
        %v2578 = vpop.permute.xlu0 %2577
        %2581 = vset.pattern.permute.xlu0 32
        %2582 = vperm.xlu0 %2581, %v1956
        %v2583 = vpop.permute.xlu0 %2582
        %2586 = vset.pattern.permute.xlu0 32
        %2587 = vperm.xlu0 %2586, %v1961
        %v2588 = vpop.permute.xlu0 %2587
        %2591 = vset.pattern.permute.xlu0 32
        %2592 = vperm.xlu0 %2591, %v1966
        %v2593 = vpop.permute.xlu0 %2592
        %2596 = vset.pattern.permute.xlu0 32
        %2597 = vperm.xlu0 %2596, %v1971
        %v2598 = vpop.permute.xlu0 %2597
        %2601 = vset.pattern.permute.xlu0 32
        %2602 = vperm.xlu0 %2601, %v1976
        %v2603 = vpop.permute.xlu0 %2602
        %v2669 = vlaneseq
        %v2670 = vand.u32 %v2669, 127
        %v2671 = vlaneseq
        %v2672 = vshrl.u32 %v2671, 7
        %v2673 = vsub.s32 %v2670, %v2672
        %v2674 = vrot.slane %v2375, %v2673
        %v2675 = vlaneseq
        %v2676 = vshrl.u32 %v2675, 7
        %v2677 = vsub.s32 %v2670, %v2676
        %v2678 = vrot.slane %v2378, %v2677
        %v2679 = vlaneseq
        %v2680 = vshrl.u32 %v2679, 7
        %v2681 = vsub.s32 %v2670, %v2680
        %v2682 = vrot.slane %v2381, %v2681
        %v2683 = vlaneseq
        %v2684 = vshrl.u32 %v2683, 7
        %v2685 = vsub.s32 %v2670, %v2684
        %v2686 = vrot.slane %v2384, %v2685
        %v2687 = vlaneseq
        %v2688 = vshrl.u32 %v2687, 7
        %v2689 = vsub.s32 %v2670, %v2688
        %v2690 = vrot.slane %v2387, %v2689
        %v2691 = vlaneseq
        %v2692 = vshrl.u32 %v2691, 7
        %v2693 = vsub.s32 %v2670, %v2692
        %v2694 = vrot.slane %v2390, %v2693
        %v2695 = vlaneseq
        %v2696 = vshrl.u32 %v2695, 7
        %v2697 = vsub.s32 %v2670, %v2696
        %v2698 = vrot.slane %v2393, %v2697
        %v2699 = vlaneseq
        %v2700 = vshrl.u32 %v2699, 7
        %v2701 = vsub.s32 %v2670, %v2700
        %v2702 = vrot.slane %v2396, %v2701
        %v2703 = vlaneseq
        %v2704 = vshrl.u32 %v2703, 7
        %v2705 = vsub.s32 %v2670, %v2704
        %v2706 = vrot.slane %v2399, %v2705
        %v2707 = vlaneseq
        %v2708 = vshrl.u32 %v2707, 7
        %v2709 = vsub.s32 %v2670, %v2708
        %v2710 = vrot.slane %v2402, %v2709
        %v2711 = vlaneseq
        %v2712 = vshrl.u32 %v2711, 7
        %v2713 = vsub.s32 %v2670, %v2712
        %v2714 = vrot.slane %v2405, %v2713
        %v2715 = vlaneseq
        %v2716 = vshrl.u32 %v2715, 7
        %v2717 = vsub.s32 %v2670, %v2716
        %v2718 = vrot.slane %v2408, %v2717
        %v2719 = vlaneseq
        %v2720 = vshrl.u32 %v2719, 7
        %v2721 = vsub.s32 %v2670, %v2720
        %v2722 = vrot.slane %v2411, %v2721
        %v2723 = vlaneseq
        %v2724 = vshrl.u32 %v2723, 7
        %v2725 = vsub.s32 %v2670, %v2724
        %v2726 = vrot.slane %v2414, %v2725
        %v2727 = vlaneseq
        %v2728 = vshrl.u32 %v2727, 7
        %v2729 = vsub.s32 %v2670, %v2728
        %v2730 = vrot.slane %v2417, %v2729
        %v2731 = vlaneseq
        %v2732 = vshrl.u32 %v2731, 7
        %v2733 = vsub.s32 %v2670, %v2732
        %v2734 = vrot.slane %v2420, %v2733
        %v2735 = vlaneseq
        %v2736 = vshrl.u32 %v2735, 7
        %v2737 = vsub.s32 %v2670, %v2736
        %v2738 = vrot.slane %v2423, %v2737
        %v2739 = vlaneseq
        %v2740 = vshrl.u32 %v2739, 7
        %v2741 = vsub.s32 %v2670, %v2740
        %v2742 = vrot.slane %v2426, %v2741
        %v2743 = vlaneseq
        %v2744 = vshrl.u32 %v2743, 7
        %v2745 = vsub.s32 %v2670, %v2744
        %v2746 = vrot.slane %v2429, %v2745
        %v2747 = vlaneseq
        %v2748 = vshrl.u32 %v2747, 7
        %v2749 = vsub.s32 %v2670, %v2748
        %v2750 = vrot.slane %v2432, %v2749
        %v2751 = vlaneseq
        %v2752 = vshrl.u32 %v2751, 7
        %v2753 = vsub.s32 %v2670, %v2752
        %v2754 = vrot.slane %v2435, %v2753
        %v2755 = vlaneseq
        %v2756 = vshrl.u32 %v2755, 7
        %v2757 = vsub.s32 %v2670, %v2756
        %v2758 = vrot.slane %v2438, %v2757
        %v2759 = vlaneseq
        %v2760 = vshrl.u32 %v2759, 7
        %v2761 = vsub.s32 %v2670, %v2760
        %v2762 = vrot.slane %v2441, %v2761
        %v2763 = vlaneseq
        %v2764 = vshrl.u32 %v2763, 7
        %v2765 = vsub.s32 %v2670, %v2764
        %v2766 = vrot.slane %v2444, %v2765
        %v2767 = vlaneseq
        %v2768 = vshrl.u32 %v2767, 7
        %v2769 = vsub.s32 %v2670, %v2768
        %v2770 = vrot.slane %v2447, %v2769
        %v2771 = vlaneseq
        %v2772 = vshrl.u32 %v2771, 7
        %v2773 = vsub.s32 %v2670, %v2772
        %v2774 = vrot.slane %v2450, %v2773
        %v2775 = vlaneseq
        %v2776 = vshrl.u32 %v2775, 7
        %v2777 = vsub.s32 %v2670, %v2776
        %v2778 = vrot.slane %v2453, %v2777
        %v2779 = vlaneseq
        %v2780 = vshrl.u32 %v2779, 7
        %v2781 = vsub.s32 %v2670, %v2780
        %v2782 = vrot.slane %v2456, %v2781
        %v2783 = vlaneseq
        %v2784 = vshrl.u32 %v2783, 7
        %v2785 = vsub.s32 %v2670, %v2784
        %v2786 = vrot.slane %v2459, %v2785
        %v2787 = vlaneseq
        %v2788 = vshrl.u32 %v2787, 7
        %v2789 = vsub.s32 %v2670, %v2788
        %v2790 = vrot.slane %v2462, %v2789
        %v2791 = vlaneseq
        %v2792 = vshrl.u32 %v2791, 7
        %v2793 = vsub.s32 %v2670, %v2792
        %v2794 = vrot.slane %v2465, %v2793
        %v2795 = vlaneseq
        %v2796 = vshrl.u32 %v2795, 7
        %v2797 = vsub.s32 %v2670, %v2796
        %v2798 = vrot.slane %v2468, %v2797
        %v2799 = vlaneseq
        %v2800 = vshrl.u32 %v2799, 7
        %v2801 = vsub.s32 %v2670, %v2800
        %v2802 = vrot.slane %v2471, %v2801
        %v2803 = vlaneseq
        %v2804 = vshrl.u32 %v2803, 7
        %v2805 = vsub.s32 %v2670, %v2804
        %v2806 = vrot.slane %v2474, %v2805
        %v2807 = vlaneseq
        %v2808 = vshrl.u32 %v2807, 7
        %v2809 = vsub.s32 %v2670, %v2808
        %v2810 = vrot.slane %v2477, %v2809
        %v2811 = vlaneseq
        %v2812 = vshrl.u32 %v2811, 7
        %v2813 = vsub.s32 %v2670, %v2812
        %v2814 = vrot.slane %v2480, %v2813
        %v2815 = vlaneseq
        %v2816 = vshrl.u32 %v2815, 7
        %v2817 = vsub.s32 %v2670, %v2816
        %v2818 = vrot.slane %v2483, %v2817
        %v2819 = vlaneseq
        %v2820 = vshrl.u32 %v2819, 7
        %v2821 = vsub.s32 %v2670, %v2820
        %v2822 = vrot.slane %v2486, %v2821
        %v2823 = vlaneseq
        %v2824 = vshrl.u32 %v2823, 7
        %v2825 = vsub.s32 %v2670, %v2824
        %v2826 = vrot.slane %v2489, %v2825
        %v2827 = vlaneseq
        %v2828 = vshrl.u32 %v2827, 7
        %v2829 = vsub.s32 %v2670, %v2828
        %v2830 = vrot.slane %v2492, %v2829
        %v2831 = vlaneseq
        %v2832 = vshrl.u32 %v2831, 7
        %v2833 = vsub.s32 %v2670, %v2832
        %v2834 = vrot.slane %v2495, %v2833
        %v2835 = vlaneseq
        %v2836 = vshrl.u32 %v2835, 7
        %v2837 = vsub.s32 %v2670, %v2836
        %v2838 = vrot.slane %v2498, %v2837
        %v2839 = vlaneseq
        %v2840 = vshrl.u32 %v2839, 7
        %v2841 = vsub.s32 %v2670, %v2840
        %v2842 = vrot.slane %v2501, %v2841
        %v2843 = vlaneseq
        %v2844 = vshrl.u32 %v2843, 7
        %v2845 = vsub.s32 %v2670, %v2844
        %v2846 = vrot.slane %v2504, %v2845
        %v2847 = vlaneseq
        %v2848 = vshrl.u32 %v2847, 7
        %v2849 = vsub.s32 %v2670, %v2848
        %v2850 = vrot.slane %v2507, %v2849
        %v2851 = vlaneseq
        %v2852 = vshrl.u32 %v2851, 7
        %v2853 = vsub.s32 %v2670, %v2852
        %v2854 = vrot.slane %v2510, %v2853
        %v2855 = vlaneseq
        %v2856 = vshrl.u32 %v2855, 7
        %v2857 = vsub.s32 %v2670, %v2856
        %v2858 = vrot.slane %v2513, %v2857
        %v2859 = vlaneseq
        %v2860 = vshrl.u32 %v2859, 7
        %v2861 = vsub.s32 %v2670, %v2860
        %v2862 = vrot.slane %v2516, %v2861
        %v2863 = vlaneseq
        %v2864 = vshrl.u32 %v2863, 7
        %v2865 = vsub.s32 %v2670, %v2864
        %v2866 = vrot.slane %v2519, %v2865
        %v2867 = vlaneseq
        %v2868 = vshrl.u32 %v2867, 7
        %v2869 = vsub.s32 %v2670, %v2868
        %v2870 = vrot.slane %v2522, %v2869
        %v2871 = vlaneseq
        %v2872 = vshrl.u32 %v2871, 7
        %v2873 = vsub.s32 %v2670, %v2872
        %v2874 = vrot.slane %v2525, %v2873
        %v2875 = vlaneseq
        %v2876 = vshrl.u32 %v2875, 7
        %v2877 = vsub.s32 %v2670, %v2876
        %v2878 = vrot.slane %v2528, %v2877
        %v2879 = vlaneseq
        %v2880 = vshrl.u32 %v2879, 7
        %v2881 = vsub.s32 %v2670, %v2880
        %v2882 = vrot.slane %v2531, %v2881
        %v2883 = vlaneseq
        %v2884 = vshrl.u32 %v2883, 7
        %v2885 = vsub.s32 %v2670, %v2884
        %v2886 = vrot.slane %v2534, %v2885
        %v2887 = vlaneseq
        %v2888 = vshrl.u32 %v2887, 7
        %v2889 = vsub.s32 %v2670, %v2888
        %v2890 = vrot.slane %v2537, %v2889
        %v2891 = vlaneseq
        %v2892 = vshrl.u32 %v2891, 7
        %v2893 = vsub.s32 %v2670, %v2892
        %v2894 = vrot.slane %v2540, %v2893
        %v2895 = vlaneseq
        %v2896 = vshrl.u32 %v2895, 7
        %v2897 = vsub.s32 %v2670, %v2896
        %v2898 = vrot.slane %v2543, %v2897
        %v2899 = vlaneseq
        %v2900 = vshrl.u32 %v2899, 7
        %v2901 = vsub.s32 %v2670, %v2900
        %v2902 = vrot.slane %v2546, %v2901
        %v2903 = vlaneseq
        %v2904 = vshrl.u32 %v2903, 7
        %v2905 = vsub.s32 %v2670, %v2904
        %v2906 = vrot.slane %v2549, %v2905
        %v2907 = vlaneseq
        %v2908 = vshrl.u32 %v2907, 7
        %v2909 = vsub.s32 %v2670, %v2908
        %v2910 = vrot.slane %v2552, %v2909
        %v2911 = vlaneseq
        %v2912 = vshrl.u32 %v2911, 7
        %v2913 = vsub.s32 %v2670, %v2912
        %v2914 = vrot.slane %v2555, %v2913
        %v2915 = vlaneseq
        %v2916 = vshrl.u32 %v2915, 7
        %v2917 = vsub.s32 %v2670, %v2916
        %v2918 = vrot.slane %v2558, %v2917
        %v2919 = vlaneseq
        %v2920 = vshrl.u32 %v2919, 7
        %v2921 = vsub.s32 %v2670, %v2920
        %v2922 = vrot.slane %v2561, %v2921
        %v2923 = vlaneseq
        %v2924 = vshrl.u32 %v2923, 7
        %v2925 = vsub.s32 %v2670, %v2924
        %v2926 = vrot.slane %v2564, %v2925
        %vm2927 = vcmask 1041409
        %v2928 = vsel %vm2927, %v2678, %v2674
        %vm2929 = vcmask 1042434
        %v2930 = vsel %vm2929, %v2682, %v2928
        %vm2931 = vcmask 1043459
        %v2932 = vsel %vm2931, %v2686, %v2930
        %vm2933 = vcmask 1044484
        %v2934 = vsel %vm2933, %v2690, %v2932
        %vm2935 = vcmask 1045509
        %v2936 = vsel %vm2935, %v2694, %v2934
        %vm2937 = vcmask 1046534
        %v2938 = vsel %vm2937, %v2698, %v2936
        %vm2939 = vcmask 1047559
        %v2940 = vsel %vm2939, %v2702, %v2938
        %v2941 = vsel %vm2927, %v2710, %v2706
        %v2942 = vsel %vm2929, %v2714, %v2941
        %v2943 = vsel %vm2931, %v2718, %v2942
        %v2944 = vsel %vm2933, %v2722, %v2943
        %v2945 = vsel %vm2935, %v2726, %v2944
        %v2946 = vsel %vm2937, %v2730, %v2945
        %v2947 = vsel %vm2939, %v2734, %v2946
        %v2948 = vsel %vm2927, %v2742, %v2738
        %v2949 = vsel %vm2929, %v2746, %v2948
        %v2950 = vsel %vm2931, %v2750, %v2949
        %v2951 = vsel %vm2933, %v2754, %v2950
        %v2952 = vsel %vm2935, %v2758, %v2951
        %v2953 = vsel %vm2937, %v2762, %v2952
        %v2954 = vsel %vm2939, %v2766, %v2953
        %v2955 = vsel %vm2927, %v2774, %v2770
        %v2956 = vsel %vm2929, %v2778, %v2955
        %v2957 = vsel %vm2931, %v2782, %v2956
        %v2958 = vsel %vm2933, %v2786, %v2957
        %v2959 = vsel %vm2935, %v2790, %v2958
        %v2960 = vsel %vm2937, %v2794, %v2959
        %v2961 = vsel %vm2939, %v2798, %v2960
        %v2962 = vsel %vm2927, %v2806, %v2802
        %v2963 = vsel %vm2929, %v2810, %v2962
        %v2964 = vsel %vm2931, %v2814, %v2963
        %v2965 = vsel %vm2933, %v2818, %v2964
        %v2966 = vsel %vm2935, %v2822, %v2965
        %v2967 = vsel %vm2937, %v2826, %v2966
        %v2968 = vsel %vm2939, %v2830, %v2967
        %v2969 = vsel %vm2927, %v2838, %v2834
        %v2970 = vsel %vm2929, %v2842, %v2969
        %v2971 = vsel %vm2931, %v2846, %v2970
        %v2972 = vsel %vm2933, %v2850, %v2971
        %v2973 = vsel %vm2935, %v2854, %v2972
        %v2974 = vsel %vm2937, %v2858, %v2973
        %v2975 = vsel %vm2939, %v2862, %v2974
        %v2976 = vsel %vm2927, %v2870, %v2866
        %v2977 = vsel %vm2929, %v2874, %v2976
        %v2978 = vsel %vm2931, %v2878, %v2977
        %v2979 = vsel %vm2933, %v2882, %v2978
        %v2980 = vsel %vm2935, %v2886, %v2979
        %v2981 = vsel %vm2937, %v2890, %v2980
        %v2982 = vsel %vm2939, %v2894, %v2981
        %v2983 = vsel %vm2927, %v2902, %v2898
        %v2984 = vsel %vm2929, %v2906, %v2983
        %v2985 = vsel %vm2931, %v2910, %v2984
        %v2986 = vsel %vm2933, %v2914, %v2985
        %v2987 = vsel %vm2935, %v2918, %v2986
        %v2988 = vsel %vm2937, %v2922, %v2987
        %v2989 = vsel %vm2939, %v2926, %v2988
        %v2998 = vadd.f32 %v2568, %v2940
        %v2999 = vadd.f32 %v2573, %v2947
        %v3000 = vadd.f32 %v2578, %v2954
        %v3001 = vadd.f32 %v2583, %v2961
        %v3002 = vadd.f32 %v2588, %v2968
        %v3003 = vadd.f32 %v2593, %v2975
        %v3004 = vadd.f32 %v2598, %v2982
        %v3005 = vadd.f32 %v2603, %v2989
        %vm3006 = vcmp.ge.f32.partialorder %v2998, 0.0
        %vm3007 = vcmp.ge.f32.partialorder %v2999, 0.0
        %vm3008 = vcmp.ge.f32.partialorder %v3000, 0.0
        %vm3009 = vcmp.ge.f32.partialorder %v3001, 0.0
        %vm3010 = vcmp.ge.f32.partialorder %v3002, 0.0
        %vm3011 = vcmp.ge.f32.partialorder %v3003, 0.0
        %vm3012 = vcmp.ge.f32.partialorder %v3004, 0.0
        %vm3013 = vcmp.ge.f32.partialorder %v3005, 0.0
        %v3014 = vmul.f32 %v2998, 0.01
        %v3015 = vmul.f32 %v2999, 0.01
        %v3016 = vmul.f32 %v3000, 0.01
        %v3017 = vmul.f32 %v3001, 0.01
        %v3018 = vmul.f32 %v3002, 0.01
        %v3019 = vmul.f32 %v3003, 0.01
        %v3020 = vmul.f32 %v3004, 0.01
        %v3021 = vmul.f32 %v3005, 0.01
        %v3022 = vsel %vm3006, %v2998, %v3014
        %v3023 = vsel %vm3007, %v2999, %v3015
        %v3024 = vsel %vm3008, %v3000, %v3016
        %v3025 = vsel %vm3009, %v3001, %v3017
        %v3026 = vsel %vm3010, %v3002, %v3018
        %v3027 = vsel %vm3011, %v3003, %v3019
        %v3028 = vsel %vm3012, %v3004, %v3020
        %v3029 = vsel %vm3013, %v3005, %v3021
        %vm3030 = vcmp.gt.f32.partialorder %v314, 0.0
        %vm3031 = vcmp.gt.f32.partialorder %v315, 0.0
        %vm3032 = vcmp.gt.f32.partialorder %v316, 0.0
        %vm3033 = vcmp.gt.f32.partialorder %v317, 0.0
        %vm3034 = vcmp.gt.f32.partialorder %v318, 0.0
        %vm3035 = vcmp.gt.f32.partialorder %v319, 0.0
        %vm3036 = vcmp.gt.f32.partialorder %v320, 0.0
        %vm3037 = vcmp.gt.f32.partialorder %v321, 0.0
        %v3038 = vsel %vm3030, %v3022, -1e+09
        %v3039 = vsel %vm3031, %v3023, -1e+09
        %v3040 = vsel %vm3032, %v3024, -1e+09
        %v3041 = vsel %vm3033, %v3025, -1e+09
        %v3042 = vsel %vm3034, %v3026, -1e+09
        %v3043 = vsel %vm3035, %v3027, -1e+09
        %v3044 = vsel %vm3036, %v3028, -1e+09
        %v3045 = vsel %vm3037, %v3029, -1e+09
        %v3046 = vsel %vm489, %v3038, -inf
        %3047 = vmax.xlane.f32.xlu0 %v3046
        %v3048 = vpop.xlane.xlu0 %3047
        %v3049 = vsel %vm489, %v3039, -inf
        %3050 = vmax.xlane.f32.xlu0 %v3049
        %v3051 = vpop.xlane.xlu0 %3050
        %v3052 = vsel %vm489, %v3040, -inf
        %3053 = vmax.xlane.f32.xlu0 %v3052
        %v3054 = vpop.xlane.xlu0 %3053
        %v3055 = vsel %vm489, %v3041, -inf
        %3056 = vmax.xlane.f32.xlu0 %v3055
        %v3057 = vpop.xlane.xlu0 %3056
        %v3058 = vsel %vm489, %v3042, -inf
        %3059 = vmax.xlane.f32.xlu0 %v3058
        %v3060 = vpop.xlane.xlu0 %3059
        %v3061 = vsel %vm489, %v3043, -inf
        %3062 = vmax.xlane.f32.xlu0 %v3061
        %v3063 = vpop.xlane.xlu0 %3062
        %v3064 = vsel %vm489, %v3044, -inf
        %3065 = vmax.xlane.f32.xlu0 %v3064
        %v3066 = vpop.xlane.xlu0 %3065
        %v3067 = vsel %vm489, %v3045, -inf
        %3068 = vmax.xlane.f32.xlu0 %v3067
        %v3069 = vpop.xlane.xlu0 %3068
        %v3070 = vsub.f32 %v3038, %v3048
        %v3071 = vsub.f32 %v3039, %v3051
        %v3072 = vsub.f32 %v3040, %v3054
        %v3073 = vsub.f32 %v3041, %v3057
        %v3074 = vsub.f32 %v3042, %v3060
        %v3075 = vsub.f32 %v3043, %v3063
        %v3076 = vsub.f32 %v3044, %v3066
        %v3077 = vsub.f32 %v3045, %v3069
        %v3078 = vmul.f32 %v3070, 1.442695
        %v3079 = vpow.pop %v3078
        %v3080 = vmul.f32 %v3071, 1.442695
        %v3081 = vpow.pop %v3080
        %v3082 = vmul.f32 %v3072, 1.442695
        %v3083 = vpow.pop %v3082
        %v3084 = vmul.f32 %v3073, 1.442695
        %v3085 = vpow.pop %v3084
        %v3086 = vmul.f32 %v3074, 1.442695
        %v3087 = vpow.pop %v3086
        %v3088 = vmul.f32 %v3075, 1.442695
        %v3089 = vpow.pop %v3088
        %v3090 = vmul.f32 %v3076, 1.442695
        %v3091 = vpow.pop %v3090
        %v3092 = vmul.f32 %v3077, 1.442695
        %v3093 = vpow.pop %v3092
        %v3094 = vmul.f32 %v3079, %v314
        %v3095 = vmul.f32 %v3081, %v315
        %v3096 = vmul.f32 %v3083, %v316
        %v3097 = vmul.f32 %v3085, %v317
        %v3098 = vmul.f32 %v3087, %v318
        %v3099 = vmul.f32 %v3089, %v319
        %v3100 = vmul.f32 %v3091, %v320
        %v3101 = vmul.f32 %v3093, %v321
        %v3102 = vsel %vm489, %v3094, 0.0
        %3103 = vadd.xlane.f32.xlu0 %v3102
        %v3104 = vpop.xlane.xlu0 %3103
        %v3105 = vsel %vm489, %v3095, 0.0
        %3106 = vadd.xlane.f32.xlu0 %v3105
        %v3107 = vpop.xlane.xlu0 %3106
        %v3108 = vsel %vm489, %v3096, 0.0
        %3109 = vadd.xlane.f32.xlu0 %v3108
        %v3110 = vpop.xlane.xlu0 %3109
        %v3111 = vsel %vm489, %v3097, 0.0
        %3112 = vadd.xlane.f32.xlu0 %v3111
        %v3113 = vpop.xlane.xlu0 %3112
        %v3114 = vsel %vm489, %v3098, 0.0
        %3115 = vadd.xlane.f32.xlu0 %v3114
        %v3116 = vpop.xlane.xlu0 %3115
        %v3117 = vsel %vm489, %v3099, 0.0
        %3118 = vadd.xlane.f32.xlu0 %v3117
        %v3119 = vpop.xlane.xlu0 %3118
        %v3120 = vsel %vm489, %v3100, 0.0
        %3121 = vadd.xlane.f32.xlu0 %v3120
        %v3122 = vpop.xlane.xlu0 %3121
        %v3123 = vsel %vm489, %v3101, 0.0
        %3124 = vadd.xlane.f32.xlu0 %v3123
        %v3125 = vpop.xlane.xlu0 %3124
        %v3126 = vadd.f32 %v3104, 1e-09
        %v3127 = vadd.f32 %v3107, 1e-09
        %v3128 = vadd.f32 %v3110, 1e-09
        %v3129 = vadd.f32 %v3113, 1e-09
        %v3130 = vadd.f32 %v3116, 1e-09
        %v3131 = vadd.f32 %v3119, 1e-09
        %v3132 = vadd.f32 %v3122, 1e-09
        %v3133 = vadd.f32 %v3125, 1e-09
        %v3134 = vrcp.pop %v3126
        %v3135 = vmul.f32 %v3094, %v3134
        %v3136 = vrcp.pop %v3127
        %v3137 = vmul.f32 %v3095, %v3136
        %v3138 = vrcp.pop %v3128
        %v3139 = vmul.f32 %v3096, %v3138
        %v3140 = vrcp.pop %v3129
        %v3141 = vmul.f32 %v3097, %v3140
        %v3142 = vrcp.pop %v3130
        %v3143 = vmul.f32 %v3098, %v3142
        %v3144 = vrcp.pop %v3131
        %v3145 = vmul.f32 %v3099, %v3144
        %v3146 = vrcp.pop %v3132
        %v3147 = vmul.f32 %v3100, %v3146
        %v3148 = vrcp.pop %v3133
        %v3149 = vmul.f32 %v3101, %v3148
        %v3150 = vld [vmem:[%s3 + $0x80] sm:$0xff]
        %v3151 = vld [vmem:[%s3 + $0x88] sm:$0xff]
        %v3152 = vld [vmem:[%s3 + $0x90] sm:$0xff]
        %v3153 = vld [vmem:[%s3 + $0x98] sm:$0xff]
        %v3154 = vld [vmem:[%s3 + $0xa0] sm:$0x1]
        %v3155 = vlaneseq
        %v3156 = vshrl.u32 %v3155, 7
        %v3157 = vsub.s32 0, %v3156
        %v3158 = vrot.slane %v3154, %v3157
        %v3160 = vsel %vm1263, %v2240, 0
        %v3163 = vsel %vm1263, %v2241, 0
        %v3166 = vsel %vm1263, %v2242, 0
        %v3169 = vsel %vm1263, %v2243, 0
        %v3172 = vsel %vm1263, %v2244, 0
        %v3175 = vsel %vm1263, %v2245, 0
        %v3178 = vsel %vm1263, %v2246, 0
        %v3181 = vsel %vm1263, %v2247, 0
        %v3184 = vsel %vm1263, %v2248, 0
        %v3187 = vsel %vm1263, %v2249, 0
        %v3190 = vsel %vm1263, %v2250, 0
        %v3193 = vsel %vm1263, %v2251, 0
        %v3196 = vsel %vm1263, %v2252, 0
        %v3199 = vsel %vm1263, %v2253, 0
        %v3202 = vsel %vm1263, %v2254, 0
        %v3205 = vsel %vm1263, %v2255, 0
        %v3208 = vsel %vm1263, %v2256, 0
        %v3211 = vsel %vm1263, %v2257, 0
        %v3214 = vsel %vm1263, %v2258, 0
        %v3217 = vsel %vm1263, %v2259, 0
        %v3220 = vsel %vm1263, %v2260, 0
        %v3223 = vsel %vm1263, %v2261, 0
        %v3226 = vsel %vm1263, %v2262, 0
        %v3229 = vsel %vm1263, %v2263, 0
        %v3232 = vsel %vm1263, %v2264, 0
        %v3235 = vsel %vm1263, %v2265, 0
        %v3238 = vsel %vm1263, %v2266, 0
        %v3241 = vsel %vm1263, %v2267, 0
        %v3244 = vsel %vm1263, %v2268, 0
        %v3247 = vsel %vm1263, %v2269, 0
        %v3250 = vsel %vm1263, %v2270, 0
        %v3253 = vsel %vm1263, %v2271, 0
        %v3256 = vsel %vm1263, %v2272, 0
        %v3259 = vsel %vm1263, %v2273, 0
        %v3262 = vsel %vm1263, %v2274, 0
        %v3265 = vsel %vm1263, %v2275, 0
        %v3268 = vsel %vm1263, %v2276, 0
        %v3271 = vsel %vm1263, %v2277, 0
        %v3274 = vsel %vm1263, %v2278, 0
        %v3277 = vsel %vm1263, %v2279, 0
        %v3280 = vsel %vm1263, %v2280, 0
        %v3283 = vsel %vm1263, %v2281, 0
        %v3286 = vsel %vm1263, %v2282, 0
        %v3289 = vsel %vm1263, %v2283, 0
        %v3292 = vsel %vm1263, %v2284, 0
        %v3295 = vsel %vm1263, %v2285, 0
        %v3298 = vsel %vm1263, %v2286, 0
        %v3301 = vsel %vm1263, %v2287, 0
        %v3304 = vsel %vm1263, %v2288, 0
        %v3307 = vsel %vm1263, %v2289, 0
        %v3310 = vsel %vm1263, %v2290, 0
        %v3313 = vsel %vm1263, %v2291, 0
        %v3316 = vsel %vm1263, %v2292, 0
        %v3319 = vsel %vm1263, %v2293, 0
        %v3322 = vsel %vm1263, %v2294, 0
        %v3325 = vsel %vm1263, %v2295, 0
        %v3328 = vsel %vm1263, %v2296, 0
        %v3331 = vsel %vm1263, %v2297, 0
        %v3334 = vsel %vm1263, %v2298, 0
        %v3337 = vsel %vm1263, %v2299, 0
        %v3340 = vsel %vm1263, %v2300, 0
        %v3343 = vsel %vm1263, %v2301, 0
        %v3346 = vsel %vm1263, %v2302, 0
        %v3349 = vsel %vm1263, %v2303, 0
        %3351 = vmatprep.subr.mxu0 0.0
        %3352 = vmatpush1.msra.mxu0 %v3150
        %3353 = vmatprep.subr.mxu0 0.0
        %3354 = vmatpush1.msra.mxu0 %v3151
        %3355 = vmatprep.subr.mxu0 0.0
        %3356 = vmatpush1.msra.mxu0 %v3152
        %3357 = vmatprep.subr.mxu0 0.0
        %3358 = vmatpush1.msra.mxu0 %v3153
        %3359 = vmatprep.subr.mxu0 0.0
        %3360 = vmatpush1.msra.mxu0 0.0
        %3361 = vmatprep.subr.mxu0 0.0
        %3362 = vmatpush1.msra.mxu0 0.0
        %3363 = vmatprep.subr.mxu0 0.0
        %3364 = vmatpush1.msra.mxu0 0.0
        %3365 = vmatprep.subr.mxu0 0.0
        %3366 = vmatpush1.msra.mxu0 0.0
        %3367 = vmatprep.subr.mxu0 0.0
        %3368 = vmatpush1.msra.mxu0 0.0
        %3369 = vmatprep.subr.mxu0 0.0
        %3370 = vmatpush1.msra.mxu0 0.0
        %3371 = vmatprep.subr.mxu0 0.0
        %3372 = vmatpush1.msra.mxu0 0.0
        %3373 = vmatprep.subr.mxu0 0.0
        %3374 = vmatpush1.msra.mxu0 0.0
        %3375 = vmatprep.subr.mxu0 0.0
        %3376 = vmatpush1.msra.mxu0 0.0
        %3377 = vmatprep.subr.mxu0 0.0
        %3378 = vmatpush1.msra.mxu0 0.0
        %3379 = vmatprep.subr.mxu0 0.0
        %3380 = vmatpush1.msra.mxu0 0.0
        %3381 = vmatprep.subr.mxu0 0.0
        %3382 = vmatpush1.msra.mxu0 0.0
        %3383 = vmatprep.subr.mxu0 0.0
        %3384 = vmatpush1.msra.mxu0 0.0
        %3385 = vmatprep.subr.mxu0 0.0
        %3386 = vmatpush1.msra.mxu0 0.0
        %3387 = vmatprep.subr.mxu0 0.0
        %3388 = vmatpush1.msra.mxu0 0.0
        %3389 = vmatprep.subr.mxu0 0.0
        %3390 = vmatpush1.msra.mxu0 0.0
        %3391 = vmatprep.subr.mxu0 0.0
        %3392 = vmatpush1.msra.mxu0 0.0
        %3393 = vmatprep.subr.mxu0 0.0
        %3394 = vmatpush1.msra.mxu0 0.0
        %3395 = vmatprep.subr.mxu0 0.0
        %3396 = vmatpush1.msra.mxu0 0.0
        %3397 = vmatprep.subr.mxu0 0.0
        %3398 = vmatpush1.msra.mxu0 0.0
        %3399 = vmatprep.subr.mxu0 0.0
        %3400 = vmatpush1.msra.mxu0 0.0
        %3401 = vmatprep.subr.mxu0 0.0
        %3402 = vmatpush1.msra.mxu0 0.0
        %3403 = vmatprep.subr.mxu0 0.0
        %3404 = vmatpush1.msra.mxu0 0.0
        %3405 = vmatprep.subr.mxu0 0.0
        %3406 = vmatpush1.msra.mxu0 0.0
        %3407 = vmatprep.subr.mxu0 0.0
        %3408 = vmatpush1.msra.mxu0 0.0
        %3409 = vmatprep.subr.mxu0 0.0
        %3410 = vmatpush1.msra.mxu0 0.0
        %3411 = vmatprep.subr.mxu0 0.0
        %3412 = vmatpush1.msra.mxu0 0.0
        %3413 = vmatprep.subr.mxu0 0.0
        %3414 = vmatpush1.msra.mxu0 0.0
        %3415 = vmatprep.mubr.f32.mxu0 0.0
        %3416 = vmatmul.mubr.f32.gmra.mrb[0].mxu0 %v3160
        %v3417 = vpop.f32.mrb[0].mxu0
        %v3418 = vadd.f32 %v3158, %v3417
        %v3419 = vpop.f32.mrb[0].mxu0
        %3420 = vmatprep.mubr.f32.mxu0 0.0
        %3421 = vmatmul.mubr.f32.gmra.mrb[0].mxu0 %v3163
        %v3422 = vpop.f32.mrb[0].mxu0
        %v3423 = vadd.f32 %v3158, %v3422
        %v3424 = vpop.f32.mrb[0].mxu0
        %3425 = vmatprep.mubr.f32.mxu0 0.0
        %3426 = vmatmul.mubr.f32.gmra.mrb[0].mxu0 %v3166
        %v3427 = vpop.f32.mrb[0].mxu0
        %v3428 = vadd.f32 %v3158, %v3427
        %v3429 = vpop.f32.mrb[0].mxu0
        %3430 = vmatprep.mubr.f32.mxu0 0.0
        %3431 = vmatmul.mubr.f32.gmra.mrb[0].mxu0 %v3169
        %v3432 = vpop.f32.mrb[0].mxu0
        %v3433 = vadd.f32 %v3158, %v3432
        %v3434 = vpop.f32.mrb[0].mxu0
        %3435 = vmatprep.mubr.f32.mxu0 0.0
        %3436 = vmatmul.mubr.f32.gmra.mrb[0].mxu0 %v3172
        %v3437 = vpop.f32.mrb[0].mxu0
        %v3438 = vadd.f32 %v3158, %v3437
        %v3439 = vpop.f32.mrb[0].mxu0
        %3440 = vmatprep.mubr.f32.mxu0 0.0
        %3441 = vmatmul.mubr.f32.gmra.mrb[0].mxu0 %v3175
        %v3442 = vpop.f32.mrb[0].mxu0
        %v3443 = vadd.f32 %v3158, %v3442
        %v3444 = vpop.f32.mrb[0].mxu0
        %3445 = vmatprep.mubr.f32.mxu0 0.0
        %3446 = vmatmul.mubr.f32.gmra.mrb[0].mxu0 %v3178
        %v3447 = vpop.f32.mrb[0].mxu0
        %v3448 = vadd.f32 %v3158, %v3447
        %v3449 = vpop.f32.mrb[0].mxu0
        %3450 = vmatprep.mubr.f32.mxu0 0.0
        %3451 = vmatmul.mubr.f32.gmra.mrb[0].mxu0 %v3181
        %v3452 = vpop.f32.mrb[0].mxu0
        %v3453 = vadd.f32 %v3158, %v3452
        %v3454 = vpop.f32.mrb[0].mxu0
        %3455 = vmatprep.mubr.f32.mxu0 0.0
        %3456 = vmatmul.mubr.f32.gmra.mrb[0].mxu0 %v3184
        %v3457 = vpop.f32.mrb[0].mxu0
        %v3458 = vadd.f32 %v3158, %v3457
        %v3459 = vpop.f32.mrb[0].mxu0
        %3460 = vmatprep.mubr.f32.mxu0 0.0
        %3461 = vmatmul.mubr.f32.gmra.mrb[0].mxu0 %v3187
        %v3462 = vpop.f32.mrb[0].mxu0
        %v3463 = vadd.f32 %v3158, %v3462
        %v3464 = vpop.f32.mrb[0].mxu0
        %3465 = vmatprep.mubr.f32.mxu0 0.0
        %3466 = vmatmul.mubr.f32.gmra.mrb[0].mxu0 %v3190
        %v3467 = vpop.f32.mrb[0].mxu0
        %v3468 = vadd.f32 %v3158, %v3467
        %v3469 = vpop.f32.mrb[0].mxu0
        %3470 = vmatprep.mubr.f32.mxu0 0.0
        %3471 = vmatmul.mubr.f32.gmra.mrb[0].mxu0 %v3193
        %v3472 = vpop.f32.mrb[0].mxu0
        %v3473 = vadd.f32 %v3158, %v3472
        %v3474 = vpop.f32.mrb[0].mxu0
        %3475 = vmatprep.mubr.f32.mxu0 0.0
        %3476 = vmatmul.mubr.f32.gmra.mrb[0].mxu0 %v3196
        %v3477 = vpop.f32.mrb[0].mxu0
        %v3478 = vadd.f32 %v3158, %v3477
        %v3479 = vpop.f32.mrb[0].mxu0
        %3480 = vmatprep.mubr.f32.mxu0 0.0
        %3481 = vmatmul.mubr.f32.gmra.mrb[0].mxu0 %v3199
        %v3482 = vpop.f32.mrb[0].mxu0
        %v3483 = vadd.f32 %v3158, %v3482
        %v3484 = vpop.f32.mrb[0].mxu0
        %3485 = vmatprep.mubr.f32.mxu0 0.0
        %3486 = vmatmul.mubr.f32.gmra.mrb[0].mxu0 %v3202
        %v3487 = vpop.f32.mrb[0].mxu0
        %v3488 = vadd.f32 %v3158, %v3487
        %v3489 = vpop.f32.mrb[0].mxu0
        %3490 = vmatprep.mubr.f32.mxu0 0.0
        %3491 = vmatmul.mubr.f32.gmra.mrb[0].mxu0 %v3205
        %v3492 = vpop.f32.mrb[0].mxu0
        %v3493 = vadd.f32 %v3158, %v3492
        %v3494 = vpop.f32.mrb[0].mxu0
        %3495 = vmatprep.mubr.f32.mxu0 0.0
        %3496 = vmatmul.mubr.f32.gmra.mrb[0].mxu0 %v3208
        %v3497 = vpop.f32.mrb[0].mxu0
        %v3498 = vadd.f32 %v3158, %v3497
        %v3499 = vpop.f32.mrb[0].mxu0
        %3500 = vmatprep.mubr.f32.mxu0 0.0
        %3501 = vmatmul.mubr.f32.gmra.mrb[0].mxu0 %v3211
        %v3502 = vpop.f32.mrb[0].mxu0
        %v3503 = vadd.f32 %v3158, %v3502
        %v3504 = vpop.f32.mrb[0].mxu0
        %3505 = vmatprep.mubr.f32.mxu0 0.0
        %3506 = vmatmul.mubr.f32.gmra.mrb[0].mxu0 %v3214
        %v3507 = vpop.f32.mrb[0].mxu0
        %v3508 = vadd.f32 %v3158, %v3507
        %v3509 = vpop.f32.mrb[0].mxu0
        %3510 = vmatprep.mubr.f32.mxu0 0.0
        %3511 = vmatmul.mubr.f32.gmra.mrb[0].mxu0 %v3217
        %v3512 = vpop.f32.mrb[0].mxu0
        %v3513 = vadd.f32 %v3158, %v3512
        %v3514 = vpop.f32.mrb[0].mxu0
        %3515 = vmatprep.mubr.f32.mxu0 0.0
        %3516 = vmatmul.mubr.f32.gmra.mrb[0].mxu0 %v3220
        %v3517 = vpop.f32.mrb[0].mxu0
        %v3518 = vadd.f32 %v3158, %v3517
        %v3519 = vpop.f32.mrb[0].mxu0
        %3520 = vmatprep.mubr.f32.mxu0 0.0
        %3521 = vmatmul.mubr.f32.gmra.mrb[0].mxu0 %v3223
        %v3522 = vpop.f32.mrb[0].mxu0
        %v3523 = vadd.f32 %v3158, %v3522
        %v3524 = vpop.f32.mrb[0].mxu0
        %3525 = vmatprep.mubr.f32.mxu0 0.0
        %3526 = vmatmul.mubr.f32.gmra.mrb[0].mxu0 %v3226
        %v3527 = vpop.f32.mrb[0].mxu0
        %v3528 = vadd.f32 %v3158, %v3527
        %v3529 = vpop.f32.mrb[0].mxu0
        %3530 = vmatprep.mubr.f32.mxu0 0.0
        %3531 = vmatmul.mubr.f32.gmra.mrb[0].mxu0 %v3229
        %v3532 = vpop.f32.mrb[0].mxu0
        %v3533 = vadd.f32 %v3158, %v3532
        %v3534 = vpop.f32.mrb[0].mxu0
        %3535 = vmatprep.mubr.f32.mxu0 0.0
        %3536 = vmatmul.mubr.f32.gmra.mrb[0].mxu0 %v3232
        %v3537 = vpop.f32.mrb[0].mxu0
        %v3538 = vadd.f32 %v3158, %v3537
        %v3539 = vpop.f32.mrb[0].mxu0
        %3540 = vmatprep.mubr.f32.mxu0 0.0
        %3541 = vmatmul.mubr.f32.gmra.mrb[0].mxu0 %v3235
        %v3542 = vpop.f32.mrb[0].mxu0
        %v3543 = vadd.f32 %v3158, %v3542
        %v3544 = vpop.f32.mrb[0].mxu0
        %3545 = vmatprep.mubr.f32.mxu0 0.0
        %3546 = vmatmul.mubr.f32.gmra.mrb[0].mxu0 %v3238
        %v3547 = vpop.f32.mrb[0].mxu0
        %v3548 = vadd.f32 %v3158, %v3547
        %v3549 = vpop.f32.mrb[0].mxu0
        %3550 = vmatprep.mubr.f32.mxu0 0.0
        %3551 = vmatmul.mubr.f32.gmra.mrb[0].mxu0 %v3241
        %v3552 = vpop.f32.mrb[0].mxu0
        %v3553 = vadd.f32 %v3158, %v3552
        %v3554 = vpop.f32.mrb[0].mxu0
        %3555 = vmatprep.mubr.f32.mxu0 0.0
        %3556 = vmatmul.mubr.f32.gmra.mrb[0].mxu0 %v3244
        %v3557 = vpop.f32.mrb[0].mxu0
        %v3558 = vadd.f32 %v3158, %v3557
        %v3559 = vpop.f32.mrb[0].mxu0
        %3560 = vmatprep.mubr.f32.mxu0 0.0
        %3561 = vmatmul.mubr.f32.gmra.mrb[0].mxu0 %v3247
        %v3562 = vpop.f32.mrb[0].mxu0
        %v3563 = vadd.f32 %v3158, %v3562
        %v3564 = vpop.f32.mrb[0].mxu0
        %3565 = vmatprep.mubr.f32.mxu0 0.0
        %3566 = vmatmul.mubr.f32.gmra.mrb[0].mxu0 %v3250
        %v3567 = vpop.f32.mrb[0].mxu0
        %v3568 = vadd.f32 %v3158, %v3567
        %v3569 = vpop.f32.mrb[0].mxu0
        %3570 = vmatprep.mubr.f32.mxu0 0.0
        %3571 = vmatmul.mubr.f32.gmra.mrb[0].mxu0 %v3253
        %v3572 = vpop.f32.mrb[0].mxu0
        %v3573 = vadd.f32 %v3158, %v3572
        %v3574 = vpop.f32.mrb[0].mxu0
        %3575 = vmatprep.mubr.f32.mxu0 0.0
        %3576 = vmatmul.mubr.f32.gmra.mrb[0].mxu0 %v3256
        %v3577 = vpop.f32.mrb[0].mxu0
        %v3578 = vadd.f32 %v3158, %v3577
        %v3579 = vpop.f32.mrb[0].mxu0
        %3580 = vmatprep.mubr.f32.mxu0 0.0
        %3581 = vmatmul.mubr.f32.gmra.mrb[0].mxu0 %v3259
        %v3582 = vpop.f32.mrb[0].mxu0
        %v3583 = vadd.f32 %v3158, %v3582
        %v3584 = vpop.f32.mrb[0].mxu0
        %3585 = vmatprep.mubr.f32.mxu0 0.0
        %3586 = vmatmul.mubr.f32.gmra.mrb[0].mxu0 %v3262
        %v3587 = vpop.f32.mrb[0].mxu0
        %v3588 = vadd.f32 %v3158, %v3587
        %v3589 = vpop.f32.mrb[0].mxu0
        %3590 = vmatprep.mubr.f32.mxu0 0.0
        %3591 = vmatmul.mubr.f32.gmra.mrb[0].mxu0 %v3265
        %v3592 = vpop.f32.mrb[0].mxu0
        %v3593 = vadd.f32 %v3158, %v3592
        %v3594 = vpop.f32.mrb[0].mxu0
        %3595 = vmatprep.mubr.f32.mxu0 0.0
        %3596 = vmatmul.mubr.f32.gmra.mrb[0].mxu0 %v3268
        %v3597 = vpop.f32.mrb[0].mxu0
        %v3598 = vadd.f32 %v3158, %v3597
        %v3599 = vpop.f32.mrb[0].mxu0
        %3600 = vmatprep.mubr.f32.mxu0 0.0
        %3601 = vmatmul.mubr.f32.gmra.mrb[0].mxu0 %v3271
        %v3602 = vpop.f32.mrb[0].mxu0
        %v3603 = vadd.f32 %v3158, %v3602
        %v3604 = vpop.f32.mrb[0].mxu0
        %3605 = vmatprep.mubr.f32.mxu0 0.0
        %3606 = vmatmul.mubr.f32.gmra.mrb[0].mxu0 %v3274
        %v3607 = vpop.f32.mrb[0].mxu0
        %v3608 = vadd.f32 %v3158, %v3607
        %v3609 = vpop.f32.mrb[0].mxu0
        %3610 = vmatprep.mubr.f32.mxu0 0.0
        %3611 = vmatmul.mubr.f32.gmra.mrb[0].mxu0 %v3277
        %v3612 = vpop.f32.mrb[0].mxu0
        %v3613 = vadd.f32 %v3158, %v3612
        %v3614 = vpop.f32.mrb[0].mxu0
        %3615 = vmatprep.mubr.f32.mxu0 0.0
        %3616 = vmatmul.mubr.f32.gmra.mrb[0].mxu0 %v3280
        %v3617 = vpop.f32.mrb[0].mxu0
        %v3618 = vadd.f32 %v3158, %v3617
        %v3619 = vpop.f32.mrb[0].mxu0
        %3620 = vmatprep.mubr.f32.mxu0 0.0
        %3621 = vmatmul.mubr.f32.gmra.mrb[0].mxu0 %v3283
        %v3622 = vpop.f32.mrb[0].mxu0
        %v3623 = vadd.f32 %v3158, %v3622
        %v3624 = vpop.f32.mrb[0].mxu0
        %3625 = vmatprep.mubr.f32.mxu0 0.0
        %3626 = vmatmul.mubr.f32.gmra.mrb[0].mxu0 %v3286
        %v3627 = vpop.f32.mrb[0].mxu0
        %v3628 = vadd.f32 %v3158, %v3627
        %v3629 = vpop.f32.mrb[0].mxu0
        %3630 = vmatprep.mubr.f32.mxu0 0.0
        %3631 = vmatmul.mubr.f32.gmra.mrb[0].mxu0 %v3289
        %v3632 = vpop.f32.mrb[0].mxu0
        %v3633 = vadd.f32 %v3158, %v3632
        %v3634 = vpop.f32.mrb[0].mxu0
        %3635 = vmatprep.mubr.f32.mxu0 0.0
        %3636 = vmatmul.mubr.f32.gmra.mrb[0].mxu0 %v3292
        %v3637 = vpop.f32.mrb[0].mxu0
        %v3638 = vadd.f32 %v3158, %v3637
        %v3639 = vpop.f32.mrb[0].mxu0
        %3640 = vmatprep.mubr.f32.mxu0 0.0
        %3641 = vmatmul.mubr.f32.gmra.mrb[0].mxu0 %v3295
        %v3642 = vpop.f32.mrb[0].mxu0
        %v3643 = vadd.f32 %v3158, %v3642
        %v3644 = vpop.f32.mrb[0].mxu0
        %3645 = vmatprep.mubr.f32.mxu0 0.0
        %3646 = vmatmul.mubr.f32.gmra.mrb[0].mxu0 %v3298
        %v3647 = vpop.f32.mrb[0].mxu0
        %v3648 = vadd.f32 %v3158, %v3647
        %v3649 = vpop.f32.mrb[0].mxu0
        %3650 = vmatprep.mubr.f32.mxu0 0.0
        %3651 = vmatmul.mubr.f32.gmra.mrb[0].mxu0 %v3301
        %v3652 = vpop.f32.mrb[0].mxu0
        %v3653 = vadd.f32 %v3158, %v3652
        %v3654 = vpop.f32.mrb[0].mxu0
        %3655 = vmatprep.mubr.f32.mxu0 0.0
        %3656 = vmatmul.mubr.f32.gmra.mrb[0].mxu0 %v3304
        %v3657 = vpop.f32.mrb[0].mxu0
        %v3658 = vadd.f32 %v3158, %v3657
        %v3659 = vpop.f32.mrb[0].mxu0
        %3660 = vmatprep.mubr.f32.mxu0 0.0
        %3661 = vmatmul.mubr.f32.gmra.mrb[0].mxu0 %v3307
        %v3662 = vpop.f32.mrb[0].mxu0
        %v3663 = vadd.f32 %v3158, %v3662
        %v3664 = vpop.f32.mrb[0].mxu0
        %3665 = vmatprep.mubr.f32.mxu0 0.0
        %3666 = vmatmul.mubr.f32.gmra.mrb[0].mxu0 %v3310
        %v3667 = vpop.f32.mrb[0].mxu0
        %v3668 = vadd.f32 %v3158, %v3667
        %v3669 = vpop.f32.mrb[0].mxu0
        %3670 = vmatprep.mubr.f32.mxu0 0.0
        %3671 = vmatmul.mubr.f32.gmra.mrb[0].mxu0 %v3313
        %v3672 = vpop.f32.mrb[0].mxu0
        %v3673 = vadd.f32 %v3158, %v3672
        %v3674 = vpop.f32.mrb[0].mxu0
        %3675 = vmatprep.mubr.f32.mxu0 0.0
        %3676 = vmatmul.mubr.f32.gmra.mrb[0].mxu0 %v3316
        %v3677 = vpop.f32.mrb[0].mxu0
        %v3678 = vadd.f32 %v3158, %v3677
        %v3679 = vpop.f32.mrb[0].mxu0
        %3680 = vmatprep.mubr.f32.mxu0 0.0
        %3681 = vmatmul.mubr.f32.gmra.mrb[0].mxu0 %v3319
        %v3682 = vpop.f32.mrb[0].mxu0
        %v3683 = vadd.f32 %v3158, %v3682
        %v3684 = vpop.f32.mrb[0].mxu0
        %3685 = vmatprep.mubr.f32.mxu0 0.0
        %3686 = vmatmul.mubr.f32.gmra.mrb[0].mxu0 %v3322
        %v3687 = vpop.f32.mrb[0].mxu0
        %v3688 = vadd.f32 %v3158, %v3687
        %v3689 = vpop.f32.mrb[0].mxu0
        %3690 = vmatprep.mubr.f32.mxu0 0.0
        %3691 = vmatmul.mubr.f32.gmra.mrb[0].mxu0 %v3325
        %v3692 = vpop.f32.mrb[0].mxu0
        %v3693 = vadd.f32 %v3158, %v3692
        %v3694 = vpop.f32.mrb[0].mxu0
        %3695 = vmatprep.mubr.f32.mxu0 0.0
        %3696 = vmatmul.mubr.f32.gmra.mrb[0].mxu0 %v3328
        %v3697 = vpop.f32.mrb[0].mxu0
        %v3698 = vadd.f32 %v3158, %v3697
        %v3699 = vpop.f32.mrb[0].mxu0
        %3700 = vmatprep.mubr.f32.mxu0 0.0
        %3701 = vmatmul.mubr.f32.gmra.mrb[0].mxu0 %v3331
        %v3702 = vpop.f32.mrb[0].mxu0
        %v3703 = vadd.f32 %v3158, %v3702
        %v3704 = vpop.f32.mrb[0].mxu0
        %3705 = vmatprep.mubr.f32.mxu0 0.0
        %3706 = vmatmul.mubr.f32.gmra.mrb[0].mxu0 %v3334
        %v3707 = vpop.f32.mrb[0].mxu0
        %v3708 = vadd.f32 %v3158, %v3707
        %v3709 = vpop.f32.mrb[0].mxu0
        %3710 = vmatprep.mubr.f32.mxu0 0.0
        %3711 = vmatmul.mubr.f32.gmra.mrb[0].mxu0 %v3337
        %v3712 = vpop.f32.mrb[0].mxu0
        %v3713 = vadd.f32 %v3158, %v3712
        %v3714 = vpop.f32.mrb[0].mxu0
        %3715 = vmatprep.mubr.f32.mxu0 0.0
        %3716 = vmatmul.mubr.f32.gmra.mrb[0].mxu0 %v3340
        %v3717 = vpop.f32.mrb[0].mxu0
        %v3718 = vadd.f32 %v3158, %v3717
        %v3719 = vpop.f32.mrb[0].mxu0
        %3720 = vmatprep.mubr.f32.mxu0 0.0
        %3721 = vmatmul.mubr.f32.gmra.mrb[0].mxu0 %v3343
        %v3722 = vpop.f32.mrb[0].mxu0
        %v3723 = vadd.f32 %v3158, %v3722
        %v3724 = vpop.f32.mrb[0].mxu0
        %3725 = vmatprep.mubr.f32.mxu0 0.0
        %3726 = vmatmul.mubr.f32.gmra.mrb[0].mxu0 %v3346
        %v3727 = vpop.f32.mrb[0].mxu0
        %v3728 = vadd.f32 %v3158, %v3727
        %v3729 = vpop.f32.mrb[0].mxu0
        %3730 = vmatprep.mubr.f32.mxu0 0.0
        %3731 = vmatmul.mubr.f32.gmra.mrb[0].mxu0 %v3349
        %v3732 = vpop.f32.mrb[0].mxu0
        %v3733 = vadd.f32 %v3158, %v3732
        %v3734 = vpop.f32.mrb[0].mxu0
        %3735 = vdwg.mxu0
        %v3736 = vlaneseq
        %v3737 = vshrl.u32 %v3736, 7
        %v3738 = vsub.s32 0, %v3737
        %v3739 = vrot.slane %v3135, %v3738
        %3741 = vbcast.lane.b32.xlu0 %v3739, 256
        %v3742 = vpop.permute.xlu0 %3741
        %v3743 = vlaneseq
        %v3744 = vshrl.u32 %v3743, 7
        %v3745 = vsub.s32 1, %v3744
        %v3746 = vrot.slane %v3135, %v3745
        %3748 = vbcast.lane.b32.xlu0 %v3746, 256
        %v3749 = vpop.permute.xlu0 %3748
        %v3750 = vlaneseq
        %v3751 = vshrl.u32 %v3750, 7
        %v3752 = vsub.s32 2, %v3751
        %v3753 = vrot.slane %v3135, %v3752
        %3755 = vbcast.lane.b32.xlu0 %v3753, 256
        %v3756 = vpop.permute.xlu0 %3755
        %v3757 = vlaneseq
        %v3758 = vshrl.u32 %v3757, 7
        %v3759 = vsub.s32 3, %v3758
        %v3760 = vrot.slane %v3135, %v3759
        %3762 = vbcast.lane.b32.xlu0 %v3760, 256
        %v3763 = vpop.permute.xlu0 %3762
        %v3764 = vlaneseq
        %v3765 = vshrl.u32 %v3764, 7
        %v3766 = vsub.s32 4, %v3765
        %v3767 = vrot.slane %v3135, %v3766
        %3769 = vbcast.lane.b32.xlu0 %v3767, 256
        %v3770 = vpop.permute.xlu0 %3769
        %v3771 = vlaneseq
        %v3772 = vshrl.u32 %v3771, 7
        %v3773 = vsub.s32 5, %v3772
        %v3774 = vrot.slane %v3135, %v3773
        %3776 = vbcast.lane.b32.xlu0 %v3774, 256
        %v3777 = vpop.permute.xlu0 %3776
        %v3778 = vlaneseq
        %v3779 = vshrl.u32 %v3778, 7
        %v3780 = vsub.s32 6, %v3779
        %v3781 = vrot.slane %v3135, %v3780
        %3783 = vbcast.lane.b32.xlu0 %v3781, 256
        %v3784 = vpop.permute.xlu0 %3783
        %v3785 = vlaneseq
        %v3786 = vshrl.u32 %v3785, 7
        %v3787 = vsub.s32 7, %v3786
        %v3788 = vrot.slane %v3135, %v3787
        %3790 = vbcast.lane.b32.xlu0 %v3788, 256
        %v3791 = vpop.permute.xlu0 %3790
        %v3792 = vlaneseq
        %v3793 = vshrl.u32 %v3792, 7
        %v3794 = vsub.s32 0, %v3793
        %v3795 = vrot.slane %v3137, %v3794
        %3797 = vbcast.lane.b32.xlu0 %v3795, 256
        %v3798 = vpop.permute.xlu0 %3797
        %v3799 = vlaneseq
        %v3800 = vshrl.u32 %v3799, 7
        %v3801 = vsub.s32 1, %v3800
        %v3802 = vrot.slane %v3137, %v3801
        %3804 = vbcast.lane.b32.xlu0 %v3802, 256
        %v3805 = vpop.permute.xlu0 %3804
        %v3806 = vlaneseq
        %v3807 = vshrl.u32 %v3806, 7
        %v3808 = vsub.s32 2, %v3807
        %v3809 = vrot.slane %v3137, %v3808
        %3811 = vbcast.lane.b32.xlu0 %v3809, 256
        %v3812 = vpop.permute.xlu0 %3811
        %v3813 = vlaneseq
        %v3814 = vshrl.u32 %v3813, 7
        %v3815 = vsub.s32 3, %v3814
        %v3816 = vrot.slane %v3137, %v3815
        %3818 = vbcast.lane.b32.xlu0 %v3816, 256
        %v3819 = vpop.permute.xlu0 %3818
        %v3820 = vlaneseq
        %v3821 = vshrl.u32 %v3820, 7
        %v3822 = vsub.s32 4, %v3821
        %v3823 = vrot.slane %v3137, %v3822
        %3825 = vbcast.lane.b32.xlu0 %v3823, 256
        %v3826 = vpop.permute.xlu0 %3825
        %v3827 = vlaneseq
        %v3828 = vshrl.u32 %v3827, 7
        %v3829 = vsub.s32 5, %v3828
        %v3830 = vrot.slane %v3137, %v3829
        %3832 = vbcast.lane.b32.xlu0 %v3830, 256
        %v3833 = vpop.permute.xlu0 %3832
        %v3834 = vlaneseq
        %v3835 = vshrl.u32 %v3834, 7
        %v3836 = vsub.s32 6, %v3835
        %v3837 = vrot.slane %v3137, %v3836
        %3839 = vbcast.lane.b32.xlu0 %v3837, 256
        %v3840 = vpop.permute.xlu0 %3839
        %v3841 = vlaneseq
        %v3842 = vshrl.u32 %v3841, 7
        %v3843 = vsub.s32 7, %v3842
        %v3844 = vrot.slane %v3137, %v3843
        %3846 = vbcast.lane.b32.xlu0 %v3844, 256
        %v3847 = vpop.permute.xlu0 %3846
        %v3848 = vlaneseq
        %v3849 = vshrl.u32 %v3848, 7
        %v3850 = vsub.s32 0, %v3849
        %v3851 = vrot.slane %v3139, %v3850
        %3853 = vbcast.lane.b32.xlu0 %v3851, 256
        %v3854 = vpop.permute.xlu0 %3853
        %v3855 = vlaneseq
        %v3856 = vshrl.u32 %v3855, 7
        %v3857 = vsub.s32 1, %v3856
        %v3858 = vrot.slane %v3139, %v3857
        %3860 = vbcast.lane.b32.xlu0 %v3858, 256
        %v3861 = vpop.permute.xlu0 %3860
        %v3862 = vlaneseq
        %v3863 = vshrl.u32 %v3862, 7
        %v3864 = vsub.s32 2, %v3863
        %v3865 = vrot.slane %v3139, %v3864
        %3867 = vbcast.lane.b32.xlu0 %v3865, 256
        %v3868 = vpop.permute.xlu0 %3867
        %v3869 = vlaneseq
        %v3870 = vshrl.u32 %v3869, 7
        %v3871 = vsub.s32 3, %v3870
        %v3872 = vrot.slane %v3139, %v3871
        %3874 = vbcast.lane.b32.xlu0 %v3872, 256
        %v3875 = vpop.permute.xlu0 %3874
        %v3876 = vlaneseq
        %v3877 = vshrl.u32 %v3876, 7
        %v3878 = vsub.s32 4, %v3877
        %v3879 = vrot.slane %v3139, %v3878
        %3881 = vbcast.lane.b32.xlu0 %v3879, 256
        %v3882 = vpop.permute.xlu0 %3881
        %v3883 = vlaneseq
        %v3884 = vshrl.u32 %v3883, 7
        %v3885 = vsub.s32 5, %v3884
        %v3886 = vrot.slane %v3139, %v3885
        %3888 = vbcast.lane.b32.xlu0 %v3886, 256
        %v3889 = vpop.permute.xlu0 %3888
        %v3890 = vlaneseq
        %v3891 = vshrl.u32 %v3890, 7
        %v3892 = vsub.s32 6, %v3891
        %v3893 = vrot.slane %v3139, %v3892
        %3895 = vbcast.lane.b32.xlu0 %v3893, 256
        %v3896 = vpop.permute.xlu0 %3895
        %v3897 = vlaneseq
        %v3898 = vshrl.u32 %v3897, 7
        %v3899 = vsub.s32 7, %v3898
        %v3900 = vrot.slane %v3139, %v3899
        %3902 = vbcast.lane.b32.xlu0 %v3900, 256
        %v3903 = vpop.permute.xlu0 %3902
        %v3904 = vlaneseq
        %v3905 = vshrl.u32 %v3904, 7
        %v3906 = vsub.s32 0, %v3905
        %v3907 = vrot.slane %v3141, %v3906
        %3909 = vbcast.lane.b32.xlu0 %v3907, 256
        %v3910 = vpop.permute.xlu0 %3909
        %v3911 = vlaneseq
        %v3912 = vshrl.u32 %v3911, 7
        %v3913 = vsub.s32 1, %v3912
        %v3914 = vrot.slane %v3141, %v3913
        %3916 = vbcast.lane.b32.xlu0 %v3914, 256
        %v3917 = vpop.permute.xlu0 %3916
        %v3918 = vlaneseq
        %v3919 = vshrl.u32 %v3918, 7
        %v3920 = vsub.s32 2, %v3919
        %v3921 = vrot.slane %v3141, %v3920
        %3923 = vbcast.lane.b32.xlu0 %v3921, 256
        %v3924 = vpop.permute.xlu0 %3923
        %v3925 = vlaneseq
        %v3926 = vshrl.u32 %v3925, 7
        %v3927 = vsub.s32 3, %v3926
        %v3928 = vrot.slane %v3141, %v3927
        %3930 = vbcast.lane.b32.xlu0 %v3928, 256
        %v3931 = vpop.permute.xlu0 %3930
        %v3932 = vlaneseq
        %v3933 = vshrl.u32 %v3932, 7
        %v3934 = vsub.s32 4, %v3933
        %v3935 = vrot.slane %v3141, %v3934
        %3937 = vbcast.lane.b32.xlu0 %v3935, 256
        %v3938 = vpop.permute.xlu0 %3937
        %v3939 = vlaneseq
        %v3940 = vshrl.u32 %v3939, 7
        %v3941 = vsub.s32 5, %v3940
        %v3942 = vrot.slane %v3141, %v3941
        %3944 = vbcast.lane.b32.xlu0 %v3942, 256
        %v3945 = vpop.permute.xlu0 %3944
        %v3946 = vlaneseq
        %v3947 = vshrl.u32 %v3946, 7
        %v3948 = vsub.s32 6, %v3947
        %v3949 = vrot.slane %v3141, %v3948
        %3951 = vbcast.lane.b32.xlu0 %v3949, 256
        %v3952 = vpop.permute.xlu0 %3951
        %v3953 = vlaneseq
        %v3954 = vshrl.u32 %v3953, 7
        %v3955 = vsub.s32 7, %v3954
        %v3956 = vrot.slane %v3141, %v3955
        %3958 = vbcast.lane.b32.xlu0 %v3956, 256
        %v3959 = vpop.permute.xlu0 %3958
        %v3960 = vlaneseq
        %v3961 = vshrl.u32 %v3960, 7
        %v3962 = vsub.s32 0, %v3961
        %v3963 = vrot.slane %v3143, %v3962
        %3965 = vbcast.lane.b32.xlu0 %v3963, 256
        %v3966 = vpop.permute.xlu0 %3965
        %v3967 = vlaneseq
        %v3968 = vshrl.u32 %v3967, 7
        %v3969 = vsub.s32 1, %v3968
        %v3970 = vrot.slane %v3143, %v3969
        %3972 = vbcast.lane.b32.xlu0 %v3970, 256
        %v3973 = vpop.permute.xlu0 %3972
        %v3974 = vlaneseq
        %v3975 = vshrl.u32 %v3974, 7
        %v3976 = vsub.s32 2, %v3975
        %v3977 = vrot.slane %v3143, %v3976
        %3979 = vbcast.lane.b32.xlu0 %v3977, 256
        %v3980 = vpop.permute.xlu0 %3979
        %v3981 = vlaneseq
        %v3982 = vshrl.u32 %v3981, 7
        %v3983 = vsub.s32 3, %v3982
        %v3984 = vrot.slane %v3143, %v3983
        %3986 = vbcast.lane.b32.xlu0 %v3984, 256
        %v3987 = vpop.permute.xlu0 %3986
        %v3988 = vlaneseq
        %v3989 = vshrl.u32 %v3988, 7
        %v3990 = vsub.s32 4, %v3989
        %v3991 = vrot.slane %v3143, %v3990
        %3993 = vbcast.lane.b32.xlu0 %v3991, 256
        %v3994 = vpop.permute.xlu0 %3993
        %v3995 = vlaneseq
        %v3996 = vshrl.u32 %v3995, 7
        %v3997 = vsub.s32 5, %v3996
        %v3998 = vrot.slane %v3143, %v3997
        %4000 = vbcast.lane.b32.xlu0 %v3998, 256
        %v4001 = vpop.permute.xlu0 %4000
        %v4002 = vlaneseq
        %v4003 = vshrl.u32 %v4002, 7
        %v4004 = vsub.s32 6, %v4003
        %v4005 = vrot.slane %v3143, %v4004
        %4007 = vbcast.lane.b32.xlu0 %v4005, 256
        %v4008 = vpop.permute.xlu0 %4007
        %v4009 = vlaneseq
        %v4010 = vshrl.u32 %v4009, 7
        %v4011 = vsub.s32 7, %v4010
        %v4012 = vrot.slane %v3143, %v4011
        %4014 = vbcast.lane.b32.xlu0 %v4012, 256
        %v4015 = vpop.permute.xlu0 %4014
        %v4016 = vlaneseq
        %v4017 = vshrl.u32 %v4016, 7
        %v4018 = vsub.s32 0, %v4017
        %v4019 = vrot.slane %v3145, %v4018
        %4021 = vbcast.lane.b32.xlu0 %v4019, 256
        %v4022 = vpop.permute.xlu0 %4021
        %v4023 = vlaneseq
        %v4024 = vshrl.u32 %v4023, 7
        %v4025 = vsub.s32 1, %v4024
        %v4026 = vrot.slane %v3145, %v4025
        %4028 = vbcast.lane.b32.xlu0 %v4026, 256
        %v4029 = vpop.permute.xlu0 %4028
        %v4030 = vlaneseq
        %v4031 = vshrl.u32 %v4030, 7
        %v4032 = vsub.s32 2, %v4031
        %v4033 = vrot.slane %v3145, %v4032
        %4035 = vbcast.lane.b32.xlu0 %v4033, 256
        %v4036 = vpop.permute.xlu0 %4035
        %v4037 = vlaneseq
        %v4038 = vshrl.u32 %v4037, 7
        %v4039 = vsub.s32 3, %v4038
        %v4040 = vrot.slane %v3145, %v4039
        %4042 = vbcast.lane.b32.xlu0 %v4040, 256
        %v4043 = vpop.permute.xlu0 %4042
        %v4044 = vlaneseq
        %v4045 = vshrl.u32 %v4044, 7
        %v4046 = vsub.s32 4, %v4045
        %v4047 = vrot.slane %v3145, %v4046
        %4049 = vbcast.lane.b32.xlu0 %v4047, 256
        %v4050 = vpop.permute.xlu0 %4049
        %v4051 = vlaneseq
        %v4052 = vshrl.u32 %v4051, 7
        %v4053 = vsub.s32 5, %v4052
        %v4054 = vrot.slane %v3145, %v4053
        %4056 = vbcast.lane.b32.xlu0 %v4054, 256
        %v4057 = vpop.permute.xlu0 %4056
        %v4058 = vlaneseq
        %v4059 = vshrl.u32 %v4058, 7
        %v4060 = vsub.s32 6, %v4059
        %v4061 = vrot.slane %v3145, %v4060
        %4063 = vbcast.lane.b32.xlu0 %v4061, 256
        %v4064 = vpop.permute.xlu0 %4063
        %v4065 = vlaneseq
        %v4066 = vshrl.u32 %v4065, 7
        %v4067 = vsub.s32 7, %v4066
        %v4068 = vrot.slane %v3145, %v4067
        %4070 = vbcast.lane.b32.xlu0 %v4068, 256
        %v4071 = vpop.permute.xlu0 %4070
        %v4072 = vlaneseq
        %v4073 = vshrl.u32 %v4072, 7
        %v4074 = vsub.s32 0, %v4073
        %v4075 = vrot.slane %v3147, %v4074
        %4077 = vbcast.lane.b32.xlu0 %v4075, 256
        %v4078 = vpop.permute.xlu0 %4077
        %v4079 = vlaneseq
        %v4080 = vshrl.u32 %v4079, 7
        %v4081 = vsub.s32 1, %v4080
        %v4082 = vrot.slane %v3147, %v4081
        %4084 = vbcast.lane.b32.xlu0 %v4082, 256
        %v4085 = vpop.permute.xlu0 %4084
        %v4086 = vlaneseq
        %v4087 = vshrl.u32 %v4086, 7
        %v4088 = vsub.s32 2, %v4087
        %v4089 = vrot.slane %v3147, %v4088
        %4091 = vbcast.lane.b32.xlu0 %v4089, 256
        %v4092 = vpop.permute.xlu0 %4091
        %v4093 = vlaneseq
        %v4094 = vshrl.u32 %v4093, 7
        %v4095 = vsub.s32 3, %v4094
        %v4096 = vrot.slane %v3147, %v4095
        %4098 = vbcast.lane.b32.xlu0 %v4096, 256
        %v4099 = vpop.permute.xlu0 %4098
        %v4100 = vlaneseq
        %v4101 = vshrl.u32 %v4100, 7
        %v4102 = vsub.s32 4, %v4101
        %v4103 = vrot.slane %v3147, %v4102
        %4105 = vbcast.lane.b32.xlu0 %v4103, 256
        %v4106 = vpop.permute.xlu0 %4105
        %v4107 = vlaneseq
        %v4108 = vshrl.u32 %v4107, 7
        %v4109 = vsub.s32 5, %v4108
        %v4110 = vrot.slane %v3147, %v4109
        %4112 = vbcast.lane.b32.xlu0 %v4110, 256
        %v4113 = vpop.permute.xlu0 %4112
        %v4114 = vlaneseq
        %v4115 = vshrl.u32 %v4114, 7
        %v4116 = vsub.s32 6, %v4115
        %v4117 = vrot.slane %v3147, %v4116
        %4119 = vbcast.lane.b32.xlu0 %v4117, 256
        %v4120 = vpop.permute.xlu0 %4119
        %v4121 = vlaneseq
        %v4122 = vshrl.u32 %v4121, 7
        %v4123 = vsub.s32 7, %v4122
        %v4124 = vrot.slane %v3147, %v4123
        %4126 = vbcast.lane.b32.xlu0 %v4124, 256
        %v4127 = vpop.permute.xlu0 %4126
        %v4128 = vlaneseq
        %v4129 = vshrl.u32 %v4128, 7
        %v4130 = vsub.s32 0, %v4129
        %v4131 = vrot.slane %v3149, %v4130
        %4133 = vbcast.lane.b32.xlu0 %v4131, 256
        %v4134 = vpop.permute.xlu0 %4133
        %v4135 = vlaneseq
        %v4136 = vshrl.u32 %v4135, 7
        %v4137 = vsub.s32 1, %v4136
        %v4138 = vrot.slane %v3149, %v4137
        %4140 = vbcast.lane.b32.xlu0 %v4138, 256
        %v4141 = vpop.permute.xlu0 %4140
        %v4142 = vlaneseq
        %v4143 = vshrl.u32 %v4142, 7
        %v4144 = vsub.s32 2, %v4143
        %v4145 = vrot.slane %v3149, %v4144
        %4147 = vbcast.lane.b32.xlu0 %v4145, 256
        %v4148 = vpop.permute.xlu0 %4147
        %v4149 = vlaneseq
        %v4150 = vshrl.u32 %v4149, 7
        %v4151 = vsub.s32 3, %v4150
        %v4152 = vrot.slane %v3149, %v4151
        %4154 = vbcast.lane.b32.xlu0 %v4152, 256
        %v4155 = vpop.permute.xlu0 %4154
        %v4156 = vlaneseq
        %v4157 = vshrl.u32 %v4156, 7
        %v4158 = vsub.s32 4, %v4157
        %v4159 = vrot.slane %v3149, %v4158
        %4161 = vbcast.lane.b32.xlu0 %v4159, 256
        %v4162 = vpop.permute.xlu0 %4161
        %v4163 = vlaneseq
        %v4164 = vshrl.u32 %v4163, 7
        %v4165 = vsub.s32 5, %v4164
        %v4166 = vrot.slane %v3149, %v4165
        %4168 = vbcast.lane.b32.xlu0 %v4166, 256
        %v4169 = vpop.permute.xlu0 %4168
        %v4170 = vlaneseq
        %v4171 = vshrl.u32 %v4170, 7
        %v4172 = vsub.s32 6, %v4171
        %v4173 = vrot.slane %v3149, %v4172
        %4175 = vbcast.lane.b32.xlu0 %v4173, 256
        %v4176 = vpop.permute.xlu0 %4175
        %v4177 = vlaneseq
        %v4178 = vshrl.u32 %v4177, 7
        %v4179 = vsub.s32 7, %v4178
        %v4180 = vrot.slane %v3149, %v4179
        %4182 = vbcast.lane.b32.xlu0 %v4180, 256
        %v4183 = vpop.permute.xlu0 %4182
        %v4184 = vmul.f32 %v3742, %v3418
        %v4185 = vmul.f32 %v3749, %v3423
        %v4186 = vmul.f32 %v3756, %v3428
        %v4187 = vmul.f32 %v3763, %v3433
        %v4188 = vmul.f32 %v3770, %v3438
        %v4189 = vmul.f32 %v3777, %v3443
        %v4190 = vmul.f32 %v3784, %v3448
        %v4191 = vmul.f32 %v3791, %v3453
        %v4192 = vmul.f32 %v3798, %v3458
        %v4193 = vmul.f32 %v3805, %v3463
        %v4194 = vmul.f32 %v3812, %v3468
        %v4195 = vmul.f32 %v3819, %v3473
        %v4196 = vmul.f32 %v3826, %v3478
        %v4197 = vmul.f32 %v3833, %v3483
        %v4198 = vmul.f32 %v3840, %v3488
        %v4199 = vmul.f32 %v3847, %v3493
        %v4200 = vmul.f32 %v3854, %v3498
        %v4201 = vmul.f32 %v3861, %v3503
        %v4202 = vmul.f32 %v3868, %v3508
        %v4203 = vmul.f32 %v3875, %v3513
        %v4204 = vmul.f32 %v3882, %v3518
        %v4205 = vmul.f32 %v3889, %v3523
        %v4206 = vmul.f32 %v3896, %v3528
        %v4207 = vmul.f32 %v3903, %v3533
        %v4208 = vmul.f32 %v3910, %v3538
        %v4209 = vmul.f32 %v3917, %v3543
        %v4210 = vmul.f32 %v3924, %v3548
        %v4211 = vmul.f32 %v3931, %v3553
        %v4212 = vmul.f32 %v3938, %v3558
        %v4213 = vmul.f32 %v3945, %v3563
        %v4214 = vmul.f32 %v3952, %v3568
        %v4215 = vmul.f32 %v3959, %v3573
        %v4216 = vmul.f32 %v3966, %v3578
        %v4217 = vmul.f32 %v3973, %v3583
        %v4218 = vmul.f32 %v3980, %v3588
        %v4219 = vmul.f32 %v3987, %v3593
        %v4220 = vmul.f32 %v3994, %v3598
        %v4221 = vmul.f32 %v4001, %v3603
        %v4222 = vmul.f32 %v4008, %v3608
        %v4223 = vmul.f32 %v4015, %v3613
        %v4224 = vmul.f32 %v4022, %v3618
        %v4225 = vmul.f32 %v4029, %v3623
        %v4226 = vmul.f32 %v4036, %v3628
        %v4227 = vmul.f32 %v4043, %v3633
        %v4228 = vmul.f32 %v4050, %v3638
        %v4229 = vmul.f32 %v4057, %v3643
        %v4230 = vmul.f32 %v4064, %v3648
        %v4231 = vmul.f32 %v4071, %v3653
        %v4232 = vmul.f32 %v4078, %v3658
        %v4233 = vmul.f32 %v4085, %v3663
        %v4234 = vmul.f32 %v4092, %v3668
        %v4235 = vmul.f32 %v4099, %v3673
        %v4236 = vmul.f32 %v4106, %v3678
        %v4237 = vmul.f32 %v4113, %v3683
        %v4238 = vmul.f32 %v4120, %v3688
        %v4239 = vmul.f32 %v4127, %v3693
        %v4240 = vmul.f32 %v4134, %v3698
        %v4241 = vmul.f32 %v4141, %v3703
        %v4242 = vmul.f32 %v4148, %v3708
        %v4243 = vmul.f32 %v4155, %v3713
        %v4244 = vmul.f32 %v4162, %v3718
        %v4245 = vmul.f32 %v4169, %v3723
        %v4246 = vmul.f32 %v4176, %v3728
        %v4247 = vmul.f32 %v4183, %v3733
        %v4248 = vsel %vm1263, %v4184, 0.0
        %v4249 = vrot.slane %v4248, 4
        %v4250 = vadd.f32 %v4248, %v4249
        %v4251 = vrot.slane %v4250, 2
        %v4252 = vadd.f32 %v4250, %v4251
        %v4253 = vrot.slane %v4252, 1
        %v4254 = vadd.f32 %v4252, %v4253
        %v4255 = vsel %vm1263, %v4185, 0.0
        %v4256 = vrot.slane %v4255, 4
        %v4257 = vadd.f32 %v4255, %v4256
        %v4258 = vrot.slane %v4257, 2
        %v4259 = vadd.f32 %v4257, %v4258
        %v4260 = vrot.slane %v4259, 1
        %v4261 = vadd.f32 %v4259, %v4260
        %v4262 = vsel %vm1263, %v4186, 0.0
        %v4263 = vrot.slane %v4262, 4
        %v4264 = vadd.f32 %v4262, %v4263
        %v4265 = vrot.slane %v4264, 2
        %v4266 = vadd.f32 %v4264, %v4265
        %v4267 = vrot.slane %v4266, 1
        %v4268 = vadd.f32 %v4266, %v4267
        %v4269 = vsel %vm1263, %v4187, 0.0
        %v4270 = vrot.slane %v4269, 4
        %v4271 = vadd.f32 %v4269, %v4270
        %v4272 = vrot.slane %v4271, 2
        %v4273 = vadd.f32 %v4271, %v4272
        %v4274 = vrot.slane %v4273, 1
        %v4275 = vadd.f32 %v4273, %v4274
        %v4276 = vsel %vm1263, %v4188, 0.0
        %v4277 = vrot.slane %v4276, 4
        %v4278 = vadd.f32 %v4276, %v4277
        %v4279 = vrot.slane %v4278, 2
        %v4280 = vadd.f32 %v4278, %v4279
        %v4281 = vrot.slane %v4280, 1
        %v4282 = vadd.f32 %v4280, %v4281
        %v4283 = vsel %vm1263, %v4189, 0.0
        %v4284 = vrot.slane %v4283, 4
        %v4285 = vadd.f32 %v4283, %v4284
        %v4286 = vrot.slane %v4285, 2
        %v4287 = vadd.f32 %v4285, %v4286
        %v4288 = vrot.slane %v4287, 1
        %v4289 = vadd.f32 %v4287, %v4288
        %v4290 = vsel %vm1263, %v4190, 0.0
        %v4291 = vrot.slane %v4290, 4
        %v4292 = vadd.f32 %v4290, %v4291
        %v4293 = vrot.slane %v4292, 2
        %v4294 = vadd.f32 %v4292, %v4293
        %v4295 = vrot.slane %v4294, 1
        %v4296 = vadd.f32 %v4294, %v4295
        %v4297 = vsel %vm1263, %v4191, 0.0
        %v4298 = vrot.slane %v4297, 4
        %v4299 = vadd.f32 %v4297, %v4298
        %v4300 = vrot.slane %v4299, 2
        %v4301 = vadd.f32 %v4299, %v4300
        %v4302 = vrot.slane %v4301, 1
        %v4303 = vadd.f32 %v4301, %v4302
        %v4304 = vsel %vm1263, %v4192, 0.0
        %v4305 = vrot.slane %v4304, 4
        %v4306 = vadd.f32 %v4304, %v4305
        %v4307 = vrot.slane %v4306, 2
        %v4308 = vadd.f32 %v4306, %v4307
        %v4309 = vrot.slane %v4308, 1
        %v4310 = vadd.f32 %v4308, %v4309
        %v4311 = vsel %vm1263, %v4193, 0.0
        %v4312 = vrot.slane %v4311, 4
        %v4313 = vadd.f32 %v4311, %v4312
        %v4314 = vrot.slane %v4313, 2
        %v4315 = vadd.f32 %v4313, %v4314
        %v4316 = vrot.slane %v4315, 1
        %v4317 = vadd.f32 %v4315, %v4316
        %v4318 = vsel %vm1263, %v4194, 0.0
        %v4319 = vrot.slane %v4318, 4
        %v4320 = vadd.f32 %v4318, %v4319
        %v4321 = vrot.slane %v4320, 2
        %v4322 = vadd.f32 %v4320, %v4321
        %v4323 = vrot.slane %v4322, 1
        %v4324 = vadd.f32 %v4322, %v4323
        %v4325 = vsel %vm1263, %v4195, 0.0
        %v4326 = vrot.slane %v4325, 4
        %v4327 = vadd.f32 %v4325, %v4326
        %v4328 = vrot.slane %v4327, 2
        %v4329 = vadd.f32 %v4327, %v4328
        %v4330 = vrot.slane %v4329, 1
        %v4331 = vadd.f32 %v4329, %v4330
        %v4332 = vsel %vm1263, %v4196, 0.0
        %v4333 = vrot.slane %v4332, 4
        %v4334 = vadd.f32 %v4332, %v4333
        %v4335 = vrot.slane %v4334, 2
        %v4336 = vadd.f32 %v4334, %v4335
        %v4337 = vrot.slane %v4336, 1
        %v4338 = vadd.f32 %v4336, %v4337
        %v4339 = vsel %vm1263, %v4197, 0.0
        %v4340 = vrot.slane %v4339, 4
        %v4341 = vadd.f32 %v4339, %v4340
        %v4342 = vrot.slane %v4341, 2
        %v4343 = vadd.f32 %v4341, %v4342
        %v4344 = vrot.slane %v4343, 1
        %v4345 = vadd.f32 %v4343, %v4344
        %v4346 = vsel %vm1263, %v4198, 0.0
        %v4347 = vrot.slane %v4346, 4
        %v4348 = vadd.f32 %v4346, %v4347
        %v4349 = vrot.slane %v4348, 2
        %v4350 = vadd.f32 %v4348, %v4349
        %v4351 = vrot.slane %v4350, 1
        %v4352 = vadd.f32 %v4350, %v4351
        %v4353 = vsel %vm1263, %v4199, 0.0
        %v4354 = vrot.slane %v4353, 4
        %v4355 = vadd.f32 %v4353, %v4354
        %v4356 = vrot.slane %v4355, 2
        %v4357 = vadd.f32 %v4355, %v4356
        %v4358 = vrot.slane %v4357, 1
        %v4359 = vadd.f32 %v4357, %v4358
        %v4360 = vsel %vm1263, %v4200, 0.0
        %v4361 = vrot.slane %v4360, 4
        %v4362 = vadd.f32 %v4360, %v4361
        %v4363 = vrot.slane %v4362, 2
        %v4364 = vadd.f32 %v4362, %v4363
        %v4365 = vrot.slane %v4364, 1
        %v4366 = vadd.f32 %v4364, %v4365
        %v4367 = vsel %vm1263, %v4201, 0.0
        %v4368 = vrot.slane %v4367, 4
        %v4369 = vadd.f32 %v4367, %v4368
        %v4370 = vrot.slane %v4369, 2
        %v4371 = vadd.f32 %v4369, %v4370
        %v4372 = vrot.slane %v4371, 1
        %v4373 = vadd.f32 %v4371, %v4372
        %v4374 = vsel %vm1263, %v4202, 0.0
        %v4375 = vrot.slane %v4374, 4
        %v4376 = vadd.f32 %v4374, %v4375
        %v4377 = vrot.slane %v4376, 2
        %v4378 = vadd.f32 %v4376, %v4377
        %v4379 = vrot.slane %v4378, 1
        %v4380 = vadd.f32 %v4378, %v4379
        %v4381 = vsel %vm1263, %v4203, 0.0
        %v4382 = vrot.slane %v4381, 4
        %v4383 = vadd.f32 %v4381, %v4382
        %v4384 = vrot.slane %v4383, 2
        %v4385 = vadd.f32 %v4383, %v4384
        %v4386 = vrot.slane %v4385, 1
        %v4387 = vadd.f32 %v4385, %v4386
        %v4388 = vsel %vm1263, %v4204, 0.0
        %v4389 = vrot.slane %v4388, 4
        %v4390 = vadd.f32 %v4388, %v4389
        %v4391 = vrot.slane %v4390, 2
        %v4392 = vadd.f32 %v4390, %v4391
        %v4393 = vrot.slane %v4392, 1
        %v4394 = vadd.f32 %v4392, %v4393
        %v4395 = vsel %vm1263, %v4205, 0.0
        %v4396 = vrot.slane %v4395, 4
        %v4397 = vadd.f32 %v4395, %v4396
        %v4398 = vrot.slane %v4397, 2
        %v4399 = vadd.f32 %v4397, %v4398
        %v4400 = vrot.slane %v4399, 1
        %v4401 = vadd.f32 %v4399, %v4400
        %v4402 = vsel %vm1263, %v4206, 0.0
        %v4403 = vrot.slane %v4402, 4
        %v4404 = vadd.f32 %v4402, %v4403
        %v4405 = vrot.slane %v4404, 2
        %v4406 = vadd.f32 %v4404, %v4405
        %v4407 = vrot.slane %v4406, 1
        %v4408 = vadd.f32 %v4406, %v4407
        %v4409 = vsel %vm1263, %v4207, 0.0
        %v4410 = vrot.slane %v4409, 4
        %v4411 = vadd.f32 %v4409, %v4410
        %v4412 = vrot.slane %v4411, 2
        %v4413 = vadd.f32 %v4411, %v4412
        %v4414 = vrot.slane %v4413, 1
        %v4415 = vadd.f32 %v4413, %v4414
        %v4416 = vsel %vm1263, %v4208, 0.0
        %v4417 = vrot.slane %v4416, 4
        %v4418 = vadd.f32 %v4416, %v4417
        %v4419 = vrot.slane %v4418, 2
        %v4420 = vadd.f32 %v4418, %v4419
        %v4421 = vrot.slane %v4420, 1
        %v4422 = vadd.f32 %v4420, %v4421
        %v4423 = vsel %vm1263, %v4209, 0.0
        %v4424 = vrot.slane %v4423, 4
        %v4425 = vadd.f32 %v4423, %v4424
        %v4426 = vrot.slane %v4425, 2
        %v4427 = vadd.f32 %v4425, %v4426
        %v4428 = vrot.slane %v4427, 1
        %v4429 = vadd.f32 %v4427, %v4428
        %v4430 = vsel %vm1263, %v4210, 0.0
        %v4431 = vrot.slane %v4430, 4
        %v4432 = vadd.f32 %v4430, %v4431
        %v4433 = vrot.slane %v4432, 2
        %v4434 = vadd.f32 %v4432, %v4433
        %v4435 = vrot.slane %v4434, 1
        %v4436 = vadd.f32 %v4434, %v4435
        %v4437 = vsel %vm1263, %v4211, 0.0
        %v4438 = vrot.slane %v4437, 4
        %v4439 = vadd.f32 %v4437, %v4438
        %v4440 = vrot.slane %v4439, 2
        %v4441 = vadd.f32 %v4439, %v4440
        %v4442 = vrot.slane %v4441, 1
        %v4443 = vadd.f32 %v4441, %v4442
        %v4444 = vsel %vm1263, %v4212, 0.0
        %v4445 = vrot.slane %v4444, 4
        %v4446 = vadd.f32 %v4444, %v4445
        %v4447 = vrot.slane %v4446, 2
        %v4448 = vadd.f32 %v4446, %v4447
        %v4449 = vrot.slane %v4448, 1
        %v4450 = vadd.f32 %v4448, %v4449
        %v4451 = vsel %vm1263, %v4213, 0.0
        %v4452 = vrot.slane %v4451, 4
        %v4453 = vadd.f32 %v4451, %v4452
        %v4454 = vrot.slane %v4453, 2
        %v4455 = vadd.f32 %v4453, %v4454
        %v4456 = vrot.slane %v4455, 1
        %v4457 = vadd.f32 %v4455, %v4456
        %v4458 = vsel %vm1263, %v4214, 0.0
        %v4459 = vrot.slane %v4458, 4
        %v4460 = vadd.f32 %v4458, %v4459
        %v4461 = vrot.slane %v4460, 2
        %v4462 = vadd.f32 %v4460, %v4461
        %v4463 = vrot.slane %v4462, 1
        %v4464 = vadd.f32 %v4462, %v4463
        %v4465 = vsel %vm1263, %v4215, 0.0
        %v4466 = vrot.slane %v4465, 4
        %v4467 = vadd.f32 %v4465, %v4466
        %v4468 = vrot.slane %v4467, 2
        %v4469 = vadd.f32 %v4467, %v4468
        %v4470 = vrot.slane %v4469, 1
        %v4471 = vadd.f32 %v4469, %v4470
        %v4472 = vsel %vm1263, %v4216, 0.0
        %v4473 = vrot.slane %v4472, 4
        %v4474 = vadd.f32 %v4472, %v4473
        %v4475 = vrot.slane %v4474, 2
        %v4476 = vadd.f32 %v4474, %v4475
        %v4477 = vrot.slane %v4476, 1
        %v4478 = vadd.f32 %v4476, %v4477
        %v4479 = vsel %vm1263, %v4217, 0.0
        %v4480 = vrot.slane %v4479, 4
        %v4481 = vadd.f32 %v4479, %v4480
        %v4482 = vrot.slane %v4481, 2
        %v4483 = vadd.f32 %v4481, %v4482
        %v4484 = vrot.slane %v4483, 1
        %v4485 = vadd.f32 %v4483, %v4484
        %v4486 = vsel %vm1263, %v4218, 0.0
        %v4487 = vrot.slane %v4486, 4
        %v4488 = vadd.f32 %v4486, %v4487
        %v4489 = vrot.slane %v4488, 2
        %v4490 = vadd.f32 %v4488, %v4489
        %v4491 = vrot.slane %v4490, 1
        %v4492 = vadd.f32 %v4490, %v4491
        %v4493 = vsel %vm1263, %v4219, 0.0
        %v4494 = vrot.slane %v4493, 4
        %v4495 = vadd.f32 %v4493, %v4494
        %v4496 = vrot.slane %v4495, 2
        %v4497 = vadd.f32 %v4495, %v4496
        %v4498 = vrot.slane %v4497, 1
        %v4499 = vadd.f32 %v4497, %v4498
        %v4500 = vsel %vm1263, %v4220, 0.0
        %v4501 = vrot.slane %v4500, 4
        %v4502 = vadd.f32 %v4500, %v4501
        %v4503 = vrot.slane %v4502, 2
        %v4504 = vadd.f32 %v4502, %v4503
        %v4505 = vrot.slane %v4504, 1
        %v4506 = vadd.f32 %v4504, %v4505
        %v4507 = vsel %vm1263, %v4221, 0.0
        %v4508 = vrot.slane %v4507, 4
        %v4509 = vadd.f32 %v4507, %v4508
        %v4510 = vrot.slane %v4509, 2
        %v4511 = vadd.f32 %v4509, %v4510
        %v4512 = vrot.slane %v4511, 1
        %v4513 = vadd.f32 %v4511, %v4512
        %v4514 = vsel %vm1263, %v4222, 0.0
        %v4515 = vrot.slane %v4514, 4
        %v4516 = vadd.f32 %v4514, %v4515
        %v4517 = vrot.slane %v4516, 2
        %v4518 = vadd.f32 %v4516, %v4517
        %v4519 = vrot.slane %v4518, 1
        %v4520 = vadd.f32 %v4518, %v4519
        %v4521 = vsel %vm1263, %v4223, 0.0
        %v4522 = vrot.slane %v4521, 4
        %v4523 = vadd.f32 %v4521, %v4522
        %v4524 = vrot.slane %v4523, 2
        %v4525 = vadd.f32 %v4523, %v4524
        %v4526 = vrot.slane %v4525, 1
        %v4527 = vadd.f32 %v4525, %v4526
        %v4528 = vsel %vm1263, %v4224, 0.0
        %v4529 = vrot.slane %v4528, 4
        %v4530 = vadd.f32 %v4528, %v4529
        %v4531 = vrot.slane %v4530, 2
        %v4532 = vadd.f32 %v4530, %v4531
        %v4533 = vrot.slane %v4532, 1
        %v4534 = vadd.f32 %v4532, %v4533
        %v4535 = vsel %vm1263, %v4225, 0.0
        %v4536 = vrot.slane %v4535, 4
        %v4537 = vadd.f32 %v4535, %v4536
        %v4538 = vrot.slane %v4537, 2
        %v4539 = vadd.f32 %v4537, %v4538
        %v4540 = vrot.slane %v4539, 1
        %v4541 = vadd.f32 %v4539, %v4540
        %v4542 = vsel %vm1263, %v4226, 0.0
        %v4543 = vrot.slane %v4542, 4
        %v4544 = vadd.f32 %v4542, %v4543
        %v4545 = vrot.slane %v4544, 2
        %v4546 = vadd.f32 %v4544, %v4545
        %v4547 = vrot.slane %v4546, 1
        %v4548 = vadd.f32 %v4546, %v4547
        %v4549 = vsel %vm1263, %v4227, 0.0
        %v4550 = vrot.slane %v4549, 4
        %v4551 = vadd.f32 %v4549, %v4550
        %v4552 = vrot.slane %v4551, 2
        %v4553 = vadd.f32 %v4551, %v4552
        %v4554 = vrot.slane %v4553, 1
        %v4555 = vadd.f32 %v4553, %v4554
        %v4556 = vsel %vm1263, %v4228, 0.0
        %v4557 = vrot.slane %v4556, 4
        %v4558 = vadd.f32 %v4556, %v4557
        %v4559 = vrot.slane %v4558, 2
        %v4560 = vadd.f32 %v4558, %v4559
        %v4561 = vrot.slane %v4560, 1
        %v4562 = vadd.f32 %v4560, %v4561
        %v4563 = vsel %vm1263, %v4229, 0.0
        %v4564 = vrot.slane %v4563, 4
        %v4565 = vadd.f32 %v4563, %v4564
        %v4566 = vrot.slane %v4565, 2
        %v4567 = vadd.f32 %v4565, %v4566
        %v4568 = vrot.slane %v4567, 1
        %v4569 = vadd.f32 %v4567, %v4568
        %v4570 = vsel %vm1263, %v4230, 0.0
        %v4571 = vrot.slane %v4570, 4
        %v4572 = vadd.f32 %v4570, %v4571
        %v4573 = vrot.slane %v4572, 2
        %v4574 = vadd.f32 %v4572, %v4573
        %v4575 = vrot.slane %v4574, 1
        %v4576 = vadd.f32 %v4574, %v4575
        %v4577 = vsel %vm1263, %v4231, 0.0
        %v4578 = vrot.slane %v4577, 4
        %v4579 = vadd.f32 %v4577, %v4578
        %v4580 = vrot.slane %v4579, 2
        %v4581 = vadd.f32 %v4579, %v4580
        %v4582 = vrot.slane %v4581, 1
        %v4583 = vadd.f32 %v4581, %v4582
        %v4584 = vsel %vm1263, %v4232, 0.0
        %v4585 = vrot.slane %v4584, 4
        %v4586 = vadd.f32 %v4584, %v4585
        %v4587 = vrot.slane %v4586, 2
        %v4588 = vadd.f32 %v4586, %v4587
        %v4589 = vrot.slane %v4588, 1
        %v4590 = vadd.f32 %v4588, %v4589
        %v4591 = vsel %vm1263, %v4233, 0.0
        %v4592 = vrot.slane %v4591, 4
        %v4593 = vadd.f32 %v4591, %v4592
        %v4594 = vrot.slane %v4593, 2
        %v4595 = vadd.f32 %v4593, %v4594
        %v4596 = vrot.slane %v4595, 1
        %v4597 = vadd.f32 %v4595, %v4596
        %v4598 = vsel %vm1263, %v4234, 0.0
        %v4599 = vrot.slane %v4598, 4
        %v4600 = vadd.f32 %v4598, %v4599
        %v4601 = vrot.slane %v4600, 2
        %v4602 = vadd.f32 %v4600, %v4601
        %v4603 = vrot.slane %v4602, 1
        %v4604 = vadd.f32 %v4602, %v4603
        %v4605 = vsel %vm1263, %v4235, 0.0
        %v4606 = vrot.slane %v4605, 4
        %v4607 = vadd.f32 %v4605, %v4606
        %v4608 = vrot.slane %v4607, 2
        %v4609 = vadd.f32 %v4607, %v4608
        %v4610 = vrot.slane %v4609, 1
        %v4611 = vadd.f32 %v4609, %v4610
        %v4612 = vsel %vm1263, %v4236, 0.0
        %v4613 = vrot.slane %v4612, 4
        %v4614 = vadd.f32 %v4612, %v4613
        %v4615 = vrot.slane %v4614, 2
        %v4616 = vadd.f32 %v4614, %v4615
        %v4617 = vrot.slane %v4616, 1
        %v4618 = vadd.f32 %v4616, %v4617
        %v4619 = vsel %vm1263, %v4237, 0.0
        %v4620 = vrot.slane %v4619, 4
        %v4621 = vadd.f32 %v4619, %v4620
        %v4622 = vrot.slane %v4621, 2
        %v4623 = vadd.f32 %v4621, %v4622
        %v4624 = vrot.slane %v4623, 1
        %v4625 = vadd.f32 %v4623, %v4624
        %v4626 = vsel %vm1263, %v4238, 0.0
        %v4627 = vrot.slane %v4626, 4
        %v4628 = vadd.f32 %v4626, %v4627
        %v4629 = vrot.slane %v4628, 2
        %v4630 = vadd.f32 %v4628, %v4629
        %v4631 = vrot.slane %v4630, 1
        %v4632 = vadd.f32 %v4630, %v4631
        %v4633 = vsel %vm1263, %v4239, 0.0
        %v4634 = vrot.slane %v4633, 4
        %v4635 = vadd.f32 %v4633, %v4634
        %v4636 = vrot.slane %v4635, 2
        %v4637 = vadd.f32 %v4635, %v4636
        %v4638 = vrot.slane %v4637, 1
        %v4639 = vadd.f32 %v4637, %v4638
        %v4640 = vsel %vm1263, %v4240, 0.0
        %v4641 = vrot.slane %v4640, 4
        %v4642 = vadd.f32 %v4640, %v4641
        %v4643 = vrot.slane %v4642, 2
        %v4644 = vadd.f32 %v4642, %v4643
        %v4645 = vrot.slane %v4644, 1
        %v4646 = vadd.f32 %v4644, %v4645
        %v4647 = vsel %vm1263, %v4241, 0.0
        %v4648 = vrot.slane %v4647, 4
        %v4649 = vadd.f32 %v4647, %v4648
        %v4650 = vrot.slane %v4649, 2
        %v4651 = vadd.f32 %v4649, %v4650
        %v4652 = vrot.slane %v4651, 1
        %v4653 = vadd.f32 %v4651, %v4652
        %v4654 = vsel %vm1263, %v4242, 0.0
        %v4655 = vrot.slane %v4654, 4
        %v4656 = vadd.f32 %v4654, %v4655
        %v4657 = vrot.slane %v4656, 2
        %v4658 = vadd.f32 %v4656, %v4657
        %v4659 = vrot.slane %v4658, 1
        %v4660 = vadd.f32 %v4658, %v4659
        %v4661 = vsel %vm1263, %v4243, 0.0
        %v4662 = vrot.slane %v4661, 4
        %v4663 = vadd.f32 %v4661, %v4662
        %v4664 = vrot.slane %v4663, 2
        %v4665 = vadd.f32 %v4663, %v4664
        %v4666 = vrot.slane %v4665, 1
        %v4667 = vadd.f32 %v4665, %v4666
        %v4668 = vsel %vm1263, %v4244, 0.0
        %v4669 = vrot.slane %v4668, 4
        %v4670 = vadd.f32 %v4668, %v4669
        %v4671 = vrot.slane %v4670, 2
        %v4672 = vadd.f32 %v4670, %v4671
        %v4673 = vrot.slane %v4672, 1
        %v4674 = vadd.f32 %v4672, %v4673
        %v4675 = vsel %vm1263, %v4245, 0.0
        %v4676 = vrot.slane %v4675, 4
        %v4677 = vadd.f32 %v4675, %v4676
        %v4678 = vrot.slane %v4677, 2
        %v4679 = vadd.f32 %v4677, %v4678
        %v4680 = vrot.slane %v4679, 1
        %v4681 = vadd.f32 %v4679, %v4680
        %v4682 = vsel %vm1263, %v4246, 0.0
        %v4683 = vrot.slane %v4682, 4
        %v4684 = vadd.f32 %v4682, %v4683
        %v4685 = vrot.slane %v4684, 2
        %v4686 = vadd.f32 %v4684, %v4685
        %v4687 = vrot.slane %v4686, 1
        %v4688 = vadd.f32 %v4686, %v4687
        %v4689 = vsel %vm1263, %v4247, 0.0
        %v4690 = vrot.slane %v4689, 4
        %v4691 = vadd.f32 %v4689, %v4690
        %v4692 = vrot.slane %v4691, 2
        %v4693 = vadd.f32 %v4691, %v4692
        %v4694 = vrot.slane %v4693, 1
        %v4695 = vadd.f32 %v4693, %v4694
        %vm4696 = vcmp.gt.f32.partialorder %v4254, 0.0
        %vm4697 = vcmp.gt.f32.partialorder %v4261, 0.0
        %vm4698 = vcmp.gt.f32.partialorder %v4268, 0.0
        %vm4699 = vcmp.gt.f32.partialorder %v4275, 0.0
        %vm4700 = vcmp.gt.f32.partialorder %v4282, 0.0
        %vm4701 = vcmp.gt.f32.partialorder %v4289, 0.0
        %vm4702 = vcmp.gt.f32.partialorder %v4296, 0.0
        %vm4703 = vcmp.gt.f32.partialorder %v4303, 0.0
        %vm4704 = vcmp.gt.f32.partialorder %v4310, 0.0
        %vm4705 = vcmp.gt.f32.partialorder %v4317, 0.0
        %vm4706 = vcmp.gt.f32.partialorder %v4324, 0.0
        %vm4707 = vcmp.gt.f32.partialorder %v4331, 0.0
        %vm4708 = vcmp.gt.f32.partialorder %v4338, 0.0
        %vm4709 = vcmp.gt.f32.partialorder %v4345, 0.0
        %vm4710 = vcmp.gt.f32.partialorder %v4352, 0.0
        %vm4711 = vcmp.gt.f32.partialorder %v4359, 0.0
        %vm4712 = vcmp.gt.f32.partialorder %v4366, 0.0
        %vm4713 = vcmp.gt.f32.partialorder %v4373, 0.0
        %vm4714 = vcmp.gt.f32.partialorder %v4380, 0.0
        %vm4715 = vcmp.gt.f32.partialorder %v4387, 0.0
        %vm4716 = vcmp.gt.f32.partialorder %v4394, 0.0
        %vm4717 = vcmp.gt.f32.partialorder %v4401, 0.0
        %vm4718 = vcmp.gt.f32.partialorder %v4408, 0.0
        %vm4719 = vcmp.gt.f32.partialorder %v4415, 0.0
        %vm4720 = vcmp.gt.f32.partialorder %v4422, 0.0
        %vm4721 = vcmp.gt.f32.partialorder %v4429, 0.0
        %vm4722 = vcmp.gt.f32.partialorder %v4436, 0.0
        %vm4723 = vcmp.gt.f32.partialorder %v4443, 0.0
        %vm4724 = vcmp.gt.f32.partialorder %v4450, 0.0
        %vm4725 = vcmp.gt.f32.partialorder %v4457, 0.0
        %vm4726 = vcmp.gt.f32.partialorder %v4464, 0.0
        %vm4727 = vcmp.gt.f32.partialorder %v4471, 0.0
        %vm4728 = vcmp.gt.f32.partialorder %v4478, 0.0
        %vm4729 = vcmp.gt.f32.partialorder %v4485, 0.0
        %vm4730 = vcmp.gt.f32.partialorder %v4492, 0.0
        %vm4731 = vcmp.gt.f32.partialorder %v4499, 0.0
        %vm4732 = vcmp.gt.f32.partialorder %v4506, 0.0
        %vm4733 = vcmp.gt.f32.partialorder %v4513, 0.0
        %vm4734 = vcmp.gt.f32.partialorder %v4520, 0.0
        %vm4735 = vcmp.gt.f32.partialorder %v4527, 0.0
        %vm4736 = vcmp.gt.f32.partialorder %v4534, 0.0
        %vm4737 = vcmp.gt.f32.partialorder %v4541, 0.0
        %vm4738 = vcmp.gt.f32.partialorder %v4548, 0.0
        %vm4739 = vcmp.gt.f32.partialorder %v4555, 0.0
        %vm4740 = vcmp.gt.f32.partialorder %v4562, 0.0
        %vm4741 = vcmp.gt.f32.partialorder %v4569, 0.0
        %vm4742 = vcmp.gt.f32.partialorder %v4576, 0.0
        %vm4743 = vcmp.gt.f32.partialorder %v4583, 0.0
        %vm4744 = vcmp.gt.f32.partialorder %v4590, 0.0
        %vm4745 = vcmp.gt.f32.partialorder %v4597, 0.0
        %vm4746 = vcmp.gt.f32.partialorder %v4604, 0.0
        %vm4747 = vcmp.gt.f32.partialorder %v4611, 0.0
        %vm4748 = vcmp.gt.f32.partialorder %v4618, 0.0
        %vm4749 = vcmp.gt.f32.partialorder %v4625, 0.0
        %vm4750 = vcmp.gt.f32.partialorder %v4632, 0.0
        %vm4751 = vcmp.gt.f32.partialorder %v4639, 0.0
        %vm4752 = vcmp.gt.f32.partialorder %v4646, 0.0
        %vm4753 = vcmp.gt.f32.partialorder %v4653, 0.0
        %vm4754 = vcmp.gt.f32.partialorder %v4660, 0.0
        %vm4755 = vcmp.gt.f32.partialorder %v4667, 0.0
        %vm4756 = vcmp.gt.f32.partialorder %v4674, 0.0
        %vm4757 = vcmp.gt.f32.partialorder %v4681, 0.0
        %vm4758 = vcmp.gt.f32.partialorder %v4688, 0.0
        %vm4759 = vcmp.gt.f32.partialorder %v4695, 0.0
        %v4760 = vmul.f32 %v4254, 1.442695
        %v4761 = vpow.pop %v4760
        %v4762 = vmul.f32 %v4261, 1.442695
        %v4763 = vpow.pop %v4762
        %v4764 = vmul.f32 %v4268, 1.442695
        %v4765 = vpow.pop %v4764
        %v4766 = vmul.f32 %v4275, 1.442695
        %v4767 = vpow.pop %v4766
        %v4768 = vmul.f32 %v4282, 1.442695
        %v4769 = vpow.pop %v4768
        %v4770 = vmul.f32 %v4289, 1.442695
        %v4771 = vpow.pop %v4770
        %v4772 = vmul.f32 %v4296, 1.442695
        %v4773 = vpow.pop %v4772
        %v4774 = vmul.f32 %v4303, 1.442695
        %v4775 = vpow.pop %v4774
        %v4776 = vmul.f32 %v4310, 1.442695
        %v4777 = vpow.pop %v4776
        %v4778 = vmul.f32 %v4317, 1.442695
        %v4779 = vpow.pop %v4778
        %v4780 = vmul.f32 %v4324, 1.442695
        %v4781 = vpow.pop %v4780
        %v4782 = vmul.f32 %v4331, 1.442695
        %v4783 = vpow.pop %v4782
        %v4784 = vmul.f32 %v4338, 1.442695
        %v4785 = vpow.pop %v4784
        %v4786 = vmul.f32 %v4345, 1.442695
        %v4787 = vpow.pop %v4786
        %v4788 = vmul.f32 %v4352, 1.442695
        %v4789 = vpow.pop %v4788
        %v4790 = vmul.f32 %v4359, 1.442695
        %v4791 = vpow.pop %v4790
        %v4792 = vmul.f32 %v4366, 1.442695
        %v4793 = vpow.pop %v4792
        %v4794 = vmul.f32 %v4373, 1.442695
        %v4795 = vpow.pop %v4794
        %v4796 = vmul.f32 %v4380, 1.442695
        %v4797 = vpow.pop %v4796
        %v4798 = vmul.f32 %v4387, 1.442695
        %v4799 = vpow.pop %v4798
        %v4800 = vmul.f32 %v4394, 1.442695
        %v4801 = vpow.pop %v4800
        %v4802 = vmul.f32 %v4401, 1.442695
        %v4803 = vpow.pop %v4802
        %v4804 = vmul.f32 %v4408, 1.442695
        %v4805 = vpow.pop %v4804
        %v4806 = vmul.f32 %v4415, 1.442695
        %v4807 = vpow.pop %v4806
        %v4808 = vmul.f32 %v4422, 1.442695
        %v4809 = vpow.pop %v4808
        %v4810 = vmul.f32 %v4429, 1.442695
        %v4811 = vpow.pop %v4810
        %v4812 = vmul.f32 %v4436, 1.442695
        %v4813 = vpow.pop %v4812
        %v4814 = vmul.f32 %v4443, 1.442695
        %v4815 = vpow.pop %v4814
        %v4816 = vmul.f32 %v4450, 1.442695
        %v4817 = vpow.pop %v4816
        %v4818 = vmul.f32 %v4457, 1.442695
        %v4819 = vpow.pop %v4818
        %v4820 = vmul.f32 %v4464, 1.442695
        %v4821 = vpow.pop %v4820
        %v4822 = vmul.f32 %v4471, 1.442695
        %v4823 = vpow.pop %v4822
        %v4824 = vmul.f32 %v4478, 1.442695
        %v4825 = vpow.pop %v4824
        %v4826 = vmul.f32 %v4485, 1.442695
        %v4827 = vpow.pop %v4826
        %v4828 = vmul.f32 %v4492, 1.442695
        %v4829 = vpow.pop %v4828
        %v4830 = vmul.f32 %v4499, 1.442695
        %v4831 = vpow.pop %v4830
        %v4832 = vmul.f32 %v4506, 1.442695
        %v4833 = vpow.pop %v4832
        %v4834 = vmul.f32 %v4513, 1.442695
        %v4835 = vpow.pop %v4834
        %v4836 = vmul.f32 %v4520, 1.442695
        %v4837 = vpow.pop %v4836
        %v4838 = vmul.f32 %v4527, 1.442695
        %v4839 = vpow.pop %v4838
        %v4840 = vmul.f32 %v4534, 1.442695
        %v4841 = vpow.pop %v4840
        %v4842 = vmul.f32 %v4541, 1.442695
        %v4843 = vpow.pop %v4842
        %v4844 = vmul.f32 %v4548, 1.442695
        %v4845 = vpow.pop %v4844
        %v4846 = vmul.f32 %v4555, 1.442695
        %v4847 = vpow.pop %v4846
        %v4848 = vmul.f32 %v4562, 1.442695
        %v4849 = vpow.pop %v4848
        %v4850 = vmul.f32 %v4569, 1.442695
        %v4851 = vpow.pop %v4850
        %v4852 = vmul.f32 %v4576, 1.442695
        %v4853 = vpow.pop %v4852
        %v4854 = vmul.f32 %v4583, 1.442695
        %v4855 = vpow.pop %v4854
        %v4856 = vmul.f32 %v4590, 1.442695
        %v4857 = vpow.pop %v4856
        %v4858 = vmul.f32 %v4597, 1.442695
        %v4859 = vpow.pop %v4858
        %v4860 = vmul.f32 %v4604, 1.442695
        %v4861 = vpow.pop %v4860
        %v4862 = vmul.f32 %v4611, 1.442695
        %v4863 = vpow.pop %v4862
        %v4864 = vmul.f32 %v4618, 1.442695
        %v4865 = vpow.pop %v4864
        %v4866 = vmul.f32 %v4625, 1.442695
        %v4867 = vpow.pop %v4866
        %v4868 = vmul.f32 %v4632, 1.442695
        %v4869 = vpow.pop %v4868
        %v4870 = vmul.f32 %v4639, 1.442695
        %v4871 = vpow.pop %v4870
        %v4872 = vmul.f32 %v4646, 1.442695
        %v4873 = vpow.pop %v4872
        %v4874 = vmul.f32 %v4653, 1.442695
        %v4875 = vpow.pop %v4874
        %v4876 = vmul.f32 %v4660, 1.442695
        %v4877 = vpow.pop %v4876
        %v4878 = vmul.f32 %v4667, 1.442695
        %v4879 = vpow.pop %v4878
        %v4880 = vmul.f32 %v4674, 1.442695
        %v4881 = vpow.pop %v4880
        %v4882 = vmul.f32 %v4681, 1.442695
        %v4883 = vpow.pop %v4882
        %v4884 = vmul.f32 %v4688, 1.442695
        %v4885 = vpow.pop %v4884
        %v4886 = vmul.f32 %v4695, 1.442695
        %v4887 = vpow.pop %v4886
        %v4888 = vsub.f32 %v4761, 1.0
        %v4889 = vsub.f32 %v4763, 1.0
        %v4890 = vsub.f32 %v4765, 1.0
        %v4891 = vsub.f32 %v4767, 1.0
        %v4892 = vsub.f32 %v4769, 1.0
        %v4893 = vsub.f32 %v4771, 1.0
        %v4894 = vsub.f32 %v4773, 1.0
        %v4895 = vsub.f32 %v4775, 1.0
        %v4896 = vsub.f32 %v4777, 1.0
        %v4897 = vsub.f32 %v4779, 1.0
        %v4898 = vsub.f32 %v4781, 1.0
        %v4899 = vsub.f32 %v4783, 1.0
        %v4900 = vsub.f32 %v4785, 1.0
        %v4901 = vsub.f32 %v4787, 1.0
        %v4902 = vsub.f32 %v4789, 1.0
        %v4903 = vsub.f32 %v4791, 1.0
        %v4904 = vsub.f32 %v4793, 1.0
        %v4905 = vsub.f32 %v4795, 1.0
        %v4906 = vsub.f32 %v4797, 1.0
        %v4907 = vsub.f32 %v4799, 1.0
        %v4908 = vsub.f32 %v4801, 1.0
        %v4909 = vsub.f32 %v4803, 1.0
        %v4910 = vsub.f32 %v4805, 1.0
        %v4911 = vsub.f32 %v4807, 1.0
        %v4912 = vsub.f32 %v4809, 1.0
        %v4913 = vsub.f32 %v4811, 1.0
        %v4914 = vsub.f32 %v4813, 1.0
        %v4915 = vsub.f32 %v4815, 1.0
        %v4916 = vsub.f32 %v4817, 1.0
        %v4917 = vsub.f32 %v4819, 1.0
        %v4918 = vsub.f32 %v4821, 1.0
        %v4919 = vsub.f32 %v4823, 1.0
        %v4920 = vsub.f32 %v4825, 1.0
        %v4921 = vsub.f32 %v4827, 1.0
        %v4922 = vsub.f32 %v4829, 1.0
        %v4923 = vsub.f32 %v4831, 1.0
        %v4924 = vsub.f32 %v4833, 1.0
        %v4925 = vsub.f32 %v4835, 1.0
        %v4926 = vsub.f32 %v4837, 1.0
        %v4927 = vsub.f32 %v4839, 1.0
        %v4928 = vsub.f32 %v4841, 1.0
        %v4929 = vsub.f32 %v4843, 1.0
        %v4930 = vsub.f32 %v4845, 1.0
        %v4931 = vsub.f32 %v4847, 1.0
        %v4932 = vsub.f32 %v4849, 1.0
        %v4933 = vsub.f32 %v4851, 1.0
        %v4934 = vsub.f32 %v4853, 1.0
        %v4935 = vsub.f32 %v4855, 1.0
        %v4936 = vsub.f32 %v4857, 1.0
        %v4937 = vsub.f32 %v4859, 1.0
        %v4938 = vsub.f32 %v4861, 1.0
        %v4939 = vsub.f32 %v4863, 1.0
        %v4940 = vsub.f32 %v4865, 1.0
        %v4941 = vsub.f32 %v4867, 1.0
        %v4942 = vsub.f32 %v4869, 1.0
        %v4943 = vsub.f32 %v4871, 1.0
        %v4944 = vsub.f32 %v4873, 1.0
        %v4945 = vsub.f32 %v4875, 1.0
        %v4946 = vsub.f32 %v4877, 1.0
        %v4947 = vsub.f32 %v4879, 1.0
        %v4948 = vsub.f32 %v4881, 1.0
        %v4949 = vsub.f32 %v4883, 1.0
        %v4950 = vsub.f32 %v4885, 1.0
        %v4951 = vsub.f32 %v4887, 1.0
        %v4952 = vsel %vm4696, %v4254, %v4888
        %v4953 = vsel %vm4697, %v4261, %v4889
        %v4954 = vsel %vm4698, %v4268, %v4890
        %v4955 = vsel %vm4699, %v4275, %v4891
        %v4956 = vsel %vm4700, %v4282, %v4892
        %v4957 = vsel %vm4701, %v4289, %v4893
        %v4958 = vsel %vm4702, %v4296, %v4894
        %v4959 = vsel %vm4703, %v4303, %v4895
        %v4960 = vsel %vm4704, %v4310, %v4896
        %v4961 = vsel %vm4705, %v4317, %v4897
        %v4962 = vsel %vm4706, %v4324, %v4898
        %v4963 = vsel %vm4707, %v4331, %v4899
        %v4964 = vsel %vm4708, %v4338, %v4900
        %v4965 = vsel %vm4709, %v4345, %v4901
        %v4966 = vsel %vm4710, %v4352, %v4902
        %v4967 = vsel %vm4711, %v4359, %v4903
        %v4968 = vsel %vm4712, %v4366, %v4904
        %v4969 = vsel %vm4713, %v4373, %v4905
        %v4970 = vsel %vm4714, %v4380, %v4906
        %v4971 = vsel %vm4715, %v4387, %v4907
        %v4972 = vsel %vm4716, %v4394, %v4908
        %v4973 = vsel %vm4717, %v4401, %v4909
        %v4974 = vsel %vm4718, %v4408, %v4910
        %v4975 = vsel %vm4719, %v4415, %v4911
        %v4976 = vsel %vm4720, %v4422, %v4912
        %v4977 = vsel %vm4721, %v4429, %v4913
        %v4978 = vsel %vm4722, %v4436, %v4914
        %v4979 = vsel %vm4723, %v4443, %v4915
        %v4980 = vsel %vm4724, %v4450, %v4916
        %v4981 = vsel %vm4725, %v4457, %v4917
        %v4982 = vsel %vm4726, %v4464, %v4918
        %v4983 = vsel %vm4727, %v4471, %v4919
        %v4984 = vsel %vm4728, %v4478, %v4920
        %v4985 = vsel %vm4729, %v4485, %v4921
        %v4986 = vsel %vm4730, %v4492, %v4922
        %v4987 = vsel %vm4731, %v4499, %v4923
        %v4988 = vsel %vm4732, %v4506, %v4924
        %v4989 = vsel %vm4733, %v4513, %v4925
        %v4990 = vsel %vm4734, %v4520, %v4926
        %v4991 = vsel %vm4735, %v4527, %v4927
        %v4992 = vsel %vm4736, %v4534, %v4928
        %v4993 = vsel %vm4737, %v4541, %v4929
        %v4994 = vsel %vm4738, %v4548, %v4930
        %v4995 = vsel %vm4739, %v4555, %v4931
        %v4996 = vsel %vm4740, %v4562, %v4932
        %v4997 = vsel %vm4741, %v4569, %v4933
        %v4998 = vsel %vm4742, %v4576, %v4934
        %v4999 = vsel %vm4743, %v4583, %v4935
        %v5000 = vsel %vm4744, %v4590, %v4936
        %v5001 = vsel %vm4745, %v4597, %v4937
        %v5002 = vsel %vm4746, %v4604, %v4938
        %v5003 = vsel %vm4747, %v4611, %v4939
        %v5004 = vsel %vm4748, %v4618, %v4940
        %v5005 = vsel %vm4749, %v4625, %v4941
        %v5006 = vsel %vm4750, %v4632, %v4942
        %v5007 = vsel %vm4751, %v4639, %v4943
        %v5008 = vsel %vm4752, %v4646, %v4944
        %v5009 = vsel %vm4753, %v4653, %v4945
        %v5010 = vsel %vm4754, %v4660, %v4946
        %v5011 = vsel %vm4755, %v4667, %v4947
        %v5012 = vsel %vm4756, %v4674, %v4948
        %v5013 = vsel %vm4757, %v4681, %v4949
        %v5014 = vsel %vm4758, %v4688, %v4950
        %v5015 = vsel %vm4759, %v4695, %v4951
        %v5016 = vld [vmem:[%s3 + $0xa8] sm:$0xff]
        %v5017 = vld [vmem:[%s3 + $0xb0] sm:$0xff]
        %v5018 = vld [vmem:[%s3 + $0xb8] sm:$0xff]
        %v5019 = vld [vmem:[%s3 + $0xc0] sm:$0xff]
        %v5020 = vld [vmem:[%s3 + $0xc8] sm:$0xff]
        %v5021 = vld [vmem:[%s3 + $0xd0] sm:$0xff]
        %v5022 = vld [vmem:[%s3 + $0xd8] sm:$0xff]
        %v5023 = vld [vmem:[%s3 + $0xe0] sm:$0xff]
        %v5024 = vld [vmem:[%s3 + $0xe8] sm:$0x1]
        %v5089 = vsel %vm2927, %v4953, %v4952
        %v5090 = vsel %vm2929, %v4954, %v5089
        %v5091 = vsel %vm2931, %v4955, %v5090
        %v5092 = vsel %vm2933, %v4956, %v5091
        %v5093 = vsel %vm2935, %v4957, %v5092
        %v5094 = vsel %vm2937, %v4958, %v5093
        %v5095 = vsel %vm2939, %v4959, %v5094
        %v5096 = vsel %vm2927, %v4961, %v4960
        %v5097 = vsel %vm2929, %v4962, %v5096
        %v5098 = vsel %vm2931, %v4963, %v5097
        %v5099 = vsel %vm2933, %v4964, %v5098
        %v5100 = vsel %vm2935, %v4965, %v5099
        %v5101 = vsel %vm2937, %v4966, %v5100
        %v5102 = vsel %vm2939, %v4967, %v5101
        %v5103 = vsel %vm2927, %v4969, %v4968
        %v5104 = vsel %vm2929, %v4970, %v5103
        %v5105 = vsel %vm2931, %v4971, %v5104
        %v5106 = vsel %vm2933, %v4972, %v5105
        %v5107 = vsel %vm2935, %v4973, %v5106
        %v5108 = vsel %vm2937, %v4974, %v5107
        %v5109 = vsel %vm2939, %v4975, %v5108
        %v5110 = vsel %vm2927, %v4977, %v4976
        %v5111 = vsel %vm2929, %v4978, %v5110
        %v5112 = vsel %vm2931, %v4979, %v5111
        %v5113 = vsel %vm2933, %v4980, %v5112
        %v5114 = vsel %vm2935, %v4981, %v5113
        %v5115 = vsel %vm2937, %v4982, %v5114
        %v5116 = vsel %vm2939, %v4983, %v5115
        %v5117 = vsel %vm2927, %v4985, %v4984
        %v5118 = vsel %vm2929, %v4986, %v5117
        %v5119 = vsel %vm2931, %v4987, %v5118
        %v5120 = vsel %vm2933, %v4988, %v5119
        %v5121 = vsel %vm2935, %v4989, %v5120
        %v5122 = vsel %vm2937, %v4990, %v5121
        %v5123 = vsel %vm2939, %v4991, %v5122
        %v5124 = vsel %vm2927, %v4993, %v4992
        %v5125 = vsel %vm2929, %v4994, %v5124
        %v5126 = vsel %vm2931, %v4995, %v5125
        %v5127 = vsel %vm2933, %v4996, %v5126
        %v5128 = vsel %vm2935, %v4997, %v5127
        %v5129 = vsel %vm2937, %v4998, %v5128
        %v5130 = vsel %vm2939, %v4999, %v5129
        %v5131 = vsel %vm2927, %v5001, %v5000
        %v5132 = vsel %vm2929, %v5002, %v5131
        %v5133 = vsel %vm2931, %v5003, %v5132
        %v5134 = vsel %vm2933, %v5004, %v5133
        %v5135 = vsel %vm2935, %v5005, %v5134
        %v5136 = vsel %vm2937, %v5006, %v5135
        %v5137 = vsel %vm2939, %v5007, %v5136
        %v5138 = vsel %vm2927, %v5009, %v5008
        %v5139 = vsel %vm2929, %v5010, %v5138
        %v5140 = vsel %vm2931, %v5011, %v5139
        %v5141 = vsel %vm2933, %v5012, %v5140
        %v5142 = vsel %vm2935, %v5013, %v5141
        %v5143 = vsel %vm2937, %v5014, %v5142
        %v5144 = vsel %vm2939, %v5015, %v5143
        %5153 = vrot.lane.b32.xlu0 %v475, 32
        %v5154 = vpop.permute.xlu0 %5153
        %5155 = vrot.lane.b32.xlu0 %v476, 32
        %v5156 = vpop.permute.xlu0 %5155
        %5157 = vrot.lane.b32.xlu0 %v477, 32
        %v5158 = vpop.permute.xlu0 %5157
        %5159 = vrot.lane.b32.xlu0 %v478, 32
        %v5160 = vpop.permute.xlu0 %5159
        %5161 = vrot.lane.b32.xlu0 %v479, 32
        %v5162 = vpop.permute.xlu0 %5161
        %5163 = vrot.lane.b32.xlu0 %v480, 32
        %v5164 = vpop.permute.xlu0 %5163
        %5165 = vrot.lane.b32.xlu0 %v481, 32
        %v5166 = vpop.permute.xlu0 %5165
        %5167 = vrot.lane.b32.xlu0 %v482, 32
        %v5168 = vpop.permute.xlu0 %5167
        %v5177 = vsel %vm1263, %v5095, %v5154
        %v5178 = vsel %vm1263, %v5102, %v5156
        %v5179 = vsel %vm1263, %v5109, %v5158
        %v5180 = vsel %vm1263, %v5116, %v5160
        %v5181 = vsel %vm1263, %v5123, %v5162
        %v5182 = vsel %vm1263, %v5130, %v5164
        %v5183 = vsel %vm1263, %v5137, %v5166
        %v5184 = vsel %vm1263, %v5144, %v5168
        %v5185 = vlaneseq
        %v5186 = vshrl.u32 %v5185, 7
        %v5187 = vsub.s32 0, %v5186
        %v5188 = vrot.slane %v5024, %v5187
        %vm5189 = vcmask 523264
        %v5191 = vsel %vm5189, %v5177, 0
        %v5194 = vsel %vm5189, %v5178, 0
        %v5197 = vsel %vm5189, %v5179, 0
        %v5200 = vsel %vm5189, %v5180, 0
        %v5203 = vsel %vm5189, %v5181, 0
        %v5206 = vsel %vm5189, %v5182, 0
        %v5209 = vsel %vm5189, %v5183, 0
        %v5212 = vsel %vm5189, %v5184, 0
        %5214 = vmatprep.subr.mxu0 0.0
        %5215 = vmatpush1.msra.mxu0 %v5016
        %5216 = vmatprep.subr.mxu0 0.0
        %5217 = vmatpush1.msra.mxu0 %v5017
        %5218 = vmatprep.subr.mxu0 0.0
        %5219 = vmatpush1.msra.mxu0 %v5018
        %5220 = vmatprep.subr.mxu0 0.0
        %5221 = vmatpush1.msra.mxu0 %v5019
        %5222 = vmatprep.subr.mxu0 0.0
        %5223 = vmatpush1.msra.mxu0 %v5020
        %5224 = vmatprep.subr.mxu0 0.0
        %5225 = vmatpush1.msra.mxu0 %v5021
        %5226 = vmatprep.subr.mxu0 0.0
        %5227 = vmatpush1.msra.mxu0 %v5022
        %5228 = vmatprep.subr.mxu0 0.0
        %5229 = vmatpush1.msra.mxu0 %v5023
        %5230 = vmatprep.subr.mxu0 0.0
        %5231 = vmatpush1.msra.mxu0 0.0
        %5232 = vmatprep.subr.mxu0 0.0
        %5233 = vmatpush1.msra.mxu0 0.0
        %5234 = vmatprep.subr.mxu0 0.0
        %5235 = vmatpush1.msra.mxu0 0.0
        %5236 = vmatprep.subr.mxu0 0.0
        %5237 = vmatpush1.msra.mxu0 0.0
        %5238 = vmatprep.subr.mxu0 0.0
        %5239 = vmatpush1.msra.mxu0 0.0
        %5240 = vmatprep.subr.mxu0 0.0
        %5241 = vmatpush1.msra.mxu0 0.0
        %5242 = vmatprep.subr.mxu0 0.0
        %5243 = vmatpush1.msra.mxu0 0.0
        %5244 = vmatprep.subr.mxu0 0.0
        %5245 = vmatpush1.msra.mxu0 0.0
        %5246 = vmatprep.subr.mxu0 0.0
        %5247 = vmatpush1.msra.mxu0 0.0
        %5248 = vmatprep.subr.mxu0 0.0
        %5249 = vmatpush1.msra.mxu0 0.0
        %5250 = vmatprep.subr.mxu0 0.0
        %5251 = vmatpush1.msra.mxu0 0.0
        %5252 = vmatprep.subr.mxu0 0.0
        %5253 = vmatpush1.msra.mxu0 0.0
        %5254 = vmatprep.subr.mxu0 0.0
        %5255 = vmatpush1.msra.mxu0 0.0
        %5256 = vmatprep.subr.mxu0 0.0
        %5257 = vmatpush1.msra.mxu0 0.0
        %5258 = vmatprep.subr.mxu0 0.0
        %5259 = vmatpush1.msra.mxu0 0.0
        %5260 = vmatprep.subr.mxu0 0.0
        %5261 = vmatpush1.msra.mxu0 0.0
        %5262 = vmatprep.subr.mxu0 0.0
        %5263 = vmatpush1.msra.mxu0 0.0
        %5264 = vmatprep.subr.mxu0 0.0
        %5265 = vmatpush1.msra.mxu0 0.0
        %5266 = vmatprep.subr.mxu0 0.0
        %5267 = vmatpush1.msra.mxu0 0.0
        %5268 = vmatprep.subr.mxu0 0.0
        %5269 = vmatpush1.msra.mxu0 0.0
        %5270 = vmatprep.subr.mxu0 0.0
        %5271 = vmatpush1.msra.mxu0 0.0
        %5272 = vmatprep.subr.mxu0 0.0
        %5273 = vmatpush1.msra.mxu0 0.0
        %5274 = vmatprep.subr.mxu0 0.0
        %5275 = vmatpush1.msra.mxu0 0.0
        %5276 = vmatprep.subr.mxu0 0.0
        %5277 = vmatpush1.msra.mxu0 0.0
        %5278 = vmatprep.mubr.f32.mxu0 0.0
        %5279 = vmatmul.mubr.f32.gmra.mrb[0].mxu0 %v5191
        %v5280 = vpop.f32.mrb[0].mxu0
        %v5281 = vadd.f32 %v5188, %v5280
        %v5282 = vpop.f32.mrb[0].mxu0
        %5283 = vmatprep.mubr.f32.mxu0 0.0
        %5284 = vmatmul.mubr.f32.gmra.mrb[0].mxu0 %v5194
        %v5285 = vpop.f32.mrb[0].mxu0
        %v5286 = vadd.f32 %v5188, %v5285
        %v5287 = vpop.f32.mrb[0].mxu0
        %5288 = vmatprep.mubr.f32.mxu0 0.0
        %5289 = vmatmul.mubr.f32.gmra.mrb[0].mxu0 %v5197
        %v5290 = vpop.f32.mrb[0].mxu0
        %v5291 = vadd.f32 %v5188, %v5290
        %v5292 = vpop.f32.mrb[0].mxu0
        %5293 = vmatprep.mubr.f32.mxu0 0.0
        %5294 = vmatmul.mubr.f32.gmra.mrb[0].mxu0 %v5200
        %v5295 = vpop.f32.mrb[0].mxu0
        %v5296 = vadd.f32 %v5188, %v5295
        %v5297 = vpop.f32.mrb[0].mxu0
        %5298 = vmatprep.mubr.f32.mxu0 0.0
        %5299 = vmatmul.mubr.f32.gmra.mrb[0].mxu0 %v5203
        %v5300 = vpop.f32.mrb[0].mxu0
        %v5301 = vadd.f32 %v5188, %v5300
        %v5302 = vpop.f32.mrb[0].mxu0
        %5303 = vmatprep.mubr.f32.mxu0 0.0
        %5304 = vmatmul.mubr.f32.gmra.mrb[0].mxu0 %v5206
        %v5305 = vpop.f32.mrb[0].mxu0
        %v5306 = vadd.f32 %v5188, %v5305
        %v5307 = vpop.f32.mrb[0].mxu0
        %5308 = vmatprep.mubr.f32.mxu0 0.0
        %5309 = vmatmul.mubr.f32.gmra.mrb[0].mxu0 %v5209
        %v5310 = vpop.f32.mrb[0].mxu0
        %v5311 = vadd.f32 %v5188, %v5310
        %v5312 = vpop.f32.mrb[0].mxu0
        %5313 = vmatprep.mubr.f32.mxu0 0.0
        %5314 = vmatmul.mubr.f32.gmra.mrb[0].mxu0 %v5212
        %v5315 = vpop.f32.mrb[0].mxu0
        %v5316 = vadd.f32 %v5188, %v5315
        %v5317 = vpop.f32.mrb[0].mxu0
        %5318 = vdwg.mxu0
        %v5319 = vxor.u32 %v5281, 2147483648
        %v5320 = vxor.u32 %v5286, 2147483648
        %v5321 = vxor.u32 %v5291, 2147483648
        %v5322 = vxor.u32 %v5296, 2147483648
        %v5323 = vxor.u32 %v5301, 2147483648
        %v5324 = vxor.u32 %v5306, 2147483648
        %v5325 = vxor.u32 %v5311, 2147483648
        %v5326 = vxor.u32 %v5316, 2147483648
        %v5327 = vmul.f32 %v5319, 1.442695
        %v5328 = vpow.pop %v5327
        %v5329 = vmul.f32 %v5320, 1.442695
        %v5330 = vpow.pop %v5329
        %v5331 = vmul.f32 %v5321, 1.442695
        %v5332 = vpow.pop %v5331
        %v5333 = vmul.f32 %v5322, 1.442695
        %v5334 = vpow.pop %v5333
        %v5335 = vmul.f32 %v5323, 1.442695
        %v5336 = vpow.pop %v5335
        %v5337 = vmul.f32 %v5324, 1.442695
        %v5338 = vpow.pop %v5337
        %v5339 = vmul.f32 %v5325, 1.442695
        %v5340 = vpow.pop %v5339
        %v5341 = vmul.f32 %v5326, 1.442695
        %v5342 = vpow.pop %v5341
        %v5343 = vadd.f32 %v5328, 1.0
        %v5344 = vadd.f32 %v5330, 1.0
        %v5345 = vadd.f32 %v5332, 1.0
        %v5346 = vadd.f32 %v5334, 1.0
        %v5347 = vadd.f32 %v5336, 1.0
        %v5348 = vadd.f32 %v5338, 1.0
        %v5349 = vadd.f32 %v5340, 1.0
        %v5350 = vadd.f32 %v5342, 1.0
        %v5351 = vrcp.pop %v5343
        %v5352 = vmul.f32 1.0, %v5351
        %v5353 = vrcp.pop %v5344
        %v5354 = vmul.f32 1.0, %v5353
        %v5355 = vrcp.pop %v5345
        %v5356 = vmul.f32 1.0, %v5355
        %v5357 = vrcp.pop %v5346
        %v5358 = vmul.f32 1.0, %v5357
        %v5359 = vrcp.pop %v5347
        %v5360 = vmul.f32 1.0, %v5359
        %v5361 = vrcp.pop %v5348
        %v5362 = vmul.f32 1.0, %v5361
        %v5363 = vrcp.pop %v5349
        %v5364 = vmul.f32 1.0, %v5363
        %v5365 = vrcp.pop %v5350
        %v5366 = vmul.f32 1.0, %v5365
        %5375 = vrot.lane.b32.xlu0 %v5281, 32
        %v5376 = vpop.permute.xlu0 %5375
        %5377 = vrot.lane.b32.xlu0 %v5286, 32
        %v5378 = vpop.permute.xlu0 %5377
        %5379 = vrot.lane.b32.xlu0 %v5291, 32
        %v5380 = vpop.permute.xlu0 %5379
        %5381 = vrot.lane.b32.xlu0 %v5296, 32
        %v5382 = vpop.permute.xlu0 %5381
        %5383 = vrot.lane.b32.xlu0 %v5301, 32
        %v5384 = vpop.permute.xlu0 %5383
        %5385 = vrot.lane.b32.xlu0 %v5306, 32
        %v5386 = vpop.permute.xlu0 %5385
        %5387 = vrot.lane.b32.xlu0 %v5311, 32
        %v5388 = vpop.permute.xlu0 %5387
        %5389 = vrot.lane.b32.xlu0 %v5316, 32
        %v5390 = vpop.permute.xlu0 %5389
        %v5399 = vmul.f32 %v5352, %v5376
        %v5400 = vmul.f32 %v5354, %v5378
        %v5401 = vmul.f32 %v5356, %v5380
        %v5402 = vmul.f32 %v5358, %v5382
        %v5403 = vmul.f32 %v5360, %v5384
        %v5404 = vmul.f32 %v5362, %v5386
        %v5405 = vmul.f32 %v5364, %v5388
        %v5406 = vmul.f32 %v5366, %v5390
        %5415 = vrot.lane.b32.xlu0 %v5399, 64
        %v5416 = vpop.permute.xlu0 %5415
        %5417 = vrot.lane.b32.xlu0 %v5400, 64
        %v5418 = vpop.permute.xlu0 %5417
        %5419 = vrot.lane.b32.xlu0 %v5401, 64
        %v5420 = vpop.permute.xlu0 %5419
        %5421 = vrot.lane.b32.xlu0 %v5402, 64
        %v5422 = vpop.permute.xlu0 %5421
        %5423 = vrot.lane.b32.xlu0 %v5403, 64
        %v5424 = vpop.permute.xlu0 %5423
        %5425 = vrot.lane.b32.xlu0 %v5404, 64
        %v5426 = vpop.permute.xlu0 %5425
        %5427 = vrot.lane.b32.xlu0 %v5405, 64
        %v5428 = vpop.permute.xlu0 %5427
        %5429 = vrot.lane.b32.xlu0 %v5406, 64
        %v5430 = vpop.permute.xlu0 %5429
        %v5439 = vadd.f32 %v5281, %v5416
        %v5440 = vadd.f32 %v5286, %v5418
        %v5441 = vadd.f32 %v5291, %v5420
        %v5442 = vadd.f32 %v5296, %v5422
        %v5443 = vadd.f32 %v5301, %v5424
        %v5444 = vadd.f32 %v5306, %v5426
        %v5445 = vadd.f32 %v5311, %v5428
        %v5446 = vadd.f32 %v5316, %v5430
        %v5447 = vtanh.pop %v5439
        %v5448 = vtanh.pop %v5440
        %v5449 = vtanh.pop %v5441
        %v5450 = vtanh.pop %v5442
        %v5451 = vtanh.pop %v5443
        %v5452 = vtanh.pop %v5444
        %v5453 = vtanh.pop %v5445
        %v5454 = vtanh.pop %v5446
        %v5455 = vsub.f32 1.0, %v5352
        %v5456 = vsub.f32 1.0, %v5354
        %v5457 = vsub.f32 1.0, %v5356
        %v5458 = vsub.f32 1.0, %v5358
        %v5459 = vsub.f32 1.0, %v5360
        %v5460 = vsub.f32 1.0, %v5362
        %v5461 = vsub.f32 1.0, %v5364
        %v5462 = vsub.f32 1.0, %v5366
        %5471 = vrot.lane.b32.xlu0 %v5447, 96
        %v5472 = vpop.permute.xlu0 %5471
        %5473 = vrot.lane.b32.xlu0 %v5448, 96
        %v5474 = vpop.permute.xlu0 %5473
        %5475 = vrot.lane.b32.xlu0 %v5449, 96
        %v5476 = vpop.permute.xlu0 %5475
        %5477 = vrot.lane.b32.xlu0 %v5450, 96
        %v5478 = vpop.permute.xlu0 %5477
        %5479 = vrot.lane.b32.xlu0 %v5451, 96
        %v5480 = vpop.permute.xlu0 %5479
        %5481 = vrot.lane.b32.xlu0 %v5452, 96
        %v5482 = vpop.permute.xlu0 %5481
        %5483 = vrot.lane.b32.xlu0 %v5453, 96
        %v5484 = vpop.permute.xlu0 %5483
        %5485 = vrot.lane.b32.xlu0 %v5454, 96
        %v5486 = vpop.permute.xlu0 %5485
        %v5495 = vmul.f32 %v5455, %v5472
        %v5496 = vmul.f32 %v5456, %v5474
        %v5497 = vmul.f32 %v5457, %v5476
        %v5498 = vmul.f32 %v5458, %v5478
        %v5499 = vmul.f32 %v5459, %v5480
        %v5500 = vmul.f32 %v5460, %v5482
        %v5501 = vmul.f32 %v5461, %v5484
        %v5502 = vmul.f32 %v5462, %v5486
        %v5503 = vmul.f32 %v5352, %v5154
        %v5504 = vmul.f32 %v5354, %v5156
        %v5505 = vmul.f32 %v5356, %v5158
        %v5506 = vmul.f32 %v5358, %v5160
        %v5507 = vmul.f32 %v5360, %v5162
        %v5508 = vmul.f32 %v5362, %v5164
        %v5509 = vmul.f32 %v5364, %v5166
        %v5510 = vmul.f32 %v5366, %v5168
        %v5511 = vadd.f32 %v5495, %v5503
        %v5512 = vadd.f32 %v5496, %v5504
        %v5513 = vadd.f32 %v5497, %v5505
        %v5514 = vadd.f32 %v5498, %v5506
        %v5515 = vadd.f32 %v5499, %v5507
        %v5516 = vadd.f32 %v5500, %v5508
        %v5517 = vadd.f32 %v5501, %v5509
        %v5518 = vadd.f32 %v5502, %v5510
        %v5519 = vld [vmem:[%s3 + $0xf0] sm:$0xff]
        %v5520 = vld [vmem:[%s3 + $0xf8] sm:$0xff]
        %v5521 = vld [vmem:[%s3 + $0x100] sm:$0xff]
        %v5522 = vld [vmem:[%s3 + $0x108] sm:$0xff]
        %v5523 = vld [vmem:[%s3 + $0x110] sm:$0x1]
        %v5524 = vlaneseq
        %v5525 = vshrl.u32 %v5524, 7
        %v5526 = vsub.s32 0, %v5525
        %v5527 = vrot.slane %v5523, %v5526
        %5536 = vrot.lane.b32.xlu0 %v5511, 96
        %v5537 = vpop.permute.xlu0 %5536
        %5538 = vrot.lane.b32.xlu0 %v5512, 96
        %v5539 = vpop.permute.xlu0 %5538
        %5540 = vrot.lane.b32.xlu0 %v5513, 96
        %v5541 = vpop.permute.xlu0 %5540
        %5542 = vrot.lane.b32.xlu0 %v5514, 96
        %v5543 = vpop.permute.xlu0 %5542
        %5544 = vrot.lane.b32.xlu0 %v5515, 96
        %v5545 = vpop.permute.xlu0 %5544
        %5546 = vrot.lane.b32.xlu0 %v5516, 96
        %v5547 = vpop.permute.xlu0 %5546
        %5548 = vrot.lane.b32.xlu0 %v5517, 96
        %v5549 = vpop.permute.xlu0 %5548
        %5550 = vrot.lane.b32.xlu0 %v5518, 96
        %v5551 = vpop.permute.xlu0 %5550
        %v5552 = vsel %vm1263, %v5537, 0
        %v5554 = vsel %vm1263, %v5539, 0
        %v5556 = vsel %vm1263, %v5541, 0
        %v5558 = vsel %vm1263, %v5543, 0
        %v5560 = vsel %vm1263, %v5545, 0
        %v5562 = vsel %vm1263, %v5547, 0
        %v5564 = vsel %vm1263, %v5549, 0
        %v5566 = vsel %vm1263, %v5551, 0
        %5568 = vmatprep.subr.mxu0 0.0
        %5569 = vmatpush1.msra.mxu0 %v5519
        %5570 = vmatprep.subr.mxu0 0.0
        %5571 = vmatpush1.msra.mxu0 %v5520
        %5572 = vmatprep.subr.mxu0 0.0
        %5573 = vmatpush1.msra.mxu0 %v5521
        %5574 = vmatprep.subr.mxu0 0.0
        %5575 = vmatpush1.msra.mxu0 %v5522
        %5576 = vmatprep.subr.mxu0 0.0
        %5577 = vmatpush1.msra.mxu0 0.0
        %5578 = vmatprep.subr.mxu0 0.0
        %5579 = vmatpush1.msra.mxu0 0.0
        %5580 = vmatprep.subr.mxu0 0.0
        %5581 = vmatpush1.msra.mxu0 0.0
        %5582 = vmatprep.subr.mxu0 0.0
        %5583 = vmatpush1.msra.mxu0 0.0
        %5584 = vmatprep.subr.mxu0 0.0
        %5585 = vmatpush1.msra.mxu0 0.0
        %5586 = vmatprep.subr.mxu0 0.0
        %5587 = vmatpush1.msra.mxu0 0.0
        %5588 = vmatprep.subr.mxu0 0.0
        %5589 = vmatpush1.msra.mxu0 0.0
        %5590 = vmatprep.subr.mxu0 0.0
        %5591 = vmatpush1.msra.mxu0 0.0
        %5592 = vmatprep.subr.mxu0 0.0
        %5593 = vmatpush1.msra.mxu0 0.0
        %5594 = vmatprep.subr.mxu0 0.0
        %5595 = vmatpush1.msra.mxu0 0.0
        %5596 = vmatprep.subr.mxu0 0.0
        %5597 = vmatpush1.msra.mxu0 0.0
        %5598 = vmatprep.subr.mxu0 0.0
        %5599 = vmatpush1.msra.mxu0 0.0
        %5600 = vmatprep.subr.mxu0 0.0
        %5601 = vmatpush1.msra.mxu0 0.0
        %5602 = vmatprep.subr.mxu0 0.0
        %5603 = vmatpush1.msra.mxu0 0.0
        %5604 = vmatprep.subr.mxu0 0.0
        %5605 = vmatpush1.msra.mxu0 0.0
        %5606 = vmatprep.subr.mxu0 0.0
        %5607 = vmatpush1.msra.mxu0 0.0
        %5608 = vmatprep.subr.mxu0 0.0
        %5609 = vmatpush1.msra.mxu0 0.0
        %5610 = vmatprep.subr.mxu0 0.0
        %5611 = vmatpush1.msra.mxu0 0.0
        %5612 = vmatprep.subr.mxu0 0.0
        %5613 = vmatpush1.msra.mxu0 0.0
        %5614 = vmatprep.subr.mxu0 0.0
        %5615 = vmatpush1.msra.mxu0 0.0
        %5616 = vmatprep.subr.mxu0 0.0
        %5617 = vmatpush1.msra.mxu0 0.0
        %5618 = vmatprep.subr.mxu0 0.0
        %5619 = vmatpush1.msra.mxu0 0.0
        %5620 = vmatprep.subr.mxu0 0.0
        %5621 = vmatpush1.msra.mxu0 0.0
        %5622 = vmatprep.subr.mxu0 0.0
        %5623 = vmatpush1.msra.mxu0 0.0
        %5624 = vmatprep.subr.mxu0 0.0
        %5625 = vmatpush1.msra.mxu0 0.0
        %5626 = vmatprep.subr.mxu0 0.0
        %5627 = vmatpush1.msra.mxu0 0.0
        %5628 = vmatprep.subr.mxu0 0.0
        %5629 = vmatpush1.msra.mxu0 0.0
        %5630 = vmatprep.subr.mxu0 0.0
        %5631 = vmatpush1.msra.mxu0 0.0
        %5632 = vmatprep.mubr.f32.mxu0 0.0
        %5633 = vmatmul.mubr.f32.gmra.mrb[0].mxu0 %v5552
        %v5634 = vpop.f32.mrb[0].mxu0
        %v5635 = vadd.f32 %v5527, %v5634
        %v5636 = vpop.f32.mrb[0].mxu0
        %5637 = vmatprep.mubr.f32.mxu0 0.0
        %5638 = vmatmul.mubr.f32.gmra.mrb[0].mxu0 %v5554
        %v5639 = vpop.f32.mrb[0].mxu0
        %v5640 = vadd.f32 %v5527, %v5639
        %v5641 = vpop.f32.mrb[0].mxu0
        %5642 = vmatprep.mubr.f32.mxu0 0.0
        %5643 = vmatmul.mubr.f32.gmra.mrb[0].mxu0 %v5556
        %v5644 = vpop.f32.mrb[0].mxu0
        %v5645 = vadd.f32 %v5527, %v5644
        %v5646 = vpop.f32.mrb[0].mxu0
        %5647 = vmatprep.mubr.f32.mxu0 0.0
        %5648 = vmatmul.mubr.f32.gmra.mrb[0].mxu0 %v5558
        %v5649 = vpop.f32.mrb[0].mxu0
        %v5650 = vadd.f32 %v5527, %v5649
        %v5651 = vpop.f32.mrb[0].mxu0
        %5652 = vmatprep.mubr.f32.mxu0 0.0
        %5653 = vmatmul.mubr.f32.gmra.mrb[0].mxu0 %v5560
        %v5654 = vpop.f32.mrb[0].mxu0
        %v5655 = vadd.f32 %v5527, %v5654
        %v5656 = vpop.f32.mrb[0].mxu0
        %5657 = vmatprep.mubr.f32.mxu0 0.0
        %5658 = vmatmul.mubr.f32.gmra.mrb[0].mxu0 %v5562
        %v5659 = vpop.f32.mrb[0].mxu0
        %v5660 = vadd.f32 %v5527, %v5659
        %v5661 = vpop.f32.mrb[0].mxu0
        %5662 = vmatprep.mubr.f32.mxu0 0.0
        %5663 = vmatmul.mubr.f32.gmra.mrb[0].mxu0 %v5564
        %v5664 = vpop.f32.mrb[0].mxu0
        %v5665 = vadd.f32 %v5527, %v5664
        %v5666 = vpop.f32.mrb[0].mxu0
        %5667 = vmatprep.mubr.f32.mxu0 0.0
        %5668 = vmatmul.mubr.f32.gmra.mrb[0].mxu0 %v5566
        %v5669 = vpop.f32.mrb[0].mxu0
        %v5670 = vadd.f32 %v5527, %v5669
        %v5671 = vpop.f32.mrb[0].mxu0
        %5672 = vdwg.mxu0
        %v5673 = vld [vmem:[%s3 + $0x118] sm:$0x1]
        %v5674 = vlaneseq
        %v5675 = vshrl.u32 %v5674, 7
        %v5676 = vsub.s32 0, %v5675
        %v5677 = vrot.slane %v5673, %v5676
        %5679 = vrot.lane.b32.xlu0 %v5677, 32
        %v5680 = vpop.permute.xlu0 %5679
        %v5682 = vmul.f32 %v5511, %v5680
        %v5683 = vmul.f32 %v5512, %v5680
        %v5684 = vmul.f32 %v5513, %v5680
        %v5685 = vmul.f32 %v5514, %v5680
        %v5686 = vmul.f32 %v5515, %v5680
        %v5687 = vmul.f32 %v5516, %v5680
        %v5688 = vmul.f32 %v5517, %v5680
        %v5689 = vmul.f32 %v5518, %v5680
        %5698 = vrot.lane.b32.xlu0 %v5682, 96
        %v5699 = vpop.permute.xlu0 %5698
        %5700 = vrot.lane.b32.xlu0 %v5683, 96
        %v5701 = vpop.permute.xlu0 %5700
        %5702 = vrot.lane.b32.xlu0 %v5684, 96
        %v5703 = vpop.permute.xlu0 %5702
        %5704 = vrot.lane.b32.xlu0 %v5685, 96
        %v5705 = vpop.permute.xlu0 %5704
        %5706 = vrot.lane.b32.xlu0 %v5686, 96
        %v5707 = vpop.permute.xlu0 %5706
        %5708 = vrot.lane.b32.xlu0 %v5687, 96
        %v5709 = vpop.permute.xlu0 %5708
        %5710 = vrot.lane.b32.xlu0 %v5688, 96
        %v5711 = vpop.permute.xlu0 %5710
        %5712 = vrot.lane.b32.xlu0 %v5689, 96
        %v5713 = vpop.permute.xlu0 %5712
        %v5722 = vsel %vm1263, %v5699, 0.0
        %5723 = vadd.xlane.f32.xlu0 %v5722
        %v5724 = vpop.xlane.xlu0 %5723
        %v5725 = vsel %vm1263, %v5701, 0.0
        %5726 = vadd.xlane.f32.xlu0 %v5725
        %v5727 = vpop.xlane.xlu0 %5726
        %v5728 = vsel %vm1263, %v5703, 0.0
        %5729 = vadd.xlane.f32.xlu0 %v5728
        %v5730 = vpop.xlane.xlu0 %5729
        %v5731 = vsel %vm1263, %v5705, 0.0
        %5732 = vadd.xlane.f32.xlu0 %v5731
        %v5733 = vpop.xlane.xlu0 %5732
        %v5734 = vsel %vm1263, %v5707, 0.0
        %5735 = vadd.xlane.f32.xlu0 %v5734
        %v5736 = vpop.xlane.xlu0 %5735
        %v5737 = vsel %vm1263, %v5709, 0.0
        %5738 = vadd.xlane.f32.xlu0 %v5737
        %v5739 = vpop.xlane.xlu0 %5738
        %v5740 = vsel %vm1263, %v5711, 0.0
        %5741 = vadd.xlane.f32.xlu0 %v5740
        %v5742 = vpop.xlane.xlu0 %5741
        %v5743 = vsel %vm1263, %v5713, 0.0
        %5744 = vadd.xlane.f32.xlu0 %v5743
        %v5745 = vpop.xlane.xlu0 %5744
        %5747 = vset.pattern.permute.xlu0 32
        %5748 = vperm.xlu0 %5747, %v5635
        %v5749 = vpop.permute.xlu0 %5748
        %5752 = vset.pattern.permute.xlu0 32
        %5753 = vperm.xlu0 %5752, %v5640
        %v5754 = vpop.permute.xlu0 %5753
        %5757 = vset.pattern.permute.xlu0 32
        %5758 = vperm.xlu0 %5757, %v5645
        %v5759 = vpop.permute.xlu0 %5758
        %5762 = vset.pattern.permute.xlu0 32
        %5763 = vperm.xlu0 %5762, %v5650
        %v5764 = vpop.permute.xlu0 %5763
        %5767 = vset.pattern.permute.xlu0 32
        %5768 = vperm.xlu0 %5767, %v5655
        %v5769 = vpop.permute.xlu0 %5768
        %5772 = vset.pattern.permute.xlu0 32
        %5773 = vperm.xlu0 %5772, %v5660
        %v5774 = vpop.permute.xlu0 %5773
        %5777 = vset.pattern.permute.xlu0 32
        %5778 = vperm.xlu0 %5777, %v5665
        %v5779 = vpop.permute.xlu0 %5778
        %5782 = vset.pattern.permute.xlu0 32
        %5783 = vperm.xlu0 %5782, %v5670
        %v5784 = vpop.permute.xlu0 %5783
        %v5794 = vlaneseq
        %v5795 = vshrl.u32 %v5794, 7
        %v5796 = vsub.s32 %v2670, %v5795
        %v5797 = vrot.slane %v5724, %v5796
        %v5798 = vlaneseq
        %v5799 = vshrl.u32 %v5798, 7
        %v5800 = vsub.s32 %v2670, %v5799
        %v5801 = vrot.slane %v5727, %v5800
        %v5802 = vlaneseq
        %v5803 = vshrl.u32 %v5802, 7
        %v5804 = vsub.s32 %v2670, %v5803
        %v5805 = vrot.slane %v5730, %v5804
        %v5806 = vlaneseq
        %v5807 = vshrl.u32 %v5806, 7
        %v5808 = vsub.s32 %v2670, %v5807
        %v5809 = vrot.slane %v5733, %v5808
        %v5810 = vlaneseq
        %v5811 = vshrl.u32 %v5810, 7
        %v5812 = vsub.s32 %v2670, %v5811
        %v5813 = vrot.slane %v5736, %v5812
        %v5814 = vlaneseq
        %v5815 = vshrl.u32 %v5814, 7
        %v5816 = vsub.s32 %v2670, %v5815
        %v5817 = vrot.slane %v5739, %v5816
        %v5818 = vlaneseq
        %v5819 = vshrl.u32 %v5818, 7
        %v5820 = vsub.s32 %v2670, %v5819
        %v5821 = vrot.slane %v5742, %v5820
        %v5822 = vlaneseq
        %v5823 = vshrl.u32 %v5822, 7
        %v5824 = vsub.s32 %v2670, %v5823
        %v5825 = vrot.slane %v5745, %v5824
        %v5826 = vsel %vm2929, %v5797, %v5797
        %v5827 = vsel %vm2931, %v5797, %v5826
        %v5828 = vsel %vm2933, %v5797, %v5827
        %v5829 = vsel %vm2935, %v5797, %v5828
        %v5830 = vsel %vm2937, %v5797, %v5829
        %v5831 = vsel %vm2939, %v5797, %v5830
        %v5832 = vsel %vm2929, %v5801, %v5801
        %v5833 = vsel %vm2931, %v5801, %v5832
        %v5834 = vsel %vm2933, %v5801, %v5833
        %v5835 = vsel %vm2935, %v5801, %v5834
        %v5836 = vsel %vm2937, %v5801, %v5835
        %v5837 = vsel %vm2939, %v5801, %v5836
        %v5838 = vsel %vm2929, %v5805, %v5805
        %v5839 = vsel %vm2931, %v5805, %v5838
        %v5840 = vsel %vm2933, %v5805, %v5839
        %v5841 = vsel %vm2935, %v5805, %v5840
        %v5842 = vsel %vm2937, %v5805, %v5841
        %v5843 = vsel %vm2939, %v5805, %v5842
        %v5844 = vsel %vm2929, %v5809, %v5809
        %v5845 = vsel %vm2931, %v5809, %v5844
        %v5846 = vsel %vm2933, %v5809, %v5845
        %v5847 = vsel %vm2935, %v5809, %v5846
        %v5848 = vsel %vm2937, %v5809, %v5847
        %v5849 = vsel %vm2939, %v5809, %v5848
        %v5850 = vsel %vm2929, %v5813, %v5813
        %v5851 = vsel %vm2931, %v5813, %v5850
        %v5852 = vsel %vm2933, %v5813, %v5851
        %v5853 = vsel %vm2935, %v5813, %v5852
        %v5854 = vsel %vm2937, %v5813, %v5853
        %v5855 = vsel %vm2939, %v5813, %v5854
        %v5856 = vsel %vm2929, %v5817, %v5817
        %v5857 = vsel %vm2931, %v5817, %v5856
        %v5858 = vsel %vm2933, %v5817, %v5857
        %v5859 = vsel %vm2935, %v5817, %v5858
        %v5860 = vsel %vm2937, %v5817, %v5859
        %v5861 = vsel %vm2939, %v5817, %v5860
        %v5862 = vsel %vm2929, %v5821, %v5821
        %v5863 = vsel %vm2931, %v5821, %v5862
        %v5864 = vsel %vm2933, %v5821, %v5863
        %v5865 = vsel %vm2935, %v5821, %v5864
        %v5866 = vsel %vm2937, %v5821, %v5865
        %v5867 = vsel %vm2939, %v5821, %v5866
        %v5868 = vsel %vm2929, %v5825, %v5825
        %v5869 = vsel %vm2931, %v5825, %v5868
        %v5870 = vsel %vm2933, %v5825, %v5869
        %v5871 = vsel %vm2935, %v5825, %v5870
        %v5872 = vsel %vm2937, %v5825, %v5871
        %v5873 = vsel %vm2939, %v5825, %v5872
        %v5882 = vadd.f32 %v5749, %v5831
        %v5883 = vadd.f32 %v5754, %v5837
        %v5884 = vadd.f32 %v5759, %v5843
        %v5885 = vadd.f32 %v5764, %v5849
        %v5886 = vadd.f32 %v5769, %v5855
        %v5887 = vadd.f32 %v5774, %v5861
        %v5888 = vadd.f32 %v5779, %v5867
        %v5889 = vadd.f32 %v5784, %v5873
        %vm5890 = vcmp.ge.f32.partialorder %v5882, 0.0
        %vm5891 = vcmp.ge.f32.partialorder %v5883, 0.0
        %vm5892 = vcmp.ge.f32.partialorder %v5884, 0.0
        %vm5893 = vcmp.ge.f32.partialorder %v5885, 0.0
        %vm5894 = vcmp.ge.f32.partialorder %v5886, 0.0
        %vm5895 = vcmp.ge.f32.partialorder %v5887, 0.0
        %vm5896 = vcmp.ge.f32.partialorder %v5888, 0.0
        %vm5897 = vcmp.ge.f32.partialorder %v5889, 0.0
        %v5898 = vmul.f32 %v5882, 0.01
        %v5899 = vmul.f32 %v5883, 0.01
        %v5900 = vmul.f32 %v5884, 0.01
        %v5901 = vmul.f32 %v5885, 0.01
        %v5902 = vmul.f32 %v5886, 0.01
        %v5903 = vmul.f32 %v5887, 0.01
        %v5904 = vmul.f32 %v5888, 0.01
        %v5905 = vmul.f32 %v5889, 0.01
        %v5906 = vsel %vm5890, %v5882, %v5898
        %v5907 = vsel %vm5891, %v5883, %v5899
        %v5908 = vsel %vm5892, %v5884, %v5900
        %v5909 = vsel %vm5893, %v5885, %v5901
        %v5910 = vsel %vm5894, %v5886, %v5902
        %v5911 = vsel %vm5895, %v5887, %v5903
        %v5912 = vsel %vm5896, %v5888, %v5904
        %v5913 = vsel %vm5897, %v5889, %v5905
        %v5914 = vsel %vm3030, %v5906, -1e+09
        %v5915 = vsel %vm3031, %v5907, -1e+09
        %v5916 = vsel %vm3032, %v5908, -1e+09
        %v5917 = vsel %vm3033, %v5909, -1e+09
        %v5918 = vsel %vm3034, %v5910, -1e+09
        %v5919 = vsel %vm3035, %v5911, -1e+09
        %v5920 = vsel %vm3036, %v5912, -1e+09
        %v5921 = vsel %vm3037, %v5913, -1e+09
        %v5922 = vsel %vm489, %v5914, -inf
        %5923 = vmax.xlane.f32.xlu0 %v5922
        %v5924 = vpop.xlane.xlu0 %5923
        %v5925 = vsel %vm489, %v5915, -inf
        %5926 = vmax.xlane.f32.xlu0 %v5925
        %v5927 = vpop.xlane.xlu0 %5926
        %v5928 = vsel %vm489, %v5916, -inf
        %5929 = vmax.xlane.f32.xlu0 %v5928
        %v5930 = vpop.xlane.xlu0 %5929
        %v5931 = vsel %vm489, %v5917, -inf
        %5932 = vmax.xlane.f32.xlu0 %v5931
        %v5933 = vpop.xlane.xlu0 %5932
        %v5934 = vsel %vm489, %v5918, -inf
        %5935 = vmax.xlane.f32.xlu0 %v5934
        %v5936 = vpop.xlane.xlu0 %5935
        %v5937 = vsel %vm489, %v5919, -inf
        %5938 = vmax.xlane.f32.xlu0 %v5937
        %v5939 = vpop.xlane.xlu0 %5938
        %v5940 = vsel %vm489, %v5920, -inf
        %5941 = vmax.xlane.f32.xlu0 %v5940
        %v5942 = vpop.xlane.xlu0 %5941
        %v5943 = vsel %vm489, %v5921, -inf
        %5944 = vmax.xlane.f32.xlu0 %v5943
        %v5945 = vpop.xlane.xlu0 %5944
        %v5946 = vsub.f32 %v5914, %v5924
        %v5947 = vsub.f32 %v5915, %v5927
        %v5948 = vsub.f32 %v5916, %v5930
        %v5949 = vsub.f32 %v5917, %v5933
        %v5950 = vsub.f32 %v5918, %v5936
        %v5951 = vsub.f32 %v5919, %v5939
        %v5952 = vsub.f32 %v5920, %v5942
        %v5953 = vsub.f32 %v5921, %v5945
        %v5954 = vmul.f32 %v5946, 1.442695
        %v5955 = vpow.pop %v5954
        %v5956 = vmul.f32 %v5947, 1.442695
        %v5957 = vpow.pop %v5956
        %v5958 = vmul.f32 %v5948, 1.442695
        %v5959 = vpow.pop %v5958
        %v5960 = vmul.f32 %v5949, 1.442695
        %v5961 = vpow.pop %v5960
        %v5962 = vmul.f32 %v5950, 1.442695
        %v5963 = vpow.pop %v5962
        %v5964 = vmul.f32 %v5951, 1.442695
        %v5965 = vpow.pop %v5964
        %v5966 = vmul.f32 %v5952, 1.442695
        %v5967 = vpow.pop %v5966
        %v5968 = vmul.f32 %v5953, 1.442695
        %v5969 = vpow.pop %v5968
        %v5970 = vmul.f32 %v5955, %v314
        %v5971 = vmul.f32 %v5957, %v315
        %v5972 = vmul.f32 %v5959, %v316
        %v5973 = vmul.f32 %v5961, %v317
        %v5974 = vmul.f32 %v5963, %v318
        %v5975 = vmul.f32 %v5965, %v319
        %v5976 = vmul.f32 %v5967, %v320
        %v5977 = vmul.f32 %v5969, %v321
        %v5978 = vsel %vm489, %v5970, 0.0
        %5979 = vadd.xlane.f32.xlu0 %v5978
        %v5980 = vpop.xlane.xlu0 %5979
        %v5981 = vsel %vm489, %v5971, 0.0
        %5982 = vadd.xlane.f32.xlu0 %v5981
        %v5983 = vpop.xlane.xlu0 %5982
        %v5984 = vsel %vm489, %v5972, 0.0
        %5985 = vadd.xlane.f32.xlu0 %v5984
        %v5986 = vpop.xlane.xlu0 %5985
        %v5987 = vsel %vm489, %v5973, 0.0
        %5988 = vadd.xlane.f32.xlu0 %v5987
        %v5989 = vpop.xlane.xlu0 %5988
        %v5990 = vsel %vm489, %v5974, 0.0
        %5991 = vadd.xlane.f32.xlu0 %v5990
        %v5992 = vpop.xlane.xlu0 %5991
        %v5993 = vsel %vm489, %v5975, 0.0
        %5994 = vadd.xlane.f32.xlu0 %v5993
        %v5995 = vpop.xlane.xlu0 %5994
        %v5996 = vsel %vm489, %v5976, 0.0
        %5997 = vadd.xlane.f32.xlu0 %v5996
        %v5998 = vpop.xlane.xlu0 %5997
        %v5999 = vsel %vm489, %v5977, 0.0
        %6000 = vadd.xlane.f32.xlu0 %v5999
        %v6001 = vpop.xlane.xlu0 %6000
        %v6002 = vadd.f32 %v5980, 1e-09
        %v6003 = vadd.f32 %v5983, 1e-09
        %v6004 = vadd.f32 %v5986, 1e-09
        %v6005 = vadd.f32 %v5989, 1e-09
        %v6006 = vadd.f32 %v5992, 1e-09
        %v6007 = vadd.f32 %v5995, 1e-09
        %v6008 = vadd.f32 %v5998, 1e-09
        %v6009 = vadd.f32 %v6001, 1e-09
        %v6010 = vrcp.pop %v6002
        %v6011 = vmul.f32 %v5970, %v6010
        %v6012 = vrcp.pop %v6003
        %v6013 = vmul.f32 %v5971, %v6012
        %v6014 = vrcp.pop %v6004
        %v6015 = vmul.f32 %v5972, %v6014
        %v6016 = vrcp.pop %v6005
        %v6017 = vmul.f32 %v5973, %v6016
        %v6018 = vrcp.pop %v6006
        %v6019 = vmul.f32 %v5974, %v6018
        %v6020 = vrcp.pop %v6007
        %v6021 = vmul.f32 %v5975, %v6020
        %v6022 = vrcp.pop %v6008
        %v6023 = vmul.f32 %v5976, %v6022
        %v6024 = vrcp.pop %v6009
        %v6025 = vmul.f32 %v5977, %v6024
        %v6026 = vlaneseq
        %v6027 = vshrl.u32 %v6026, 7
        %v6028 = vsub.s32 0, %v6027
        %v6029 = vrot.slane %v6011, %v6028
        %6031 = vbcast.lane.b32.xlu0 %v6029, 256
        %v6032 = vpop.permute.xlu0 %6031
        %v6033 = vlaneseq
        %v6034 = vshrl.u32 %v6033, 7
        %v6035 = vsub.s32 1, %v6034
        %v6036 = vrot.slane %v6011, %v6035
        %6038 = vbcast.lane.b32.xlu0 %v6036, 256
        %v6039 = vpop.permute.xlu0 %6038
        %v6040 = vlaneseq
        %v6041 = vshrl.u32 %v6040, 7
        %v6042 = vsub.s32 2, %v6041
        %v6043 = vrot.slane %v6011, %v6042
        %6045 = vbcast.lane.b32.xlu0 %v6043, 256
        %v6046 = vpop.permute.xlu0 %6045
        %v6047 = vlaneseq
        %v6048 = vshrl.u32 %v6047, 7
        %v6049 = vsub.s32 3, %v6048
        %v6050 = vrot.slane %v6011, %v6049
        %6052 = vbcast.lane.b32.xlu0 %v6050, 256
        %v6053 = vpop.permute.xlu0 %6052
        %v6054 = vlaneseq
        %v6055 = vshrl.u32 %v6054, 7
        %v6056 = vsub.s32 4, %v6055
        %v6057 = vrot.slane %v6011, %v6056
        %6059 = vbcast.lane.b32.xlu0 %v6057, 256
        %v6060 = vpop.permute.xlu0 %6059
        %v6061 = vlaneseq
        %v6062 = vshrl.u32 %v6061, 7
        %v6063 = vsub.s32 5, %v6062
        %v6064 = vrot.slane %v6011, %v6063
        %6066 = vbcast.lane.b32.xlu0 %v6064, 256
        %v6067 = vpop.permute.xlu0 %6066
        %v6068 = vlaneseq
        %v6069 = vshrl.u32 %v6068, 7
        %v6070 = vsub.s32 6, %v6069
        %v6071 = vrot.slane %v6011, %v6070
        %6073 = vbcast.lane.b32.xlu0 %v6071, 256
        %v6074 = vpop.permute.xlu0 %6073
        %v6075 = vlaneseq
        %v6076 = vshrl.u32 %v6075, 7
        %v6077 = vsub.s32 7, %v6076
        %v6078 = vrot.slane %v6011, %v6077
        %6080 = vbcast.lane.b32.xlu0 %v6078, 256
        %v6081 = vpop.permute.xlu0 %6080
        %v6082 = vlaneseq
        %v6083 = vshrl.u32 %v6082, 7
        %v6084 = vsub.s32 0, %v6083
        %v6085 = vrot.slane %v6013, %v6084
        %6087 = vbcast.lane.b32.xlu0 %v6085, 256
        %v6088 = vpop.permute.xlu0 %6087
        %v6089 = vlaneseq
        %v6090 = vshrl.u32 %v6089, 7
        %v6091 = vsub.s32 1, %v6090
        %v6092 = vrot.slane %v6013, %v6091
        %6094 = vbcast.lane.b32.xlu0 %v6092, 256
        %v6095 = vpop.permute.xlu0 %6094
        %v6096 = vlaneseq
        %v6097 = vshrl.u32 %v6096, 7
        %v6098 = vsub.s32 2, %v6097
        %v6099 = vrot.slane %v6013, %v6098
        %6101 = vbcast.lane.b32.xlu0 %v6099, 256
        %v6102 = vpop.permute.xlu0 %6101
        %v6103 = vlaneseq
        %v6104 = vshrl.u32 %v6103, 7
        %v6105 = vsub.s32 3, %v6104
        %v6106 = vrot.slane %v6013, %v6105
        %6108 = vbcast.lane.b32.xlu0 %v6106, 256
        %v6109 = vpop.permute.xlu0 %6108
        %v6110 = vlaneseq
        %v6111 = vshrl.u32 %v6110, 7
        %v6112 = vsub.s32 4, %v6111
        %v6113 = vrot.slane %v6013, %v6112
        %6115 = vbcast.lane.b32.xlu0 %v6113, 256
        %v6116 = vpop.permute.xlu0 %6115
        %v6117 = vlaneseq
        %v6118 = vshrl.u32 %v6117, 7
        %v6119 = vsub.s32 5, %v6118
        %v6120 = vrot.slane %v6013, %v6119
        %6122 = vbcast.lane.b32.xlu0 %v6120, 256
        %v6123 = vpop.permute.xlu0 %6122
        %v6124 = vlaneseq
        %v6125 = vshrl.u32 %v6124, 7
        %v6126 = vsub.s32 6, %v6125
        %v6127 = vrot.slane %v6013, %v6126
        %6129 = vbcast.lane.b32.xlu0 %v6127, 256
        %v6130 = vpop.permute.xlu0 %6129
        %v6131 = vlaneseq
        %v6132 = vshrl.u32 %v6131, 7
        %v6133 = vsub.s32 7, %v6132
        %v6134 = vrot.slane %v6013, %v6133
        %6136 = vbcast.lane.b32.xlu0 %v6134, 256
        %v6137 = vpop.permute.xlu0 %6136
        %v6138 = vlaneseq
        %v6139 = vshrl.u32 %v6138, 7
        %v6140 = vsub.s32 0, %v6139
        %v6141 = vrot.slane %v6015, %v6140
        %6143 = vbcast.lane.b32.xlu0 %v6141, 256
        %v6144 = vpop.permute.xlu0 %6143
        %v6145 = vlaneseq
        %v6146 = vshrl.u32 %v6145, 7
        %v6147 = vsub.s32 1, %v6146
        %v6148 = vrot.slane %v6015, %v6147
        %6150 = vbcast.lane.b32.xlu0 %v6148, 256
        %v6151 = vpop.permute.xlu0 %6150
        %v6152 = vlaneseq
        %v6153 = vshrl.u32 %v6152, 7
        %v6154 = vsub.s32 2, %v6153
        %v6155 = vrot.slane %v6015, %v6154
        %6157 = vbcast.lane.b32.xlu0 %v6155, 256
        %v6158 = vpop.permute.xlu0 %6157
        %v6159 = vlaneseq
        %v6160 = vshrl.u32 %v6159, 7
        %v6161 = vsub.s32 3, %v6160
        %v6162 = vrot.slane %v6015, %v6161
        %6164 = vbcast.lane.b32.xlu0 %v6162, 256
        %v6165 = vpop.permute.xlu0 %6164
        %v6166 = vlaneseq
        %v6167 = vshrl.u32 %v6166, 7
        %v6168 = vsub.s32 4, %v6167
        %v6169 = vrot.slane %v6015, %v6168
        %6171 = vbcast.lane.b32.xlu0 %v6169, 256
        %v6172 = vpop.permute.xlu0 %6171
        %v6173 = vlaneseq
        %v6174 = vshrl.u32 %v6173, 7
        %v6175 = vsub.s32 5, %v6174
        %v6176 = vrot.slane %v6015, %v6175
        %6178 = vbcast.lane.b32.xlu0 %v6176, 256
        %v6179 = vpop.permute.xlu0 %6178
        %v6180 = vlaneseq
        %v6181 = vshrl.u32 %v6180, 7
        %v6182 = vsub.s32 6, %v6181
        %v6183 = vrot.slane %v6015, %v6182
        %6185 = vbcast.lane.b32.xlu0 %v6183, 256
        %v6186 = vpop.permute.xlu0 %6185
        %v6187 = vlaneseq
        %v6188 = vshrl.u32 %v6187, 7
        %v6189 = vsub.s32 7, %v6188
        %v6190 = vrot.slane %v6015, %v6189
        %6192 = vbcast.lane.b32.xlu0 %v6190, 256
        %v6193 = vpop.permute.xlu0 %6192
        %v6194 = vlaneseq
        %v6195 = vshrl.u32 %v6194, 7
        %v6196 = vsub.s32 0, %v6195
        %v6197 = vrot.slane %v6017, %v6196
        %6199 = vbcast.lane.b32.xlu0 %v6197, 256
        %v6200 = vpop.permute.xlu0 %6199
        %v6201 = vlaneseq
        %v6202 = vshrl.u32 %v6201, 7
        %v6203 = vsub.s32 1, %v6202
        %v6204 = vrot.slane %v6017, %v6203
        %6206 = vbcast.lane.b32.xlu0 %v6204, 256
        %v6207 = vpop.permute.xlu0 %6206
        %v6208 = vlaneseq
        %v6209 = vshrl.u32 %v6208, 7
        %v6210 = vsub.s32 2, %v6209
        %v6211 = vrot.slane %v6017, %v6210
        %6213 = vbcast.lane.b32.xlu0 %v6211, 256
        %v6214 = vpop.permute.xlu0 %6213
        %v6215 = vlaneseq
        %v6216 = vshrl.u32 %v6215, 7
        %v6217 = vsub.s32 3, %v6216
        %v6218 = vrot.slane %v6017, %v6217
        %6220 = vbcast.lane.b32.xlu0 %v6218, 256
        %v6221 = vpop.permute.xlu0 %6220
        %v6222 = vlaneseq
        %v6223 = vshrl.u32 %v6222, 7
        %v6224 = vsub.s32 4, %v6223
        %v6225 = vrot.slane %v6017, %v6224
        %6227 = vbcast.lane.b32.xlu0 %v6225, 256
        %v6228 = vpop.permute.xlu0 %6227
        %v6229 = vlaneseq
        %v6230 = vshrl.u32 %v6229, 7
        %v6231 = vsub.s32 5, %v6230
        %v6232 = vrot.slane %v6017, %v6231
        %6234 = vbcast.lane.b32.xlu0 %v6232, 256
        %v6235 = vpop.permute.xlu0 %6234
        %v6236 = vlaneseq
        %v6237 = vshrl.u32 %v6236, 7
        %v6238 = vsub.s32 6, %v6237
        %v6239 = vrot.slane %v6017, %v6238
        %6241 = vbcast.lane.b32.xlu0 %v6239, 256
        %v6242 = vpop.permute.xlu0 %6241
        %v6243 = vlaneseq
        %v6244 = vshrl.u32 %v6243, 7
        %v6245 = vsub.s32 7, %v6244
        %v6246 = vrot.slane %v6017, %v6245
        %6248 = vbcast.lane.b32.xlu0 %v6246, 256
        %v6249 = vpop.permute.xlu0 %6248
        %v6250 = vlaneseq
        %v6251 = vshrl.u32 %v6250, 7
        %v6252 = vsub.s32 0, %v6251
        %v6253 = vrot.slane %v6019, %v6252
        %6255 = vbcast.lane.b32.xlu0 %v6253, 256
        %v6256 = vpop.permute.xlu0 %6255
        %v6257 = vlaneseq
        %v6258 = vshrl.u32 %v6257, 7
        %v6259 = vsub.s32 1, %v6258
        %v6260 = vrot.slane %v6019, %v6259
        %6262 = vbcast.lane.b32.xlu0 %v6260, 256
        %v6263 = vpop.permute.xlu0 %6262
        %v6264 = vlaneseq
        %v6265 = vshrl.u32 %v6264, 7
        %v6266 = vsub.s32 2, %v6265
        %v6267 = vrot.slane %v6019, %v6266
        %6269 = vbcast.lane.b32.xlu0 %v6267, 256
        %v6270 = vpop.permute.xlu0 %6269
        %v6271 = vlaneseq
        %v6272 = vshrl.u32 %v6271, 7
        %v6273 = vsub.s32 3, %v6272
        %v6274 = vrot.slane %v6019, %v6273
        %6276 = vbcast.lane.b32.xlu0 %v6274, 256
        %v6277 = vpop.permute.xlu0 %6276
        %v6278 = vlaneseq
        %v6279 = vshrl.u32 %v6278, 7
        %v6280 = vsub.s32 4, %v6279
        %v6281 = vrot.slane %v6019, %v6280
        %6283 = vbcast.lane.b32.xlu0 %v6281, 256
        %v6284 = vpop.permute.xlu0 %6283
        %v6285 = vlaneseq
        %v6286 = vshrl.u32 %v6285, 7
        %v6287 = vsub.s32 5, %v6286
        %v6288 = vrot.slane %v6019, %v6287
        %6290 = vbcast.lane.b32.xlu0 %v6288, 256
        %v6291 = vpop.permute.xlu0 %6290
        %v6292 = vlaneseq
        %v6293 = vshrl.u32 %v6292, 7
        %v6294 = vsub.s32 6, %v6293
        %v6295 = vrot.slane %v6019, %v6294
        %6297 = vbcast.lane.b32.xlu0 %v6295, 256
        %v6298 = vpop.permute.xlu0 %6297
        %v6299 = vlaneseq
        %v6300 = vshrl.u32 %v6299, 7
        %v6301 = vsub.s32 7, %v6300
        %v6302 = vrot.slane %v6019, %v6301
        %6304 = vbcast.lane.b32.xlu0 %v6302, 256
        %v6305 = vpop.permute.xlu0 %6304
        %v6306 = vlaneseq
        %v6307 = vshrl.u32 %v6306, 7
        %v6308 = vsub.s32 0, %v6307
        %v6309 = vrot.slane %v6021, %v6308
        %6311 = vbcast.lane.b32.xlu0 %v6309, 256
        %v6312 = vpop.permute.xlu0 %6311
        %v6313 = vlaneseq
        %v6314 = vshrl.u32 %v6313, 7
        %v6315 = vsub.s32 1, %v6314
        %v6316 = vrot.slane %v6021, %v6315
        %6318 = vbcast.lane.b32.xlu0 %v6316, 256
        %v6319 = vpop.permute.xlu0 %6318
        %v6320 = vlaneseq
        %v6321 = vshrl.u32 %v6320, 7
        %v6322 = vsub.s32 2, %v6321
        %v6323 = vrot.slane %v6021, %v6322
        %6325 = vbcast.lane.b32.xlu0 %v6323, 256
        %v6326 = vpop.permute.xlu0 %6325
        %v6327 = vlaneseq
        %v6328 = vshrl.u32 %v6327, 7
        %v6329 = vsub.s32 3, %v6328
        %v6330 = vrot.slane %v6021, %v6329
        %6332 = vbcast.lane.b32.xlu0 %v6330, 256
        %v6333 = vpop.permute.xlu0 %6332
        %v6334 = vlaneseq
        %v6335 = vshrl.u32 %v6334, 7
        %v6336 = vsub.s32 4, %v6335
        %v6337 = vrot.slane %v6021, %v6336
        %6339 = vbcast.lane.b32.xlu0 %v6337, 256
        %v6340 = vpop.permute.xlu0 %6339
        %v6341 = vlaneseq
        %v6342 = vshrl.u32 %v6341, 7
        %v6343 = vsub.s32 5, %v6342
        %v6344 = vrot.slane %v6021, %v6343
        %6346 = vbcast.lane.b32.xlu0 %v6344, 256
        %v6347 = vpop.permute.xlu0 %6346
        %v6348 = vlaneseq
        %v6349 = vshrl.u32 %v6348, 7
        %v6350 = vsub.s32 6, %v6349
        %v6351 = vrot.slane %v6021, %v6350
        %6353 = vbcast.lane.b32.xlu0 %v6351, 256
        %v6354 = vpop.permute.xlu0 %6353
        %v6355 = vlaneseq
        %v6356 = vshrl.u32 %v6355, 7
        %v6357 = vsub.s32 7, %v6356
        %v6358 = vrot.slane %v6021, %v6357
        %6360 = vbcast.lane.b32.xlu0 %v6358, 256
        %v6361 = vpop.permute.xlu0 %6360
        %v6362 = vlaneseq
        %v6363 = vshrl.u32 %v6362, 7
        %v6364 = vsub.s32 0, %v6363
        %v6365 = vrot.slane %v6023, %v6364
        %6367 = vbcast.lane.b32.xlu0 %v6365, 256
        %v6368 = vpop.permute.xlu0 %6367
        %v6369 = vlaneseq
        %v6370 = vshrl.u32 %v6369, 7
        %v6371 = vsub.s32 1, %v6370
        %v6372 = vrot.slane %v6023, %v6371
        %6374 = vbcast.lane.b32.xlu0 %v6372, 256
        %v6375 = vpop.permute.xlu0 %6374
        %v6376 = vlaneseq
        %v6377 = vshrl.u32 %v6376, 7
        %v6378 = vsub.s32 2, %v6377
        %v6379 = vrot.slane %v6023, %v6378
        %6381 = vbcast.lane.b32.xlu0 %v6379, 256
        %v6382 = vpop.permute.xlu0 %6381
        %v6383 = vlaneseq
        %v6384 = vshrl.u32 %v6383, 7
        %v6385 = vsub.s32 3, %v6384
        %v6386 = vrot.slane %v6023, %v6385
        %6388 = vbcast.lane.b32.xlu0 %v6386, 256
        %v6389 = vpop.permute.xlu0 %6388
        %v6390 = vlaneseq
        %v6391 = vshrl.u32 %v6390, 7
        %v6392 = vsub.s32 4, %v6391
        %v6393 = vrot.slane %v6023, %v6392
        %6395 = vbcast.lane.b32.xlu0 %v6393, 256
        %v6396 = vpop.permute.xlu0 %6395
        %v6397 = vlaneseq
        %v6398 = vshrl.u32 %v6397, 7
        %v6399 = vsub.s32 5, %v6398
        %v6400 = vrot.slane %v6023, %v6399
        %6402 = vbcast.lane.b32.xlu0 %v6400, 256
        %v6403 = vpop.permute.xlu0 %6402
        %v6404 = vlaneseq
        %v6405 = vshrl.u32 %v6404, 7
        %v6406 = vsub.s32 6, %v6405
        %v6407 = vrot.slane %v6023, %v6406
        %6409 = vbcast.lane.b32.xlu0 %v6407, 256
        %v6410 = vpop.permute.xlu0 %6409
        %v6411 = vlaneseq
        %v6412 = vshrl.u32 %v6411, 7
        %v6413 = vsub.s32 7, %v6412
        %v6414 = vrot.slane %v6023, %v6413
        %6416 = vbcast.lane.b32.xlu0 %v6414, 256
        %v6417 = vpop.permute.xlu0 %6416
        %v6418 = vlaneseq
        %v6419 = vshrl.u32 %v6418, 7
        %v6420 = vsub.s32 0, %v6419
        %v6421 = vrot.slane %v6025, %v6420
        %6423 = vbcast.lane.b32.xlu0 %v6421, 256
        %v6424 = vpop.permute.xlu0 %6423
        %v6425 = vlaneseq
        %v6426 = vshrl.u32 %v6425, 7
        %v6427 = vsub.s32 1, %v6426
        %v6428 = vrot.slane %v6025, %v6427
        %6430 = vbcast.lane.b32.xlu0 %v6428, 256
        %v6431 = vpop.permute.xlu0 %6430
        %v6432 = vlaneseq
        %v6433 = vshrl.u32 %v6432, 7
        %v6434 = vsub.s32 2, %v6433
        %v6435 = vrot.slane %v6025, %v6434
        %6437 = vbcast.lane.b32.xlu0 %v6435, 256
        %v6438 = vpop.permute.xlu0 %6437
        %v6439 = vlaneseq
        %v6440 = vshrl.u32 %v6439, 7
        %v6441 = vsub.s32 3, %v6440
        %v6442 = vrot.slane %v6025, %v6441
        %6444 = vbcast.lane.b32.xlu0 %v6442, 256
        %v6445 = vpop.permute.xlu0 %6444
        %v6446 = vlaneseq
        %v6447 = vshrl.u32 %v6446, 7
        %v6448 = vsub.s32 4, %v6447
        %v6449 = vrot.slane %v6025, %v6448
        %6451 = vbcast.lane.b32.xlu0 %v6449, 256
        %v6452 = vpop.permute.xlu0 %6451
        %v6453 = vlaneseq
        %v6454 = vshrl.u32 %v6453, 7
        %v6455 = vsub.s32 5, %v6454
        %v6456 = vrot.slane %v6025, %v6455
        %6458 = vbcast.lane.b32.xlu0 %v6456, 256
        %v6459 = vpop.permute.xlu0 %6458
        %v6460 = vlaneseq
        %v6461 = vshrl.u32 %v6460, 7
        %v6462 = vsub.s32 6, %v6461
        %v6463 = vrot.slane %v6025, %v6462
        %6465 = vbcast.lane.b32.xlu0 %v6463, 256
        %v6466 = vpop.permute.xlu0 %6465
        %v6467 = vlaneseq
        %v6468 = vshrl.u32 %v6467, 7
        %v6469 = vsub.s32 7, %v6468
        %v6470 = vrot.slane %v6025, %v6469
        %6472 = vbcast.lane.b32.xlu0 %v6470, 256
        %v6473 = vpop.permute.xlu0 %6472
        %v6474 = vmul.f32 %v6032, %v5635
        %v6475 = vmul.f32 %v6039, %v5635
        %v6476 = vmul.f32 %v6046, %v5635
        %v6477 = vmul.f32 %v6053, %v5635
        %v6478 = vmul.f32 %v6060, %v5635
        %v6479 = vmul.f32 %v6067, %v5635
        %v6480 = vmul.f32 %v6074, %v5635
        %v6481 = vmul.f32 %v6081, %v5635
        %v6482 = vmul.f32 %v6088, %v5640
        %v6483 = vmul.f32 %v6095, %v5640
        %v6484 = vmul.f32 %v6102, %v5640
        %v6485 = vmul.f32 %v6109, %v5640
        %v6486 = vmul.f32 %v6116, %v5640
        %v6487 = vmul.f32 %v6123, %v5640
        %v6488 = vmul.f32 %v6130, %v5640
        %v6489 = vmul.f32 %v6137, %v5640
        %v6490 = vmul.f32 %v6144, %v5645
        %v6491 = vmul.f32 %v6151, %v5645
        %v6492 = vmul.f32 %v6158, %v5645
        %v6493 = vmul.f32 %v6165, %v5645
        %v6494 = vmul.f32 %v6172, %v5645
        %v6495 = vmul.f32 %v6179, %v5645
        %v6496 = vmul.f32 %v6186, %v5645
        %v6497 = vmul.f32 %v6193, %v5645
        %v6498 = vmul.f32 %v6200, %v5650
        %v6499 = vmul.f32 %v6207, %v5650
        %v6500 = vmul.f32 %v6214, %v5650
        %v6501 = vmul.f32 %v6221, %v5650
        %v6502 = vmul.f32 %v6228, %v5650
        %v6503 = vmul.f32 %v6235, %v5650
        %v6504 = vmul.f32 %v6242, %v5650
        %v6505 = vmul.f32 %v6249, %v5650
        %v6506 = vmul.f32 %v6256, %v5655
        %v6507 = vmul.f32 %v6263, %v5655
        %v6508 = vmul.f32 %v6270, %v5655
        %v6509 = vmul.f32 %v6277, %v5655
        %v6510 = vmul.f32 %v6284, %v5655
        %v6511 = vmul.f32 %v6291, %v5655
        %v6512 = vmul.f32 %v6298, %v5655
        %v6513 = vmul.f32 %v6305, %v5655
        %v6514 = vmul.f32 %v6312, %v5660
        %v6515 = vmul.f32 %v6319, %v5660
        %v6516 = vmul.f32 %v6326, %v5660
        %v6517 = vmul.f32 %v6333, %v5660
        %v6518 = vmul.f32 %v6340, %v5660
        %v6519 = vmul.f32 %v6347, %v5660
        %v6520 = vmul.f32 %v6354, %v5660
        %v6521 = vmul.f32 %v6361, %v5660
        %v6522 = vmul.f32 %v6368, %v5665
        %v6523 = vmul.f32 %v6375, %v5665
        %v6524 = vmul.f32 %v6382, %v5665
        %v6525 = vmul.f32 %v6389, %v5665
        %v6526 = vmul.f32 %v6396, %v5665
        %v6527 = vmul.f32 %v6403, %v5665
        %v6528 = vmul.f32 %v6410, %v5665
        %v6529 = vmul.f32 %v6417, %v5665
        %v6530 = vmul.f32 %v6424, %v5670
        %v6531 = vmul.f32 %v6431, %v5670
        %v6532 = vmul.f32 %v6438, %v5670
        %v6533 = vmul.f32 %v6445, %v5670
        %v6534 = vmul.f32 %v6452, %v5670
        %v6535 = vmul.f32 %v6459, %v5670
        %v6536 = vmul.f32 %v6466, %v5670
        %v6537 = vmul.f32 %v6473, %v5670
        %v6538 = vsel %vm1263, %v6474, 0.0
        %v6539 = vrot.slane %v6538, 4
        %v6540 = vadd.f32 %v6538, %v6539
        %v6541 = vrot.slane %v6540, 2
        %v6542 = vadd.f32 %v6540, %v6541
        %v6543 = vrot.slane %v6542, 1
        %v6544 = vadd.f32 %v6542, %v6543
        %v6545 = vsel %vm1263, %v6475, 0.0
        %v6546 = vrot.slane %v6545, 4
        %v6547 = vadd.f32 %v6545, %v6546
        %v6548 = vrot.slane %v6547, 2
        %v6549 = vadd.f32 %v6547, %v6548
        %v6550 = vrot.slane %v6549, 1
        %v6551 = vadd.f32 %v6549, %v6550
        %v6552 = vsel %vm1263, %v6476, 0.0
        %v6553 = vrot.slane %v6552, 4
        %v6554 = vadd.f32 %v6552, %v6553
        %v6555 = vrot.slane %v6554, 2
        %v6556 = vadd.f32 %v6554, %v6555
        %v6557 = vrot.slane %v6556, 1
        %v6558 = vadd.f32 %v6556, %v6557
        %v6559 = vsel %vm1263, %v6477, 0.0
        %v6560 = vrot.slane %v6559, 4
        %v6561 = vadd.f32 %v6559, %v6560
        %v6562 = vrot.slane %v6561, 2
        %v6563 = vadd.f32 %v6561, %v6562
        %v6564 = vrot.slane %v6563, 1
        %v6565 = vadd.f32 %v6563, %v6564
        %v6566 = vsel %vm1263, %v6478, 0.0
        %v6567 = vrot.slane %v6566, 4
        %v6568 = vadd.f32 %v6566, %v6567
        %v6569 = vrot.slane %v6568, 2
        %v6570 = vadd.f32 %v6568, %v6569
        %v6571 = vrot.slane %v6570, 1
        %v6572 = vadd.f32 %v6570, %v6571
        %v6573 = vsel %vm1263, %v6479, 0.0
        %v6574 = vrot.slane %v6573, 4
        %v6575 = vadd.f32 %v6573, %v6574
        %v6576 = vrot.slane %v6575, 2
        %v6577 = vadd.f32 %v6575, %v6576
        %v6578 = vrot.slane %v6577, 1
        %v6579 = vadd.f32 %v6577, %v6578
        %v6580 = vsel %vm1263, %v6480, 0.0
        %v6581 = vrot.slane %v6580, 4
        %v6582 = vadd.f32 %v6580, %v6581
        %v6583 = vrot.slane %v6582, 2
        %v6584 = vadd.f32 %v6582, %v6583
        %v6585 = vrot.slane %v6584, 1
        %v6586 = vadd.f32 %v6584, %v6585
        %v6587 = vsel %vm1263, %v6481, 0.0
        %v6588 = vrot.slane %v6587, 4
        %v6589 = vadd.f32 %v6587, %v6588
        %v6590 = vrot.slane %v6589, 2
        %v6591 = vadd.f32 %v6589, %v6590
        %v6592 = vrot.slane %v6591, 1
        %v6593 = vadd.f32 %v6591, %v6592
        %v6594 = vsel %vm1263, %v6482, 0.0
        %v6595 = vrot.slane %v6594, 4
        %v6596 = vadd.f32 %v6594, %v6595
        %v6597 = vrot.slane %v6596, 2
        %v6598 = vadd.f32 %v6596, %v6597
        %v6599 = vrot.slane %v6598, 1
        %v6600 = vadd.f32 %v6598, %v6599
        %v6601 = vsel %vm1263, %v6483, 0.0
        %v6602 = vrot.slane %v6601, 4
        %v6603 = vadd.f32 %v6601, %v6602
        %v6604 = vrot.slane %v6603, 2
        %v6605 = vadd.f32 %v6603, %v6604
        %v6606 = vrot.slane %v6605, 1
        %v6607 = vadd.f32 %v6605, %v6606
        %v6608 = vsel %vm1263, %v6484, 0.0
        %v6609 = vrot.slane %v6608, 4
        %v6610 = vadd.f32 %v6608, %v6609
        %v6611 = vrot.slane %v6610, 2
        %v6612 = vadd.f32 %v6610, %v6611
        %v6613 = vrot.slane %v6612, 1
        %v6614 = vadd.f32 %v6612, %v6613
        %v6615 = vsel %vm1263, %v6485, 0.0
        %v6616 = vrot.slane %v6615, 4
        %v6617 = vadd.f32 %v6615, %v6616
        %v6618 = vrot.slane %v6617, 2
        %v6619 = vadd.f32 %v6617, %v6618
        %v6620 = vrot.slane %v6619, 1
        %v6621 = vadd.f32 %v6619, %v6620
        %v6622 = vsel %vm1263, %v6486, 0.0
        %v6623 = vrot.slane %v6622, 4
        %v6624 = vadd.f32 %v6622, %v6623
        %v6625 = vrot.slane %v6624, 2
        %v6626 = vadd.f32 %v6624, %v6625
        %v6627 = vrot.slane %v6626, 1
        %v6628 = vadd.f32 %v6626, %v6627
        %v6629 = vsel %vm1263, %v6487, 0.0
        %v6630 = vrot.slane %v6629, 4
        %v6631 = vadd.f32 %v6629, %v6630
        %v6632 = vrot.slane %v6631, 2
        %v6633 = vadd.f32 %v6631, %v6632
        %v6634 = vrot.slane %v6633, 1
        %v6635 = vadd.f32 %v6633, %v6634
        %v6636 = vsel %vm1263, %v6488, 0.0
        %v6637 = vrot.slane %v6636, 4
        %v6638 = vadd.f32 %v6636, %v6637
        %v6639 = vrot.slane %v6638, 2
        %v6640 = vadd.f32 %v6638, %v6639
        %v6641 = vrot.slane %v6640, 1
        %v6642 = vadd.f32 %v6640, %v6641
        %v6643 = vsel %vm1263, %v6489, 0.0
        %v6644 = vrot.slane %v6643, 4
        %v6645 = vadd.f32 %v6643, %v6644
        %v6646 = vrot.slane %v6645, 2
        %v6647 = vadd.f32 %v6645, %v6646
        %v6648 = vrot.slane %v6647, 1
        %v6649 = vadd.f32 %v6647, %v6648
        %v6650 = vsel %vm1263, %v6490, 0.0
        %v6651 = vrot.slane %v6650, 4
        %v6652 = vadd.f32 %v6650, %v6651
        %v6653 = vrot.slane %v6652, 2
        %v6654 = vadd.f32 %v6652, %v6653
        %v6655 = vrot.slane %v6654, 1
        %v6656 = vadd.f32 %v6654, %v6655
        %v6657 = vsel %vm1263, %v6491, 0.0
        %v6658 = vrot.slane %v6657, 4
        %v6659 = vadd.f32 %v6657, %v6658
        %v6660 = vrot.slane %v6659, 2
        %v6661 = vadd.f32 %v6659, %v6660
        %v6662 = vrot.slane %v6661, 1
        %v6663 = vadd.f32 %v6661, %v6662
        %v6664 = vsel %vm1263, %v6492, 0.0
        %v6665 = vrot.slane %v6664, 4
        %v6666 = vadd.f32 %v6664, %v6665
        %v6667 = vrot.slane %v6666, 2
        %v6668 = vadd.f32 %v6666, %v6667
        %v6669 = vrot.slane %v6668, 1
        %v6670 = vadd.f32 %v6668, %v6669
        %v6671 = vsel %vm1263, %v6493, 0.0
        %v6672 = vrot.slane %v6671, 4
        %v6673 = vadd.f32 %v6671, %v6672
        %v6674 = vrot.slane %v6673, 2
        %v6675 = vadd.f32 %v6673, %v6674
        %v6676 = vrot.slane %v6675, 1
        %v6677 = vadd.f32 %v6675, %v6676
        %v6678 = vsel %vm1263, %v6494, 0.0
        %v6679 = vrot.slane %v6678, 4
        %v6680 = vadd.f32 %v6678, %v6679
        %v6681 = vrot.slane %v6680, 2
        %v6682 = vadd.f32 %v6680, %v6681
        %v6683 = vrot.slane %v6682, 1
        %v6684 = vadd.f32 %v6682, %v6683
        %v6685 = vsel %vm1263, %v6495, 0.0
        %v6686 = vrot.slane %v6685, 4
        %v6687 = vadd.f32 %v6685, %v6686
        %v6688 = vrot.slane %v6687, 2
        %v6689 = vadd.f32 %v6687, %v6688
        %v6690 = vrot.slane %v6689, 1
        %v6691 = vadd.f32 %v6689, %v6690
        %v6692 = vsel %vm1263, %v6496, 0.0
        %v6693 = vrot.slane %v6692, 4
        %v6694 = vadd.f32 %v6692, %v6693
        %v6695 = vrot.slane %v6694, 2
        %v6696 = vadd.f32 %v6694, %v6695
        %v6697 = vrot.slane %v6696, 1
        %v6698 = vadd.f32 %v6696, %v6697
        %v6699 = vsel %vm1263, %v6497, 0.0
        %v6700 = vrot.slane %v6699, 4
        %v6701 = vadd.f32 %v6699, %v6700
        %v6702 = vrot.slane %v6701, 2
        %v6703 = vadd.f32 %v6701, %v6702
        %v6704 = vrot.slane %v6703, 1
        %v6705 = vadd.f32 %v6703, %v6704
        %v6706 = vsel %vm1263, %v6498, 0.0
        %v6707 = vrot.slane %v6706, 4
        %v6708 = vadd.f32 %v6706, %v6707
        %v6709 = vrot.slane %v6708, 2
        %v6710 = vadd.f32 %v6708, %v6709
        %v6711 = vrot.slane %v6710, 1
        %v6712 = vadd.f32 %v6710, %v6711
        %v6713 = vsel %vm1263, %v6499, 0.0
        %v6714 = vrot.slane %v6713, 4
        %v6715 = vadd.f32 %v6713, %v6714
        %v6716 = vrot.slane %v6715, 2
        %v6717 = vadd.f32 %v6715, %v6716
        %v6718 = vrot.slane %v6717, 1
        %v6719 = vadd.f32 %v6717, %v6718
        %v6720 = vsel %vm1263, %v6500, 0.0
        %v6721 = vrot.slane %v6720, 4
        %v6722 = vadd.f32 %v6720, %v6721
        %v6723 = vrot.slane %v6722, 2
        %v6724 = vadd.f32 %v6722, %v6723
        %v6725 = vrot.slane %v6724, 1
        %v6726 = vadd.f32 %v6724, %v6725
        %v6727 = vsel %vm1263, %v6501, 0.0
        %v6728 = vrot.slane %v6727, 4
        %v6729 = vadd.f32 %v6727, %v6728
        %v6730 = vrot.slane %v6729, 2
        %v6731 = vadd.f32 %v6729, %v6730
        %v6732 = vrot.slane %v6731, 1
        %v6733 = vadd.f32 %v6731, %v6732
        %v6734 = vsel %vm1263, %v6502, 0.0
        %v6735 = vrot.slane %v6734, 4
        %v6736 = vadd.f32 %v6734, %v6735
        %v6737 = vrot.slane %v6736, 2
        %v6738 = vadd.f32 %v6736, %v6737
        %v6739 = vrot.slane %v6738, 1
        %v6740 = vadd.f32 %v6738, %v6739
        %v6741 = vsel %vm1263, %v6503, 0.0
        %v6742 = vrot.slane %v6741, 4
        %v6743 = vadd.f32 %v6741, %v6742
        %v6744 = vrot.slane %v6743, 2
        %v6745 = vadd.f32 %v6743, %v6744
        %v6746 = vrot.slane %v6745, 1
        %v6747 = vadd.f32 %v6745, %v6746
        %v6748 = vsel %vm1263, %v6504, 0.0
        %v6749 = vrot.slane %v6748, 4
        %v6750 = vadd.f32 %v6748, %v6749
        %v6751 = vrot.slane %v6750, 2
        %v6752 = vadd.f32 %v6750, %v6751
        %v6753 = vrot.slane %v6752, 1
        %v6754 = vadd.f32 %v6752, %v6753
        %v6755 = vsel %vm1263, %v6505, 0.0
        %v6756 = vrot.slane %v6755, 4
        %v6757 = vadd.f32 %v6755, %v6756
        %v6758 = vrot.slane %v6757, 2
        %v6759 = vadd.f32 %v6757, %v6758
        %v6760 = vrot.slane %v6759, 1
        %v6761 = vadd.f32 %v6759, %v6760
        %v6762 = vsel %vm1263, %v6506, 0.0
        %v6763 = vrot.slane %v6762, 4
        %v6764 = vadd.f32 %v6762, %v6763
        %v6765 = vrot.slane %v6764, 2
        %v6766 = vadd.f32 %v6764, %v6765
        %v6767 = vrot.slane %v6766, 1
        %v6768 = vadd.f32 %v6766, %v6767
        %v6769 = vsel %vm1263, %v6507, 0.0
        %v6770 = vrot.slane %v6769, 4
        %v6771 = vadd.f32 %v6769, %v6770
        %v6772 = vrot.slane %v6771, 2
        %v6773 = vadd.f32 %v6771, %v6772
        %v6774 = vrot.slane %v6773, 1
        %v6775 = vadd.f32 %v6773, %v6774
        %v6776 = vsel %vm1263, %v6508, 0.0
        %v6777 = vrot.slane %v6776, 4
        %v6778 = vadd.f32 %v6776, %v6777
        %v6779 = vrot.slane %v6778, 2
        %v6780 = vadd.f32 %v6778, %v6779
        %v6781 = vrot.slane %v6780, 1
        %v6782 = vadd.f32 %v6780, %v6781
        %v6783 = vsel %vm1263, %v6509, 0.0
        %v6784 = vrot.slane %v6783, 4
        %v6785 = vadd.f32 %v6783, %v6784
        %v6786 = vrot.slane %v6785, 2
        %v6787 = vadd.f32 %v6785, %v6786
        %v6788 = vrot.slane %v6787, 1
        %v6789 = vadd.f32 %v6787, %v6788
        %v6790 = vsel %vm1263, %v6510, 0.0
        %v6791 = vrot.slane %v6790, 4
        %v6792 = vadd.f32 %v6790, %v6791
        %v6793 = vrot.slane %v6792, 2
        %v6794 = vadd.f32 %v6792, %v6793
        %v6795 = vrot.slane %v6794, 1
        %v6796 = vadd.f32 %v6794, %v6795
        %v6797 = vsel %vm1263, %v6511, 0.0
        %v6798 = vrot.slane %v6797, 4
        %v6799 = vadd.f32 %v6797, %v6798
        %v6800 = vrot.slane %v6799, 2
        %v6801 = vadd.f32 %v6799, %v6800
        %v6802 = vrot.slane %v6801, 1
        %v6803 = vadd.f32 %v6801, %v6802
        %v6804 = vsel %vm1263, %v6512, 0.0
        %v6805 = vrot.slane %v6804, 4
        %v6806 = vadd.f32 %v6804, %v6805
        %v6807 = vrot.slane %v6806, 2
        %v6808 = vadd.f32 %v6806, %v6807
        %v6809 = vrot.slane %v6808, 1
        %v6810 = vadd.f32 %v6808, %v6809
        %v6811 = vsel %vm1263, %v6513, 0.0
        %v6812 = vrot.slane %v6811, 4
        %v6813 = vadd.f32 %v6811, %v6812
        %v6814 = vrot.slane %v6813, 2
        %v6815 = vadd.f32 %v6813, %v6814
        %v6816 = vrot.slane %v6815, 1
        %v6817 = vadd.f32 %v6815, %v6816
        %v6818 = vsel %vm1263, %v6514, 0.0
        %v6819 = vrot.slane %v6818, 4
        %v6820 = vadd.f32 %v6818, %v6819
        %v6821 = vrot.slane %v6820, 2
        %v6822 = vadd.f32 %v6820, %v6821
        %v6823 = vrot.slane %v6822, 1
        %v6824 = vadd.f32 %v6822, %v6823
        %v6825 = vsel %vm1263, %v6515, 0.0
        %v6826 = vrot.slane %v6825, 4
        %v6827 = vadd.f32 %v6825, %v6826
        %v6828 = vrot.slane %v6827, 2
        %v6829 = vadd.f32 %v6827, %v6828
        %v6830 = vrot.slane %v6829, 1
        %v6831 = vadd.f32 %v6829, %v6830
        %v6832 = vsel %vm1263, %v6516, 0.0
        %v6833 = vrot.slane %v6832, 4
        %v6834 = vadd.f32 %v6832, %v6833
        %v6835 = vrot.slane %v6834, 2
        %v6836 = vadd.f32 %v6834, %v6835
        %v6837 = vrot.slane %v6836, 1
        %v6838 = vadd.f32 %v6836, %v6837
        %v6839 = vsel %vm1263, %v6517, 0.0
        %v6840 = vrot.slane %v6839, 4
        %v6841 = vadd.f32 %v6839, %v6840
        %v6842 = vrot.slane %v6841, 2
        %v6843 = vadd.f32 %v6841, %v6842
        %v6844 = vrot.slane %v6843, 1
        %v6845 = vadd.f32 %v6843, %v6844
        %v6846 = vsel %vm1263, %v6518, 0.0
        %v6847 = vrot.slane %v6846, 4
        %v6848 = vadd.f32 %v6846, %v6847
        %v6849 = vrot.slane %v6848, 2
        %v6850 = vadd.f32 %v6848, %v6849
        %v6851 = vrot.slane %v6850, 1
        %v6852 = vadd.f32 %v6850, %v6851
        %v6853 = vsel %vm1263, %v6519, 0.0
        %v6854 = vrot.slane %v6853, 4
        %v6855 = vadd.f32 %v6853, %v6854
        %v6856 = vrot.slane %v6855, 2
        %v6857 = vadd.f32 %v6855, %v6856
        %v6858 = vrot.slane %v6857, 1
        %v6859 = vadd.f32 %v6857, %v6858
        %v6860 = vsel %vm1263, %v6520, 0.0
        %v6861 = vrot.slane %v6860, 4
        %v6862 = vadd.f32 %v6860, %v6861
        %v6863 = vrot.slane %v6862, 2
        %v6864 = vadd.f32 %v6862, %v6863
        %v6865 = vrot.slane %v6864, 1
        %v6866 = vadd.f32 %v6864, %v6865
        %v6867 = vsel %vm1263, %v6521, 0.0
        %v6868 = vrot.slane %v6867, 4
        %v6869 = vadd.f32 %v6867, %v6868
        %v6870 = vrot.slane %v6869, 2
        %v6871 = vadd.f32 %v6869, %v6870
        %v6872 = vrot.slane %v6871, 1
        %v6873 = vadd.f32 %v6871, %v6872
        %v6874 = vsel %vm1263, %v6522, 0.0
        %v6875 = vrot.slane %v6874, 4
        %v6876 = vadd.f32 %v6874, %v6875
        %v6877 = vrot.slane %v6876, 2
        %v6878 = vadd.f32 %v6876, %v6877
        %v6879 = vrot.slane %v6878, 1
        %v6880 = vadd.f32 %v6878, %v6879
        %v6881 = vsel %vm1263, %v6523, 0.0
        %v6882 = vrot.slane %v6881, 4
        %v6883 = vadd.f32 %v6881, %v6882
        %v6884 = vrot.slane %v6883, 2
        %v6885 = vadd.f32 %v6883, %v6884
        %v6886 = vrot.slane %v6885, 1
        %v6887 = vadd.f32 %v6885, %v6886
        %v6888 = vsel %vm1263, %v6524, 0.0
        %v6889 = vrot.slane %v6888, 4
        %v6890 = vadd.f32 %v6888, %v6889
        %v6891 = vrot.slane %v6890, 2
        %v6892 = vadd.f32 %v6890, %v6891
        %v6893 = vrot.slane %v6892, 1
        %v6894 = vadd.f32 %v6892, %v6893
        %v6895 = vsel %vm1263, %v6525, 0.0
        %v6896 = vrot.slane %v6895, 4
        %v6897 = vadd.f32 %v6895, %v6896
        %v6898 = vrot.slane %v6897, 2
        %v6899 = vadd.f32 %v6897, %v6898
        %v6900 = vrot.slane %v6899, 1
        %v6901 = vadd.f32 %v6899, %v6900
        %v6902 = vsel %vm1263, %v6526, 0.0
        %v6903 = vrot.slane %v6902, 4
        %v6904 = vadd.f32 %v6902, %v6903
        %v6905 = vrot.slane %v6904, 2
        %v6906 = vadd.f32 %v6904, %v6905
        %v6907 = vrot.slane %v6906, 1
        %v6908 = vadd.f32 %v6906, %v6907
        %v6909 = vsel %vm1263, %v6527, 0.0
        %v6910 = vrot.slane %v6909, 4
        %v6911 = vadd.f32 %v6909, %v6910
        %v6912 = vrot.slane %v6911, 2
        %v6913 = vadd.f32 %v6911, %v6912
        %v6914 = vrot.slane %v6913, 1
        %v6915 = vadd.f32 %v6913, %v6914
        %v6916 = vsel %vm1263, %v6528, 0.0
        %v6917 = vrot.slane %v6916, 4
        %v6918 = vadd.f32 %v6916, %v6917
        %v6919 = vrot.slane %v6918, 2
        %v6920 = vadd.f32 %v6918, %v6919
        %v6921 = vrot.slane %v6920, 1
        %v6922 = vadd.f32 %v6920, %v6921
        %v6923 = vsel %vm1263, %v6529, 0.0
        %v6924 = vrot.slane %v6923, 4
        %v6925 = vadd.f32 %v6923, %v6924
        %v6926 = vrot.slane %v6925, 2
        %v6927 = vadd.f32 %v6925, %v6926
        %v6928 = vrot.slane %v6927, 1
        %v6929 = vadd.f32 %v6927, %v6928
        %v6930 = vsel %vm1263, %v6530, 0.0
        %v6931 = vrot.slane %v6930, 4
        %v6932 = vadd.f32 %v6930, %v6931
        %v6933 = vrot.slane %v6932, 2
        %v6934 = vadd.f32 %v6932, %v6933
        %v6935 = vrot.slane %v6934, 1
        %v6936 = vadd.f32 %v6934, %v6935
        %v6937 = vsel %vm1263, %v6531, 0.0
        %v6938 = vrot.slane %v6937, 4
        %v6939 = vadd.f32 %v6937, %v6938
        %v6940 = vrot.slane %v6939, 2
        %v6941 = vadd.f32 %v6939, %v6940
        %v6942 = vrot.slane %v6941, 1
        %v6943 = vadd.f32 %v6941, %v6942
        %v6944 = vsel %vm1263, %v6532, 0.0
        %v6945 = vrot.slane %v6944, 4
        %v6946 = vadd.f32 %v6944, %v6945
        %v6947 = vrot.slane %v6946, 2
        %v6948 = vadd.f32 %v6946, %v6947
        %v6949 = vrot.slane %v6948, 1
        %v6950 = vadd.f32 %v6948, %v6949
        %v6951 = vsel %vm1263, %v6533, 0.0
        %v6952 = vrot.slane %v6951, 4
        %v6953 = vadd.f32 %v6951, %v6952
        %v6954 = vrot.slane %v6953, 2
        %v6955 = vadd.f32 %v6953, %v6954
        %v6956 = vrot.slane %v6955, 1
        %v6957 = vadd.f32 %v6955, %v6956
        %v6958 = vsel %vm1263, %v6534, 0.0
        %v6959 = vrot.slane %v6958, 4
        %v6960 = vadd.f32 %v6958, %v6959
        %v6961 = vrot.slane %v6960, 2
        %v6962 = vadd.f32 %v6960, %v6961
        %v6963 = vrot.slane %v6962, 1
        %v6964 = vadd.f32 %v6962, %v6963
        %v6965 = vsel %vm1263, %v6535, 0.0
        %v6966 = vrot.slane %v6965, 4
        %v6967 = vadd.f32 %v6965, %v6966
        %v6968 = vrot.slane %v6967, 2
        %v6969 = vadd.f32 %v6967, %v6968
        %v6970 = vrot.slane %v6969, 1
        %v6971 = vadd.f32 %v6969, %v6970
        %v6972 = vsel %vm1263, %v6536, 0.0
        %v6973 = vrot.slane %v6972, 4
        %v6974 = vadd.f32 %v6972, %v6973
        %v6975 = vrot.slane %v6974, 2
        %v6976 = vadd.f32 %v6974, %v6975
        %v6977 = vrot.slane %v6976, 1
        %v6978 = vadd.f32 %v6976, %v6977
        %v6979 = vsel %vm1263, %v6537, 0.0
        %v6980 = vrot.slane %v6979, 4
        %v6981 = vadd.f32 %v6979, %v6980
        %v6982 = vrot.slane %v6981, 2
        %v6983 = vadd.f32 %v6981, %v6982
        %v6984 = vrot.slane %v6983, 1
        %v6985 = vadd.f32 %v6983, %v6984
        %vm6986 = vcmp.gt.f32.partialorder %v6544, 0.0
        %vm6987 = vcmp.gt.f32.partialorder %v6551, 0.0
        %vm6988 = vcmp.gt.f32.partialorder %v6558, 0.0
        %vm6989 = vcmp.gt.f32.partialorder %v6565, 0.0
        %vm6990 = vcmp.gt.f32.partialorder %v6572, 0.0
        %vm6991 = vcmp.gt.f32.partialorder %v6579, 0.0
        %vm6992 = vcmp.gt.f32.partialorder %v6586, 0.0
        %vm6993 = vcmp.gt.f32.partialorder %v6593, 0.0
        %vm6994 = vcmp.gt.f32.partialorder %v6600, 0.0
        %vm6995 = vcmp.gt.f32.partialorder %v6607, 0.0
        %vm6996 = vcmp.gt.f32.partialorder %v6614, 0.0
        %vm6997 = vcmp.gt.f32.partialorder %v6621, 0.0
        %vm6998 = vcmp.gt.f32.partialorder %v6628, 0.0
        %vm6999 = vcmp.gt.f32.partialorder %v6635, 0.0
        %vm7000 = vcmp.gt.f32.partialorder %v6642, 0.0
        %vm7001 = vcmp.gt.f32.partialorder %v6649, 0.0
        %vm7002 = vcmp.gt.f32.partialorder %v6656, 0.0
        %vm7003 = vcmp.gt.f32.partialorder %v6663, 0.0
        %vm7004 = vcmp.gt.f32.partialorder %v6670, 0.0
        %vm7005 = vcmp.gt.f32.partialorder %v6677, 0.0
        %vm7006 = vcmp.gt.f32.partialorder %v6684, 0.0
        %vm7007 = vcmp.gt.f32.partialorder %v6691, 0.0
        %vm7008 = vcmp.gt.f32.partialorder %v6698, 0.0
        %vm7009 = vcmp.gt.f32.partialorder %v6705, 0.0
        %vm7010 = vcmp.gt.f32.partialorder %v6712, 0.0
        %vm7011 = vcmp.gt.f32.partialorder %v6719, 0.0
        %vm7012 = vcmp.gt.f32.partialorder %v6726, 0.0
        %vm7013 = vcmp.gt.f32.partialorder %v6733, 0.0
        %vm7014 = vcmp.gt.f32.partialorder %v6740, 0.0
        %vm7015 = vcmp.gt.f32.partialorder %v6747, 0.0
        %vm7016 = vcmp.gt.f32.partialorder %v6754, 0.0
        %vm7017 = vcmp.gt.f32.partialorder %v6761, 0.0
        %vm7018 = vcmp.gt.f32.partialorder %v6768, 0.0
        %vm7019 = vcmp.gt.f32.partialorder %v6775, 0.0
        %vm7020 = vcmp.gt.f32.partialorder %v6782, 0.0
        %vm7021 = vcmp.gt.f32.partialorder %v6789, 0.0
        %vm7022 = vcmp.gt.f32.partialorder %v6796, 0.0
        %vm7023 = vcmp.gt.f32.partialorder %v6803, 0.0
        %vm7024 = vcmp.gt.f32.partialorder %v6810, 0.0
        %vm7025 = vcmp.gt.f32.partialorder %v6817, 0.0
        %vm7026 = vcmp.gt.f32.partialorder %v6824, 0.0
        %vm7027 = vcmp.gt.f32.partialorder %v6831, 0.0
        %vm7028 = vcmp.gt.f32.partialorder %v6838, 0.0
        %vm7029 = vcmp.gt.f32.partialorder %v6845, 0.0
        %vm7030 = vcmp.gt.f32.partialorder %v6852, 0.0
        %vm7031 = vcmp.gt.f32.partialorder %v6859, 0.0
        %vm7032 = vcmp.gt.f32.partialorder %v6866, 0.0
        %vm7033 = vcmp.gt.f32.partialorder %v6873, 0.0
        %vm7034 = vcmp.gt.f32.partialorder %v6880, 0.0
        %vm7035 = vcmp.gt.f32.partialorder %v6887, 0.0
        %vm7036 = vcmp.gt.f32.partialorder %v6894, 0.0
        %vm7037 = vcmp.gt.f32.partialorder %v6901, 0.0
        %vm7038 = vcmp.gt.f32.partialorder %v6908, 0.0
        %vm7039 = vcmp.gt.f32.partialorder %v6915, 0.0
        %vm7040 = vcmp.gt.f32.partialorder %v6922, 0.0
        %vm7041 = vcmp.gt.f32.partialorder %v6929, 0.0
        %vm7042 = vcmp.gt.f32.partialorder %v6936, 0.0
        %vm7043 = vcmp.gt.f32.partialorder %v6943, 0.0
        %vm7044 = vcmp.gt.f32.partialorder %v6950, 0.0
        %vm7045 = vcmp.gt.f32.partialorder %v6957, 0.0
        %vm7046 = vcmp.gt.f32.partialorder %v6964, 0.0
        %vm7047 = vcmp.gt.f32.partialorder %v6971, 0.0
        %vm7048 = vcmp.gt.f32.partialorder %v6978, 0.0
        %vm7049 = vcmp.gt.f32.partialorder %v6985, 0.0
        %v7050 = vmul.f32 %v6544, 1.442695
        %v7051 = vpow.pop %v7050
        %v7052 = vmul.f32 %v6551, 1.442695
        %v7053 = vpow.pop %v7052
        %v7054 = vmul.f32 %v6558, 1.442695
        %v7055 = vpow.pop %v7054
        %v7056 = vmul.f32 %v6565, 1.442695
        %v7057 = vpow.pop %v7056
        %v7058 = vmul.f32 %v6572, 1.442695
        %v7059 = vpow.pop %v7058
        %v7060 = vmul.f32 %v6579, 1.442695
        %v7061 = vpow.pop %v7060
        %v7062 = vmul.f32 %v6586, 1.442695
        %v7063 = vpow.pop %v7062
        %v7064 = vmul.f32 %v6593, 1.442695
        %v7065 = vpow.pop %v7064
        %v7066 = vmul.f32 %v6600, 1.442695
        %v7067 = vpow.pop %v7066
        %v7068 = vmul.f32 %v6607, 1.442695
        %v7069 = vpow.pop %v7068
        %v7070 = vmul.f32 %v6614, 1.442695
        %v7071 = vpow.pop %v7070
        %v7072 = vmul.f32 %v6621, 1.442695
        %v7073 = vpow.pop %v7072
        %v7074 = vmul.f32 %v6628, 1.442695
        %v7075 = vpow.pop %v7074
        %v7076 = vmul.f32 %v6635, 1.442695
        %v7077 = vpow.pop %v7076
        %v7078 = vmul.f32 %v6642, 1.442695
        %v7079 = vpow.pop %v7078
        %v7080 = vmul.f32 %v6649, 1.442695
        %v7081 = vpow.pop %v7080
        %v7082 = vmul.f32 %v6656, 1.442695
        %v7083 = vpow.pop %v7082
        %v7084 = vmul.f32 %v6663, 1.442695
        %v7085 = vpow.pop %v7084
        %v7086 = vmul.f32 %v6670, 1.442695
        %v7087 = vpow.pop %v7086
        %v7088 = vmul.f32 %v6677, 1.442695
        %v7089 = vpow.pop %v7088
        %v7090 = vmul.f32 %v6684, 1.442695
        %v7091 = vpow.pop %v7090
        %v7092 = vmul.f32 %v6691, 1.442695
        %v7093 = vpow.pop %v7092
        %v7094 = vmul.f32 %v6698, 1.442695
        %v7095 = vpow.pop %v7094
        %v7096 = vmul.f32 %v6705, 1.442695
        %v7097 = vpow.pop %v7096
        %v7098 = vmul.f32 %v6712, 1.442695
        %v7099 = vpow.pop %v7098
        %v7100 = vmul.f32 %v6719, 1.442695
        %v7101 = vpow.pop %v7100
        %v7102 = vmul.f32 %v6726, 1.442695
        %v7103 = vpow.pop %v7102
        %v7104 = vmul.f32 %v6733, 1.442695
        %v7105 = vpow.pop %v7104
        %v7106 = vmul.f32 %v6740, 1.442695
        %v7107 = vpow.pop %v7106
        %v7108 = vmul.f32 %v6747, 1.442695
        %v7109 = vpow.pop %v7108
        %v7110 = vmul.f32 %v6754, 1.442695
        %v7111 = vpow.pop %v7110
        %v7112 = vmul.f32 %v6761, 1.442695
        %v7113 = vpow.pop %v7112
        %v7114 = vmul.f32 %v6768, 1.442695
        %v7115 = vpow.pop %v7114
        %v7116 = vmul.f32 %v6775, 1.442695
        %v7117 = vpow.pop %v7116
        %v7118 = vmul.f32 %v6782, 1.442695
        %v7119 = vpow.pop %v7118
        %v7120 = vmul.f32 %v6789, 1.442695
        %v7121 = vpow.pop %v7120
        %v7122 = vmul.f32 %v6796, 1.442695
        %v7123 = vpow.pop %v7122
        %v7124 = vmul.f32 %v6803, 1.442695
        %v7125 = vpow.pop %v7124
        %v7126 = vmul.f32 %v6810, 1.442695
        %v7127 = vpow.pop %v7126
        %v7128 = vmul.f32 %v6817, 1.442695
        %v7129 = vpow.pop %v7128
        %v7130 = vmul.f32 %v6824, 1.442695
        %v7131 = vpow.pop %v7130
        %v7132 = vmul.f32 %v6831, 1.442695
        %v7133 = vpow.pop %v7132
        %v7134 = vmul.f32 %v6838, 1.442695
        %v7135 = vpow.pop %v7134
        %v7136 = vmul.f32 %v6845, 1.442695
        %v7137 = vpow.pop %v7136
        %v7138 = vmul.f32 %v6852, 1.442695
        %v7139 = vpow.pop %v7138
        %v7140 = vmul.f32 %v6859, 1.442695
        %v7141 = vpow.pop %v7140
        %v7142 = vmul.f32 %v6866, 1.442695
        %v7143 = vpow.pop %v7142
        %v7144 = vmul.f32 %v6873, 1.442695
        %v7145 = vpow.pop %v7144
        %v7146 = vmul.f32 %v6880, 1.442695
        %v7147 = vpow.pop %v7146
        %v7148 = vmul.f32 %v6887, 1.442695
        %v7149 = vpow.pop %v7148
        %v7150 = vmul.f32 %v6894, 1.442695
        %v7151 = vpow.pop %v7150
        %v7152 = vmul.f32 %v6901, 1.442695
        %v7153 = vpow.pop %v7152
        %v7154 = vmul.f32 %v6908, 1.442695
        %v7155 = vpow.pop %v7154
        %v7156 = vmul.f32 %v6915, 1.442695
        %v7157 = vpow.pop %v7156
        %v7158 = vmul.f32 %v6922, 1.442695
        %v7159 = vpow.pop %v7158
        %v7160 = vmul.f32 %v6929, 1.442695
        %v7161 = vpow.pop %v7160
        %v7162 = vmul.f32 %v6936, 1.442695
        %v7163 = vpow.pop %v7162
        %v7164 = vmul.f32 %v6943, 1.442695
        %v7165 = vpow.pop %v7164
        %v7166 = vmul.f32 %v6950, 1.442695
        %v7167 = vpow.pop %v7166
        %v7168 = vmul.f32 %v6957, 1.442695
        %v7169 = vpow.pop %v7168
        %v7170 = vmul.f32 %v6964, 1.442695
        %v7171 = vpow.pop %v7170
        %v7172 = vmul.f32 %v6971, 1.442695
        %v7173 = vpow.pop %v7172
        %v7174 = vmul.f32 %v6978, 1.442695
        %v7175 = vpow.pop %v7174
        %v7176 = vmul.f32 %v6985, 1.442695
        %v7177 = vpow.pop %v7176
        %v7178 = vsub.f32 %v7051, 1.0
        %v7179 = vsub.f32 %v7053, 1.0
        %v7180 = vsub.f32 %v7055, 1.0
        %v7181 = vsub.f32 %v7057, 1.0
        %v7182 = vsub.f32 %v7059, 1.0
        %v7183 = vsub.f32 %v7061, 1.0
        %v7184 = vsub.f32 %v7063, 1.0
        %v7185 = vsub.f32 %v7065, 1.0
        %v7186 = vsub.f32 %v7067, 1.0
        %v7187 = vsub.f32 %v7069, 1.0
        %v7188 = vsub.f32 %v7071, 1.0
        %v7189 = vsub.f32 %v7073, 1.0
        %v7190 = vsub.f32 %v7075, 1.0
        %v7191 = vsub.f32 %v7077, 1.0
        %v7192 = vsub.f32 %v7079, 1.0
        %v7193 = vsub.f32 %v7081, 1.0
        %v7194 = vsub.f32 %v7083, 1.0
        %v7195 = vsub.f32 %v7085, 1.0
        %v7196 = vsub.f32 %v7087, 1.0
        %v7197 = vsub.f32 %v7089, 1.0
        %v7198 = vsub.f32 %v7091, 1.0
        %v7199 = vsub.f32 %v7093, 1.0
        %v7200 = vsub.f32 %v7095, 1.0
        %v7201 = vsub.f32 %v7097, 1.0
        %v7202 = vsub.f32 %v7099, 1.0
        %v7203 = vsub.f32 %v7101, 1.0
        %v7204 = vsub.f32 %v7103, 1.0
        %v7205 = vsub.f32 %v7105, 1.0
        %v7206 = vsub.f32 %v7107, 1.0
        %v7207 = vsub.f32 %v7109, 1.0
        %v7208 = vsub.f32 %v7111, 1.0
        %v7209 = vsub.f32 %v7113, 1.0
        %v7210 = vsub.f32 %v7115, 1.0
        %v7211 = vsub.f32 %v7117, 1.0
        %v7212 = vsub.f32 %v7119, 1.0
        %v7213 = vsub.f32 %v7121, 1.0
        %v7214 = vsub.f32 %v7123, 1.0
        %v7215 = vsub.f32 %v7125, 1.0
        %v7216 = vsub.f32 %v7127, 1.0
        %v7217 = vsub.f32 %v7129, 1.0
        %v7218 = vsub.f32 %v7131, 1.0
        %v7219 = vsub.f32 %v7133, 1.0
        %v7220 = vsub.f32 %v7135, 1.0
        %v7221 = vsub.f32 %v7137, 1.0
        %v7222 = vsub.f32 %v7139, 1.0
        %v7223 = vsub.f32 %v7141, 1.0
        %v7224 = vsub.f32 %v7143, 1.0
        %v7225 = vsub.f32 %v7145, 1.0
        %v7226 = vsub.f32 %v7147, 1.0
        %v7227 = vsub.f32 %v7149, 1.0
        %v7228 = vsub.f32 %v7151, 1.0
        %v7229 = vsub.f32 %v7153, 1.0
        %v7230 = vsub.f32 %v7155, 1.0
        %v7231 = vsub.f32 %v7157, 1.0
        %v7232 = vsub.f32 %v7159, 1.0
        %v7233 = vsub.f32 %v7161, 1.0
        %v7234 = vsub.f32 %v7163, 1.0
        %v7235 = vsub.f32 %v7165, 1.0
        %v7236 = vsub.f32 %v7167, 1.0
        %v7237 = vsub.f32 %v7169, 1.0
        %v7238 = vsub.f32 %v7171, 1.0
        %v7239 = vsub.f32 %v7173, 1.0
        %v7240 = vsub.f32 %v7175, 1.0
        %v7241 = vsub.f32 %v7177, 1.0
        %v7242 = vsel %vm6986, %v6544, %v7178
        %v7243 = vsel %vm6987, %v6551, %v7179
        %v7244 = vsel %vm6988, %v6558, %v7180
        %v7245 = vsel %vm6989, %v6565, %v7181
        %v7246 = vsel %vm6990, %v6572, %v7182
        %v7247 = vsel %vm6991, %v6579, %v7183
        %v7248 = vsel %vm6992, %v6586, %v7184
        %v7249 = vsel %vm6993, %v6593, %v7185
        %v7250 = vsel %vm6994, %v6600, %v7186
        %v7251 = vsel %vm6995, %v6607, %v7187
        %v7252 = vsel %vm6996, %v6614, %v7188
        %v7253 = vsel %vm6997, %v6621, %v7189
        %v7254 = vsel %vm6998, %v6628, %v7190
        %v7255 = vsel %vm6999, %v6635, %v7191
        %v7256 = vsel %vm7000, %v6642, %v7192
        %v7257 = vsel %vm7001, %v6649, %v7193
        %v7258 = vsel %vm7002, %v6656, %v7194
        %v7259 = vsel %vm7003, %v6663, %v7195
        %v7260 = vsel %vm7004, %v6670, %v7196
        %v7261 = vsel %vm7005, %v6677, %v7197
        %v7262 = vsel %vm7006, %v6684, %v7198
        %v7263 = vsel %vm7007, %v6691, %v7199
        %v7264 = vsel %vm7008, %v6698, %v7200
        %v7265 = vsel %vm7009, %v6705, %v7201
        %v7266 = vsel %vm7010, %v6712, %v7202
        %v7267 = vsel %vm7011, %v6719, %v7203
        %v7268 = vsel %vm7012, %v6726, %v7204
        %v7269 = vsel %vm7013, %v6733, %v7205
        %v7270 = vsel %vm7014, %v6740, %v7206
        %v7271 = vsel %vm7015, %v6747, %v7207
        %v7272 = vsel %vm7016, %v6754, %v7208
        %v7273 = vsel %vm7017, %v6761, %v7209
        %v7274 = vsel %vm7018, %v6768, %v7210
        %v7275 = vsel %vm7019, %v6775, %v7211
        %v7276 = vsel %vm7020, %v6782, %v7212
        %v7277 = vsel %vm7021, %v6789, %v7213
        %v7278 = vsel %vm7022, %v6796, %v7214
        %v7279 = vsel %vm7023, %v6803, %v7215
        %v7280 = vsel %vm7024, %v6810, %v7216
        %v7281 = vsel %vm7025, %v6817, %v7217
        %v7282 = vsel %vm7026, %v6824, %v7218
        %v7283 = vsel %vm7027, %v6831, %v7219
        %v7284 = vsel %vm7028, %v6838, %v7220
        %v7285 = vsel %vm7029, %v6845, %v7221
        %v7286 = vsel %vm7030, %v6852, %v7222
        %v7287 = vsel %vm7031, %v6859, %v7223
        %v7288 = vsel %vm7032, %v6866, %v7224
        %v7289 = vsel %vm7033, %v6873, %v7225
        %v7290 = vsel %vm7034, %v6880, %v7226
        %v7291 = vsel %vm7035, %v6887, %v7227
        %v7292 = vsel %vm7036, %v6894, %v7228
        %v7293 = vsel %vm7037, %v6901, %v7229
        %v7294 = vsel %vm7038, %v6908, %v7230
        %v7295 = vsel %vm7039, %v6915, %v7231
        %v7296 = vsel %vm7040, %v6922, %v7232
        %v7297 = vsel %vm7041, %v6929, %v7233
        %v7298 = vsel %vm7042, %v6936, %v7234
        %v7299 = vsel %vm7043, %v6943, %v7235
        %v7300 = vsel %vm7044, %v6950, %v7236
        %v7301 = vsel %vm7045, %v6957, %v7237
        %v7302 = vsel %vm7046, %v6964, %v7238
        %v7303 = vsel %vm7047, %v6971, %v7239
        %v7304 = vsel %vm7048, %v6978, %v7240
        %v7305 = vsel %vm7049, %v6985, %v7241
        %v7306 = vld [vmem:[%s3 + $0x120] sm:$0xff]
        %v7307 = vld [vmem:[%s3 + $0x128] sm:$0xff]
        %v7308 = vld [vmem:[%s3 + $0x130] sm:$0xff]
        %v7309 = vld [vmem:[%s3 + $0x138] sm:$0xff]
        %v7310 = vld [vmem:[%s3 + $0x140] sm:$0xff]
        %v7311 = vld [vmem:[%s3 + $0x148] sm:$0xff]
        %v7312 = vld [vmem:[%s3 + $0x150] sm:$0xff]
        %v7313 = vld [vmem:[%s3 + $0x158] sm:$0xff]
        %v7314 = vld [vmem:[%s3 + $0x160] sm:$0x1]
        %v7379 = vsel %vm2927, %v7243, %v7242
        %v7380 = vsel %vm2929, %v7244, %v7379
        %v7381 = vsel %vm2931, %v7245, %v7380
        %v7382 = vsel %vm2933, %v7246, %v7381
        %v7383 = vsel %vm2935, %v7247, %v7382
        %v7384 = vsel %vm2937, %v7248, %v7383
        %v7385 = vsel %vm2939, %v7249, %v7384
        %v7386 = vsel %vm2927, %v7251, %v7250
        %v7387 = vsel %vm2929, %v7252, %v7386
        %v7388 = vsel %vm2931, %v7253, %v7387
        %v7389 = vsel %vm2933, %v7254, %v7388
        %v7390 = vsel %vm2935, %v7255, %v7389
        %v7391 = vsel %vm2937, %v7256, %v7390
        %v7392 = vsel %vm2939, %v7257, %v7391
        %v7393 = vsel %vm2927, %v7259, %v7258
        %v7394 = vsel %vm2929, %v7260, %v7393
        %v7395 = vsel %vm2931, %v7261, %v7394
        %v7396 = vsel %vm2933, %v7262, %v7395
        %v7397 = vsel %vm2935, %v7263, %v7396
        %v7398 = vsel %vm2937, %v7264, %v7397
        %v7399 = vsel %vm2939, %v7265, %v7398
        %v7400 = vsel %vm2927, %v7267, %v7266
        %v7401 = vsel %vm2929, %v7268, %v7400
        %v7402 = vsel %vm2931, %v7269, %v7401
        %v7403 = vsel %vm2933, %v7270, %v7402
        %v7404 = vsel %vm2935, %v7271, %v7403
        %v7405 = vsel %vm2937, %v7272, %v7404
        %v7406 = vsel %vm2939, %v7273, %v7405
        %v7407 = vsel %vm2927, %v7275, %v7274
        %v7408 = vsel %vm2929, %v7276, %v7407
        %v7409 = vsel %vm2931, %v7277, %v7408
        %v7410 = vsel %vm2933, %v7278, %v7409
        %v7411 = vsel %vm2935, %v7279, %v7410
        %v7412 = vsel %vm2937, %v7280, %v7411
        %v7413 = vsel %vm2939, %v7281, %v7412
        %v7414 = vsel %vm2927, %v7283, %v7282
        %v7415 = vsel %vm2929, %v7284, %v7414
        %v7416 = vsel %vm2931, %v7285, %v7415
        %v7417 = vsel %vm2933, %v7286, %v7416
        %v7418 = vsel %vm2935, %v7287, %v7417
        %v7419 = vsel %vm2937, %v7288, %v7418
        %v7420 = vsel %vm2939, %v7289, %v7419
        %v7421 = vsel %vm2927, %v7291, %v7290
        %v7422 = vsel %vm2929, %v7292, %v7421
        %v7423 = vsel %vm2931, %v7293, %v7422
        %v7424 = vsel %vm2933, %v7294, %v7423
        %v7425 = vsel %vm2935, %v7295, %v7424
        %v7426 = vsel %vm2937, %v7296, %v7425
        %v7427 = vsel %vm2939, %v7297, %v7426
        %v7428 = vsel %vm2927, %v7299, %v7298
        %v7429 = vsel %vm2929, %v7300, %v7428
        %v7430 = vsel %vm2931, %v7301, %v7429
        %v7431 = vsel %vm2933, %v7302, %v7430
        %v7432 = vsel %vm2935, %v7303, %v7431
        %v7433 = vsel %vm2937, %v7304, %v7432
        %v7434 = vsel %vm2939, %v7305, %v7433
        %v7443 = vsel %vm1263, %v7385, %v5511
        %v7444 = vsel %vm1263, %v7392, %v5512
        %v7445 = vsel %vm1263, %v7399, %v5513
        %v7446 = vsel %vm1263, %v7406, %v5514
        %v7447 = vsel %vm1263, %v7413, %v5515
        %v7448 = vsel %vm1263, %v7420, %v5516
        %v7449 = vsel %vm1263, %v7427, %v5517
        %v7450 = vsel %vm1263, %v7434, %v5518
        %v7451 = vlaneseq
        %v7452 = vshrl.u32 %v7451, 7
        %v7453 = vsub.s32 0, %v7452
        %v7454 = vrot.slane %v7314, %v7453
        %v7456 = vsel %vm5189, %v7443, 0
        %v7459 = vsel %vm5189, %v7444, 0
        %v7462 = vsel %vm5189, %v7445, 0
        %v7465 = vsel %vm5189, %v7446, 0
        %v7468 = vsel %vm5189, %v7447, 0
        %v7471 = vsel %vm5189, %v7448, 0
        %v7474 = vsel %vm5189, %v7449, 0
        %v7477 = vsel %vm5189, %v7450, 0
        %7479 = vmatprep.subr.mxu0 0.0
        %7480 = vmatpush1.msra.mxu0 %v7306
        %7481 = vmatprep.subr.mxu0 0.0
        %7482 = vmatpush1.msra.mxu0 %v7307
        %7483 = vmatprep.subr.mxu0 0.0
        %7484 = vmatpush1.msra.mxu0 %v7308
        %7485 = vmatprep.subr.mxu0 0.0
        %7486 = vmatpush1.msra.mxu0 %v7309
        %7487 = vmatprep.subr.mxu0 0.0
        %7488 = vmatpush1.msra.mxu0 %v7310
        %7489 = vmatprep.subr.mxu0 0.0
        %7490 = vmatpush1.msra.mxu0 %v7311
        %7491 = vmatprep.subr.mxu0 0.0
        %7492 = vmatpush1.msra.mxu0 %v7312
        %7493 = vmatprep.subr.mxu0 0.0
        %7494 = vmatpush1.msra.mxu0 %v7313
        %7495 = vmatprep.subr.mxu0 0.0
        %7496 = vmatpush1.msra.mxu0 0.0
        %7497 = vmatprep.subr.mxu0 0.0
        %7498 = vmatpush1.msra.mxu0 0.0
        %7499 = vmatprep.subr.mxu0 0.0
        %7500 = vmatpush1.msra.mxu0 0.0
        %7501 = vmatprep.subr.mxu0 0.0
        %7502 = vmatpush1.msra.mxu0 0.0
        %7503 = vmatprep.subr.mxu0 0.0
        %7504 = vmatpush1.msra.mxu0 0.0
        %7505 = vmatprep.subr.mxu0 0.0
        %7506 = vmatpush1.msra.mxu0 0.0
        %7507 = vmatprep.subr.mxu0 0.0
        %7508 = vmatpush1.msra.mxu0 0.0
        %7509 = vmatprep.subr.mxu0 0.0
        %7510 = vmatpush1.msra.mxu0 0.0
        %7511 = vmatprep.subr.mxu0 0.0
        %7512 = vmatpush1.msra.mxu0 0.0
        %7513 = vmatprep.subr.mxu0 0.0
        %7514 = vmatpush1.msra.mxu0 0.0
        %7515 = vmatprep.subr.mxu0 0.0
        %7516 = vmatpush1.msra.mxu0 0.0
        %7517 = vmatprep.subr.mxu0 0.0
        %7518 = vmatpush1.msra.mxu0 0.0
        %7519 = vmatprep.subr.mxu0 0.0
        %7520 = vmatpush1.msra.mxu0 0.0
        %7521 = vmatprep.subr.mxu0 0.0
        %7522 = vmatpush1.msra.mxu0 0.0
        %7523 = vmatprep.subr.mxu0 0.0
        %7524 = vmatpush1.msra.mxu0 0.0
        %7525 = vmatprep.subr.mxu0 0.0
        %7526 = vmatpush1.msra.mxu0 0.0
        %7527 = vmatprep.subr.mxu0 0.0
        %7528 = vmatpush1.msra.mxu0 0.0
        %7529 = vmatprep.subr.mxu0 0.0
        %7530 = vmatpush1.msra.mxu0 0.0
        %7531 = vmatprep.subr.mxu0 0.0
        %7532 = vmatpush1.msra.mxu0 0.0
        %7533 = vmatprep.subr.mxu0 0.0
        %7534 = vmatpush1.msra.mxu0 0.0
        %7535 = vmatprep.subr.mxu0 0.0
        %7536 = vmatpush1.msra.mxu0 0.0
        %7537 = vmatprep.subr.mxu0 0.0
        %7538 = vmatpush1.msra.mxu0 0.0
        %7539 = vmatprep.subr.mxu0 0.0
        %7540 = vmatpush1.msra.mxu0 0.0
        %7541 = vmatprep.subr.mxu0 0.0
        %7542 = vmatpush1.msra.mxu0 0.0
        %7543 = vmatprep.mubr.f32.mxu0 0.0
        %7544 = vmatmul.mubr.f32.gmra.mrb[0].mxu0 %v7456
        %v7545 = vpop.f32.mrb[0].mxu0
        %v7546 = vadd.f32 %v7454, %v7545
        %v7547 = vpop.f32.mrb[0].mxu0
        %7548 = vmatprep.mubr.f32.mxu0 0.0
        %7549 = vmatmul.mubr.f32.gmra.mrb[0].mxu0 %v7459
        %v7550 = vpop.f32.mrb[0].mxu0
        %v7551 = vadd.f32 %v7454, %v7550
        %v7552 = vpop.f32.mrb[0].mxu0
        %7553 = vmatprep.mubr.f32.mxu0 0.0
        %7554 = vmatmul.mubr.f32.gmra.mrb[0].mxu0 %v7462
        %v7555 = vpop.f32.mrb[0].mxu0
        %v7556 = vadd.f32 %v7454, %v7555
        %v7557 = vpop.f32.mrb[0].mxu0
        %7558 = vmatprep.mubr.f32.mxu0 0.0
        %7559 = vmatmul.mubr.f32.gmra.mrb[0].mxu0 %v7465
        %v7560 = vpop.f32.mrb[0].mxu0
        %v7561 = vadd.f32 %v7454, %v7560
        %v7562 = vpop.f32.mrb[0].mxu0
        %7563 = vmatprep.mubr.f32.mxu0 0.0
        %7564 = vmatmul.mubr.f32.gmra.mrb[0].mxu0 %v7468
        %v7565 = vpop.f32.mrb[0].mxu0
        %v7566 = vadd.f32 %v7454, %v7565
        %v7567 = vpop.f32.mrb[0].mxu0
        %7568 = vmatprep.mubr.f32.mxu0 0.0
        %7569 = vmatmul.mubr.f32.gmra.mrb[0].mxu0 %v7471
        %v7570 = vpop.f32.mrb[0].mxu0
        %v7571 = vadd.f32 %v7454, %v7570
        %v7572 = vpop.f32.mrb[0].mxu0
        %7573 = vmatprep.mubr.f32.mxu0 0.0
        %7574 = vmatmul.mubr.f32.gmra.mrb[0].mxu0 %v7474
        %v7575 = vpop.f32.mrb[0].mxu0
        %v7576 = vadd.f32 %v7454, %v7575
        %v7577 = vpop.f32.mrb[0].mxu0
        %7578 = vmatprep.mubr.f32.mxu0 0.0
        %7579 = vmatmul.mubr.f32.gmra.mrb[0].mxu0 %v7477
        %v7580 = vpop.f32.mrb[0].mxu0
        %v7581 = vadd.f32 %v7454, %v7580
        %v7582 = vpop.f32.mrb[0].mxu0
        %7583 = vdwg.mxu0
        %v7584 = vxor.u32 %v7546, 2147483648
        %v7585 = vxor.u32 %v7551, 2147483648
        %v7586 = vxor.u32 %v7556, 2147483648
        %v7587 = vxor.u32 %v7561, 2147483648
        %v7588 = vxor.u32 %v7566, 2147483648
        %v7589 = vxor.u32 %v7571, 2147483648
        %v7590 = vxor.u32 %v7576, 2147483648
        %v7591 = vxor.u32 %v7581, 2147483648
        %v7592 = vmul.f32 %v7584, 1.442695
        %v7593 = vpow.pop %v7592
        %v7594 = vmul.f32 %v7585, 1.442695
        %v7595 = vpow.pop %v7594
        %v7596 = vmul.f32 %v7586, 1.442695
        %v7597 = vpow.pop %v7596
        %v7598 = vmul.f32 %v7587, 1.442695
        %v7599 = vpow.pop %v7598
        %v7600 = vmul.f32 %v7588, 1.442695
        %v7601 = vpow.pop %v7600
        %v7602 = vmul.f32 %v7589, 1.442695
        %v7603 = vpow.pop %v7602
        %v7604 = vmul.f32 %v7590, 1.442695
        %v7605 = vpow.pop %v7604
        %v7606 = vmul.f32 %v7591, 1.442695
        %v7607 = vpow.pop %v7606
        %v7608 = vadd.f32 %v7593, 1.0
        %v7609 = vadd.f32 %v7595, 1.0
        %v7610 = vadd.f32 %v7597, 1.0
        %v7611 = vadd.f32 %v7599, 1.0
        %v7612 = vadd.f32 %v7601, 1.0
        %v7613 = vadd.f32 %v7603, 1.0
        %v7614 = vadd.f32 %v7605, 1.0
        %v7615 = vadd.f32 %v7607, 1.0
        %v7616 = vrcp.pop %v7608
        %v7617 = vmul.f32 1.0, %v7616
        %v7618 = vrcp.pop %v7609
        %v7619 = vmul.f32 1.0, %v7618
        %v7620 = vrcp.pop %v7610
        %v7621 = vmul.f32 1.0, %v7620
        %v7622 = vrcp.pop %v7611
        %v7623 = vmul.f32 1.0, %v7622
        %v7624 = vrcp.pop %v7612
        %v7625 = vmul.f32 1.0, %v7624
        %v7626 = vrcp.pop %v7613
        %v7627 = vmul.f32 1.0, %v7626
        %v7628 = vrcp.pop %v7614
        %v7629 = vmul.f32 1.0, %v7628
        %v7630 = vrcp.pop %v7615
        %v7631 = vmul.f32 1.0, %v7630
        %7640 = vrot.lane.b32.xlu0 %v7546, 32
        %v7641 = vpop.permute.xlu0 %7640
        %7642 = vrot.lane.b32.xlu0 %v7551, 32
        %v7643 = vpop.permute.xlu0 %7642
        %7644 = vrot.lane.b32.xlu0 %v7556, 32
        %v7645 = vpop.permute.xlu0 %7644
        %7646 = vrot.lane.b32.xlu0 %v7561, 32
        %v7647 = vpop.permute.xlu0 %7646
        %7648 = vrot.lane.b32.xlu0 %v7566, 32
        %v7649 = vpop.permute.xlu0 %7648
        %7650 = vrot.lane.b32.xlu0 %v7571, 32
        %v7651 = vpop.permute.xlu0 %7650
        %7652 = vrot.lane.b32.xlu0 %v7576, 32
        %v7653 = vpop.permute.xlu0 %7652
        %7654 = vrot.lane.b32.xlu0 %v7581, 32
        %v7655 = vpop.permute.xlu0 %7654
        %v7664 = vmul.f32 %v7617, %v7641
        %v7665 = vmul.f32 %v7619, %v7643
        %v7666 = vmul.f32 %v7621, %v7645
        %v7667 = vmul.f32 %v7623, %v7647
        %v7668 = vmul.f32 %v7625, %v7649
        %v7669 = vmul.f32 %v7627, %v7651
        %v7670 = vmul.f32 %v7629, %v7653
        %v7671 = vmul.f32 %v7631, %v7655
        %7680 = vrot.lane.b32.xlu0 %v7664, 64
        %v7681 = vpop.permute.xlu0 %7680
        %7682 = vrot.lane.b32.xlu0 %v7665, 64
        %v7683 = vpop.permute.xlu0 %7682
        %7684 = vrot.lane.b32.xlu0 %v7666, 64
        %v7685 = vpop.permute.xlu0 %7684
        %7686 = vrot.lane.b32.xlu0 %v7667, 64
        %v7687 = vpop.permute.xlu0 %7686
        %7688 = vrot.lane.b32.xlu0 %v7668, 64
        %v7689 = vpop.permute.xlu0 %7688
        %7690 = vrot.lane.b32.xlu0 %v7669, 64
        %v7691 = vpop.permute.xlu0 %7690
        %7692 = vrot.lane.b32.xlu0 %v7670, 64
        %v7693 = vpop.permute.xlu0 %7692
        %7694 = vrot.lane.b32.xlu0 %v7671, 64
        %v7695 = vpop.permute.xlu0 %7694
        %v7704 = vadd.f32 %v7546, %v7681
        %v7705 = vadd.f32 %v7551, %v7683
        %v7706 = vadd.f32 %v7556, %v7685
        %v7707 = vadd.f32 %v7561, %v7687
        %v7708 = vadd.f32 %v7566, %v7689
        %v7709 = vadd.f32 %v7571, %v7691
        %v7710 = vadd.f32 %v7576, %v7693
        %v7711 = vadd.f32 %v7581, %v7695
        %v7712 = vtanh.pop %v7704
        %v7713 = vtanh.pop %v7705
        %v7714 = vtanh.pop %v7706
        %v7715 = vtanh.pop %v7707
        %v7716 = vtanh.pop %v7708
        %v7717 = vtanh.pop %v7709
        %v7718 = vtanh.pop %v7710
        %v7719 = vtanh.pop %v7711
        %v7720 = vsub.f32 1.0, %v7617
        %v7721 = vsub.f32 1.0, %v7619
        %v7722 = vsub.f32 1.0, %v7621
        %v7723 = vsub.f32 1.0, %v7623
        %v7724 = vsub.f32 1.0, %v7625
        %v7725 = vsub.f32 1.0, %v7627
        %v7726 = vsub.f32 1.0, %v7629
        %v7727 = vsub.f32 1.0, %v7631
        %7736 = vrot.lane.b32.xlu0 %v7712, 96
        %v7737 = vpop.permute.xlu0 %7736
        %7738 = vrot.lane.b32.xlu0 %v7713, 96
        %v7739 = vpop.permute.xlu0 %7738
        %7740 = vrot.lane.b32.xlu0 %v7714, 96
        %v7741 = vpop.permute.xlu0 %7740
        %7742 = vrot.lane.b32.xlu0 %v7715, 96
        %v7743 = vpop.permute.xlu0 %7742
        %7744 = vrot.lane.b32.xlu0 %v7716, 96
        %v7745 = vpop.permute.xlu0 %7744
        %7746 = vrot.lane.b32.xlu0 %v7717, 96
        %v7747 = vpop.permute.xlu0 %7746
        %7748 = vrot.lane.b32.xlu0 %v7718, 96
        %v7749 = vpop.permute.xlu0 %7748
        %7750 = vrot.lane.b32.xlu0 %v7719, 96
        %v7751 = vpop.permute.xlu0 %7750
        %v7760 = vmul.f32 %v7720, %v7737
        %v7761 = vmul.f32 %v7721, %v7739
        %v7762 = vmul.f32 %v7722, %v7741
        %v7763 = vmul.f32 %v7723, %v7743
        %v7764 = vmul.f32 %v7724, %v7745
        %v7765 = vmul.f32 %v7725, %v7747
        %v7766 = vmul.f32 %v7726, %v7749
        %v7767 = vmul.f32 %v7727, %v7751
        %v7768 = vmul.f32 %v7617, %v5511
        %v7769 = vmul.f32 %v7619, %v5512
        %v7770 = vmul.f32 %v7621, %v5513
        %v7771 = vmul.f32 %v7623, %v5514
        %v7772 = vmul.f32 %v7625, %v5515
        %v7773 = vmul.f32 %v7627, %v5516
        %v7774 = vmul.f32 %v7629, %v5517
        %v7775 = vmul.f32 %v7631, %v5518
        %v7776 = vadd.f32 %v7760, %v7768
        %v7777 = vadd.f32 %v7761, %v7769
        %v7778 = vadd.f32 %v7762, %v7770
        %v7779 = vadd.f32 %v7763, %v7771
        %v7780 = vadd.f32 %v7764, %v7772
        %v7781 = vadd.f32 %v7765, %v7773
        %v7782 = vadd.f32 %v7766, %v7774
        %v7783 = vadd.f32 %v7767, %v7775
        %vm7784 = vcmask 523520
        %v7785 = vsel %vm7784, %v7776, 0.0
        %v7786 = vrot.slane %v7785, 4
        %v7787 = vadd.f32 %v7785, %v7786
        %v7788 = vrot.slane %v7787, 2
        %v7789 = vadd.f32 %v7787, %v7788
        %v7790 = vrot.slane %v7789, 1
        %v7791 = vadd.f32 %v7789, %v7790
        %v7792 = vsel %vm7784, %v7777, 0.0
        %v7793 = vrot.slane %v7792, 4
        %v7794 = vadd.f32 %v7792, %v7793
        %v7795 = vrot.slane %v7794, 2
        %v7796 = vadd.f32 %v7794, %v7795
        %v7797 = vrot.slane %v7796, 1
        %v7798 = vadd.f32 %v7796, %v7797
        %v7799 = vsel %vm7784, %v7778, 0.0
        %v7800 = vrot.slane %v7799, 4
        %v7801 = vadd.f32 %v7799, %v7800
        %v7802 = vrot.slane %v7801, 2
        %v7803 = vadd.f32 %v7801, %v7802
        %v7804 = vrot.slane %v7803, 1
        %v7805 = vadd.f32 %v7803, %v7804
        %v7806 = vsel %vm7784, %v7779, 0.0
        %v7807 = vrot.slane %v7806, 4
        %v7808 = vadd.f32 %v7806, %v7807
        %v7809 = vrot.slane %v7808, 2
        %v7810 = vadd.f32 %v7808, %v7809
        %v7811 = vrot.slane %v7810, 1
        %v7812 = vadd.f32 %v7810, %v7811
        %v7813 = vsel %vm7784, %v7780, 0.0
        %v7814 = vrot.slane %v7813, 4
        %v7815 = vadd.f32 %v7813, %v7814
        %v7816 = vrot.slane %v7815, 2
        %v7817 = vadd.f32 %v7815, %v7816
        %v7818 = vrot.slane %v7817, 1
        %v7819 = vadd.f32 %v7817, %v7818
        %v7820 = vsel %vm7784, %v7781, 0.0
        %v7821 = vrot.slane %v7820, 4
        %v7822 = vadd.f32 %v7820, %v7821
        %v7823 = vrot.slane %v7822, 2
        %v7824 = vadd.f32 %v7822, %v7823
        %v7825 = vrot.slane %v7824, 1
        %v7826 = vadd.f32 %v7824, %v7825
        %v7827 = vsel %vm7784, %v7782, 0.0
        %v7828 = vrot.slane %v7827, 4
        %v7829 = vadd.f32 %v7827, %v7828
        %v7830 = vrot.slane %v7829, 2
        %v7831 = vadd.f32 %v7829, %v7830
        %v7832 = vrot.slane %v7831, 1
        %v7833 = vadd.f32 %v7831, %v7832
        %v7834 = vsel %vm7784, %v7783, 0.0
        %v7835 = vrot.slane %v7834, 4
        %v7836 = vadd.f32 %v7834, %v7835
        %v7837 = vrot.slane %v7836, 2
        %v7838 = vadd.f32 %v7836, %v7837
        %v7839 = vrot.slane %v7838, 1
        %v7840 = vadd.f32 %v7838, %v7839
        %v7841 = vmax.f32 %v7776, 0.0
        %v7842 = vmax.f32 %v7777, 0.0
        %v7843 = vmax.f32 %v7778, 0.0
        %v7844 = vmax.f32 %v7779, 0.0
        %v7845 = vmax.f32 %v7780, 0.0
        %v7846 = vmax.f32 %v7781, 0.0
        %v7847 = vmax.f32 %v7782, 0.0
        %v7848 = vmax.f32 %v7783, 0.0
        %v7849 = vld [vmem:[%s3 + $0x180] sm:$0xff]
        %v7850 = vld [vmem:[%s3 + $0x188] sm:$0xff]
        %v7851 = vld [vmem:[%s3 + $0x190] sm:$0xff]
        %v7852 = vld [vmem:[%s3 + $0x198] sm:$0xff]
        %v7853 = vld [vmem:[%s3 + $0x1a0] sm:$0x1]
        %v7854 = vlaneseq
        %v7855 = vshrl.u32 %v7854, 7
        %v7856 = vsub.s32 0, %v7855
        %v7857 = vrot.slane %v7853, %v7856
        %7866 = vrot.lane.b32.xlu0 %v7841, 96
        %v7867 = vpop.permute.xlu0 %7866
        %7868 = vrot.lane.b32.xlu0 %v7842, 96
        %v7869 = vpop.permute.xlu0 %7868
        %7870 = vrot.lane.b32.xlu0 %v7843, 96
        %v7871 = vpop.permute.xlu0 %7870
        %7872 = vrot.lane.b32.xlu0 %v7844, 96
        %v7873 = vpop.permute.xlu0 %7872
        %7874 = vrot.lane.b32.xlu0 %v7845, 96
        %v7875 = vpop.permute.xlu0 %7874
        %7876 = vrot.lane.b32.xlu0 %v7846, 96
        %v7877 = vpop.permute.xlu0 %7876
        %7878 = vrot.lane.b32.xlu0 %v7847, 96
        %v7879 = vpop.permute.xlu0 %7878
        %7880 = vrot.lane.b32.xlu0 %v7848, 96
        %v7881 = vpop.permute.xlu0 %7880
        %v7882 = vsel %vm1263, %v7867, 0
        %v7884 = vsel %vm1263, %v7869, 0
        %v7886 = vsel %vm1263, %v7871, 0
        %v7888 = vsel %vm1263, %v7873, 0
        %v7890 = vsel %vm1263, %v7875, 0
        %v7892 = vsel %vm1263, %v7877, 0
        %v7894 = vsel %vm1263, %v7879, 0
        %v7896 = vsel %vm1263, %v7881, 0
        %7898 = vmatprep.subr.mxu0 0.0
        %7899 = vmatpush1.msra.mxu0 %v7849
        %7900 = vmatprep.subr.mxu0 0.0
        %7901 = vmatpush1.msra.mxu0 %v7850
        %7902 = vmatprep.subr.mxu0 0.0
        %7903 = vmatpush1.msra.mxu0 %v7851
        %7904 = vmatprep.subr.mxu0 0.0
        %7905 = vmatpush1.msra.mxu0 %v7852
        %7906 = vmatprep.subr.mxu0 0.0
        %7907 = vmatpush1.msra.mxu0 0.0
        %7908 = vmatprep.subr.mxu0 0.0
        %7909 = vmatpush1.msra.mxu0 0.0
        %7910 = vmatprep.subr.mxu0 0.0
        %7911 = vmatpush1.msra.mxu0 0.0
        %7912 = vmatprep.subr.mxu0 0.0
        %7913 = vmatpush1.msra.mxu0 0.0
        %7914 = vmatprep.subr.mxu0 0.0
        %7915 = vmatpush1.msra.mxu0 0.0
        %7916 = vmatprep.subr.mxu0 0.0
        %7917 = vmatpush1.msra.mxu0 0.0
        %7918 = vmatprep.subr.mxu0 0.0
        %7919 = vmatpush1.msra.mxu0 0.0
        %7920 = vmatprep.subr.mxu0 0.0
        %7921 = vmatpush1.msra.mxu0 0.0
        %7922 = vmatprep.subr.mxu0 0.0
        %7923 = vmatpush1.msra.mxu0 0.0
        %7924 = vmatprep.subr.mxu0 0.0
        %7925 = vmatpush1.msra.mxu0 0.0
        %7926 = vmatprep.subr.mxu0 0.0
        %7927 = vmatpush1.msra.mxu0 0.0
        %7928 = vmatprep.subr.mxu0 0.0
        %7929 = vmatpush1.msra.mxu0 0.0
        %7930 = vmatprep.subr.mxu0 0.0
        %7931 = vmatpush1.msra.mxu0 0.0
        %7932 = vmatprep.subr.mxu0 0.0
        %7933 = vmatpush1.msra.mxu0 0.0
        %7934 = vmatprep.subr.mxu0 0.0
        %7935 = vmatpush1.msra.mxu0 0.0
        %7936 = vmatprep.subr.mxu0 0.0
        %7937 = vmatpush1.msra.mxu0 0.0
        %7938 = vmatprep.subr.mxu0 0.0
        %7939 = vmatpush1.msra.mxu0 0.0
        %7940 = vmatprep.subr.mxu0 0.0
        %7941 = vmatpush1.msra.mxu0 0.0
        %7942 = vmatprep.subr.mxu0 0.0
        %7943 = vmatpush1.msra.mxu0 0.0
        %7944 = vmatprep.subr.mxu0 0.0
        %7945 = vmatpush1.msra.mxu0 0.0
        %7946 = vmatprep.subr.mxu0 0.0
        %7947 = vmatpush1.msra.mxu0 0.0
        %7948 = vmatprep.subr.mxu0 0.0
        %7949 = vmatpush1.msra.mxu0 0.0
        %7950 = vmatprep.subr.mxu0 0.0
        %7951 = vmatpush1.msra.mxu0 0.0
        %7952 = vmatprep.subr.mxu0 0.0
        %7953 = vmatpush1.msra.mxu0 0.0
        %7954 = vmatprep.subr.mxu0 0.0
        %7955 = vmatpush1.msra.mxu0 0.0
        %7956 = vmatprep.subr.mxu0 0.0
        %7957 = vmatpush1.msra.mxu0 0.0
        %7958 = vmatprep.subr.mxu0 0.0
        %7959 = vmatpush1.msra.mxu0 0.0
        %7960 = vmatprep.subr.mxu0 0.0
        %7961 = vmatpush1.msra.mxu0 0.0
        %7962 = vmatprep.mubr.f32.mxu0 0.0
        %7963 = vmatmul.mubr.f32.gmra.mrb[0].mxu0 %v7882
        %v7964 = vpop.f32.mrb[0].mxu0
        %v7965 = vadd.f32 %v7857, %v7964
        %v7966 = vpop.f32.mrb[0].mxu0
        %7967 = vmatprep.mubr.f32.mxu0 0.0
        %7968 = vmatmul.mubr.f32.gmra.mrb[0].mxu0 %v7884
        %v7969 = vpop.f32.mrb[0].mxu0
        %v7970 = vadd.f32 %v7857, %v7969
        %v7971 = vpop.f32.mrb[0].mxu0
        %7972 = vmatprep.mubr.f32.mxu0 0.0
        %7973 = vmatmul.mubr.f32.gmra.mrb[0].mxu0 %v7886
        %v7974 = vpop.f32.mrb[0].mxu0
        %v7975 = vadd.f32 %v7857, %v7974
        %v7976 = vpop.f32.mrb[0].mxu0
        %7977 = vmatprep.mubr.f32.mxu0 0.0
        %7978 = vmatmul.mubr.f32.gmra.mrb[0].mxu0 %v7888
        %v7979 = vpop.f32.mrb[0].mxu0
        %v7980 = vadd.f32 %v7857, %v7979
        %v7981 = vpop.f32.mrb[0].mxu0
        %7982 = vmatprep.mubr.f32.mxu0 0.0
        %7983 = vmatmul.mubr.f32.gmra.mrb[0].mxu0 %v7890
        %v7984 = vpop.f32.mrb[0].mxu0
        %v7985 = vadd.f32 %v7857, %v7984
        %v7986 = vpop.f32.mrb[0].mxu0
        %7987 = vmatprep.mubr.f32.mxu0 0.0
        %7988 = vmatmul.mubr.f32.gmra.mrb[0].mxu0 %v7892
        %v7989 = vpop.f32.mrb[0].mxu0
        %v7990 = vadd.f32 %v7857, %v7989
        %v7991 = vpop.f32.mrb[0].mxu0
        %7992 = vmatprep.mubr.f32.mxu0 0.0
        %7993 = vmatmul.mubr.f32.gmra.mrb[0].mxu0 %v7894
        %v7994 = vpop.f32.mrb[0].mxu0
        %v7995 = vadd.f32 %v7857, %v7994
        %v7996 = vpop.f32.mrb[0].mxu0
        %7997 = vmatprep.mubr.f32.mxu0 0.0
        %7998 = vmatmul.mubr.f32.gmra.mrb[0].mxu0 %v7896
        %v7999 = vpop.f32.mrb[0].mxu0
        %v8000 = vadd.f32 %v7857, %v7999
        %v8001 = vpop.f32.mrb[0].mxu0
        %8002 = vdwg.mxu0
        %v8003 = vld [vmem:[%s3 + $0x178] sm:$0x1]
        %v8004 = vlaneseq
        %v8005 = vshrl.u32 %v8004, 7
        %v8006 = vsub.s32 0, %v8005
        %v8007 = vrot.slane %v8003, %v8006
        %8009 = vrot.lane.b32.xlu0 %v8007, 32
        %v8010 = vpop.permute.xlu0 %8009
        %v8012 = vmul.f32 %v7841, %v8010
        %v8013 = vmul.f32 %v7842, %v8010
        %v8014 = vmul.f32 %v7843, %v8010
        %v8015 = vmul.f32 %v7844, %v8010
        %v8016 = vmul.f32 %v7845, %v8010
        %v8017 = vmul.f32 %v7846, %v8010
        %v8018 = vmul.f32 %v7847, %v8010
        %v8019 = vmul.f32 %v7848, %v8010
        %8028 = vrot.lane.b32.xlu0 %v8012, 96
        %v8029 = vpop.permute.xlu0 %8028
        %8030 = vrot.lane.b32.xlu0 %v8013, 96
        %v8031 = vpop.permute.xlu0 %8030
        %8032 = vrot.lane.b32.xlu0 %v8014, 96
        %v8033 = vpop.permute.xlu0 %8032
        %8034 = vrot.lane.b32.xlu0 %v8015, 96
        %v8035 = vpop.permute.xlu0 %8034
        %8036 = vrot.lane.b32.xlu0 %v8016, 96
        %v8037 = vpop.permute.xlu0 %8036
        %8038 = vrot.lane.b32.xlu0 %v8017, 96
        %v8039 = vpop.permute.xlu0 %8038
        %8040 = vrot.lane.b32.xlu0 %v8018, 96
        %v8041 = vpop.permute.xlu0 %8040
        %8042 = vrot.lane.b32.xlu0 %v8019, 96
        %v8043 = vpop.permute.xlu0 %8042
        %v8052 = vsel %vm1263, %v8029, 0.0
        %8053 = vadd.xlane.f32.xlu0 %v8052
        %v8054 = vpop.xlane.xlu0 %8053
        %v8055 = vsel %vm1263, %v8031, 0.0
        %8056 = vadd.xlane.f32.xlu0 %v8055
        %v8057 = vpop.xlane.xlu0 %8056
        %v8058 = vsel %vm1263, %v8033, 0.0
        %8059 = vadd.xlane.f32.xlu0 %v8058
        %v8060 = vpop.xlane.xlu0 %8059
        %v8061 = vsel %vm1263, %v8035, 0.0
        %8062 = vadd.xlane.f32.xlu0 %v8061
        %v8063 = vpop.xlane.xlu0 %8062
        %v8064 = vsel %vm1263, %v8037, 0.0
        %8065 = vadd.xlane.f32.xlu0 %v8064
        %v8066 = vpop.xlane.xlu0 %8065
        %v8067 = vsel %vm1263, %v8039, 0.0
        %8068 = vadd.xlane.f32.xlu0 %v8067
        %v8069 = vpop.xlane.xlu0 %8068
        %v8070 = vsel %vm1263, %v8041, 0.0
        %8071 = vadd.xlane.f32.xlu0 %v8070
        %v8072 = vpop.xlane.xlu0 %8071
        %v8073 = vsel %vm1263, %v8043, 0.0
        %8074 = vadd.xlane.f32.xlu0 %v8073
        %v8075 = vpop.xlane.xlu0 %8074
        %v8076 = vmax.f32 %v7791, 0.0
        %v8077 = vmax.f32 %v7798, 0.0
        %v8078 = vmax.f32 %v7805, 0.0
        %v8079 = vmax.f32 %v7812, 0.0
        %v8080 = vmax.f32 %v7819, 0.0
        %v8081 = vmax.f32 %v7826, 0.0
        %v8082 = vmax.f32 %v7833, 0.0
        %v8083 = vmax.f32 %v7840, 0.0
        %v8084 = vld [vmem:[%s3 + $0x168] sm:$0x1]
        %v8085 = vlaneseq
        %v8086 = vshrl.u32 %v8085, 7
        %v8087 = vsub.s32 0, %v8086
        %v8088 = vrot.slane %v8084, %v8087
        %8090 = vrot.lane.b32.xlu0 %v8088, 32
        %v8091 = vpop.permute.xlu0 %8090
        %v8093 = vmul.f32 %v8076, %v8091
        %v8094 = vmul.f32 %v8077, %v8091
        %v8095 = vmul.f32 %v8078, %v8091
        %v8096 = vmul.f32 %v8079, %v8091
        %v8097 = vmul.f32 %v8080, %v8091
        %v8098 = vmul.f32 %v8081, %v8091
        %v8099 = vmul.f32 %v8082, %v8091
        %v8100 = vmul.f32 %v8083, %v8091
        %v8109 = vrot.slane %v8094, 7
        %v8110 = vsel %vm2927, %v8109, %v8093
        %v8111 = vrot.slane %v8095, 6
        %v8112 = vsel %vm2929, %v8111, %v8110
        %v8113 = vrot.slane %v8096, 5
        %v8114 = vsel %vm2931, %v8113, %v8112
        %v8115 = vrot.slane %v8097, 4
        %v8116 = vsel %vm2933, %v8115, %v8114
        %v8117 = vrot.slane %v8098, 3
        %v8118 = vsel %vm2935, %v8117, %v8116
        %v8119 = vrot.slane %v8099, 2
        %v8120 = vsel %vm2937, %v8119, %v8118
        %v8121 = vrot.slane %v8100, 1
        %v8122 = vsel %vm2939, %v8121, %v8120
        %8123 = vrot.lane.b32.xlu0 %v8122, 96
        %v8124 = vpop.permute.xlu0 %8123
        %v8126 = vsel %vm1263, %v8124, 0.0
        %8127 = vadd.xlane.f32.xlu0 %v8126
        %v8128 = vpop.xlane.xlu0 %8127
        %v8137 = vlaneseq
        %v8138 = vshrl.u32 %v8137, 7
        %v8139 = vsub.s32 %v2670, %v8138
        %v8140 = vrot.slane %v8054, %v8139
        %v8141 = vlaneseq
        %v8142 = vshrl.u32 %v8141, 7
        %v8143 = vsub.s32 %v2670, %v8142
        %v8144 = vrot.slane %v8057, %v8143
        %v8145 = vlaneseq
        %v8146 = vshrl.u32 %v8145, 7
        %v8147 = vsub.s32 %v2670, %v8146
        %v8148 = vrot.slane %v8060, %v8147
        %v8149 = vlaneseq
        %v8150 = vshrl.u32 %v8149, 7
        %v8151 = vsub.s32 %v2670, %v8150
        %v8152 = vrot.slane %v8063, %v8151
        %v8153 = vlaneseq
        %v8154 = vshrl.u32 %v8153, 7
        %v8155 = vsub.s32 %v2670, %v8154
        %v8156 = vrot.slane %v8066, %v8155
        %v8157 = vlaneseq
        %v8158 = vshrl.u32 %v8157, 7
        %v8159 = vsub.s32 %v2670, %v8158
        %v8160 = vrot.slane %v8069, %v8159
        %v8161 = vlaneseq
        %v8162 = vshrl.u32 %v8161, 7
        %v8163 = vsub.s32 %v2670, %v8162
        %v8164 = vrot.slane %v8072, %v8163
        %v8165 = vlaneseq
        %v8166 = vshrl.u32 %v8165, 7
        %v8167 = vsub.s32 %v2670, %v8166
        %v8168 = vrot.slane %v8075, %v8167
        %v8169 = vsel %vm2927, %v8144, %v8140
        %v8170 = vsel %vm2929, %v8148, %v8169
        %v8171 = vsel %vm2931, %v8152, %v8170
        %v8172 = vsel %vm2933, %v8156, %v8171
        %v8173 = vsel %vm2935, %v8160, %v8172
        %v8174 = vsel %vm2937, %v8164, %v8173
        %v8175 = vsel %vm2939, %v8168, %v8174
        %v8177 = vadd.f32 %v8128, %v8175
        %v8178 = vld [vmem:[%s3 + $0x170] sm:$0x1]
        %s8180 = vtos %v8178
        %v8181 = vstv %s8180
        %v8183 = vadd.f32 %v8177, %v8181
        %vm8184 = vcmp.ge.f32.partialorder %v8183, 0.0
        %v8185 = vmul.f32 %v8183, 0.01
        %v8186 = vsel %vm8184, %v8183, %v8185
        %v8187 = vsel %vm489, %v8186, -inf
        %8188 = vmax.xlane.f32.xlu0 %v8187
        %v8189 = vpop.xlane.xlu0 %8188
        %v8190 = vsub.f32 %v8186, %v8189
        %v8191 = vmul.f32 %v8190, 1.442695
        %v8192 = vpow.pop %v8191
        %v8193 = vsel %vm489, %v8192, 0.0
        %8194 = vadd.xlane.f32.xlu0 %v8193
        %v8195 = vpop.xlane.xlu0 %8194
        %v8196 = vadd.f32 %v8195, 1e-09
        %v8197 = vrcp.pop %v8196
        %v8198 = vmul.f32 %v8192, %v8197
        %v8199 = vlaneseq
        %v8200 = vshrl.u32 %v8199, 7
        %v8201 = vsub.s32 0, %v8200
        %v8202 = vrot.slane %v8198, %v8201
        %8204 = vbcast.lane.b32.xlu0 %v8202, 256
        %v8205 = vpop.permute.xlu0 %8204
        %v8206 = vlaneseq
        %v8207 = vshrl.u32 %v8206, 7
        %v8208 = vsub.s32 1, %v8207
        %v8209 = vrot.slane %v8198, %v8208
        %8211 = vbcast.lane.b32.xlu0 %v8209, 256
        %v8212 = vpop.permute.xlu0 %8211
        %v8213 = vlaneseq
        %v8214 = vshrl.u32 %v8213, 7
        %v8215 = vsub.s32 2, %v8214
        %v8216 = vrot.slane %v8198, %v8215
        %8218 = vbcast.lane.b32.xlu0 %v8216, 256
        %v8219 = vpop.permute.xlu0 %8218
        %v8220 = vlaneseq
        %v8221 = vshrl.u32 %v8220, 7
        %v8222 = vsub.s32 3, %v8221
        %v8223 = vrot.slane %v8198, %v8222
        %8225 = vbcast.lane.b32.xlu0 %v8223, 256
        %v8226 = vpop.permute.xlu0 %8225
        %v8227 = vlaneseq
        %v8228 = vshrl.u32 %v8227, 7
        %v8229 = vsub.s32 4, %v8228
        %v8230 = vrot.slane %v8198, %v8229
        %8232 = vbcast.lane.b32.xlu0 %v8230, 256
        %v8233 = vpop.permute.xlu0 %8232
        %v8234 = vlaneseq
        %v8235 = vshrl.u32 %v8234, 7
        %v8236 = vsub.s32 5, %v8235
        %v8237 = vrot.slane %v8198, %v8236
        %8239 = vbcast.lane.b32.xlu0 %v8237, 256
        %v8240 = vpop.permute.xlu0 %8239
        %v8241 = vlaneseq
        %v8242 = vshrl.u32 %v8241, 7
        %v8243 = vsub.s32 6, %v8242
        %v8244 = vrot.slane %v8198, %v8243
        %8246 = vbcast.lane.b32.xlu0 %v8244, 256
        %v8247 = vpop.permute.xlu0 %8246
        %v8248 = vlaneseq
        %v8249 = vshrl.u32 %v8248, 7
        %v8250 = vsub.s32 7, %v8249
        %v8251 = vrot.slane %v8198, %v8250
        %8253 = vbcast.lane.b32.xlu0 %v8251, 256
        %v8254 = vpop.permute.xlu0 %8253
        %v8255 = vmul.f32 %v8205, %v7965
        %v8256 = vmul.f32 %v8212, %v7970
        %v8257 = vmul.f32 %v8219, %v7975
        %v8258 = vmul.f32 %v8226, %v7980
        %v8259 = vmul.f32 %v8233, %v7985
        %v8260 = vmul.f32 %v8240, %v7990
        %v8261 = vmul.f32 %v8247, %v7995
        %v8262 = vmul.f32 %v8254, %v8000
        %v8263 = vsel %vm1263, %v8255, 0.0
        %v8264 = vrot.slane %v8263, 4
        %v8265 = vadd.f32 %v8263, %v8264
        %v8266 = vrot.slane %v8265, 2
        %v8267 = vadd.f32 %v8265, %v8266
        %v8268 = vrot.slane %v8267, 1
        %v8269 = vadd.f32 %v8267, %v8268
        %v8270 = vsel %vm1263, %v8256, 0.0
        %v8271 = vrot.slane %v8270, 4
        %v8272 = vadd.f32 %v8270, %v8271
        %v8273 = vrot.slane %v8272, 2
        %v8274 = vadd.f32 %v8272, %v8273
        %v8275 = vrot.slane %v8274, 1
        %v8276 = vadd.f32 %v8274, %v8275
        %v8277 = vsel %vm1263, %v8257, 0.0
        %v8278 = vrot.slane %v8277, 4
        %v8279 = vadd.f32 %v8277, %v8278
        %v8280 = vrot.slane %v8279, 2
        %v8281 = vadd.f32 %v8279, %v8280
        %v8282 = vrot.slane %v8281, 1
        %v8283 = vadd.f32 %v8281, %v8282
        %v8284 = vsel %vm1263, %v8258, 0.0
        %v8285 = vrot.slane %v8284, 4
        %v8286 = vadd.f32 %v8284, %v8285
        %v8287 = vrot.slane %v8286, 2
        %v8288 = vadd.f32 %v8286, %v8287
        %v8289 = vrot.slane %v8288, 1
        %v8290 = vadd.f32 %v8288, %v8289
        %v8291 = vsel %vm1263, %v8259, 0.0
        %v8292 = vrot.slane %v8291, 4
        %v8293 = vadd.f32 %v8291, %v8292
        %v8294 = vrot.slane %v8293, 2
        %v8295 = vadd.f32 %v8293, %v8294
        %v8296 = vrot.slane %v8295, 1
        %v8297 = vadd.f32 %v8295, %v8296
        %v8298 = vsel %vm1263, %v8260, 0.0
        %v8299 = vrot.slane %v8298, 4
        %v8300 = vadd.f32 %v8298, %v8299
        %v8301 = vrot.slane %v8300, 2
        %v8302 = vadd.f32 %v8300, %v8301
        %v8303 = vrot.slane %v8302, 1
        %v8304 = vadd.f32 %v8302, %v8303
        %v8305 = vsel %vm1263, %v8261, 0.0
        %v8306 = vrot.slane %v8305, 4
        %v8307 = vadd.f32 %v8305, %v8306
        %v8308 = vrot.slane %v8307, 2
        %v8309 = vadd.f32 %v8307, %v8308
        %v8310 = vrot.slane %v8309, 1
        %v8311 = vadd.f32 %v8309, %v8310
        %v8312 = vsel %vm1263, %v8262, 0.0
        %v8313 = vrot.slane %v8312, 4
        %v8314 = vadd.f32 %v8312, %v8313
        %v8315 = vrot.slane %v8314, 2
        %v8316 = vadd.f32 %v8314, %v8315
        %v8317 = vrot.slane %v8316, 1
        %v8318 = vadd.f32 %v8316, %v8317
        %vm8319 = vcmp.gt.f32.partialorder %v8269, 0.0
        %vm8320 = vcmp.gt.f32.partialorder %v8276, 0.0
        %vm8321 = vcmp.gt.f32.partialorder %v8283, 0.0
        %vm8322 = vcmp.gt.f32.partialorder %v8290, 0.0
        %vm8323 = vcmp.gt.f32.partialorder %v8297, 0.0
        %vm8324 = vcmp.gt.f32.partialorder %v8304, 0.0
        %vm8325 = vcmp.gt.f32.partialorder %v8311, 0.0
        %vm8326 = vcmp.gt.f32.partialorder %v8318, 0.0
        %v8327 = vmul.f32 %v8269, 1.442695
        %v8328 = vpow.pop %v8327
        %v8329 = vmul.f32 %v8276, 1.442695
        %v8330 = vpow.pop %v8329
        %v8331 = vmul.f32 %v8283, 1.442695
        %v8332 = vpow.pop %v8331
        %v8333 = vmul.f32 %v8290, 1.442695
        %v8334 = vpow.pop %v8333
        %v8335 = vmul.f32 %v8297, 1.442695
        %v8336 = vpow.pop %v8335
        %v8337 = vmul.f32 %v8304, 1.442695
        %v8338 = vpow.pop %v8337
        %v8339 = vmul.f32 %v8311, 1.442695
        %v8340 = vpow.pop %v8339
        %v8341 = vmul.f32 %v8318, 1.442695
        %v8342 = vpow.pop %v8341
        %v8343 = vsub.f32 %v8328, 1.0
        %v8344 = vsub.f32 %v8330, 1.0
        %v8345 = vsub.f32 %v8332, 1.0
        %v8346 = vsub.f32 %v8334, 1.0
        %v8347 = vsub.f32 %v8336, 1.0
        %v8348 = vsub.f32 %v8338, 1.0
        %v8349 = vsub.f32 %v8340, 1.0
        %v8350 = vsub.f32 %v8342, 1.0
        %v8351 = vsel %vm8319, %v8269, %v8343
        %v8352 = vsel %vm8320, %v8276, %v8344
        %v8353 = vsel %vm8321, %v8283, %v8345
        %v8354 = vsel %vm8322, %v8290, %v8346
        %v8355 = vsel %vm8323, %v8297, %v8347
        %v8356 = vsel %vm8324, %v8304, %v8348
        %v8357 = vsel %vm8325, %v8311, %v8349
        %v8358 = vsel %vm8326, %v8318, %v8350
        %v8359 = vld [vmem:[%s3 + $0x1a8] sm:$0xff]
        %v8360 = vld [vmem:[%s3 + $0x1b0] sm:$0xff]
        %v8361 = vld [vmem:[%s3 + $0x1b8] sm:$0xff]
        %v8362 = vld [vmem:[%s3 + $0x1c0] sm:$0xff]
        %v8363 = vld [vmem:[%s3 + $0x1c8] sm:$0xff]
        %v8364 = vld [vmem:[%s3 + $0x1d0] sm:$0xff]
        %v8365 = vld [vmem:[%s3 + $0x1d8] sm:$0xff]
        %v8366 = vld [vmem:[%s3 + $0x1e0] sm:$0xff]
        %v8367 = vld [vmem:[%s3 + $0x1e8] sm:$0x1]
        %v8376 = vsel %vm2927, %v8352, %v8351
        %v8377 = vsel %vm2929, %v8353, %v8376
        %v8378 = vsel %vm2931, %v8354, %v8377
        %v8379 = vsel %vm2933, %v8355, %v8378
        %v8380 = vsel %vm2935, %v8356, %v8379
        %v8381 = vsel %vm2937, %v8357, %v8380
        %v8382 = vsel %vm2939, %v8358, %v8381
        %v8392 = vsel %vm2927, %v7798, %v7791
        %v8393 = vsel %vm2929, %v7805, %v8392
        %v8394 = vsel %vm2931, %v7812, %v8393
        %v8395 = vsel %vm2933, %v7819, %v8394
        %v8396 = vsel %vm2935, %v7826, %v8395
        %v8397 = vsel %vm2937, %v7833, %v8396
        %v8398 = vsel %vm2939, %v7840, %v8397
        %v8400 = vsel %vm1263, %v8382, %v8398
        %v8401 = vlaneseq
        %v8402 = vshrl.u32 %v8401, 7
        %v8403 = vsub.s32 0, %v8402
        %v8404 = vrot.slane %v8367, %v8403
        %v8406 = vsel %vm5189, %v8400, 0
        %8408 = vmatprep.subr.mxu0 0.0
        %8409 = vmatpush1.msra.mxu0 %v8359
        %8410 = vmatprep.subr.mxu0 0.0
        %8411 = vmatpush1.msra.mxu0 %v8360
        %8412 = vmatprep.subr.mxu0 0.0
        %8413 = vmatpush1.msra.mxu0 %v8361
        %8414 = vmatprep.subr.mxu0 0.0
        %8415 = vmatpush1.msra.mxu0 %v8362
        %8416 = vmatprep.subr.mxu0 0.0
        %8417 = vmatpush1.msra.mxu0 %v8363
        %8418 = vmatprep.subr.mxu0 0.0
        %8419 = vmatpush1.msra.mxu0 %v8364
        %8420 = vmatprep.subr.mxu0 0.0
        %8421 = vmatpush1.msra.mxu0 %v8365
        %8422 = vmatprep.subr.mxu0 0.0
        %8423 = vmatpush1.msra.mxu0 %v8366
        %8424 = vmatprep.subr.mxu0 0.0
        %8425 = vmatpush1.msra.mxu0 0.0
        %8426 = vmatprep.subr.mxu0 0.0
        %8427 = vmatpush1.msra.mxu0 0.0
        %8428 = vmatprep.subr.mxu0 0.0
        %8429 = vmatpush1.msra.mxu0 0.0
        %8430 = vmatprep.subr.mxu0 0.0
        %8431 = vmatpush1.msra.mxu0 0.0
        %8432 = vmatprep.subr.mxu0 0.0
        %8433 = vmatpush1.msra.mxu0 0.0
        %8434 = vmatprep.subr.mxu0 0.0
        %8435 = vmatpush1.msra.mxu0 0.0
        %8436 = vmatprep.subr.mxu0 0.0
        %8437 = vmatpush1.msra.mxu0 0.0
        %8438 = vmatprep.subr.mxu0 0.0
        %8439 = vmatpush1.msra.mxu0 0.0
        %8440 = vmatprep.subr.mxu0 0.0
        %8441 = vmatpush1.msra.mxu0 0.0
        %8442 = vmatprep.subr.mxu0 0.0
        %8443 = vmatpush1.msra.mxu0 0.0
        %8444 = vmatprep.subr.mxu0 0.0
        %8445 = vmatpush1.msra.mxu0 0.0
        %8446 = vmatprep.subr.mxu0 0.0
        %8447 = vmatpush1.msra.mxu0 0.0
        %8448 = vmatprep.subr.mxu0 0.0
        %8449 = vmatpush1.msra.mxu0 0.0
        %8450 = vmatprep.subr.mxu0 0.0
        %8451 = vmatpush1.msra.mxu0 0.0
        %8452 = vmatprep.subr.mxu0 0.0
        %8453 = vmatpush1.msra.mxu0 0.0
        %8454 = vmatprep.subr.mxu0 0.0
        %8455 = vmatpush1.msra.mxu0 0.0
        %8456 = vmatprep.subr.mxu0 0.0
        %8457 = vmatpush1.msra.mxu0 0.0
        %8458 = vmatprep.subr.mxu0 0.0
        %8459 = vmatpush1.msra.mxu0 0.0
        %8460 = vmatprep.subr.mxu0 0.0
        %8461 = vmatpush1.msra.mxu0 0.0
        %8462 = vmatprep.subr.mxu0 0.0
        %8463 = vmatpush1.msra.mxu0 0.0
        %8464 = vmatprep.subr.mxu0 0.0
        %8465 = vmatpush1.msra.mxu0 0.0
        %8466 = vmatprep.subr.mxu0 0.0
        %8467 = vmatpush1.msra.mxu0 0.0
        %8468 = vmatprep.subr.mxu0 0.0
        %8469 = vmatpush1.msra.mxu0 0.0
        %8470 = vmatprep.subr.mxu0 0.0
        %8471 = vmatpush1.msra.mxu0 0.0
        %8472 = vmatprep.mubr.f32.mxu0 0.0
        %8473 = vmatmul.mubr.f32.gmra.mrb[0].mxu0 %v8406
        %v8474 = vpop.f32.mrb[0].mxu0
        %v8475 = vadd.f32 %v8404, %v8474
        %v8476 = vpop.f32.mrb[0].mxu0
        %8477 = vdwg.mxu0
        %v8478 = vxor.u32 %v8475, 2147483648
        %v8479 = vmul.f32 %v8478, 1.442695
        %v8480 = vpow.pop %v8479
        %v8481 = vadd.f32 %v8480, 1.0
        %v8482 = vrcp.pop %v8481
        %v8483 = vmul.f32 1.0, %v8482
        %8485 = vrot.lane.b32.xlu0 %v8475, 32
        %v8486 = vpop.permute.xlu0 %8485
        %v8488 = vmul.f32 %v8483, %v8486
        %8490 = vrot.lane.b32.xlu0 %v8488, 64
        %v8491 = vpop.permute.xlu0 %8490
        %v8493 = vadd.f32 %v8475, %v8491
        %v8494 = vtanh.pop %v8493
        %v8495 = vsub.f32 1.0, %v8483
        %8497 = vrot.lane.b32.xlu0 %v8494, 96
        %v8498 = vpop.permute.xlu0 %8497
        %v8500 = vmul.f32 %v8495, %v8498
        %v8501 = vmul.f32 %v8483, %v8398
        %v8502 = vadd.f32 %v8500, %v8501
        %v8503 = vmax.f32 %v8502, 0.0
        %v8504 = vmul.f32 %v8503, %v8091
        %8506 = vrot.lane.b32.xlu0 %v8504, 96
        %v8507 = vpop.permute.xlu0 %8506
        %v8509 = vsel %vm1263, %v8507, 0.0
        %8510 = vadd.xlane.f32.xlu0 %v8509
        %v8511 = vpop.xlane.xlu0 %8510
        %v8512 = vadd.f32 %v8511, %v8175
        %v8513 = vadd.f32 %v8512, %v8181
        %vm8514 = vcmp.ge.f32.partialorder %v8513, 0.0
        %v8515 = vmul.f32 %v8513, 0.01
        %v8516 = vsel %vm8514, %v8513, %v8515
        %v8517 = vsel %vm489, %v8516, -inf
        %8518 = vmax.xlane.f32.xlu0 %v8517
        %v8519 = vpop.xlane.xlu0 %8518
        %v8520 = vsub.f32 %v8516, %v8519
        %v8521 = vmul.f32 %v8520, 1.442695
        %v8522 = vpow.pop %v8521
        %v8523 = vsel %vm489, %v8522, 0.0
        %8524 = vadd.xlane.f32.xlu0 %v8523
        %v8525 = vpop.xlane.xlu0 %8524
        %v8526 = vadd.f32 %v8525, 1e-09
        %v8527 = vrcp.pop %v8526
        %v8528 = vmul.f32 %v8522, %v8527
        %v8529 = vlaneseq
        %v8530 = vshrl.u32 %v8529, 7
        %v8531 = vsub.s32 0, %v8530
        %v8532 = vrot.slane %v8528, %v8531
        %8534 = vbcast.lane.b32.xlu0 %v8532, 256
        %v8535 = vpop.permute.xlu0 %8534
        %v8536 = vlaneseq
        %v8537 = vshrl.u32 %v8536, 7
        %v8538 = vsub.s32 1, %v8537
        %v8539 = vrot.slane %v8528, %v8538
        %8541 = vbcast.lane.b32.xlu0 %v8539, 256
        %v8542 = vpop.permute.xlu0 %8541
        %v8543 = vlaneseq
        %v8544 = vshrl.u32 %v8543, 7
        %v8545 = vsub.s32 2, %v8544
        %v8546 = vrot.slane %v8528, %v8545
        %8548 = vbcast.lane.b32.xlu0 %v8546, 256
        %v8549 = vpop.permute.xlu0 %8548
        %v8550 = vlaneseq
        %v8551 = vshrl.u32 %v8550, 7
        %v8552 = vsub.s32 3, %v8551
        %v8553 = vrot.slane %v8528, %v8552
        %8555 = vbcast.lane.b32.xlu0 %v8553, 256
        %v8556 = vpop.permute.xlu0 %8555
        %v8557 = vlaneseq
        %v8558 = vshrl.u32 %v8557, 7
        %v8559 = vsub.s32 4, %v8558
        %v8560 = vrot.slane %v8528, %v8559
        %8562 = vbcast.lane.b32.xlu0 %v8560, 256
        %v8563 = vpop.permute.xlu0 %8562
        %v8564 = vlaneseq
        %v8565 = vshrl.u32 %v8564, 7
        %v8566 = vsub.s32 5, %v8565
        %v8567 = vrot.slane %v8528, %v8566
        %8569 = vbcast.lane.b32.xlu0 %v8567, 256
        %v8570 = vpop.permute.xlu0 %8569
        %v8571 = vlaneseq
        %v8572 = vshrl.u32 %v8571, 7
        %v8573 = vsub.s32 6, %v8572
        %v8574 = vrot.slane %v8528, %v8573
        %8576 = vbcast.lane.b32.xlu0 %v8574, 256
        %v8577 = vpop.permute.xlu0 %8576
        %v8578 = vlaneseq
        %v8579 = vshrl.u32 %v8578, 7
        %v8580 = vsub.s32 7, %v8579
        %v8581 = vrot.slane %v8528, %v8580
        %8583 = vbcast.lane.b32.xlu0 %v8581, 256
        %v8584 = vpop.permute.xlu0 %8583
        %v8585 = vmul.f32 %v8535, %v7965
        %v8586 = vmul.f32 %v8542, %v7970
        %v8587 = vmul.f32 %v8549, %v7975
        %v8588 = vmul.f32 %v8556, %v7980
        %v8589 = vmul.f32 %v8563, %v7985
        %v8590 = vmul.f32 %v8570, %v7990
        %v8591 = vmul.f32 %v8577, %v7995
        %v8592 = vmul.f32 %v8584, %v8000
        %v8593 = vsel %vm1263, %v8585, 0.0
        %v8594 = vrot.slane %v8593, 4
        %v8595 = vadd.f32 %v8593, %v8594
        %v8596 = vrot.slane %v8595, 2
        %v8597 = vadd.f32 %v8595, %v8596
        %v8598 = vrot.slane %v8597, 1
        %v8599 = vadd.f32 %v8597, %v8598
        %v8600 = vsel %vm1263, %v8586, 0.0
        %v8601 = vrot.slane %v8600, 4
        %v8602 = vadd.f32 %v8600, %v8601
        %v8603 = vrot.slane %v8602, 2
        %v8604 = vadd.f32 %v8602, %v8603
        %v8605 = vrot.slane %v8604, 1
        %v8606 = vadd.f32 %v8604, %v8605
        %v8607 = vsel %vm1263, %v8587, 0.0
        %v8608 = vrot.slane %v8607, 4
        %v8609 = vadd.f32 %v8607, %v8608
        %v8610 = vrot.slane %v8609, 2
        %v8611 = vadd.f32 %v8609, %v8610
        %v8612 = vrot.slane %v8611, 1
        %v8613 = vadd.f32 %v8611, %v8612
        %v8614 = vsel %vm1263, %v8588, 0.0
        %v8615 = vrot.slane %v8614, 4
        %v8616 = vadd.f32 %v8614, %v8615
        %v8617 = vrot.slane %v8616, 2
        %v8618 = vadd.f32 %v8616, %v8617
        %v8619 = vrot.slane %v8618, 1
        %v8620 = vadd.f32 %v8618, %v8619
        %v8621 = vsel %vm1263, %v8589, 0.0
        %v8622 = vrot.slane %v8621, 4
        %v8623 = vadd.f32 %v8621, %v8622
        %v8624 = vrot.slane %v8623, 2
        %v8625 = vadd.f32 %v8623, %v8624
        %v8626 = vrot.slane %v8625, 1
        %v8627 = vadd.f32 %v8625, %v8626
        %v8628 = vsel %vm1263, %v8590, 0.0
        %v8629 = vrot.slane %v8628, 4
        %v8630 = vadd.f32 %v8628, %v8629
        %v8631 = vrot.slane %v8630, 2
        %v8632 = vadd.f32 %v8630, %v8631
        %v8633 = vrot.slane %v8632, 1
        %v8634 = vadd.f32 %v8632, %v8633
        %v8635 = vsel %vm1263, %v8591, 0.0
        %v8636 = vrot.slane %v8635, 4
        %v8637 = vadd.f32 %v8635, %v8636
        %v8638 = vrot.slane %v8637, 2
        %v8639 = vadd.f32 %v8637, %v8638
        %v8640 = vrot.slane %v8639, 1
        %v8641 = vadd.f32 %v8639, %v8640
        %v8642 = vsel %vm1263, %v8592, 0.0
        %v8643 = vrot.slane %v8642, 4
        %v8644 = vadd.f32 %v8642, %v8643
        %v8645 = vrot.slane %v8644, 2
        %v8646 = vadd.f32 %v8644, %v8645
        %v8647 = vrot.slane %v8646, 1
        %v8648 = vadd.f32 %v8646, %v8647
        %vm8649 = vcmp.gt.f32.partialorder %v8599, 0.0
        %vm8650 = vcmp.gt.f32.partialorder %v8606, 0.0
        %vm8651 = vcmp.gt.f32.partialorder %v8613, 0.0
        %vm8652 = vcmp.gt.f32.partialorder %v8620, 0.0
        %vm8653 = vcmp.gt.f32.partialorder %v8627, 0.0
        %vm8654 = vcmp.gt.f32.partialorder %v8634, 0.0
        %vm8655 = vcmp.gt.f32.partialorder %v8641, 0.0
        %vm8656 = vcmp.gt.f32.partialorder %v8648, 0.0
        %v8657 = vmul.f32 %v8599, 1.442695
        %v8658 = vpow.pop %v8657
        %v8659 = vmul.f32 %v8606, 1.442695
        %v8660 = vpow.pop %v8659
        %v8661 = vmul.f32 %v8613, 1.442695
        %v8662 = vpow.pop %v8661
        %v8663 = vmul.f32 %v8620, 1.442695
        %v8664 = vpow.pop %v8663
        %v8665 = vmul.f32 %v8627, 1.442695
        %v8666 = vpow.pop %v8665
        %v8667 = vmul.f32 %v8634, 1.442695
        %v8668 = vpow.pop %v8667
        %v8669 = vmul.f32 %v8641, 1.442695
        %v8670 = vpow.pop %v8669
        %v8671 = vmul.f32 %v8648, 1.442695
        %v8672 = vpow.pop %v8671
        %v8673 = vsub.f32 %v8658, 1.0
        %v8674 = vsub.f32 %v8660, 1.0
        %v8675 = vsub.f32 %v8662, 1.0
        %v8676 = vsub.f32 %v8664, 1.0
        %v8677 = vsub.f32 %v8666, 1.0
        %v8678 = vsub.f32 %v8668, 1.0
        %v8679 = vsub.f32 %v8670, 1.0
        %v8680 = vsub.f32 %v8672, 1.0
        %v8681 = vsel %vm8649, %v8599, %v8673
        %v8682 = vsel %vm8650, %v8606, %v8674
        %v8683 = vsel %vm8651, %v8613, %v8675
        %v8684 = vsel %vm8652, %v8620, %v8676
        %v8685 = vsel %vm8653, %v8627, %v8677
        %v8686 = vsel %vm8654, %v8634, %v8678
        %v8687 = vsel %vm8655, %v8641, %v8679
        %v8688 = vsel %vm8656, %v8648, %v8680
        %v8697 = vsel %vm2927, %v8682, %v8681
        %v8698 = vsel %vm2929, %v8683, %v8697
        %v8699 = vsel %vm2931, %v8684, %v8698
        %v8700 = vsel %vm2933, %v8685, %v8699
        %v8701 = vsel %vm2935, %v8686, %v8700
        %v8702 = vsel %vm2937, %v8687, %v8701
        %v8703 = vsel %vm2939, %v8688, %v8702
        %v8705 = vsel %vm1263, %v8703, %v8502
        %v8707 = vsel %vm5189, %v8705, 0
        %8709 = vmatprep.subr.mxu0 0.0
        %8710 = vmatpush1.msra.mxu0 %v8359
        %8711 = vmatprep.subr.mxu0 0.0
        %8712 = vmatpush1.msra.mxu0 %v8360
        %8713 = vmatprep.subr.mxu0 0.0
        %8714 = vmatpush1.msra.mxu0 %v8361
        %8715 = vmatprep.subr.mxu0 0.0
        %8716 = vmatpush1.msra.mxu0 %v8362
        %8717 = vmatprep.subr.mxu0 0.0
        %8718 = vmatpush1.msra.mxu0 %v8363
        %8719 = vmatprep.subr.mxu0 0.0
        %8720 = vmatpush1.msra.mxu0 %v8364
        %8721 = vmatprep.subr.mxu0 0.0
        %8722 = vmatpush1.msra.mxu0 %v8365
        %8723 = vmatprep.subr.mxu0 0.0
        %8724 = vmatpush1.msra.mxu0 %v8366
        %8725 = vmatprep.subr.mxu0 0.0
        %8726 = vmatpush1.msra.mxu0 0.0
        %8727 = vmatprep.subr.mxu0 0.0
        %8728 = vmatpush1.msra.mxu0 0.0
        %8729 = vmatprep.subr.mxu0 0.0
        %8730 = vmatpush1.msra.mxu0 0.0
        %8731 = vmatprep.subr.mxu0 0.0
        %8732 = vmatpush1.msra.mxu0 0.0
        %8733 = vmatprep.subr.mxu0 0.0
        %8734 = vmatpush1.msra.mxu0 0.0
        %8735 = vmatprep.subr.mxu0 0.0
        %8736 = vmatpush1.msra.mxu0 0.0
        %8737 = vmatprep.subr.mxu0 0.0
        %8738 = vmatpush1.msra.mxu0 0.0
        %8739 = vmatprep.subr.mxu0 0.0
        %8740 = vmatpush1.msra.mxu0 0.0
        %8741 = vmatprep.subr.mxu0 0.0
        %8742 = vmatpush1.msra.mxu0 0.0
        %8743 = vmatprep.subr.mxu0 0.0
        %8744 = vmatpush1.msra.mxu0 0.0
        %8745 = vmatprep.subr.mxu0 0.0
        %8746 = vmatpush1.msra.mxu0 0.0
        %8747 = vmatprep.subr.mxu0 0.0
        %8748 = vmatpush1.msra.mxu0 0.0
        %8749 = vmatprep.subr.mxu0 0.0
        %8750 = vmatpush1.msra.mxu0 0.0
        %8751 = vmatprep.subr.mxu0 0.0
        %8752 = vmatpush1.msra.mxu0 0.0
        %8753 = vmatprep.subr.mxu0 0.0
        %8754 = vmatpush1.msra.mxu0 0.0
        %8755 = vmatprep.subr.mxu0 0.0
        %8756 = vmatpush1.msra.mxu0 0.0
        %8757 = vmatprep.subr.mxu0 0.0
        %8758 = vmatpush1.msra.mxu0 0.0
        %8759 = vmatprep.subr.mxu0 0.0
        %8760 = vmatpush1.msra.mxu0 0.0
        %8761 = vmatprep.subr.mxu0 0.0
        %8762 = vmatpush1.msra.mxu0 0.0
        %8763 = vmatprep.subr.mxu0 0.0
        %8764 = vmatpush1.msra.mxu0 0.0
        %8765 = vmatprep.subr.mxu0 0.0
        %8766 = vmatpush1.msra.mxu0 0.0
        %8767 = vmatprep.subr.mxu0 0.0
        %8768 = vmatpush1.msra.mxu0 0.0
        %8769 = vmatprep.subr.mxu0 0.0
        %8770 = vmatpush1.msra.mxu0 0.0
        %8771 = vmatprep.subr.mxu0 0.0
        %8772 = vmatpush1.msra.mxu0 0.0
        %8773 = vmatprep.mubr.f32.mxu0 0.0
        %8774 = vmatmul.mubr.f32.gmra.mrb[0].mxu0 %v8707
        %v8775 = vpop.f32.mrb[0].mxu0
        %v8776 = vadd.f32 %v8404, %v8775
        %v8777 = vpop.f32.mrb[0].mxu0
        %8778 = vdwg.mxu0
        %v8779 = vxor.u32 %v8776, 2147483648
        %v8780 = vmul.f32 %v8779, 1.442695
        %v8781 = vpow.pop %v8780
        %v8782 = vadd.f32 %v8781, 1.0
        %v8783 = vrcp.pop %v8782
        %v8784 = vmul.f32 1.0, %v8783
        %8786 = vrot.lane.b32.xlu0 %v8776, 32
        %v8787 = vpop.permute.xlu0 %8786
        %v8789 = vmul.f32 %v8784, %v8787
        %8791 = vrot.lane.b32.xlu0 %v8789, 64
        %v8792 = vpop.permute.xlu0 %8791
        %v8794 = vadd.f32 %v8776, %v8792
        %v8795 = vtanh.pop %v8794
        %v8796 = vsub.f32 1.0, %v8784
        %8798 = vrot.lane.b32.xlu0 %v8795, 96
        %v8799 = vpop.permute.xlu0 %8798
        %v8801 = vmul.f32 %v8796, %v8799
        %v8802 = vmul.f32 %v8784, %v8502
        %v8803 = vadd.f32 %v8801, %v8802
        %8805 = vrot.lane.b32.xlu0 %v8803, 96
        %v8806 = vpop.permute.xlu0 %8805
        %8808 = vst.msk [vmem:[%s223] sm:$0xff] %vm1263, %v8806
        %s8809 = sand.u32 %s125, 1
        %s8810 = scalar_lea.sflag [#allocation3], %s8809
        %s8811 = sand.u32 %s125, 1
        %s8812 = smul.addr %s8811, 8
        %s8813 = scalar_lea.vmem [#allocation2], %s8812
        // Predicated region
        $region37: #{single_head_fragment_layer.1} parent=35 // pred_check
          %p8814 = pneg %p135
        $region38: #{single_head_fragment_layer.1} parent=35 // pred_check_branch
          %8816 = sbr.rel (%p8814) target = $region40
        $region39: #{single_head_fragment_layer.1} parent=35 // pred_region
          %s8818 = ssub.s32 128, 128
          %8819 = vsyncadd %s8810, %s8818
          %s8820 = smul.addr %s18, 128
          %s8821 = scalar_lea.hbm %s4, %s8820
          %s8823 = sshll.u32 %s8813, 4
          %s8824 = int_to_ptr.vmem [resolvable:$true] %s8823
          %8826 = dma.vmem_to_hbm [thread:$0]  %s8824, 128, %s8821, %s8810
        $region40: #{single_head_fragment_layer.1} parent=35 // pred_fallthru
          _
      $region36: #{single_head_fragment_layer.1} parent=5 // pred_fallthru
        _
      %p8827 = scmp.le.s32.totalorder 2, %s13
      // Predicated region
      $region41: #{single_head_fragment_layer.1} parent=5 // pred_check
        %p8828 = pneg %p8827
      $region42: #{single_head_fragment_layer.1} parent=5 // pred_check_branch
        %8830 = sbr.rel (%p8828) target = $region44
      $region43: #{single_head_fragment_layer.1} parent=5 // pred_region
        %s8831 = ssub.s32 %s13, 2
        // Predicated region
        $region45: #{single_head_fragment_layer.1} parent=43 // pred_check
          %p8832 = pneg %p141
        $region46: #{single_head_fragment_layer.1} parent=43 // pred_check_branch
          %8834 = sbr.rel (%p8832) target = $region48
        $region47: #{single_head_fragment_layer.1} parent=43 // pred_region
          %s8835 = sand.u32 %s126, 1
          %s8836 = scalar_lea.sflag [#allocation3], %s8835
          %s8837 = sand.u32 %s126, 1
          %s8838 = smul.addr %s8837, 8
          %s8839 = scalar_lea.vmem [#allocation2], %s8838
          %8840 = dma.done %s8836, 128
        $region48: #{single_head_fragment_layer.1} parent=43 // pred_fallthru
          _
      $region44: #{single_head_fragment_layer.1} parent=5 // pred_fallthru
        _
    $region6: #{single_head_fragment_layer.1} parent=1 // loop_footer
      %s17 = sadd.s32 1, %s13
    $region7: #{single_head_fragment_layer.1} parent=1 // loop_footer_branch
      %12 = sbr.rel target = $region3
    $region8: #{single_head_fragment_layer.1} parent=1 // loop_exit
      _
    %8841 = vsyncpa [#allocation3], 1
    %s8842 = scalar_lea.sflag [#allocation3], 1
    %8843 = vsyncpa %s8842, 1

</llo_original>
